<compile_context>
chip_gen: v7x
topology: tpu7x:2x2x1
jax: 0.10.0
libtpu: 0.0.40
codegen_flags: <defaults>
</compile_context>

<pallas_src>
import functools

import numpy as np
import jax
import jax.numpy as jnp
from jax.experimental import pallas as pl
from jax.experimental.pallas import tpu as pltpu


# ----------------------------------------------------------------------------- helpers
def compute_maconv_splits(in_channels, out_channels, split):
    """Replicates MAConv_origin.__init__ split arithmetic (including its use of
    in_channels for the last out_split entry)."""
    fracs = [1.0 / split] * split
    in_split, in_split_rest, out_split = [], [], []
    for i in range(split):
        isp = round(in_channels * fracs[i]) if i < split - 1 else in_channels - sum(in_split)
        in_split.append(int(isp))
        in_split_rest.append(in_channels - int(isp))
        osp = round(out_channels * fracs[i]) if i < split - 1 else in_channels - sum(out_split)
        out_split.append(int(osp))
    return in_split, in_split_rest, out_split


def _vmem_limit(pipeline_bytes, headroom=4 << 20, lo=8 << 20, hi=64 << 20):
    # double-buffered tiles + resident params + headroom, clamped so it is safe
    # on every generation (v7x physical VMEM is only 64 MiB).
    return int(min(hi, max(lo, pipeline_bytes + headroom)))


# ----------------------------------------------------------------------------- kernel 1
def _make_affine_kernel(num_split, in_split, mxu_dtype):
    starts = np.cumsum([0] + list(in_split)).tolist()

    def kernel(*refs):
        x_ref = refs[0]
        o_ref = refs[-1]
        p_refs = refs[1:-1]                      # 4 params per branch
        x = x_ref[...].astype(jnp.float32)       # (TILE_N, C)
        for i in range(num_split):
            w1_ref, b1_ref, w2_ref, b2_ref = p_refs[4 * i:4 * i + 4]
            s, e = starts[i], starts[i + 1]
            xi = x[:, s:e]
            rest_parts = [x[:, starts[j]:starts[j + 1]]
                          for j in range(num_split) if j != i]
            rest = rest_parts[0] if len(rest_parts) == 1 else jnp.concatenate(
                rest_parts, axis=-1)
            # fc: 1x1 conv -> ReLU -> 1x1 conv  (bf16 on the MXU, f32 accumulate)
            hdn = jnp.dot(rest.astype(mxu_dtype), w1_ref[...].astype(mxu_dtype),
                          preferred_element_type=jnp.float32)
            hdn = jnp.maximum(hdn + b1_ref[...].astype(jnp.float32), 0.0)
            st = jnp.dot(hdn.astype(mxu_dtype), w2_ref[...].astype(mxu_dtype),
                         preferred_element_type=jnp.float32)
            st = st + b2_ref[...].astype(jnp.float32)
            ci = in_split[i]
            scale = st[:, :ci]
            trans = st[:, ci:]
            gate = 1.0 / (1.0 + jnp.exp(-scale))            # sigmoid (EUP exp)
            o_ref[:, s:e] = (xi * gate + trans).astype(o_ref.dtype)

    return kernel


# ----------------------------------------------------------------------------- kernel 2
def _make_conv_kernel(num_split, in_split, out_split, k, w_pad, r_out, mxu_dtype):
    in_starts = np.cumsum([0] + list(in_split)).tolist()
    out_starts = np.cumsum([0] + list(out_split)).tolist()

    def kernel(*refs):
        y_ref = refs[0]                          # (R_in, C) flattened padded image
        o_ref = refs[-1]                         # (R_out, sum(out_split))
        p_refs = refs[1:-1]                      # 2 params per branch
        for i in range(num_split):
            wk_ref = p_refs[2 * i]               # (k*k, C_i, Cout_i)
            bk_ref = p_refs[2 * i + 1]           # (1, Cout_i)
            cs, ce = in_starts[i], in_starts[i + 1]
            acc = jnp.zeros((r_out, out_split[i]), jnp.float32)
            for dy in range(k):
                for dx in range(k):
                    off = dy * w_pad + dx        # shift in flattened (row-major) space
                    patch = y_ref[off:off + r_out, cs:ce].astype(mxu_dtype)
                    wtap = wk_ref[dy * k + dx].astype(mxu_dtype)
                    acc = acc + jnp.dot(patch, wtap,
                                        preferred_element_type=jnp.float32)
            acc = acc + bk_ref[...].astype(jnp.float32)
            o_ref[:, out_starts[i]:out_starts[i + 1]] = acc.astype(o_ref.dtype)

    return kernel


# ----------------------------------------------------------------------------- forward
def maconv_forward(x, params, *, kernel_size, stride, padding,
                   split=2, reduction=2, tile_n=512, mxu_dtype=jnp.bfloat16):
    """MAConv_origin forward. x: (B, C, H, W) f32 (NCHW). Returns (B, Cout, H', W')."""
    assert stride == 1, "Pallas conv path implements stride=1 (the MAConv/MANet config)."
    # TODO(synk): general stride via strided pl.ds row gather in the conv kernel.
    b, c, h, w = x.shape
    k, p = int(kernel_size), int(padding)
    in_split, in_split_rest, _ = compute_maconv_splits(c, c, split)
    assert all(r // reduction >= 1 for r in in_split_rest)
    out_split = [int(params[f"conv{i}_w"].shape[-1]) for i in range(split)]
    c_out_total = sum(out_split)

    # ---------------- Kernel 1: fused mutual-affine pass, token-tiled ----------------
    x_nhwc = jnp.transpose(x, (0, 2, 3, 1))                  # (B,H,W,C) channels-last
    n_tok = b * h * w
    x2d = x_nhwc.reshape(n_tok, c)
    n_tiles = int(pl.cdiv(n_tok, tile_n))
    n_pad = n_tiles * tile_n
    if n_pad != n_tok:
        x2d = jnp.pad(x2d, ((0, n_pad - n_tok), (0, 0)))

    affine_params, affine_specs = [], []
    for i in range(split):
        w1 = params[f"fc{i}_w1"]
        b1 = params[f"fc{i}_b1"].reshape(1, -1)
        w2 = params[f"fc{i}_w2"]
        b2 = params[f"fc{i}_b2"].reshape(1, -1)
        affine_params += [w1, b1, w2, b2]
        affine_specs += [pl.BlockSpec(a.shape, lambda i_: (0, 0))  # resident in VMEM
                         for a in (w1, b1, w2, b2)]

    param_bytes1 = sum(int(np.prod(a.shape)) * 4 for a in affine_params)
    vmem1 = _vmem_limit(2 * (2 * tile_n * c * 4) + param_bytes1)

    y2d = pl.pallas_call(
        _make_affine_kernel(split, in_split, mxu_dtype),
        out_shape=jax.ShapeDtypeStruct((n_pad, c), x.dtype),
        grid=(n_tiles,),
        in_specs=[pl.BlockSpec((tile_n, c), lambda i_: (i_, 0))] + affine_specs,
        out_specs=pl.BlockSpec((tile_n, c), lambda i_: (i_, 0)),
        compiler_params=pltpu.CompilerParams(
            dimension_semantics=("parallel",), vmem_limit_bytes=vmem1),
    )(x2d, *affine_params)

    y_nhwc = y2d[:n_tok].reshape(b, h, w, c)

    # ---------------- Kernel 2: both branch convolutions, fused ----------------
    h_out = h + 2 * p - k + 1
    w_out = w + 2 * p - k + 1
    assert h_out > 0 and w_out > 0
    h_padd, w_pad = h + 2 * p, w + 2 * p
    r_out = h_out * w_pad                                    # output laid out on padded width
    r_in = h_padd * w_pad + (k - 1)

    yp = jnp.pad(y_nhwc, ((0, 0), (p, p), (p, p), (0, 0)))   # zero pad AFTER the affine
    yp_flat = yp.reshape(b, h_padd * w_pad, c)
    if k > 1:
        yp_flat = jnp.pad(yp_flat, ((0, 0), (0, k - 1), (0, 0)))

    conv_params, conv_specs = [], []
    for i in range(split):
        wk = params[f"conv{i}_w"].reshape(k * k, in_split[i], out_split[i])
        bk = params[f"conv{i}_b"].reshape(1, -1)
        conv_params += [wk, bk]
        conv_specs += [pl.BlockSpec(wk.shape, lambda b_: (0, 0, 0)),
                       pl.BlockSpec(bk.shape, lambda b_: (0, 0))]

    param_bytes2 = sum(int(np.prod(a.shape)) * 4 for a in conv_params)
    vmem2 = _vmem_limit(2 * (r_in * c + r_out * c_out_total) * 4 + param_bytes2)

    out_flat = pl.pallas_call(
        _make_conv_kernel(split, in_split, out_split, k, w_pad, r_out, mxu_dtype),
        out_shape=jax.ShapeDtypeStruct((b, r_out, c_out_total), x.dtype),
        grid=(b,),
        in_specs=[pl.BlockSpec((None, r_in, c), lambda b_: (b_, 0, 0))] + conv_specs,
        out_specs=pl.BlockSpec((None, r_out, c_out_total), lambda b_: (b_, 0, 0)),
        compiler_params=pltpu.CompilerParams(
            dimension_semantics=("parallel",), vmem_limit_bytes=vmem2),
    )(yp_flat, *conv_params)

    out = out_flat.reshape(b, h_out, w_pad, c_out_total)[:, :, :w_out, :]
    return jnp.transpose(out, (0, 3, 1, 2))                  # back to NCHW


# ----------------------------------------------------------------------------- reference
def reference_forward(x, params, *, kernel_size, stride, padding, split=2):
    """Pure-JAX (f32) mirror of MAConv_origin.forward."""
    b, c, h, w = x.shape
    in_split, _, _ = compute_maconv_splits(c, c, split)
    starts = np.cumsum([0] + in_split).tolist()
    x_nhwc = jnp.transpose(x, (0, 2, 3, 1))
    parts = [x_nhwc[..., starts[i]:starts[i + 1]] for i in range(split)]
    outs = []
    for i in range(split):
        rest = jnp.concatenate([parts[j] for j in range(split) if j != i], axis=-1)
        hdn = jax.nn.relu(rest @ params[f"fc{i}_w1"] + params[f"fc{i}_b1"])
        st = hdn @ params[f"fc{i}_w2"] + params[f"fc{i}_b2"]
        ci = in_split[i]
        y = parts[i] * jax.nn.sigmoid(st[..., :ci]) + st[..., ci:]
        o = jax.lax.conv_general_dilated(
            y, params[f"conv{i}_w"], window_strides=(stride, stride),
            padding=[(padding, padding), (padding, padding)],
            dimension_numbers=("NHWC", "HWIO", "NHWC"))
        outs.append(o + params[f"conv{i}_b"])
    return jnp.transpose(jnp.concatenate(outs, axis=-1), (0, 3, 1, 2))


# ----------------------------------------------------------------------------- test
if __name__ == "__main__":
    # Small but TPU-sane shapes: split=2 / reduction=2 imply every matmul dim is
    # >= 8 when C = 32 (channels=4 would give degenerate 1-wide hidden layers).
    B, C, H, W = 2, 32, 16, 16
    KERNEL, STRIDE, PAD, BIAS = 3, 1, 1, True
    SPLIT, REDUCTION = 2, 2

    in_split, in_split_rest, out_split = compute_maconv_splits(C, C, SPLIT)

    key = jax.random.PRNGKey(0)
    key, kx = jax.random.split(key)
    x = jax.random.normal(kx, (B, C, H, W), dtype=jnp.float32)

    params = {}
    for i in range(SPLIT):
        hid = in_split_rest[i] // REDUCTION
        key, k1, k2, k3, k4, k5, k6 = jax.random.split(key, 7)
        params[f"fc{i}_w1"] = jax.random.normal(k1, (in_split_rest[i], hid), jnp.float32) * 0.2
        params[f"fc{i}_b1"] = jax.random.normal(k2, (hid,), jnp.float32) * 0.1
        params[f"fc{i}_w2"] = jax.random.normal(k3, (hid, 2 * in_split[i]), jnp.float32) * 0.2
        params[f"fc{i}_b2"] = jax.random.normal(k4, (2 * in_split[i],), jnp.float32) * 0.1
        params[f"conv{i}_w"] = jax.random.normal(
            k5, (KERNEL, KERNEL, in_split[i], out_split[i]), jnp.float32) * 0.1
        params[f"conv{i}_b"] = (jax.random.normal(k6, (out_split[i],), jnp.float32) * 0.1
                                if BIAS else jnp.zeros((out_split[i],), jnp.float32))

    ref = jax.block_until_ready(reference_forward(
        x, params, kernel_size=KERNEL, stride=STRIDE, padding=PAD, split=SPLIT))

    # 1) f32 MXU path, small tile (exercises the token grid + ragged padding), tight check.
    fwd_f32 = jax.jit(functools.partial(
        maconv_forward, kernel_size=KERNEL, stride=STRIDE, padding=PAD,
        split=SPLIT, reduction=REDUCTION, tile_n=96, mxu_dtype=jnp.float32))
    out_f32 = jax.block_until_ready(fwd_f32(x, params))
    assert out_f32.shape == ref.shape, (out_f32.shape, ref.shape)
    assert jnp.allclose(out_f32, ref, atol=1e-3, rtol=1e-3), \
        float(jnp.max(jnp.abs(out_f32 - ref)))

    # 2) bf16 MXU path (v6e/v7x native rate), default 512-row tiles, looser check.
    fwd_bf16 = jax.jit(functools.partial(
        maconv_forward, kernel_size=KERNEL, stride=STRIDE, padding=PAD,
        split=SPLIT, reduction=REDUCTION, tile_n=512, mxu_dtype=jnp.bfloat16))
    out_bf16 = jax.block_until_ready(fwd_bf16(x, params))
    assert out_bf16.shape == ref.shape, (out_bf16.shape, ref.shape)
    assert jnp.allclose(out_bf16, ref, atol=1e-1, rtol=1e-1), \
        float(jnp.max(jnp.abs(out_bf16 - ref)))

    print("KERNEL_OK")
</pallas_src>

<mosaic_0001>
module attributes {stable_mosaic.version = 11 : i64} {
  func.func @kernel(%arg0: i32, %arg1: memref<96x32xf32, #tpu.memory_space<vmem>>, %arg2: memref<16x8xf32, #tpu.memory_space<vmem>>, %arg3: memref<1x8xf32, #tpu.memory_space<vmem>>, %arg4: memref<8x32xf32, #tpu.memory_space<vmem>>, %arg5: memref<1x32xf32, #tpu.memory_space<vmem>>, %arg6: memref<16x8xf32, #tpu.memory_space<vmem>>, %arg7: memref<1x8xf32, #tpu.memory_space<vmem>>, %arg8: memref<8x32xf32, #tpu.memory_space<vmem>>, %arg9: memref<1x32xf32, #tpu.memory_space<vmem>>, %arg10: memref<96x32xf32, #tpu.memory_space<vmem>>) attributes {dimension_semantics = [#tpu.dimension_semantics<parallel>], iteration_bounds = array<i64: 6>, scalar_prefetch = 0 : i64, scratch_operands = 0 : i64, tpu.core_type = #tpu.core_type<tc>, window_params = [{transform_indices = @transform_0, window_bounds = array<i64: 96, 32>}, {pipeline_mode = #tpu.pipeline_mode<synchronous>, transform_indices = @transform_1, window_bounds = array<i64: 16, 8>}, {pipeline_mode = #tpu.pipeline_mode<synchronous>, transform_indices = @transform_2, window_bounds = array<i64: 1, 8>}, {pipeline_mode = #tpu.pipeline_mode<synchronous>, transform_indices = @transform_3, window_bounds = array<i64: 8, 32>}, {pipeline_mode = #tpu.pipeline_mode<synchronous>, transform_indices = @transform_4, window_bounds = array<i64: 1, 32>}, {pipeline_mode = #tpu.pipeline_mode<synchronous>, transform_indices = @transform_5, window_bounds = array<i64: 16, 8>}, {pipeline_mode = #tpu.pipeline_mode<synchronous>, transform_indices = @transform_6, window_bounds = array<i64: 1, 8>}, {pipeline_mode = #tpu.pipeline_mode<synchronous>, transform_indices = @transform_7, window_bounds = array<i64: 8, 32>}, {pipeline_mode = #tpu.pipeline_mode<synchronous>, transform_indices = @transform_8, window_bounds = array<i64: 1, 32>}, {transform_indices = @transform_9, window_bounds = array<i64: 96, 32>}]} {
    %c0 = arith.constant 0 : index
    %c0_0 = arith.constant 0 : index
    %0 = vector.load %arg1[%c0, %c0_0] : memref<96x32xf32, #tpu.memory_space<vmem>>, vector<96x32xf32>
    %1 = vector.extract_strided_slice %0 {offsets = [0, 0], sizes = [96, 16], strides = [1, 1]} : vector<96x32xf32> to vector<96x16xf32>
    %2 = vector.extract_strided_slice %0 {offsets = [0, 16], sizes = [96, 16], strides = [1, 1]} : vector<96x32xf32> to vector<96x16xf32>
    %c0_1 = arith.constant 0 : index
    %c0_2 = arith.constant 0 : index
    %3 = vector.load %arg2[%c0_1, %c0_2] : memref<16x8xf32, #tpu.memory_space<vmem>>, vector<16x8xf32>
    %cst = arith.constant dense<0.000000e+00> : vector<96x8xf32>
    %4 = tpu.matmul %2, %3, %cst {dimension_numbers = #tpu.dot_dimension_numbers<[1], [0], [0], [1], [0, 0, 1, 1], [], []>} : vector<96x16xf32>, vector<16x8xf32>, vector<96x8xf32> -> vector<96x8xf32>
    %c0_3 = arith.constant 0 : index
    %c0_4 = arith.constant 0 : index
    %5 = vector.load %arg3[%c0_3, %c0_4] : memref<1x8xf32, #tpu.memory_space<vmem>>, vector<1x8xf32>
    %6 = vector.broadcast %5 : vector<1x8xf32> to vector<96x8xf32>
    %7 = arith.addf %4, %6 : vector<96x8xf32>
    %cst_5 = arith.constant 0.000000e+00 : f32
    %8 = vector.broadcast %cst_5 : f32 to vector<96x8xf32>
    %9 = arith.maximumf %7, %8 : vector<96x8xf32>
    %c0_6 = arith.constant 0 : index
    %c0_7 = arith.constant 0 : index
    %10 = vector.load %arg4[%c0_6, %c0_7] : memref<8x32xf32, #tpu.memory_space<vmem>>, vector<8x32xf32>
    %cst_8 = arith.constant dense<0.000000e+00> : vector<96x32xf32>
    %11 = tpu.matmul %9, %10, %cst_8 {dimension_numbers = #tpu.dot_dimension_numbers<[1], [0], [0], [1], [0, 0, 1, 1], [], []>} : vector<96x8xf32>, vector<8x32xf32>, vector<96x32xf32> -> vector<96x32xf32>
    %c0_9 = arith.constant 0 : index
    %c0_10 = arith.constant 0 : index
    %12 = vector.load %arg5[%c0_9, %c0_10] : memref<1x32xf32, #tpu.memory_space<vmem>>, vector<1x32xf32>
    %13 = vector.broadcast %12 : vector<1x32xf32> to vector<96x32xf32>
    %14 = arith.addf %11, %13 : vector<96x32xf32>
    %15 = vector.extract_strided_slice %14 {offsets = [0, 0], sizes = [96, 16], strides = [1, 1]} : vector<96x32xf32> to vector<96x16xf32>
    %16 = vector.extract_strided_slice %14 {offsets = [0, 16], sizes = [96, 16], strides = [1, 1]} : vector<96x32xf32> to vector<96x16xf32>
    %cst_11 = arith.constant 0.000000e+00 : f32
    %17 = vector.broadcast %cst_11 : f32 to vector<96x16xf32>
    %18 = arith.subf %17, %15 : vector<96x16xf32>
    %19 = math.exp %18 : vector<96x16xf32>
    %cst_12 = arith.constant 1.000000e+00 : f32
    %20 = vector.broadcast %cst_12 : f32 to vector<96x16xf32>
    %21 = arith.addf %20, %19 : vector<96x16xf32>
    %cst_13 = arith.constant 1.000000e+00 : f32
    %22 = vector.broadcast %cst_13 : f32 to vector<96x16xf32>
    %23 = arith.divf %22, %21 : vector<96x16xf32>
    %24 = arith.mulf %1, %23 : vector<96x16xf32>
    %25 = arith.addf %24, %16 : vector<96x16xf32>
    %c0_14 = arith.constant 0 : index
    %c0_15 = arith.constant 0 : index
    %26 = vector.load %arg10[%c0_14, %c0_15] : memref<96x32xf32, #tpu.memory_space<vmem>>, vector<96x16xf32>
    tpu.vector_store %arg10[%c0_14, %c0_15], %25 {strides = array<i32>} : memref<96x32xf32, #tpu.memory_space<vmem>>, vector<96x16xf32>,
    %27 = vector.extract_strided_slice %0 {offsets = [0, 16], sizes = [96, 16], strides = [1, 1]} : vector<96x32xf32> to vector<96x16xf32>
    %28 = vector.extract_strided_slice %0 {offsets = [0, 0], sizes = [96, 16], strides = [1, 1]} : vector<96x32xf32> to vector<96x16xf32>
    %c0_16 = arith.constant 0 : index
    %c0_17 = arith.constant 0 : index
    %29 = vector.load %arg6[%c0_16, %c0_17] : memref<16x8xf32, #tpu.memory_space<vmem>>, vector<16x8xf32>
    %cst_18 = arith.constant dense<0.000000e+00> : vector<96x8xf32>
    %30 = tpu.matmul %28, %29, %cst_18 {dimension_numbers = #tpu.dot_dimension_numbers<[1], [0], [0], [1], [0, 0, 1, 1], [], []>} : vector<96x16xf32>, vector<16x8xf32>, vector<96x8xf32> -> vector<96x8xf32>
    %c0_19 = arith.constant 0 : index
    %c0_20 = arith.constant 0 : index
    %31 = vector.load %arg7[%c0_19, %c0_20] : memref<1x8xf32, #tpu.memory_space<vmem>>, vector<1x8xf32>
    %32 = vector.broadcast %31 : vector<1x8xf32> to vector<96x8xf32>
    %33 = arith.addf %30, %32 : vector<96x8xf32>
    %cst_21 = arith.constant 0.000000e+00 : f32
    %34 = vector.broadcast %cst_21 : f32 to vector<96x8xf32>
    %35 = arith.maximumf %33, %34 : vector<96x8xf32>
    %c0_22 = arith.constant 0 : index
    %c0_23 = arith.constant 0 : index
    %36 = vector.load %arg8[%c0_22, %c0_23] : memref<8x32xf32, #tpu.memory_space<vmem>>, vector<8x32xf32>
    %cst_24 = arith.constant dense<0.000000e+00> : vector<96x32xf32>
    %37 = tpu.matmul %35, %36, %cst_24 {dimension_numbers = #tpu.dot_dimension_numbers<[1], [0], [0], [1], [0, 0, 1, 1], [], []>} : vector<96x8xf32>, vector<8x32xf32>, vector<96x32xf32> -> vector<96x32xf32>
    %c0_25 = arith.constant 0 : index
    %c0_26 = arith.constant 0 : index
    %38 = vector.load %arg9[%c0_25, %c0_26] : memref<1x32xf32, #tpu.memory_space<vmem>>, vector<1x32xf32>
    %39 = vector.broadcast %38 : vector<1x32xf32> to vector<96x32xf32>
    %40 = arith.addf %37, %39 : vector<96x32xf32>
    %41 = vector.extract_strided_slice %40 {offsets = [0, 0], sizes = [96, 16], strides = [1, 1]} : vector<96x32xf32> to vector<96x16xf32>
    %42 = vector.extract_strided_slice %40 {offsets = [0, 16], sizes = [96, 16], strides = [1, 1]} : vector<96x32xf32> to vector<96x16xf32>
    %cst_27 = arith.constant 0.000000e+00 : f32
    %43 = vector.broadcast %cst_27 : f32 to vector<96x16xf32>
    %44 = arith.subf %43, %41 : vector<96x16xf32>
    %45 = math.exp %44 : vector<96x16xf32>
    %cst_28 = arith.constant 1.000000e+00 : f32
    %46 = vector.broadcast %cst_28 : f32 to vector<96x16xf32>
    %47 = arith.addf %46, %45 : vector<96x16xf32>
    %cst_29 = arith.constant 1.000000e+00 : f32
    %48 = vector.broadcast %cst_29 : f32 to vector<96x16xf32>
    %49 = arith.divf %48, %47 : vector<96x16xf32>
    %50 = arith.mulf %27, %49 : vector<96x16xf32>
    %51 = arith.addf %50, %42 : vector<96x16xf32>
    %c0_30 = arith.constant 0 : index
    %c16 = arith.constant 16 : index
    %52 = vector.load %arg10[%c0_30, %c16] : memref<96x32xf32, #tpu.memory_space<vmem>>, vector<96x16xf32>
    tpu.vector_store %arg10[%c0_30, %c16], %51 {strides = array<i32>} : memref<96x32xf32, #tpu.memory_space<vmem>>, vector<96x16xf32>,
    return
  }
  func.func @transform_0(%arg0: i32) -> (i32, i32) {
    %c0_i32 = arith.constant 0 : i32
    %c0_i32_0 = arith.constant 0 : i32
    return %arg0, %c0_i32 : i32, i32
  }
  func.func @transform_1(%arg0: i32) -> (i32, i32) {
    %c0_i32 = arith.constant 0 : i32
    %c0_i32_0 = arith.constant 0 : i32
    %c0_i32_1 = arith.constant 0 : i32
    return %c0_i32, %c0_i32_0 : i32, i32
  }
  func.func @transform_2(%arg0: i32) -> (i32, i32) {
    %c0_i32 = arith.constant 0 : i32
    %c0_i32_0 = arith.constant 0 : i32
    %c0_i32_1 = arith.constant 0 : i32
    return %c0_i32, %c0_i32_0 : i32, i32
  }
  func.func @transform_3(%arg0: i32) -> (i32, i32) {
    %c0_i32 = arith.constant 0 : i32
    %c0_i32_0 = arith.constant 0 : i32
    %c0_i32_1 = arith.constant 0 : i32
    return %c0_i32, %c0_i32_0 : i32, i32
  }
  func.func @transform_4(%arg0: i32) -> (i32, i32) {
    %c0_i32 = arith.constant 0 : i32
    %c0_i32_0 = arith.constant 0 : i32
    %c0_i32_1 = arith.constant 0 : i32
    return %c0_i32, %c0_i32_0 : i32, i32
  }
  func.func @transform_5(%arg0: i32) -> (i32, i32) {
    %c0_i32 = arith.constant 0 : i32
    %c0_i32_0 = arith.constant 0 : i32
    %c0_i32_1 = arith.constant 0 : i32
    return %c0_i32, %c0_i32_0 : i32, i32
  }
  func.func @transform_6(%arg0: i32) -> (i32, i32) {
    %c0_i32 = arith.constant 0 : i32
    %c0_i32_0 = arith.constant 0 : i32
    %c0_i32_1 = arith.constant 0 : i32
    return %c0_i32, %c0_i32_0 : i32, i32
  }
  func.func @transform_7(%arg0: i32) -> (i32, i32) {
    %c0_i32 = arith.constant 0 : i32
    %c0_i32_0 = arith.constant 0 : i32
    %c0_i32_1 = arith.constant 0 : i32
    return %c0_i32, %c0_i32_0 : i32, i32
  }
  func.func @transform_8(%arg0: i32) -> (i32, i32) {
    %c0_i32 = arith.constant 0 : i32
    %c0_i32_0 = arith.constant 0 : i32
    %c0_i32_1 = arith.constant 0 : i32
    return %c0_i32, %c0_i32_0 : i32, i32
  }
  func.func @transform_9(%arg0: i32) -> (i32, i32) {
    %c0_i32 = arith.constant 0 : i32
    %c0_i32_0 = arith.constant 0 : i32
    return %arg0, %c0_i32 : i32, i32
  }
}

module attributes {stable_mosaic.version = 11 : i64} {
  func.func @kernel(%arg0: i32, %arg1: memref<1x326x32xf32, #tpu.memory_space<vmem>>, %arg2: memref<9x16x16xf32, #tpu.memory_space<vmem>>, %arg3: memref<1x16xf32, #tpu.memory_space<vmem>>, %arg4: memref<9x16x16xf32, #tpu.memory_space<vmem>>, %arg5: memref<1x16xf32, #tpu.memory_space<vmem>>, %arg6: memref<1x288x32xf32, #tpu.memory_space<vmem>>) attributes {dimension_semantics = [#tpu.dimension_semantics<parallel>], iteration_bounds = array<i64: 2>, scalar_prefetch = 0 : i64, scratch_operands = 0 : i64, tpu.core_type = #tpu.core_type<tc>, window_params = [{transform_indices = @transform_0, window_bounds = array<i64: 1, 326, 32>}, {pipeline_mode = #tpu.pipeline_mode<synchronous>, transform_indices = @transform_1, window_bounds = array<i64: 9, 16, 16>}, {pipeline_mode = #tpu.pipeline_mode<synchronous>, transform_indices = @transform_2, window_bounds = array<i64: 1, 16>}, {pipeline_mode = #tpu.pipeline_mode<synchronous>, transform_indices = @transform_3, window_bounds = array<i64: 9, 16, 16>}, {pipeline_mode = #tpu.pipeline_mode<synchronous>, transform_indices = @transform_4, window_bounds = array<i64: 1, 16>}, {transform_indices = @transform_5, window_bounds = array<i64: 1, 288, 32>}]} {
    %cst = arith.constant 0.000000e+00 : f32
    %0 = vector.broadcast %cst : f32 to vector<288x16xf32>
    %c0 = arith.constant 0 : index
    %c0_0 = arith.constant 0 : index
    %c0_1 = arith.constant 0 : index
    %1 = vector.load %arg1[%c0, %c0_0, %c0_1] : memref<1x326x32xf32, #tpu.memory_space<vmem>>, vector<1x288x16xf32>
    %2 = vector.shape_cast %1 : vector<1x288x16xf32> to vector<288x16xf32>
    %c0_2 = arith.constant 0 : index
    %c0_3 = arith.constant 0 : index
    %c0_4 = arith.constant 0 : index
    %3 = vector.load %arg2[%c0_2, %c0_3, %c0_4] : memref<9x16x16xf32, #tpu.memory_space<vmem>>, vector<1x16x16xf32>
    %4 = vector.shape_cast %3 : vector<1x16x16xf32> to vector<16x16xf32>
    %cst_5 = arith.constant dense<0.000000e+00> : vector<288x16xf32>
    %5 = tpu.matmul %2, %4, %cst_5 {dimension_numbers = #tpu.dot_dimension_numbers<[1], [0], [0], [1], [0, 0, 1, 1], [], []>} : vector<288x16xf32>, vector<16x16xf32>, vector<288x16xf32> -> vector<288x16xf32>
    %6 = arith.addf %0, %5 : vector<288x16xf32>
    %c0_6 = arith.constant 0 : index
    %c1 = arith.constant 1 : index
    %c0_7 = arith.constant 0 : index
    %7 = vector.load %arg1[%c0_6, %c1, %c0_7] : memref<1x326x32xf32, #tpu.memory_space<vmem>>, vector<1x288x16xf32>
    %8 = vector.shape_cast %7 : vector<1x288x16xf32> to vector<288x16xf32>
    %c1_8 = arith.constant 1 : index
    %c0_9 = arith.constant 0 : index
    %c0_10 = arith.constant 0 : index
    %9 = vector.load %arg2[%c1_8, %c0_9, %c0_10] : memref<9x16x16xf32, #tpu.memory_space<vmem>>, vector<1x16x16xf32>
    %10 = vector.shape_cast %9 : vector<1x16x16xf32> to vector<16x16xf32>
    %cst_11 = arith.constant dense<0.000000e+00> : vector<288x16xf32>
    %11 = tpu.matmul %8, %10, %cst_11 {dimension_numbers = #tpu.dot_dimension_numbers<[1], [0], [0], [1], [0, 0, 1, 1], [], []>} : vector<288x16xf32>, vector<16x16xf32>, vector<288x16xf32> -> vector<288x16xf32>
    %12 = arith.addf %6, %11 : vector<288x16xf32>
    %c0_12 = arith.constant 0 : index
    %c2 = arith.constant 2 : index
    %c0_13 = arith.constant 0 : index
    %13 = vector.load %arg1[%c0_12, %c2, %c0_13] : memref<1x326x32xf32, #tpu.memory_space<vmem>>, vector<1x288x16xf32>
    %14 = vector.shape_cast %13 : vector<1x288x16xf32> to vector<288x16xf32>
    %c2_14 = arith.constant 2 : index
    %c0_15 = arith.constant 0 : index
    %c0_16 = arith.constant 0 : index
    %15 = vector.load %arg2[%c2_14, %c0_15, %c0_16] : memref<9x16x16xf32, #tpu.memory_space<vmem>>, vector<1x16x16xf32>
    %16 = vector.shape_cast %15 : vector<1x16x16xf32> to vector<16x16xf32>
    %cst_17 = arith.constant dense<0.000000e+00> : vector<288x16xf32>
    %17 = tpu.matmul %14, %16, %cst_17 {dimension_numbers = #tpu.dot_dimension_numbers<[1], [0], [0], [1], [0, 0, 1, 1], [], []>} : vector<288x16xf32>, vector<16x16xf32>, vector<288x16xf32> -> vector<288x16xf32>
    %18 = arith.addf %12, %17 : vector<288x16xf32>
    %c0_18 = arith.constant 0 : index
    %c18 = arith.constant 18 : index
    %c0_19 = arith.constant 0 : index
    %19 = vector.load %arg1[%c0_18, %c18, %c0_19] : memref<1x326x32xf32, #tpu.memory_space<vmem>>, vector<1x288x16xf32>
    %20 = vector.shape_cast %19 : vector<1x288x16xf32> to vector<288x16xf32>
    %c3 = arith.constant 3 : index
    %c0_20 = arith.constant 0 : index
    %c0_21 = arith.constant 0 : index
    %21 = vector.load %arg2[%c3, %c0_20, %c0_21] : memref<9x16x16xf32, #tpu.memory_space<vmem>>, vector<1x16x16xf32>
    %22 = vector.shape_cast %21 : vector<1x16x16xf32> to vector<16x16xf32>
    %cst_22 = arith.constant dense<0.000000e+00> : vector<288x16xf32>
    %23 = tpu.matmul %20, %22, %cst_22 {dimension_numbers = #tpu.dot_dimension_numbers<[1], [0], [0], [1], [0, 0, 1, 1], [], []>} : vector<288x16xf32>, vector<16x16xf32>, vector<288x16xf32> -> vector<288x16xf32>
    %24 = arith.addf %18, %23 : vector<288x16xf32>
    %c0_23 = arith.constant 0 : index
    %c19 = arith.constant 19 : index
    %c0_24 = arith.constant 0 : index
    %25 = vector.load %arg1[%c0_23, %c19, %c0_24] : memref<1x326x32xf32, #tpu.memory_space<vmem>>, vector<1x288x16xf32>
    %26 = vector.shape_cast %25 : vector<1x288x16xf32> to vector<288x16xf32>
    %c4 = arith.constant 4 : index
    %c0_25 = arith.constant 0 : index
    %c0_26 = arith.constant 0 : index
    %27 = vector.load %arg2[%c4, %c0_25, %c0_26] : memref<9x16x16xf32, #tpu.memory_space<vmem>>, vector<1x16x16xf32>
    %28 = vector.shape_cast %27 : vector<1x16x16xf32> to vector<16x16xf32>
    %cst_27 = arith.constant dense<0.000000e+00> : vector<288x16xf32>
    %29 = tpu.matmul %26, %28, %cst_27 {dimension_numbers = #tpu.dot_dimension_numbers<[1], [0], [0], [1], [0, 0, 1, 1], [], []>} : vector<288x16xf32>, vector<16x16xf32>, vector<288x16xf32> -> vector<288x16xf32>
    %30 = arith.addf %24, %29 : vector<288x16xf32>
    %c0_28 = arith.constant 0 : index
    %c20 = arith.constant 20 : index
    %c0_29 = arith.constant 0 : index
    %31 = vector.load %arg1[%c0_28, %c20, %c0_29] : memref<1x326x32xf32, #tpu.memory_space<vmem>>, vector<1x288x16xf32>
    %32 = vector.shape_cast %31 : vector<1x288x16xf32> to vector<288x16xf32>
    %c5 = arith.constant 5 : index
    %c0_30 = arith.constant 0 : index
    %c0_31 = arith.constant 0 : index
    %33 = vector.load %arg2[%c5, %c0_30, %c0_31] : memref<9x16x16xf32, #tpu.memory_space<vmem>>, vector<1x16x16xf32>
    %34 = vector.shape_cast %33 : vector<1x16x16xf32> to vector<16x16xf32>
    %cst_32 = arith.constant dense<0.000000e+00> : vector<288x16xf32>
    %35 = tpu.matmul %32, %34, %cst_32 {dimension_numbers = #tpu.dot_dimension_numbers<[1], [0], [0], [1], [0, 0, 1, 1], [], []>} : vector<288x16xf32>, vector<16x16xf32>, vector<288x16xf32> -> vector<288x16xf32>
    %36 = arith.addf %30, %35 : vector<288x16xf32>
    %c0_33 = arith.constant 0 : index
    %c36 = arith.constant 36 : index
    %c0_34 = arith.constant 0 : index
    %37 = vector.load %arg1[%c0_33, %c36, %c0_34] : memref<1x326x32xf32, #tpu.memory_space<vmem>>, vector<1x288x16xf32>
    %38 = vector.shape_cast %37 : vector<1x288x16xf32> to vector<288x16xf32>
    %c6 = arith.constant 6 : index
    %c0_35 = arith.constant 0 : index
    %c0_36 = arith.constant 0 : index
    %39 = vector.load %arg2[%c6, %c0_35, %c0_36] : memref<9x16x16xf32, #tpu.memory_space<vmem>>, vector<1x16x16xf32>
    %40 = vector.shape_cast %39 : vector<1x16x16xf32> to vector<16x16xf32>
    %cst_37 = arith.constant dense<0.000000e+00> : vector<288x16xf32>
    %41 = tpu.matmul %38, %40, %cst_37 {dimension_numbers = #tpu.dot_dimension_numbers<[1], [0], [0], [1], [0, 0, 1, 1], [], []>} : vector<288x16xf32>, vector<16x16xf32>, vector<288x16xf32> -> vector<288x16xf32>
    %42 = arith.addf %36, %41 : vector<288x16xf32>
    %c0_38 = arith.constant 0 : index
    %c37 = arith.constant 37 : index
    %c0_39 = arith.constant 0 : index
    %43 = vector.load %arg1[%c0_38, %c37, %c0_39] : memref<1x326x32xf32, #tpu.memory_space<vmem>>, vector<1x288x16xf32>
    %44 = vector.shape_cast %43 : vector<1x288x16xf32> to vector<288x16xf32>
    %c7 = arith.constant 7 : index
    %c0_40 = arith.constant 0 : index
    %c0_41 = arith.constant 0 : index
    %45 = vector.load %arg2[%c7, %c0_40, %c0_41] : memref<9x16x16xf32, #tpu.memory_space<vmem>>, vector<1x16x16xf32>
    %46 = vector.shape_cast %45 : vector<1x16x16xf32> to vector<16x16xf32>
    %cst_42 = arith.constant dense<0.000000e+00> : vector<288x16xf32>
    %47 = tpu.matmul %44, %46, %cst_42 {dimension_numbers = #tpu.dot_dimension_numbers<[1], [0], [0], [1], [0, 0, 1, 1], [], []>} : vector<288x16xf32>, vector<16x16xf32>, vector<288x16xf32> -> vector<288x16xf32>
    %48 = arith.addf %42, %47 : vector<288x16xf32>
    %c0_43 = arith.constant 0 : index
    %c38 = arith.constant 38 : index
    %c0_44 = arith.constant 0 : index
    %49 = vector.load %arg1[%c0_43, %c38, %c0_44] : memref<1x326x32xf32, #tpu.memory_space<vmem>>, vector<1x288x16xf32>
    %50 = vector.shape_cast %49 : vector<1x288x16xf32> to vector<288x16xf32>
    %c8 = arith.constant 8 : index
    %c0_45 = arith.constant 0 : index
    %c0_46 = arith.constant 0 : index
    %51 = vector.load %arg2[%c8, %c0_45, %c0_46] : memref<9x16x16xf32, #tpu.memory_space<vmem>>, vector<1x16x16xf32>
    %52 = vector.shape_cast %51 : vector<1x16x16xf32> to vector<16x16xf32>
    %cst_47 = arith.constant dense<0.000000e+00> : vector<288x16xf32>
    %53 = tpu.matmul %50, %52, %cst_47 {dimension_numbers = #tpu.dot_dimension_numbers<[1], [0], [0], [1], [0, 0, 1, 1], [], []>} : vector<288x16xf32>, vector<16x16xf32>, vector<288x16xf32> -> vector<288x16xf32>
    %54 = arith.addf %48, %53 : vector<288x16xf32>
    %c0_48 = arith.constant 0 : index
    %c0_49 = arith.constant 0 : index
    %55 = vector.load %arg3[%c0_48, %c0_49] : memref<1x16xf32, #tpu.memory_space<vmem>>, vector<1x16xf32>
    %56 = vector.broadcast %55 : vector<1x16xf32> to vector<288x16xf32>
    %57 = arith.addf %54, %56 : vector<288x16xf32>
    %c0_50 = arith.constant 0 : index
    %c0_51 = arith.constant 0 : index
    %c0_52 = arith.constant 0 : index
    %58 = vector.load %arg6[%c0_50, %c0_51, %c0_52] : memref<1x288x32xf32, #tpu.memory_space<vmem>>, vector<1x288x16xf32>
    %59 = vector.shape_cast %58 : vector<1x288x16xf32> to vector<288x16xf32>
    %60 = vector.shape_cast %57 : vector<288x16xf32> to vector<1x288x16xf32>
    tpu.vector_store %arg6[%c0_50, %c0_51, %c0_52], %60 {strides = array<i32>} : memref<1x288x32xf32, #tpu.memory_space<vmem>>, vector<1x288x16xf32>,
    %cst_53 = arith.constant 0.000000e+00 : f32
    %61 = vector.broadcast %cst_53 : f32 to vector<288x16xf32>
    %c0_54 = arith.constant 0 : index
    %c0_55 = arith.constant 0 : index
    %c16 = arith.constant 16 : index
    %62 = vector.load %arg1[%c0_54, %c0_55, %c16] : memref<1x326x32xf32, #tpu.memory_space<vmem>>, vector<1x288x16xf32>
    %63 = vector.shape_cast %62 : vector<1x288x16xf32> to vector<288x16xf32>
    %c0_56 = arith.constant 0 : index
    %c0_57 = arith.constant 0 : index
    %c0_58 = arith.constant 0 : index
    %64 = vector.load %arg4[%c0_56, %c0_57, %c0_58] : memref<9x16x16xf32, #tpu.memory_space<vmem>>, vector<1x16x16xf32>
    %65 = vector.shape_cast %64 : vector<1x16x16xf32> to vector<16x16xf32>
    %cst_59 = arith.constant dense<0.000000e+00> : vector<288x16xf32>
    %66 = tpu.matmul %63, %65, %cst_59 {dimension_numbers = #tpu.dot_dimension_numbers<[1], [0], [0], [1], [0, 0, 1, 1], [], []>} : vector<288x16xf32>, vector<16x16xf32>, vector<288x16xf32> -> vector<288x16xf32>
    %67 = arith.addf %61, %66 : vector<288x16xf32>
    %c0_60 = arith.constant 0 : index
    %c1_61 = arith.constant 1 : index
    %c16_62 = arith.constant 16 : index
    %68 = vector.load %arg1[%c0_60, %c1_61, %c16_62] : memref<1x326x32xf32, #tpu.memory_space<vmem>>, vector<1x288x16xf32>
    %69 = vector.shape_cast %68 : vector<1x288x16xf32> to vector<288x16xf32>
    %c1_63 = arith.constant 1 : index
    %c0_64 = arith.constant 0 : index
    %c0_65 = arith.constant 0 : index
    %70 = vector.load %arg4[%c1_63, %c0_64, %c0_65] : memref<9x16x16xf32, #tpu.memory_space<vmem>>, vector<1x16x16xf32>
    %71 = vector.shape_cast %70 : vector<1x16x16xf32> to vector<16x16xf32>
    %cst_66 = arith.constant dense<0.000000e+00> : vector<288x16xf32>
    %72 = tpu.matmul %69, %71, %cst_66 {dimension_numbers = #tpu.dot_dimension_numbers<[1], [0], [0], [1], [0, 0, 1, 1], [], []>} : vector<288x16xf32>, vector<16x16xf32>, vector<288x16xf32> -> vector<288x16xf32>
    %73 = arith.addf %67, %72 : vector<288x16xf32>
    %c0_67 = arith.constant 0 : index
    %c2_68 = arith.constant 2 : index
    %c16_69 = arith.constant 16 : index
    %74 = vector.load %arg1[%c0_67, %c2_68, %c16_69] : memref<1x326x32xf32, #tpu.memory_space<vmem>>, vector<1x288x16xf32>
    %75 = vector.shape_cast %74 : vector<1x288x16xf32> to vector<288x16xf32>
    %c2_70 = arith.constant 2 : index
    %c0_71 = arith.constant 0 : index
    %c0_72 = arith.constant 0 : index
    %76 = vector.load %arg4[%c2_70, %c0_71, %c0_72] : memref<9x16x16xf32, #tpu.memory_space<vmem>>, vector<1x16x16xf32>
    %77 = vector.shape_cast %76 : vector<1x16x16xf32> to vector<16x16xf32>
    %cst_73 = arith.constant dense<0.000000e+00> : vector<288x16xf32>
    %78 = tpu.matmul %75, %77, %cst_73 {dimension_numbers = #tpu.dot_dimension_numbers<[1], [0], [0], [1], [0, 0, 1, 1], [], []>} : vector<288x16xf32>, vector<16x16xf32>, vector<288x16xf32> -> vector<288x16xf32>
    %79 = arith.addf %73, %78 : vector<288x16xf32>
    %c0_74 = arith.constant 0 : index
    %c18_75 = arith.constant 18 : index
    %c16_76 = arith.constant 16 : index
    %80 = vector.load %arg1[%c0_74, %c18_75, %c16_76] : memref<1x326x32xf32, #tpu.memory_space<vmem>>, vector<1x288x16xf32>
    %81 = vector.shape_cast %80 : vector<1x288x16xf32> to vector<288x16xf32>
    %c3_77 = arith.constant 3 : index
    %c0_78 = arith.constant 0 : index
    %c0_79 = arith.constant 0 : index
    %82 = vector.load %arg4[%c3_77, %c0_78, %c0_79] : memref<9x16x16xf32, #tpu.memory_space<vmem>>, vector<1x16x16xf32>
    %83 = vector.shape_cast %82 : vector<1x16x16xf32> to vector<16x16xf32>
    %cst_80 = arith.constant dense<0.000000e+00> : vector<288x16xf32>
    %84 = tpu.matmul %81, %83, %cst_80 {dimension_numbers = #tpu.dot_dimension_numbers<[1], [0], [0], [1], [0, 0, 1, 1], [], []>} : vector<288x16xf32>, vector<16x16xf32>, vector<288x16xf32> -> vector<288x16xf32>
    %85 = arith.addf %79, %84 : vector<288x16xf32>
    %c0_81 = arith.constant 0 : index
    %c19_82 = arith.constant 19 : index
    %c16_83 = arith.constant 16 : index
    %86 = vector.load %arg1[%c0_81, %c19_82, %c16_83] : memref<1x326x32xf32, #tpu.memory_space<vmem>>, vector<1x288x16xf32>
    %87 = vector.shape_cast %86 : vector<1x288x16xf32> to vector<288x16xf32>
    %c4_84 = arith.constant 4 : index
    %c0_85 = arith.constant 0 : index
    %c0_86 = arith.constant 0 : index
    %88 = vector.load %arg4[%c4_84, %c0_85, %c0_86] : memref<9x16x16xf32, #tpu.memory_space<vmem>>, vector<1x16x16xf32>
    %89 = vector.shape_cast %88 : vector<1x16x16xf32> to vector<16x16xf32>
    %cst_87 = arith.constant dense<0.000000e+00> : vector<288x16xf32>
    %90 = tpu.matmul %87, %89, %cst_87 {dimension_numbers = #tpu.dot_dimension_numbers<[1], [0], [0], [1], [0, 0, 1, 1], [], []>} : vector<288x16xf32>, vector<16x16xf32>, vector<288x16xf32> -> vector<288x16xf32>
    %91 = arith.addf %85, %90 : vector<288x16xf32>
    %c0_88 = arith.constant 0 : index
    %c20_89 = arith.constant 20 : index
    %c16_90 = arith.constant 16 : index
    %92 = vector.load %arg1[%c0_88, %c20_89, %c16_90] : memref<1x326x32xf32, #tpu.memory_space<vmem>>, vector<1x288x16xf32>
    %93 = vector.shape_cast %92 : vector<1x288x16xf32> to vector<288x16xf32>
    %c5_91 = arith.constant 5 : index
    %c0_92 = arith.constant 0 : index
    %c0_93 = arith.constant 0 : index
    %94 = vector.load %arg4[%c5_91, %c0_92, %c0_93] : memref<9x16x16xf32, #tpu.memory_space<vmem>>, vector<1x16x16xf32>
    %95 = vector.shape_cast %94 : vector<1x16x16xf32> to vector<16x16xf32>
    %cst_94 = arith.constant dense<0.000000e+00> : vector<288x16xf32>
    %96 = tpu.matmul %93, %95, %cst_94 {dimension_numbers = #tpu.dot_dimension_numbers<[1], [0], [0], [1], [0, 0, 1, 1], [], []>} : vector<288x16xf32>, vector<16x16xf32>, vector<288x16xf32> -> vector<288x16xf32>
    %97 = arith.addf %91, %96 : vector<288x16xf32>
    %c0_95 = arith.constant 0 : index
    %c36_96 = arith.constant 36 : index
    %c16_97 = arith.constant 16 : index
    %98 = vector.load %arg1[%c0_95, %c36_96, %c16_97] : memref<1x326x32xf32, #tpu.memory_space<vmem>>, vector<1x288x16xf32>
    %99 = vector.shape_cast %98 : vector<1x288x16xf32> to vector<288x16xf32>
    %c6_98 = arith.constant 6 : index
    %c0_99 = arith.constant 0 : index
    %c0_100 = arith.constant 0 : index
    %100 = vector.load %arg4[%c6_98, %c0_99, %c0_100] : memref<9x16x16xf32, #tpu.memory_space<vmem>>, vector<1x16x16xf32>
    %101 = vector.shape_cast %100 : vector<1x16x16xf32> to vector<16x16xf32>
    %cst_101 = arith.constant dense<0.000000e+00> : vector<288x16xf32>
    %102 = tpu.matmul %99, %101, %cst_101 {dimension_numbers = #tpu.dot_dimension_numbers<[1], [0], [0], [1], [0, 0, 1, 1], [], []>} : vector<288x16xf32>, vector<16x16xf32>, vector<288x16xf32> -> vector<288x16xf32>
    %103 = arith.addf %97, %102 : vector<288x16xf32>
    %c0_102 = arith.constant 0 : index
    %c37_103 = arith.constant 37 : index
    %c16_104 = arith.constant 16 : index
    %104 = vector.load %arg1[%c0_102, %c37_103, %c16_104] : memref<1x326x32xf32, #tpu.memory_space<vmem>>, vector<1x288x16xf32>
    %105 = vector.shape_cast %104 : vector<1x288x16xf32> to vector<288x16xf32>
    %c7_105 = arith.constant 7 : index
    %c0_106 = arith.constant 0 : index
    %c0_107 = arith.constant 0 : index
    %106 = vector.load %arg4[%c7_105, %c0_106, %c0_107] : memref<9x16x16xf32, #tpu.memory_space<vmem>>, vector<1x16x16xf32>
    %107 = vector.shape_cast %106 : vector<1x16x16xf32> to vector<16x16xf32>
    %cst_108 = arith.constant dense<0.000000e+00> : vector<288x16xf32>
    %108 = tpu.matmul %105, %107, %cst_108 {dimension_numbers = #tpu.dot_dimension_numbers<[1], [0], [0], [1], [0, 0, 1, 1], [], []>} : vector<288x16xf32>, vector<16x16xf32>, vector<288x16xf32> -> vector<288x16xf32>
    %109 = arith.addf %103, %108 : vector<288x16xf32>
    %c0_109 = arith.constant 0 : index
    %c38_110 = arith.constant 38 : index
    %c16_111 = arith.constant 16 : index
    %110 = vector.load %arg1[%c0_109, %c38_110, %c16_111] : memref<1x326x32xf32, #tpu.memory_space<vmem>>, vector<1x288x16xf32>
    %111 = vector.shape_cast %110 : vector<1x288x16xf32> to vector<288x16xf32>
    %c8_112 = arith.constant 8 : index
    %c0_113 = arith.constant 0 : index
    %c0_114 = arith.constant 0 : index
    %112 = vector.load %arg4[%c8_112, %c0_113, %c0_114] : memref<9x16x16xf32, #tpu.memory_space<vmem>>, vector<1x16x16xf32>
    %113 = vector.shape_cast %112 : vector<1x16x16xf32> to vector<16x16xf32>
    %cst_115 = arith.constant dense<0.000000e+00> : vector<288x16xf32>
    %114 = tpu.matmul %111, %113, %cst_115 {dimension_numbers = #tpu.dot_dimension_numbers<[1], [0], [0], [1], [0, 0, 1, 1], [], []>} : vector<288x16xf32>, vector<16x16xf32>, vector<288x16xf32> -> vector<288x16xf32>
    %115 = arith.addf %109, %114 : vector<288x16xf32>
    %c0_116 = arith.constant 0 : index
    %c0_117 = arith.constant 0 : index
    %116 = vector.load %arg5[%c0_116, %c0_117] : memref<1x16xf32, #tpu.memory_space<vmem>>, vector<1x16xf32>
    %117 = vector.broadcast %116 : vector<1x16xf32> to vector<288x16xf32>
    %118 = arith.addf %115, %117 : vector<288x16xf32>
    %c0_118 = arith.constant 0 : index
    %c0_119 = arith.constant 0 : index
    %c16_120 = arith.constant 16 : index
    %119 = vector.load %arg6[%c0_118, %c0_119, %c16_120] : memref<1x288x32xf32, #tpu.memory_space<vmem>>, vector<1x288x16xf32>
    %120 = vector.shape_cast %119 : vector<1x288x16xf32> to vector<288x16xf32>
    %121 = vector.shape_cast %118 : vector<288x16xf32> to vector<1x288x16xf32>
    tpu.vector_store %arg6[%c0_118, %c0_119, %c16_120], %121 {strides = array<i32>} : memref<1x288x32xf32, #tpu.memory_space<vmem>>, vector<1x288x16xf32>,
    return
  }
  func.func @transform_0(%arg0: i32) -> (i32, i32, i32) {
    %c0_i32 = arith.constant 0 : i32
    %c0_i32_0 = arith.constant 0 : i32
    %c0_i32_1 = arith.constant 0 : i32
    return %arg0, %c0_i32, %c0_i32_0 : i32, i32, i32
  }
  func.func @transform_1(%arg0: i32) -> (i32, i32, i32) {
    %c0_i32 = arith.constant 0 : i32
    %c0_i32_0 = arith.constant 0 : i32
    %c0_i32_1 = arith.constant 0 : i32
    %c0_i32_2 = arith.constant 0 : i32
    return %c0_i32, %c0_i32_0, %c0_i32_1 : i32, i32, i32
  }
  func.func @transform_2(%arg0: i32) -> (i32, i32) {
    %c0_i32 = arith.constant 0 : i32
    %c0_i32_0 = arith.constant 0 : i32
    %c0_i32_1 = arith.constant 0 : i32
    return %c0_i32, %c0_i32_0 : i32, i32
  }
  func.func @transform_3(%arg0: i32) -> (i32, i32, i32) {
    %c0_i32 = arith.constant 0 : i32
    %c0_i32_0 = arith.constant 0 : i32
    %c0_i32_1 = arith.constant 0 : i32
    %c0_i32_2 = arith.constant 0 : i32
    return %c0_i32, %c0_i32_0, %c0_i32_1 : i32, i32, i32
  }
  func.func @transform_4(%arg0: i32) -> (i32, i32) {
    %c0_i32 = arith.constant 0 : i32
    %c0_i32_0 = arith.constant 0 : i32
    %c0_i32_1 = arith.constant 0 : i32
    return %c0_i32, %c0_i32_0 : i32, i32
  }
  func.func @transform_5(%arg0: i32) -> (i32, i32, i32) {
    %c0_i32 = arith.constant 0 : i32
    %c0_i32_0 = arith.constant 0 : i32
    %c0_i32_1 = arith.constant 0 : i32
    return %arg0, %c0_i32, %c0_i32_0 : i32, i32, i32
  }
}

</mosaic_0001>

<llo_original>
// kernel: maconv_forward.2
$region0: #{maconv_forward.2}
  #allocation0 [shape = 'u32[]', space=smem, size = 0x4, offset = 0x4, fixed_abs, tag = 'smem constant byte address 0x4 - core index']
  #allocation1 [shape = 'u32[144,128]{1,0:T(1,128)}', space=vmem, size = 0x12000, scoped, tag = 'internal scratch']
  %s0 = inlined_call_operand.vmem [shape: f32[576,32], index: 0, kind: input, shape index: {}]
  %s1 = inlined_call_operand.vmem [shape: f32[16,8], index: 1, kind: input, shape index: {}]
  %s2 = inlined_call_operand.vmem [shape: f32[1,8], index: 2, kind: input, shape index: {}]
  %s3 = inlined_call_operand.vmem [shape: f32[8,32], index: 3, kind: input, shape index: {}]
  %s4 = inlined_call_operand.vmem [shape: f32[1,32], index: 4, kind: input, shape index: {}]
  %s5 = inlined_call_operand.vmem [shape: f32[16,8], index: 5, kind: input, shape index: {}]
  %s6 = inlined_call_operand.vmem [shape: f32[1,8], index: 6, kind: input, shape index: {}]
  %s7 = inlined_call_operand.vmem [shape: f32[8,32], index: 7, kind: input, shape index: {}]
  %s8 = inlined_call_operand.vmem [shape: f32[1,32], index: 8, kind: input, shape index: {}]
  %s9 = inlined_call_operand.vmem [shape: f32[576,32], index: 9, kind: output, shape index: {}]
  %s10 = sld [smem:[#allocation0]]
  $region69: #{maconv_forward.2} parent=0
    _
  %s12 = ssub.s32 1, %s10
  %s13 = scalar_select 0, %s12, %s10
  loop: start=0, step=1, limit=8
  $region2: #{maconv_forward.2} parent=0 // loop_pre_header
    _
  $region3: #{maconv_forward.2} parent=0 // loop_header
    %s15 = sphi 0, %s19
    %p16 = scmp.ge.s32.totalorder %s15, 8
    %s25 = sphi 0, %s27
    %s28 = sphi 0, %s25
    %s29 = sphi 0, %s28
    %s45 = sphi 0, %s29
    %s49 = sphi 0, %s49
    %s51 = sphi 0, %s49
    %s52 = sphi 0, %s51
    %s66 = sphi 0, %s52
    %s70 = sphi 0, %s70
    %s72 = sphi 0, %s70
    %s73 = sphi 0, %s72
    %s87 = sphi 0, %s73
    %s91 = sphi 0, %s91
    %s93 = sphi 0, %s91
    %s94 = sphi 0, %s93
    %s108 = sphi 0, %s94
    %s112 = sphi 0, %s112
    %s114 = sphi 0, %s112
    %s115 = sphi 0, %s114
    %s129 = sphi 0, %s115
    %s133 = sphi 0, %s133
    %s135 = sphi 0, %s133
    %s136 = sphi 0, %s135
    %s150 = sphi 0, %s136
    %s154 = sphi 0, %s154
    %s156 = sphi 0, %s154
    %s157 = sphi 0, %s156
    %s171 = sphi 0, %s157
    %s175 = sphi 0, %s175
    %s177 = sphi 0, %s175
    %s178 = sphi 0, %s177
    %s192 = sphi 0, %s178
    %s196 = sphi 0, %s196
    %s198 = sphi 0, %s196
    %s199 = sphi 0, %s198
    %s213 = sphi 0, %s199
    %s219 = sphi 0, %s221
    %s222 = sphi 0, %s219
    %s223 = sphi 0, %s222
    %s239 = sphi 0, %s223
  $region4: #{maconv_forward.2} parent=0 // loop_header_branch
    %18 = sbr.rel (%p16) target = $region8
  $region5: #{maconv_forward.2} parent=0 // loop_body
    %s20 = ssub.s32 %s15, 1
    %s21 = ssub.s32 %s15, 2
    %s22 = sadd.s32 %s15, 1
    %s23 = ssub.s32 %s15, %s22
    %p24 = scmp.eq.s32.totalorder %s23, 0
    %s26 = sadd.s32 %s25, 1
    %s27 = scalar_select %p24, %s25, %s26
    %p30 = pneg %p24
    %p31 = scmp.eq.s32.totalorder %s15, 5
    %p32 = por %p30, %p31
    %p33 = scmp.ne.s32.totalorder %s25, %s28
    %p34 = scmp.eq.s32.totalorder %s15, 0
    %p35 = por %p33, %p34
    %p36 = scmp.ne.s32.totalorder %s25, %s28
    %p37 = scmp.eq.s32.totalorder %s20, 5
    %p38 = por %p36, %p37
    %p39 = scmp.ne.s32.totalorder %s28, %s29
    %p40 = scmp.eq.s32.totalorder %s20, 0
    %p41 = por %p39, %p40
    %p42 = scmp.ne.s32.totalorder %s28, %s29
    %p43 = scmp.eq.s32.totalorder %s21, 5
    %p44 = por %p42, %p43
    %p46 = scmp.ne.s32.totalorder %s29, %s45
    %p47 = scmp.eq.s32.totalorder %s21, 0
    %p48 = por %p46, %p47
    %s50 = sadd.s32 %s49, 1
    %p53 = scmp.eq.s32.totalorder %s15, 5
    %p54 = scmp.ne.s32.totalorder %s49, %s51
    %p55 = scmp.eq.s32.totalorder %s15, 0
    %p56 = por %p54, %p55
    %p57 = scmp.ne.s32.totalorder %s49, %s51
    %p58 = scmp.eq.s32.totalorder %s20, 5
    %p59 = por %p57, %p58
    %p60 = scmp.ne.s32.totalorder %s51, %s52
    %p61 = scmp.eq.s32.totalorder %s20, 0
    %p62 = por %p60, %p61
    %p63 = scmp.ne.s32.totalorder %s51, %s52
    %p64 = scmp.eq.s32.totalorder %s21, 5
    %p65 = por %p63, %p64
    %p67 = scmp.ne.s32.totalorder %s52, %s66
    %p68 = scmp.eq.s32.totalorder %s21, 0
    %p69 = por %p67, %p68
    %s71 = sadd.s32 %s70, 1
    %p74 = scmp.eq.s32.totalorder %s15, 5
    %p75 = scmp.ne.s32.totalorder %s70, %s72
    %p76 = scmp.eq.s32.totalorder %s15, 0
    %p77 = por %p75, %p76
    %p78 = scmp.ne.s32.totalorder %s70, %s72
    %p79 = scmp.eq.s32.totalorder %s20, 5
    %p80 = por %p78, %p79
    %p81 = scmp.ne.s32.totalorder %s72, %s73
    %p82 = scmp.eq.s32.totalorder %s20, 0
    %p83 = por %p81, %p82
    %p84 = scmp.ne.s32.totalorder %s72, %s73
    %p85 = scmp.eq.s32.totalorder %s21, 5
    %p86 = por %p84, %p85
    %p88 = scmp.ne.s32.totalorder %s73, %s87
    %p89 = scmp.eq.s32.totalorder %s21, 0
    %p90 = por %p88, %p89
    %s92 = sadd.s32 %s91, 1
    %p95 = scmp.eq.s32.totalorder %s15, 5
    %p96 = scmp.ne.s32.totalorder %s91, %s93
    %p97 = scmp.eq.s32.totalorder %s15, 0
    %p98 = por %p96, %p97
    %p99 = scmp.ne.s32.totalorder %s91, %s93
    %p100 = scmp.eq.s32.totalorder %s20, 5
    %p101 = por %p99, %p100
    %p102 = scmp.ne.s32.totalorder %s93, %s94
    %p103 = scmp.eq.s32.totalorder %s20, 0
    %p104 = por %p102, %p103
    %p105 = scmp.ne.s32.totalorder %s93, %s94
    %p106 = scmp.eq.s32.totalorder %s21, 5
    %p107 = por %p105, %p106
    %p109 = scmp.ne.s32.totalorder %s94, %s108
    %p110 = scmp.eq.s32.totalorder %s21, 0
    %p111 = por %p109, %p110
    %s113 = sadd.s32 %s112, 1
    %p116 = scmp.eq.s32.totalorder %s15, 5
    %p117 = scmp.ne.s32.totalorder %s112, %s114
    %p118 = scmp.eq.s32.totalorder %s15, 0
    %p119 = por %p117, %p118
    %p120 = scmp.ne.s32.totalorder %s112, %s114
    %p121 = scmp.eq.s32.totalorder %s20, 5
    %p122 = por %p120, %p121
    %p123 = scmp.ne.s32.totalorder %s114, %s115
    %p124 = scmp.eq.s32.totalorder %s20, 0
    %p125 = por %p123, %p124
    %p126 = scmp.ne.s32.totalorder %s114, %s115
    %p127 = scmp.eq.s32.totalorder %s21, 5
    %p128 = por %p126, %p127
    %p130 = scmp.ne.s32.totalorder %s115, %s129
    %p131 = scmp.eq.s32.totalorder %s21, 0
    %p132 = por %p130, %p131
    %s134 = sadd.s32 %s133, 1
    %p137 = scmp.eq.s32.totalorder %s15, 5
    %p138 = scmp.ne.s32.totalorder %s133, %s135
    %p139 = scmp.eq.s32.totalorder %s15, 0
    %p140 = por %p138, %p139
    %p141 = scmp.ne.s32.totalorder %s133, %s135
    %p142 = scmp.eq.s32.totalorder %s20, 5
    %p143 = por %p141, %p142
    %p144 = scmp.ne.s32.totalorder %s135, %s136
    %p145 = scmp.eq.s32.totalorder %s20, 0
    %p146 = por %p144, %p145
    %p147 = scmp.ne.s32.totalorder %s135, %s136
    %p148 = scmp.eq.s32.totalorder %s21, 5
    %p149 = por %p147, %p148
    %p151 = scmp.ne.s32.totalorder %s136, %s150
    %p152 = scmp.eq.s32.totalorder %s21, 0
    %p153 = por %p151, %p152
    %s155 = sadd.s32 %s154, 1
    %p158 = scmp.eq.s32.totalorder %s15, 5
    %p159 = scmp.ne.s32.totalorder %s154, %s156
    %p160 = scmp.eq.s32.totalorder %s15, 0
    %p161 = por %p159, %p160
    %p162 = scmp.ne.s32.totalorder %s154, %s156
    %p163 = scmp.eq.s32.totalorder %s20, 5
    %p164 = por %p162, %p163
    %p165 = scmp.ne.s32.totalorder %s156, %s157
    %p166 = scmp.eq.s32.totalorder %s20, 0
    %p167 = por %p165, %p166
    %p168 = scmp.ne.s32.totalorder %s156, %s157
    %p169 = scmp.eq.s32.totalorder %s21, 5
    %p170 = por %p168, %p169
    %p172 = scmp.ne.s32.totalorder %s157, %s171
    %p173 = scmp.eq.s32.totalorder %s21, 0
    %p174 = por %p172, %p173
    %s176 = sadd.s32 %s175, 1
    %p179 = scmp.eq.s32.totalorder %s15, 5
    %p180 = scmp.ne.s32.totalorder %s175, %s177
    %p181 = scmp.eq.s32.totalorder %s15, 0
    %p182 = por %p180, %p181
    %p183 = scmp.ne.s32.totalorder %s175, %s177
    %p184 = scmp.eq.s32.totalorder %s20, 5
    %p185 = por %p183, %p184
    %p186 = scmp.ne.s32.totalorder %s177, %s178
    %p187 = scmp.eq.s32.totalorder %s20, 0
    %p188 = por %p186, %p187
    %p189 = scmp.ne.s32.totalorder %s177, %s178
    %p190 = scmp.eq.s32.totalorder %s21, 5
    %p191 = por %p189, %p190
    %p193 = scmp.ne.s32.totalorder %s178, %s192
    %p194 = scmp.eq.s32.totalorder %s21, 0
    %p195 = por %p193, %p194
    %s197 = sadd.s32 %s196, 1
    %p200 = scmp.eq.s32.totalorder %s15, 5
    %p201 = scmp.ne.s32.totalorder %s196, %s198
    %p202 = scmp.eq.s32.totalorder %s15, 0
    %p203 = por %p201, %p202
    %p204 = scmp.ne.s32.totalorder %s196, %s198
    %p205 = scmp.eq.s32.totalorder %s20, 5
    %p206 = por %p204, %p205
    %p207 = scmp.ne.s32.totalorder %s198, %s199
    %p208 = scmp.eq.s32.totalorder %s20, 0
    %p209 = por %p207, %p208
    %p210 = scmp.ne.s32.totalorder %s198, %s199
    %p211 = scmp.eq.s32.totalorder %s21, 5
    %p212 = por %p210, %p211
    %p214 = scmp.ne.s32.totalorder %s199, %s213
    %p215 = scmp.eq.s32.totalorder %s21, 0
    %p216 = por %p214, %p215
    %s217 = ssub.s32 %s15, %s22
    %p218 = scmp.eq.s32.totalorder %s217, 0
    %s220 = sadd.s32 %s219, 1
    %s221 = scalar_select %p218, %s219, %s220
    %p224 = pneg %p218
    %p225 = scmp.eq.s32.totalorder %s15, 5
    %p226 = por %p224, %p225
    %p227 = scmp.ne.s32.totalorder %s219, %s222
    %p228 = scmp.eq.s32.totalorder %s15, 0
    %p229 = por %p227, %p228
    %p230 = scmp.ne.s32.totalorder %s219, %s222
    %p231 = scmp.eq.s32.totalorder %s20, 5
    %p232 = por %p230, %p231
    %p233 = scmp.ne.s32.totalorder %s222, %s223
    %p234 = scmp.eq.s32.totalorder %s20, 0
    %p235 = por %p233, %p234
    %p236 = scmp.ne.s32.totalorder %s222, %s223
    %p237 = scmp.eq.s32.totalorder %s21, 5
    %p238 = por %p236, %p237
    %p240 = scmp.ne.s32.totalorder %s223, %s239
    %p241 = scmp.eq.s32.totalorder %s21, 0
    %p242 = por %p240, %p241
    %p243 = scmp.le.s32.totalorder 1, %s15
    %p244 = scmp.lt.s32.totalorder %s15, 7
    %p245 = pnand %p243, %p244
    %p246 = pneg %p245
    // Predicated region
    $region9: #{maconv_forward.2} parent=5 // pred_check
      _
    $region10: #{maconv_forward.2} parent=5 // pred_check_branch
      %248 = sbr.rel (%p245) target = $region12
    $region11: #{maconv_forward.2} parent=5 // pred_region
      %s249 = ssub.s32 %s15, 1
      // Predicated region
      $region13: #{maconv_forward.2} parent=11 // pred_check
        %p250 = pneg %p62
      $region14: #{maconv_forward.2} parent=11 // pred_check_branch
        %252 = sbr.rel (%p250) target = $region16
      $region15: #{maconv_forward.2} parent=11 // pred_region
        _
      $region16: #{maconv_forward.2} parent=11 // pred_fallthru
        _
      // Predicated region
      $region17: #{maconv_forward.2} parent=11 // pred_check
        %p253 = pneg %p83
      $region18: #{maconv_forward.2} parent=11 // pred_check_branch
        %255 = sbr.rel (%p253) target = $region20
      $region19: #{maconv_forward.2} parent=11 // pred_region
        _
      $region20: #{maconv_forward.2} parent=11 // pred_fallthru
        _
      // Predicated region
      $region21: #{maconv_forward.2} parent=11 // pred_check
        %p256 = pneg %p104
      $region22: #{maconv_forward.2} parent=11 // pred_check_branch
        %258 = sbr.rel (%p256) target = $region24
      $region23: #{maconv_forward.2} parent=11 // pred_region
        _
      $region24: #{maconv_forward.2} parent=11 // pred_fallthru
        _
      // Predicated region
      $region25: #{maconv_forward.2} parent=11 // pred_check
        %p259 = pneg %p125
      $region26: #{maconv_forward.2} parent=11 // pred_check_branch
        %261 = sbr.rel (%p259) target = $region28
      $region27: #{maconv_forward.2} parent=11 // pred_region
        _
      $region28: #{maconv_forward.2} parent=11 // pred_fallthru
        _
      // Predicated region
      $region29: #{maconv_forward.2} parent=11 // pred_check
        %p262 = pneg %p146
      $region30: #{maconv_forward.2} parent=11 // pred_check_branch
        %264 = sbr.rel (%p262) target = $region32
      $region31: #{maconv_forward.2} parent=11 // pred_region
        _
      $region32: #{maconv_forward.2} parent=11 // pred_fallthru
        _
      // Predicated region
      $region33: #{maconv_forward.2} parent=11 // pred_check
        %p265 = pneg %p167
      $region34: #{maconv_forward.2} parent=11 // pred_check_branch
        %267 = sbr.rel (%p265) target = $region36
      $region35: #{maconv_forward.2} parent=11 // pred_region
        _
      $region36: #{maconv_forward.2} parent=11 // pred_fallthru
        _
      // Predicated region
      $region37: #{maconv_forward.2} parent=11 // pred_check
        %p268 = pneg %p188
      $region38: #{maconv_forward.2} parent=11 // pred_check_branch
        %270 = sbr.rel (%p268) target = $region40
      $region39: #{maconv_forward.2} parent=11 // pred_region
        _
      $region40: #{maconv_forward.2} parent=11 // pred_fallthru
        _
      // Predicated region
      $region41: #{maconv_forward.2} parent=11 // pred_check
        %p271 = pneg %p209
      $region42: #{maconv_forward.2} parent=11 // pred_check_branch
        %273 = sbr.rel (%p271) target = $region44
      $region43: #{maconv_forward.2} parent=11 // pred_region
        _
      $region44: #{maconv_forward.2} parent=11 // pred_fallthru
        _
    $region12: #{maconv_forward.2} parent=5 // pred_fallthru
      _
    %p274 = scmp.lt.s32.totalorder %s15, 6
    // Predicated region
    $region45: #{maconv_forward.2} parent=5 // pred_check
      %p275 = pneg %p274
    $region46: #{maconv_forward.2} parent=5 // pred_check_branch
      %277 = sbr.rel (%p275) target = $region48
    $region47: #{maconv_forward.2} parent=5 // pred_region
      // Predicated region
      $region49: #{maconv_forward.2} parent=47 // pred_check
        %p278 = pneg %p35
      $region50: #{maconv_forward.2} parent=47 // pred_check_branch
        %280 = sbr.rel (%p278) target = $region52
      $region51: #{maconv_forward.2} parent=47 // pred_region
        %s281 = smul.u32 12, %s15
        %p282 = scmp.lt.s32.totalorder %s281, 71
        %s283 = scalar_select %p282, %s281, 71
        %s284 = smul.addr %s283, 8
        %s285 = scalar_lea.vmem %s0, %s284
        %s286 = smul.u32 12, %s15
      $region52: #{maconv_forward.2} parent=47 // pred_fallthru
        _
    $region48: #{maconv_forward.2} parent=5 // pred_fallthru
      _
    %p287 = scmp.le.s32.totalorder 1, %s15
    %p288 = scmp.lt.s32.totalorder %s15, 7
    %p289 = pnand %p287, %p288
    %p290 = pneg %p289
    // Predicated region
    $region53: #{maconv_forward.2} parent=5 // pred_check
      _
    $region54: #{maconv_forward.2} parent=5 // pred_check_branch
      %292 = sbr.rel (%p289) target = $region56
    $region55: #{maconv_forward.2} parent=5 // pred_region
      %s293 = ssub.s32 %s15, 1
      %s294 = smul.u32 12, %s20
      %p295 = scmp.lt.s32.totalorder %s294, 71
      %s296 = scalar_select %p295, %s294, 71
      %s297 = smul.addr %s296, 8
      %s298 = scalar_lea.vmem %s0, %s297
      %p299 = pneg %p41
      %p300 = pneg %p38
      %p301 = pneg %p62
      %p302 = pneg %p59
      %p303 = pneg %p83
      %p304 = pneg %p80
      %p305 = pneg %p104
      %p306 = pneg %p101
      %p307 = pneg %p125
      %p308 = pneg %p122
      %p309 = pneg %p146
      %p310 = pneg %p143
      %p311 = pneg %p167
      %p312 = pneg %p164
      %p313 = pneg %p188
      %p314 = pneg %p185
      %p315 = pneg %p209
      %p316 = pneg %p206
      %p317 = pneg %p235
      %p318 = pneg %p232
      %s319 = smul.u32 12, %s20
      %p320 = scmp.lt.s32.totalorder %s319, 71
      %s321 = scalar_select %p320, %s319, 71
      %s322 = smul.addr %s321, 8
      %s323 = scalar_lea.vmem %s9, %s322
      %s324 = smul.u32 12, %s20
      %p325 = scmp.lt.s32.totalorder %s324, 71
      %s326 = scalar_select %p325, %s324, 71
      %s327 = smul.addr %s326, 8
      %s328 = scalar_lea.vmem %s0, %s327
      %s329 = smul.u32 12, %s20
      %s330 = smul.u32 12, %s20
      %p331 = scmp.lt.s32.totalorder %s330, 71
      %s332 = scalar_select %p331, %s330, 71
      %s333 = smul.addr %s332, 8
      %s334 = scalar_lea.vmem %s9, %s333
      %s335 = smul.u32 12, %s20
      %v336 = vld [vmem:[%s328] sm:$0xff]
      %v337 = vld [vmem:[%s328 + $0x8] sm:$0xff]
      %v338 = vld [vmem:[%s328 + $0x10] sm:$0xff]
      %v339 = vld [vmem:[%s328 + $0x18] sm:$0xff]
      %v340 = vld [vmem:[%s328 + $0x20] sm:$0xff]
      %v341 = vld [vmem:[%s328 + $0x28] sm:$0xff]
      %v342 = vld [vmem:[%s328 + $0x30] sm:$0xff]
      %v343 = vld [vmem:[%s328 + $0x38] sm:$0xff]
      %v344 = vld [vmem:[%s328 + $0x40] sm:$0xff]
      %v345 = vld [vmem:[%s328 + $0x48] sm:$0xff]
      %v346 = vld [vmem:[%s328 + $0x50] sm:$0xff]
      %v347 = vld [vmem:[%s328 + $0x58] sm:$0xff]
      %v348 = vld [vmem:[%s1] sm:$0xff]
      %v349 = vld [vmem:[%s1 + $0x8] sm:$0xff]
      %v350 = vld [vmem:[%s2] sm:$0x1]
      %v352 = vlaneseq
      %v353 = vshrl.u32 %v352, 7
      %v354 = vsub.s32 0, %v353
      %v355 = vrot.slane %v350, %v354
      %369 = vrot.lane.b32.xlu0 %v336, 112
      %v370 = vpop.permute.xlu0 %369
      %371 = vrot.lane.b32.xlu0 %v337, 112
      %v372 = vpop.permute.xlu0 %371
      %373 = vrot.lane.b32.xlu0 %v338, 112
      %v374 = vpop.permute.xlu0 %373
      %375 = vrot.lane.b32.xlu0 %v339, 112
      %v376 = vpop.permute.xlu0 %375
      %377 = vrot.lane.b32.xlu0 %v340, 112
      %v378 = vpop.permute.xlu0 %377
      %379 = vrot.lane.b32.xlu0 %v341, 112
      %v380 = vpop.permute.xlu0 %379
      %381 = vrot.lane.b32.xlu0 %v342, 112
      %v382 = vpop.permute.xlu0 %381
      %383 = vrot.lane.b32.xlu0 %v343, 112
      %v384 = vpop.permute.xlu0 %383
      %385 = vrot.lane.b32.xlu0 %v344, 112
      %v386 = vpop.permute.xlu0 %385
      %387 = vrot.lane.b32.xlu0 %v345, 112
      %v388 = vpop.permute.xlu0 %387
      %389 = vrot.lane.b32.xlu0 %v346, 112
      %v390 = vpop.permute.xlu0 %389
      %391 = vrot.lane.b32.xlu0 %v347, 112
      %v392 = vpop.permute.xlu0 %391
      %vm393 = vcmask 130048
      %v394 = vsel %vm393, %v370, 0
      %v396 = vsel %vm393, %v372, 0
      %v398 = vsel %vm393, %v374, 0
      %v400 = vsel %vm393, %v376, 0
      %v402 = vsel %vm393, %v378, 0
      %v404 = vsel %vm393, %v380, 0
      %v406 = vsel %vm393, %v382, 0
      %v408 = vsel %vm393, %v384, 0
      %v410 = vsel %vm393, %v386, 0
      %v412 = vsel %vm393, %v388, 0
      %v414 = vsel %vm393, %v390, 0
      %v416 = vsel %vm393, %v392, 0
      %418 = vmatprep.subr.mxu0 0.0
      %419 = vmatpush1.msra.mxu0 %v348
      %420 = vmatprep.subr.mxu0 0.0
      %421 = vmatpush1.msra.mxu0 %v349
      %422 = vmatprep.subr.mxu0 0.0
      %423 = vmatpush1.msra.mxu0 0.0
      %424 = vmatprep.subr.mxu0 0.0
      %425 = vmatpush1.msra.mxu0 0.0
      %426 = vmatprep.subr.mxu0 0.0
      %427 = vmatpush1.msra.mxu0 0.0
      %428 = vmatprep.subr.mxu0 0.0
      %429 = vmatpush1.msra.mxu0 0.0
      %430 = vmatprep.subr.mxu0 0.0
      %431 = vmatpush1.msra.mxu0 0.0
      %432 = vmatprep.subr.mxu0 0.0
      %433 = vmatpush1.msra.mxu0 0.0
      %434 = vmatprep.subr.mxu0 0.0
      %435 = vmatpush1.msra.mxu0 0.0
      %436 = vmatprep.subr.mxu0 0.0
      %437 = vmatpush1.msra.mxu0 0.0
      %438 = vmatprep.subr.mxu0 0.0
      %439 = vmatpush1.msra.mxu0 0.0
      %440 = vmatprep.subr.mxu0 0.0
      %441 = vmatpush1.msra.mxu0 0.0
      %442 = vmatprep.subr.mxu0 0.0
      %443 = vmatpush1.msra.mxu0 0.0
      %444 = vmatprep.subr.mxu0 0.0
      %445 = vmatpush1.msra.mxu0 0.0
      %446 = vmatprep.subr.mxu0 0.0
      %447 = vmatpush1.msra.mxu0 0.0
      %448 = vmatprep.subr.mxu0 0.0
      %449 = vmatpush1.msra.mxu0 0.0
      %450 = vmatprep.subr.mxu0 0.0
      %451 = vmatpush1.msra.mxu0 0.0
      %452 = vmatprep.subr.mxu0 0.0
      %453 = vmatpush1.msra.mxu0 0.0
      %454 = vmatprep.subr.mxu0 0.0
      %455 = vmatpush1.msra.mxu0 0.0
      %456 = vmatprep.subr.mxu0 0.0
      %457 = vmatpush1.msra.mxu0 0.0
      %458 = vmatprep.subr.mxu0 0.0
      %459 = vmatpush1.msra.mxu0 0.0
      %460 = vmatprep.subr.mxu0 0.0
      %461 = vmatpush1.msra.mxu0 0.0
      %462 = vmatprep.subr.mxu0 0.0
      %463 = vmatpush1.msra.mxu0 0.0
      %464 = vmatprep.subr.mxu0 0.0
      %465 = vmatpush1.msra.mxu0 0.0
      %466 = vmatprep.subr.mxu0 0.0
      %467 = vmatpush1.msra.mxu0 0.0
      %468 = vmatprep.subr.mxu0 0.0
      %469 = vmatpush1.msra.mxu0 0.0
      %470 = vmatprep.subr.mxu0 0.0
      %471 = vmatpush1.msra.mxu0 0.0
      %472 = vmatprep.subr.mxu0 0.0
      %473 = vmatpush1.msra.mxu0 0.0
      %474 = vmatprep.subr.mxu0 0.0
      %475 = vmatpush1.msra.mxu0 0.0
      %476 = vmatprep.subr.mxu0 0.0
      %477 = vmatpush1.msra.mxu0 0.0
      %478 = vmatprep.subr.mxu0 0.0
      %479 = vmatpush1.msra.mxu0 0.0
      %480 = vmatprep.subr.mxu0 0.0
      %481 = vmatpush1.msra.mxu0 0.0
      %482 = vmatprep.mubr.f32.mxu0 0.0
      %483 = vmatmul.mubr.f32.gmra.mrb[0].mxu0 %v394
      %v484 = vpop.f32.mrb[0].mxu0
      %v485 = vadd.f32 %v355, %v484
      %v486 = vpop.f32.mrb[0].mxu0
      %487 = vmatprep.mubr.f32.mxu0 0.0
      %488 = vmatmul.mubr.f32.gmra.mrb[0].mxu0 %v396
      %v489 = vpop.f32.mrb[0].mxu0
      %v490 = vadd.f32 %v355, %v489
      %v491 = vpop.f32.mrb[0].mxu0
      %492 = vmatprep.mubr.f32.mxu0 0.0
      %493 = vmatmul.mubr.f32.gmra.mrb[0].mxu0 %v398
      %v494 = vpop.f32.mrb[0].mxu0
      %v495 = vadd.f32 %v355, %v494
      %v496 = vpop.f32.mrb[0].mxu0
      %497 = vmatprep.mubr.f32.mxu0 0.0
      %498 = vmatmul.mubr.f32.gmra.mrb[0].mxu0 %v400
      %v499 = vpop.f32.mrb[0].mxu0
      %v500 = vadd.f32 %v355, %v499
      %v501 = vpop.f32.mrb[0].mxu0
      %502 = vmatprep.mubr.f32.mxu0 0.0
      %503 = vmatmul.mubr.f32.gmra.mrb[0].mxu0 %v402
      %v504 = vpop.f32.mrb[0].mxu0
      %v505 = vadd.f32 %v355, %v504
      %v506 = vpop.f32.mrb[0].mxu0
      %507 = vmatprep.mubr.f32.mxu0 0.0
      %508 = vmatmul.mubr.f32.gmra.mrb[0].mxu0 %v404
      %v509 = vpop.f32.mrb[0].mxu0
      %v510 = vadd.f32 %v355, %v509
      %v511 = vpop.f32.mrb[0].mxu0
      %512 = vmatprep.mubr.f32.mxu0 0.0
      %513 = vmatmul.mubr.f32.gmra.mrb[0].mxu0 %v406
      %v514 = vpop.f32.mrb[0].mxu0
      %v515 = vadd.f32 %v355, %v514
      %v516 = vpop.f32.mrb[0].mxu0
      %517 = vmatprep.mubr.f32.mxu0 0.0
      %518 = vmatmul.mubr.f32.gmra.mrb[0].mxu0 %v408
      %v519 = vpop.f32.mrb[0].mxu0
      %v520 = vadd.f32 %v355, %v519
      %v521 = vpop.f32.mrb[0].mxu0
      %522 = vmatprep.mubr.f32.mxu0 0.0
      %523 = vmatmul.mubr.f32.gmra.mrb[0].mxu0 %v410
      %v524 = vpop.f32.mrb[0].mxu0
      %v525 = vadd.f32 %v355, %v524
      %v526 = vpop.f32.mrb[0].mxu0
      %527 = vmatprep.mubr.f32.mxu0 0.0
      %528 = vmatmul.mubr.f32.gmra.mrb[0].mxu0 %v412
      %v529 = vpop.f32.mrb[0].mxu0
      %v530 = vadd.f32 %v355, %v529
      %v531 = vpop.f32.mrb[0].mxu0
      %532 = vmatprep.mubr.f32.mxu0 0.0
      %533 = vmatmul.mubr.f32.gmra.mrb[0].mxu0 %v414
      %v534 = vpop.f32.mrb[0].mxu0
      %v535 = vadd.f32 %v355, %v534
      %v536 = vpop.f32.mrb[0].mxu0
      %537 = vmatprep.mubr.f32.mxu0 0.0
      %538 = vmatmul.mubr.f32.gmra.mrb[0].mxu0 %v416
      %v539 = vpop.f32.mrb[0].mxu0
      %v540 = vadd.f32 %v355, %v539
      %v541 = vpop.f32.mrb[0].mxu0
      %542 = vdwg.mxu0
      %v543 = vmax.f32 %v485, 0.0
      %v544 = vmax.f32 %v490, 0.0
      %v545 = vmax.f32 %v495, 0.0
      %v546 = vmax.f32 %v500, 0.0
      %v547 = vmax.f32 %v505, 0.0
      %v548 = vmax.f32 %v510, 0.0
      %v549 = vmax.f32 %v515, 0.0
      %v550 = vmax.f32 %v520, 0.0
      %v551 = vmax.f32 %v525, 0.0
      %v552 = vmax.f32 %v530, 0.0
      %v553 = vmax.f32 %v535, 0.0
      %v554 = vmax.f32 %v540, 0.0
      %v555 = vld [vmem:[%s3] sm:$0xff]
      %v556 = vld [vmem:[%s4] sm:$0x1]
      %v558 = vlaneseq
      %v559 = vshrl.u32 %v558, 7
      %v560 = vsub.s32 0, %v559
      %v561 = vrot.slane %v556, %v560
      %vm563 = vcmask 64512
      %v565 = vsel %vm563, %v543, 0
      %v568 = vsel %vm563, %v544, 0
      %v571 = vsel %vm563, %v545, 0
      %v574 = vsel %vm563, %v546, 0
      %v577 = vsel %vm563, %v547, 0
      %v580 = vsel %vm563, %v548, 0
      %v583 = vsel %vm563, %v549, 0
      %v586 = vsel %vm563, %v550, 0
      %v589 = vsel %vm563, %v551, 0
      %v592 = vsel %vm563, %v552, 0
      %v595 = vsel %vm563, %v553, 0
      %v598 = vsel %vm563, %v554, 0
      %600 = vmatprep.subr.mxu0 0.0
      %601 = vmatpush1.msra.mxu0 %v555
      %602 = vmatprep.subr.mxu0 0.0
      %603 = vmatpush1.msra.mxu0 0.0
      %604 = vmatprep.subr.mxu0 0.0
      %605 = vmatpush1.msra.mxu0 0.0
      %606 = vmatprep.subr.mxu0 0.0
      %607 = vmatpush1.msra.mxu0 0.0
      %608 = vmatprep.subr.mxu0 0.0
      %609 = vmatpush1.msra.mxu0 0.0
      %610 = vmatprep.subr.mxu0 0.0
      %611 = vmatpush1.msra.mxu0 0.0
      %612 = vmatprep.subr.mxu0 0.0
      %613 = vmatpush1.msra.mxu0 0.0
      %614 = vmatprep.subr.mxu0 0.0
      %615 = vmatpush1.msra.mxu0 0.0
      %616 = vmatprep.subr.mxu0 0.0
      %617 = vmatpush1.msra.mxu0 0.0
      %618 = vmatprep.subr.mxu0 0.0
      %619 = vmatpush1.msra.mxu0 0.0
      %620 = vmatprep.subr.mxu0 0.0
      %621 = vmatpush1.msra.mxu0 0.0
      %622 = vmatprep.subr.mxu0 0.0
      %623 = vmatpush1.msra.mxu0 0.0
      %624 = vmatprep.subr.mxu0 0.0
      %625 = vmatpush1.msra.mxu0 0.0
      %626 = vmatprep.subr.mxu0 0.0
      %627 = vmatpush1.msra.mxu0 0.0
      %628 = vmatprep.subr.mxu0 0.0
      %629 = vmatpush1.msra.mxu0 0.0
      %630 = vmatprep.subr.mxu0 0.0
      %631 = vmatpush1.msra.mxu0 0.0
      %632 = vmatprep.subr.mxu0 0.0
      %633 = vmatpush1.msra.mxu0 0.0
      %634 = vmatprep.subr.mxu0 0.0
      %635 = vmatpush1.msra.mxu0 0.0
      %636 = vmatprep.subr.mxu0 0.0
      %637 = vmatpush1.msra.mxu0 0.0
      %638 = vmatprep.subr.mxu0 0.0
      %639 = vmatpush1.msra.mxu0 0.0
      %640 = vmatprep.subr.mxu0 0.0
      %641 = vmatpush1.msra.mxu0 0.0
      %642 = vmatprep.subr.mxu0 0.0
      %643 = vmatpush1.msra.mxu0 0.0
      %644 = vmatprep.subr.mxu0 0.0
      %645 = vmatpush1.msra.mxu0 0.0
      %646 = vmatprep.subr.mxu0 0.0
      %647 = vmatpush1.msra.mxu0 0.0
      %648 = vmatprep.subr.mxu0 0.0
      %649 = vmatpush1.msra.mxu0 0.0
      %650 = vmatprep.subr.mxu0 0.0
      %651 = vmatpush1.msra.mxu0 0.0
      %652 = vmatprep.subr.mxu0 0.0
      %653 = vmatpush1.msra.mxu0 0.0
      %654 = vmatprep.subr.mxu0 0.0
      %655 = vmatpush1.msra.mxu0 0.0
      %656 = vmatprep.subr.mxu0 0.0
      %657 = vmatpush1.msra.mxu0 0.0
      %658 = vmatprep.subr.mxu0 0.0
      %659 = vmatpush1.msra.mxu0 0.0
      %660 = vmatprep.subr.mxu0 0.0
      %661 = vmatpush1.msra.mxu0 0.0
      %662 = vmatprep.subr.mxu0 0.0
      %663 = vmatpush1.msra.mxu0 0.0
      %664 = vmatprep.mubr.f32.mxu0 0.0
      %665 = vmatmul.mubr.f32.gmra.mrb[0].mxu0 %v565
      %v666 = vpop.f32.mrb[0].mxu0
      %v667 = vadd.f32 %v561, %v666
      %v668 = vpop.f32.mrb[0].mxu0
      %669 = vmatprep.mubr.f32.mxu0 0.0
      %670 = vmatmul.mubr.f32.gmra.mrb[0].mxu0 %v568
      %v671 = vpop.f32.mrb[0].mxu0
      %v672 = vadd.f32 %v561, %v671
      %v673 = vpop.f32.mrb[0].mxu0
      %674 = vmatprep.mubr.f32.mxu0 0.0
      %675 = vmatmul.mubr.f32.gmra.mrb[0].mxu0 %v571
      %v676 = vpop.f32.mrb[0].mxu0
      %v677 = vadd.f32 %v561, %v676
      %v678 = vpop.f32.mrb[0].mxu0
      %679 = vmatprep.mubr.f32.mxu0 0.0
      %680 = vmatmul.mubr.f32.gmra.mrb[0].mxu0 %v574
      %v681 = vpop.f32.mrb[0].mxu0
      %v682 = vadd.f32 %v561, %v681
      %v683 = vpop.f32.mrb[0].mxu0
      %684 = vmatprep.mubr.f32.mxu0 0.0
      %685 = vmatmul.mubr.f32.gmra.mrb[0].mxu0 %v577
      %v686 = vpop.f32.mrb[0].mxu0
      %v687 = vadd.f32 %v561, %v686
      %v688 = vpop.f32.mrb[0].mxu0
      %689 = vmatprep.mubr.f32.mxu0 0.0
      %690 = vmatmul.mubr.f32.gmra.mrb[0].mxu0 %v580
      %v691 = vpop.f32.mrb[0].mxu0
      %v692 = vadd.f32 %v561, %v691
      %v693 = vpop.f32.mrb[0].mxu0
      %694 = vmatprep.mubr.f32.mxu0 0.0
      %695 = vmatmul.mubr.f32.gmra.mrb[0].mxu0 %v583
      %v696 = vpop.f32.mrb[0].mxu0
      %v697 = vadd.f32 %v561, %v696
      %v698 = vpop.f32.mrb[0].mxu0
      %699 = vmatprep.mubr.f32.mxu0 0.0
      %700 = vmatmul.mubr.f32.gmra.mrb[0].mxu0 %v586
      %v701 = vpop.f32.mrb[0].mxu0
      %v702 = vadd.f32 %v561, %v701
      %v703 = vpop.f32.mrb[0].mxu0
      %704 = vmatprep.mubr.f32.mxu0 0.0
      %705 = vmatmul.mubr.f32.gmra.mrb[0].mxu0 %v589
      %v706 = vpop.f32.mrb[0].mxu0
      %v707 = vadd.f32 %v561, %v706
      %v708 = vpop.f32.mrb[0].mxu0
      %709 = vmatprep.mubr.f32.mxu0 0.0
      %710 = vmatmul.mubr.f32.gmra.mrb[0].mxu0 %v592
      %v711 = vpop.f32.mrb[0].mxu0
      %v712 = vadd.f32 %v561, %v711
      %v713 = vpop.f32.mrb[0].mxu0
      %714 = vmatprep.mubr.f32.mxu0 0.0
      %715 = vmatmul.mubr.f32.gmra.mrb[0].mxu0 %v595
      %v716 = vpop.f32.mrb[0].mxu0
      %v717 = vadd.f32 %v561, %v716
      %v718 = vpop.f32.mrb[0].mxu0
      %719 = vmatprep.mubr.f32.mxu0 0.0
      %720 = vmatmul.mubr.f32.gmra.mrb[0].mxu0 %v598
      %v721 = vpop.f32.mrb[0].mxu0
      %v722 = vadd.f32 %v561, %v721
      %v723 = vpop.f32.mrb[0].mxu0
      %724 = vdwg.mxu0
      %v725 = vsub.f32 0.0, %v667
      %v726 = vsub.f32 0.0, %v672
      %v727 = vsub.f32 0.0, %v677
      %v728 = vsub.f32 0.0, %v682
      %v729 = vsub.f32 0.0, %v687
      %v730 = vsub.f32 0.0, %v692
      %v731 = vsub.f32 0.0, %v697
      %v732 = vsub.f32 0.0, %v702
      %v733 = vsub.f32 0.0, %v707
      %v734 = vsub.f32 0.0, %v712
      %v735 = vsub.f32 0.0, %v717
      %v736 = vsub.f32 0.0, %v722
      %v737 = vmul.f32 %v725, 1.442695
      %v738 = vpow.pop %v737
      %v739 = vmul.f32 %v726, 1.442695
      %v740 = vpow.pop %v739
      %v741 = vmul.f32 %v727, 1.442695
      %v742 = vpow.pop %v741
      %v743 = vmul.f32 %v728, 1.442695
      %v744 = vpow.pop %v743
      %v745 = vmul.f32 %v729, 1.442695
      %v746 = vpow.pop %v745
      %v747 = vmul.f32 %v730, 1.442695
      %v748 = vpow.pop %v747
      %v749 = vmul.f32 %v731, 1.442695
      %v750 = vpow.pop %v749
      %v751 = vmul.f32 %v732, 1.442695
      %v752 = vpow.pop %v751
      %v753 = vmul.f32 %v733, 1.442695
      %v754 = vpow.pop %v753
      %v755 = vmul.f32 %v734, 1.442695
      %v756 = vpow.pop %v755
      %v757 = vmul.f32 %v735, 1.442695
      %v758 = vpow.pop %v757
      %v759 = vmul.f32 %v736, 1.442695
      %v760 = vpow.pop %v759
      %v761 = vadd.f32 %v738, 1.0
      %v762 = vadd.f32 %v740, 1.0
      %v763 = vadd.f32 %v742, 1.0
      %v764 = vadd.f32 %v744, 1.0
      %v765 = vadd.f32 %v746, 1.0
      %v766 = vadd.f32 %v748, 1.0
      %v767 = vadd.f32 %v750, 1.0
      %v768 = vadd.f32 %v752, 1.0
      %v769 = vadd.f32 %v754, 1.0
      %v770 = vadd.f32 %v756, 1.0
      %v771 = vadd.f32 %v758, 1.0
      %v772 = vadd.f32 %v760, 1.0
      %v773 = vrcp.pop %v761
      %v774 = vmul.f32 1.0, %v773
      %v775 = vrcp.pop %v762
      %v776 = vmul.f32 1.0, %v775
      %v777 = vrcp.pop %v763
      %v778 = vmul.f32 1.0, %v777
      %v779 = vrcp.pop %v764
      %v780 = vmul.f32 1.0, %v779
      %v781 = vrcp.pop %v765
      %v782 = vmul.f32 1.0, %v781
      %v783 = vrcp.pop %v766
      %v784 = vmul.f32 1.0, %v783
      %v785 = vrcp.pop %v767
      %v786 = vmul.f32 1.0, %v785
      %v787 = vrcp.pop %v768
      %v788 = vmul.f32 1.0, %v787
      %v789 = vrcp.pop %v769
      %v790 = vmul.f32 1.0, %v789
      %v791 = vrcp.pop %v770
      %v792 = vmul.f32 1.0, %v791
      %v793 = vrcp.pop %v771
      %v794 = vmul.f32 1.0, %v793
      %v795 = vrcp.pop %v772
      %v796 = vmul.f32 1.0, %v795
      %v797 = vmul.f32 %v336, %v774
      %v798 = vmul.f32 %v337, %v776
      %v799 = vmul.f32 %v338, %v778
      %v800 = vmul.f32 %v339, %v780
      %v801 = vmul.f32 %v340, %v782
      %v802 = vmul.f32 %v341, %v784
      %v803 = vmul.f32 %v342, %v786
      %v804 = vmul.f32 %v343, %v788
      %v805 = vmul.f32 %v344, %v790
      %v806 = vmul.f32 %v345, %v792
      %v807 = vmul.f32 %v346, %v794
      %v808 = vmul.f32 %v347, %v796
      %821 = vrot.lane.b32.xlu0 %v667, 112
      %v822 = vpop.permute.xlu0 %821
      %823 = vrot.lane.b32.xlu0 %v672, 112
      %v824 = vpop.permute.xlu0 %823
      %825 = vrot.lane.b32.xlu0 %v677, 112
      %v826 = vpop.permute.xlu0 %825
      %827 = vrot.lane.b32.xlu0 %v682, 112
      %v828 = vpop.permute.xlu0 %827
      %829 = vrot.lane.b32.xlu0 %v687, 112
      %v830 = vpop.permute.xlu0 %829
      %831 = vrot.lane.b32.xlu0 %v692, 112
      %v832 = vpop.permute.xlu0 %831
      %833 = vrot.lane.b32.xlu0 %v697, 112
      %v834 = vpop.permute.xlu0 %833
      %835 = vrot.lane.b32.xlu0 %v702, 112
      %v836 = vpop.permute.xlu0 %835
      %837 = vrot.lane.b32.xlu0 %v707, 112
      %v838 = vpop.permute.xlu0 %837
      %839 = vrot.lane.b32.xlu0 %v712, 112
      %v840 = vpop.permute.xlu0 %839
      %841 = vrot.lane.b32.xlu0 %v717, 112
      %v842 = vpop.permute.xlu0 %841
      %843 = vrot.lane.b32.xlu0 %v722, 112
      %v844 = vpop.permute.xlu0 %843
      %v857 = vadd.f32 %v797, %v822
      %v858 = vadd.f32 %v798, %v824
      %v859 = vadd.f32 %v799, %v826
      %v860 = vadd.f32 %v800, %v828
      %v861 = vadd.f32 %v801, %v830
      %v862 = vadd.f32 %v802, %v832
      %v863 = vadd.f32 %v803, %v834
      %v864 = vadd.f32 %v804, %v836
      %v865 = vadd.f32 %v805, %v838
      %v866 = vadd.f32 %v806, %v840
      %v867 = vadd.f32 %v807, %v842
      %v868 = vadd.f32 %v808, %v844
      %869 = vst.msk [vmem:[%s334] sm:$0xff] %vm393, %v857
      %870 = vst.msk [vmem:[%s334 + $0x8] sm:$0xff] %vm393, %v858
      %871 = vst.msk [vmem:[%s334 + $0x10] sm:$0xff] %vm393, %v859
      %872 = vst.msk [vmem:[%s334 + $0x18] sm:$0xff] %vm393, %v860
      %873 = vst.msk [vmem:[%s334 + $0x20] sm:$0xff] %vm393, %v861
      %874 = vst.msk [vmem:[%s334 + $0x28] sm:$0xff] %vm393, %v862
      %875 = vst.msk [vmem:[%s334 + $0x30] sm:$0xff] %vm393, %v863
      %876 = vst.msk [vmem:[%s334 + $0x38] sm:$0xff] %vm393, %v864
      %877 = vst.msk [vmem:[%s334 + $0x40] sm:$0xff] %vm393, %v865
      %878 = vst.msk [vmem:[%s334 + $0x48] sm:$0xff] %vm393, %v866
      %879 = vst.msk [vmem:[%s334 + $0x50] sm:$0xff] %vm393, %v867
      %880 = vst.msk [vmem:[%s334 + $0x58] sm:$0xff] %vm393, %v868
      %v881 = vld [vmem:[%s5] sm:$0xff]
      %v882 = vld [vmem:[%s5 + $0x8] sm:$0xff]
      %v883 = vld [vmem:[%s6] sm:$0x1]
      %v885 = vlaneseq
      %v886 = vshrl.u32 %v885, 7
      %v887 = vsub.s32 0, %v886
      %v888 = vrot.slane %v883, %v887
      %v890 = vsel %vm393, %v336, 0
      %v892 = vsel %vm393, %v337, 0
      %v894 = vsel %vm393, %v338, 0
      %v896 = vsel %vm393, %v339, 0
      %v898 = vsel %vm393, %v340, 0
      %v900 = vsel %vm393, %v341, 0
      %v902 = vsel %vm393, %v342, 0
      %v904 = vsel %vm393, %v343, 0
      %v906 = vsel %vm393, %v344, 0
      %v908 = vsel %vm393, %v345, 0
      %v910 = vsel %vm393, %v346, 0
      %v912 = vsel %vm393, %v347, 0
      %914 = vmatprep.subr.mxu0 0.0
      %915 = vmatpush1.msra.mxu0 %v881
      %916 = vmatprep.subr.mxu0 0.0
      %917 = vmatpush1.msra.mxu0 %v882
      %918 = vmatprep.subr.mxu0 0.0
      %919 = vmatpush1.msra.mxu0 0.0
      %920 = vmatprep.subr.mxu0 0.0
      %921 = vmatpush1.msra.mxu0 0.0
      %922 = vmatprep.subr.mxu0 0.0
      %923 = vmatpush1.msra.mxu0 0.0
      %924 = vmatprep.subr.mxu0 0.0
      %925 = vmatpush1.msra.mxu0 0.0
      %926 = vmatprep.subr.mxu0 0.0
      %927 = vmatpush1.msra.mxu0 0.0
      %928 = vmatprep.subr.mxu0 0.0
      %929 = vmatpush1.msra.mxu0 0.0
      %930 = vmatprep.subr.mxu0 0.0
      %931 = vmatpush1.msra.mxu0 0.0
      %932 = vmatprep.subr.mxu0 0.0
      %933 = vmatpush1.msra.mxu0 0.0
      %934 = vmatprep.subr.mxu0 0.0
      %935 = vmatpush1.msra.mxu0 0.0
      %936 = vmatprep.subr.mxu0 0.0
      %937 = vmatpush1.msra.mxu0 0.0
      %938 = vmatprep.subr.mxu0 0.0
      %939 = vmatpush1.msra.mxu0 0.0
      %940 = vmatprep.subr.mxu0 0.0
      %941 = vmatpush1.msra.mxu0 0.0
      %942 = vmatprep.subr.mxu0 0.0
      %943 = vmatpush1.msra.mxu0 0.0
      %944 = vmatprep.subr.mxu0 0.0
      %945 = vmatpush1.msra.mxu0 0.0
      %946 = vmatprep.subr.mxu0 0.0
      %947 = vmatpush1.msra.mxu0 0.0
      %948 = vmatprep.subr.mxu0 0.0
      %949 = vmatpush1.msra.mxu0 0.0
      %950 = vmatprep.subr.mxu0 0.0
      %951 = vmatpush1.msra.mxu0 0.0
      %952 = vmatprep.subr.mxu0 0.0
      %953 = vmatpush1.msra.mxu0 0.0
      %954 = vmatprep.subr.mxu0 0.0
      %955 = vmatpush1.msra.mxu0 0.0
      %956 = vmatprep.subr.mxu0 0.0
      %957 = vmatpush1.msra.mxu0 0.0
      %958 = vmatprep.subr.mxu0 0.0
      %959 = vmatpush1.msra.mxu0 0.0
      %960 = vmatprep.subr.mxu0 0.0
      %961 = vmatpush1.msra.mxu0 0.0
      %962 = vmatprep.subr.mxu0 0.0
      %963 = vmatpush1.msra.mxu0 0.0
      %964 = vmatprep.subr.mxu0 0.0
      %965 = vmatpush1.msra.mxu0 0.0
      %966 = vmatprep.subr.mxu0 0.0
      %967 = vmatpush1.msra.mxu0 0.0
      %968 = vmatprep.subr.mxu0 0.0
      %969 = vmatpush1.msra.mxu0 0.0
      %970 = vmatprep.subr.mxu0 0.0
      %971 = vmatpush1.msra.mxu0 0.0
      %972 = vmatprep.subr.mxu0 0.0
      %973 = vmatpush1.msra.mxu0 0.0
      %974 = vmatprep.subr.mxu0 0.0
      %975 = vmatpush1.msra.mxu0 0.0
      %976 = vmatprep.subr.mxu0 0.0
      %977 = vmatpush1.msra.mxu0 0.0
      %978 = vmatprep.mubr.f32.mxu0 0.0
      %979 = vmatmul.mubr.f32.gmra.mrb[0].mxu0 %v890
      %v980 = vpop.f32.mrb[0].mxu0
      %v981 = vadd.f32 %v888, %v980
      %v982 = vpop.f32.mrb[0].mxu0
      %983 = vmatprep.mubr.f32.mxu0 0.0
      %984 = vmatmul.mubr.f32.gmra.mrb[0].mxu0 %v892
      %v985 = vpop.f32.mrb[0].mxu0
      %v986 = vadd.f32 %v888, %v985
      %v987 = vpop.f32.mrb[0].mxu0
      %988 = vmatprep.mubr.f32.mxu0 0.0
      %989 = vmatmul.mubr.f32.gmra.mrb[0].mxu0 %v894
      %v990 = vpop.f32.mrb[0].mxu0
      %v991 = vadd.f32 %v888, %v990
      %v992 = vpop.f32.mrb[0].mxu0
      %993 = vmatprep.mubr.f32.mxu0 0.0
      %994 = vmatmul.mubr.f32.gmra.mrb[0].mxu0 %v896
      %v995 = vpop.f32.mrb[0].mxu0
      %v996 = vadd.f32 %v888, %v995
      %v997 = vpop.f32.mrb[0].mxu0
      %998 = vmatprep.mubr.f32.mxu0 0.0
      %999 = vmatmul.mubr.f32.gmra.mrb[0].mxu0 %v898
      %v1000 = vpop.f32.mrb[0].mxu0
      %v1001 = vadd.f32 %v888, %v1000
      %v1002 = vpop.f32.mrb[0].mxu0
      %1003 = vmatprep.mubr.f32.mxu0 0.0
      %1004 = vmatmul.mubr.f32.gmra.mrb[0].mxu0 %v900
      %v1005 = vpop.f32.mrb[0].mxu0
      %v1006 = vadd.f32 %v888, %v1005
      %v1007 = vpop.f32.mrb[0].mxu0
      %1008 = vmatprep.mubr.f32.mxu0 0.0
      %1009 = vmatmul.mubr.f32.gmra.mrb[0].mxu0 %v902
      %v1010 = vpop.f32.mrb[0].mxu0
      %v1011 = vadd.f32 %v888, %v1010
      %v1012 = vpop.f32.mrb[0].mxu0
      %1013 = vmatprep.mubr.f32.mxu0 0.0
      %1014 = vmatmul.mubr.f32.gmra.mrb[0].mxu0 %v904
      %v1015 = vpop.f32.mrb[0].mxu0
      %v1016 = vadd.f32 %v888, %v1015
      %v1017 = vpop.f32.mrb[0].mxu0
      %1018 = vmatprep.mubr.f32.mxu0 0.0
      %1019 = vmatmul.mubr.f32.gmra.mrb[0].mxu0 %v906
      %v1020 = vpop.f32.mrb[0].mxu0
      %v1021 = vadd.f32 %v888, %v1020
      %v1022 = vpop.f32.mrb[0].mxu0
      %1023 = vmatprep.mubr.f32.mxu0 0.0
      %1024 = vmatmul.mubr.f32.gmra.mrb[0].mxu0 %v908
      %v1025 = vpop.f32.mrb[0].mxu0
      %v1026 = vadd.f32 %v888, %v1025
      %v1027 = vpop.f32.mrb[0].mxu0
      %1028 = vmatprep.mubr.f32.mxu0 0.0
      %1029 = vmatmul.mubr.f32.gmra.mrb[0].mxu0 %v910
      %v1030 = vpop.f32.mrb[0].mxu0
      %v1031 = vadd.f32 %v888, %v1030
      %v1032 = vpop.f32.mrb[0].mxu0
      %1033 = vmatprep.mubr.f32.mxu0 0.0
      %1034 = vmatmul.mubr.f32.gmra.mrb[0].mxu0 %v912
      %v1035 = vpop.f32.mrb[0].mxu0
      %v1036 = vadd.f32 %v888, %v1035
      %v1037 = vpop.f32.mrb[0].mxu0
      %1038 = vdwg.mxu0
      %v1039 = vmax.f32 %v981, 0.0
      %v1040 = vmax.f32 %v986, 0.0
      %v1041 = vmax.f32 %v991, 0.0
      %v1042 = vmax.f32 %v996, 0.0
      %v1043 = vmax.f32 %v1001, 0.0
      %v1044 = vmax.f32 %v1006, 0.0
      %v1045 = vmax.f32 %v1011, 0.0
      %v1046 = vmax.f32 %v1016, 0.0
      %v1047 = vmax.f32 %v1021, 0.0
      %v1048 = vmax.f32 %v1026, 0.0
      %v1049 = vmax.f32 %v1031, 0.0
      %v1050 = vmax.f32 %v1036, 0.0
      %v1051 = vld [vmem:[%s7] sm:$0xff]
      %v1052 = vld [vmem:[%s8] sm:$0x1]
      %v1054 = vlaneseq
      %v1055 = vshrl.u32 %v1054, 7
      %v1056 = vsub.s32 0, %v1055
      %v1057 = vrot.slane %v1052, %v1056
      %v1060 = vsel %vm563, %v1039, 0
      %v1063 = vsel %vm563, %v1040, 0
      %v1066 = vsel %vm563, %v1041, 0
      %v1069 = vsel %vm563, %v1042, 0
      %v1072 = vsel %vm563, %v1043, 0
      %v1075 = vsel %vm563, %v1044, 0
      %v1078 = vsel %vm563, %v1045, 0
      %v1081 = vsel %vm563, %v1046, 0
      %v1084 = vsel %vm563, %v1047, 0
      %v1087 = vsel %vm563, %v1048, 0
      %v1090 = vsel %vm563, %v1049, 0
      %v1093 = vsel %vm563, %v1050, 0
      %1095 = vmatprep.subr.mxu0 0.0
      %1096 = vmatpush1.msra.mxu0 %v1051
      %1097 = vmatprep.subr.mxu0 0.0
      %1098 = vmatpush1.msra.mxu0 0.0
      %1099 = vmatprep.subr.mxu0 0.0
      %1100 = vmatpush1.msra.mxu0 0.0
      %1101 = vmatprep.subr.mxu0 0.0
      %1102 = vmatpush1.msra.mxu0 0.0
      %1103 = vmatprep.subr.mxu0 0.0
      %1104 = vmatpush1.msra.mxu0 0.0
      %1105 = vmatprep.subr.mxu0 0.0
      %1106 = vmatpush1.msra.mxu0 0.0
      %1107 = vmatprep.subr.mxu0 0.0
      %1108 = vmatpush1.msra.mxu0 0.0
      %1109 = vmatprep.subr.mxu0 0.0
      %1110 = vmatpush1.msra.mxu0 0.0
      %1111 = vmatprep.subr.mxu0 0.0
      %1112 = vmatpush1.msra.mxu0 0.0
      %1113 = vmatprep.subr.mxu0 0.0
      %1114 = vmatpush1.msra.mxu0 0.0
      %1115 = vmatprep.subr.mxu0 0.0
      %1116 = vmatpush1.msra.mxu0 0.0
      %1117 = vmatprep.subr.mxu0 0.0
      %1118 = vmatpush1.msra.mxu0 0.0
      %1119 = vmatprep.subr.mxu0 0.0
      %1120 = vmatpush1.msra.mxu0 0.0
      %1121 = vmatprep.subr.mxu0 0.0
      %1122 = vmatpush1.msra.mxu0 0.0
      %1123 = vmatprep.subr.mxu0 0.0
      %1124 = vmatpush1.msra.mxu0 0.0
      %1125 = vmatprep.subr.mxu0 0.0
      %1126 = vmatpush1.msra.mxu0 0.0
      %1127 = vmatprep.subr.mxu0 0.0
      %1128 = vmatpush1.msra.mxu0 0.0
      %1129 = vmatprep.subr.mxu0 0.0
      %1130 = vmatpush1.msra.mxu0 0.0
      %1131 = vmatprep.subr.mxu0 0.0
      %1132 = vmatpush1.msra.mxu0 0.0
      %1133 = vmatprep.subr.mxu0 0.0
      %1134 = vmatpush1.msra.mxu0 0.0
      %1135 = vmatprep.subr.mxu0 0.0
      %1136 = vmatpush1.msra.mxu0 0.0
      %1137 = vmatprep.subr.mxu0 0.0
      %1138 = vmatpush1.msra.mxu0 0.0
      %1139 = vmatprep.subr.mxu0 0.0
      %1140 = vmatpush1.msra.mxu0 0.0
      %1141 = vmatprep.subr.mxu0 0.0
      %1142 = vmatpush1.msra.mxu0 0.0
      %1143 = vmatprep.subr.mxu0 0.0
      %1144 = vmatpush1.msra.mxu0 0.0
      %1145 = vmatprep.subr.mxu0 0.0
      %1146 = vmatpush1.msra.mxu0 0.0
      %1147 = vmatprep.subr.mxu0 0.0
      %1148 = vmatpush1.msra.mxu0 0.0
      %1149 = vmatprep.subr.mxu0 0.0
      %1150 = vmatpush1.msra.mxu0 0.0
      %1151 = vmatprep.subr.mxu0 0.0
      %1152 = vmatpush1.msra.mxu0 0.0
      %1153 = vmatprep.subr.mxu0 0.0
      %1154 = vmatpush1.msra.mxu0 0.0
      %1155 = vmatprep.subr.mxu0 0.0
      %1156 = vmatpush1.msra.mxu0 0.0
      %1157 = vmatprep.subr.mxu0 0.0
      %1158 = vmatpush1.msra.mxu0 0.0
      %1159 = vmatprep.mubr.f32.mxu0 0.0
      %1160 = vmatmul.mubr.f32.gmra.mrb[0].mxu0 %v1060
      %v1161 = vpop.f32.mrb[0].mxu0
      %v1162 = vadd.f32 %v1057, %v1161
      %v1163 = vpop.f32.mrb[0].mxu0
      %1164 = vmatprep.mubr.f32.mxu0 0.0
      %1165 = vmatmul.mubr.f32.gmra.mrb[0].mxu0 %v1063
      %v1166 = vpop.f32.mrb[0].mxu0
      %v1167 = vadd.f32 %v1057, %v1166
      %v1168 = vpop.f32.mrb[0].mxu0
      %1169 = vmatprep.mubr.f32.mxu0 0.0
      %1170 = vmatmul.mubr.f32.gmra.mrb[0].mxu0 %v1066
      %v1171 = vpop.f32.mrb[0].mxu0
      %v1172 = vadd.f32 %v1057, %v1171
      %v1173 = vpop.f32.mrb[0].mxu0
      %1174 = vmatprep.mubr.f32.mxu0 0.0
      %1175 = vmatmul.mubr.f32.gmra.mrb[0].mxu0 %v1069
      %v1176 = vpop.f32.mrb[0].mxu0
      %v1177 = vadd.f32 %v1057, %v1176
      %v1178 = vpop.f32.mrb[0].mxu0
      %1179 = vmatprep.mubr.f32.mxu0 0.0
      %1180 = vmatmul.mubr.f32.gmra.mrb[0].mxu0 %v1072
      %v1181 = vpop.f32.mrb[0].mxu0
      %v1182 = vadd.f32 %v1057, %v1181
      %v1183 = vpop.f32.mrb[0].mxu0
      %1184 = vmatprep.mubr.f32.mxu0 0.0
      %1185 = vmatmul.mubr.f32.gmra.mrb[0].mxu0 %v1075
      %v1186 = vpop.f32.mrb[0].mxu0
      %v1187 = vadd.f32 %v1057, %v1186
      %v1188 = vpop.f32.mrb[0].mxu0
      %1189 = vmatprep.mubr.f32.mxu0 0.0
      %1190 = vmatmul.mubr.f32.gmra.mrb[0].mxu0 %v1078
      %v1191 = vpop.f32.mrb[0].mxu0
      %v1192 = vadd.f32 %v1057, %v1191
      %v1193 = vpop.f32.mrb[0].mxu0
      %1194 = vmatprep.mubr.f32.mxu0 0.0
      %1195 = vmatmul.mubr.f32.gmra.mrb[0].mxu0 %v1081
      %v1196 = vpop.f32.mrb[0].mxu0
      %v1197 = vadd.f32 %v1057, %v1196
      %v1198 = vpop.f32.mrb[0].mxu0
      %1199 = vmatprep.mubr.f32.mxu0 0.0
      %1200 = vmatmul.mubr.f32.gmra.mrb[0].mxu0 %v1084
      %v1201 = vpop.f32.mrb[0].mxu0
      %v1202 = vadd.f32 %v1057, %v1201
      %v1203 = vpop.f32.mrb[0].mxu0
      %1204 = vmatprep.mubr.f32.mxu0 0.0
      %1205 = vmatmul.mubr.f32.gmra.mrb[0].mxu0 %v1087
      %v1206 = vpop.f32.mrb[0].mxu0
      %v1207 = vadd.f32 %v1057, %v1206
      %v1208 = vpop.f32.mrb[0].mxu0
      %1209 = vmatprep.mubr.f32.mxu0 0.0
      %1210 = vmatmul.mubr.f32.gmra.mrb[0].mxu0 %v1090
      %v1211 = vpop.f32.mrb[0].mxu0
      %v1212 = vadd.f32 %v1057, %v1211
      %v1213 = vpop.f32.mrb[0].mxu0
      %1214 = vmatprep.mubr.f32.mxu0 0.0
      %1215 = vmatmul.mubr.f32.gmra.mrb[0].mxu0 %v1093
      %v1216 = vpop.f32.mrb[0].mxu0
      %v1217 = vadd.f32 %v1057, %v1216
      %v1218 = vpop.f32.mrb[0].mxu0
      %1219 = vdwg.mxu0
      %v1220 = vsub.f32 0.0, %v1162
      %v1221 = vsub.f32 0.0, %v1167
      %v1222 = vsub.f32 0.0, %v1172
      %v1223 = vsub.f32 0.0, %v1177
      %v1224 = vsub.f32 0.0, %v1182
      %v1225 = vsub.f32 0.0, %v1187
      %v1226 = vsub.f32 0.0, %v1192
      %v1227 = vsub.f32 0.0, %v1197
      %v1228 = vsub.f32 0.0, %v1202
      %v1229 = vsub.f32 0.0, %v1207
      %v1230 = vsub.f32 0.0, %v1212
      %v1231 = vsub.f32 0.0, %v1217
      %v1232 = vmul.f32 %v1220, 1.442695
      %v1233 = vpow.pop %v1232
      %v1234 = vmul.f32 %v1221, 1.442695
      %v1235 = vpow.pop %v1234
      %v1236 = vmul.f32 %v1222, 1.442695
      %v1237 = vpow.pop %v1236
      %v1238 = vmul.f32 %v1223, 1.442695
      %v1239 = vpow.pop %v1238
      %v1240 = vmul.f32 %v1224, 1.442695
      %v1241 = vpow.pop %v1240
      %v1242 = vmul.f32 %v1225, 1.442695
      %v1243 = vpow.pop %v1242
      %v1244 = vmul.f32 %v1226, 1.442695
      %v1245 = vpow.pop %v1244
      %v1246 = vmul.f32 %v1227, 1.442695
      %v1247 = vpow.pop %v1246
      %v1248 = vmul.f32 %v1228, 1.442695
      %v1249 = vpow.pop %v1248
      %v1250 = vmul.f32 %v1229, 1.442695
      %v1251 = vpow.pop %v1250
      %v1252 = vmul.f32 %v1230, 1.442695
      %v1253 = vpow.pop %v1252
      %v1254 = vmul.f32 %v1231, 1.442695
      %v1255 = vpow.pop %v1254
      %v1256 = vadd.f32 %v1233, 1.0
      %v1257 = vadd.f32 %v1235, 1.0
      %v1258 = vadd.f32 %v1237, 1.0
      %v1259 = vadd.f32 %v1239, 1.0
      %v1260 = vadd.f32 %v1241, 1.0
      %v1261 = vadd.f32 %v1243, 1.0
      %v1262 = vadd.f32 %v1245, 1.0
      %v1263 = vadd.f32 %v1247, 1.0
      %v1264 = vadd.f32 %v1249, 1.0
      %v1265 = vadd.f32 %v1251, 1.0
      %v1266 = vadd.f32 %v1253, 1.0
      %v1267 = vadd.f32 %v1255, 1.0
      %v1268 = vrcp.pop %v1256
      %v1269 = vmul.f32 1.0, %v1268
      %v1270 = vrcp.pop %v1257
      %v1271 = vmul.f32 1.0, %v1270
      %v1272 = vrcp.pop %v1258
      %v1273 = vmul.f32 1.0, %v1272
      %v1274 = vrcp.pop %v1259
      %v1275 = vmul.f32 1.0, %v1274
      %v1276 = vrcp.pop %v1260
      %v1277 = vmul.f32 1.0, %v1276
      %v1278 = vrcp.pop %v1261
      %v1279 = vmul.f32 1.0, %v1278
      %v1280 = vrcp.pop %v1262
      %v1281 = vmul.f32 1.0, %v1280
      %v1282 = vrcp.pop %v1263
      %v1283 = vmul.f32 1.0, %v1282
      %v1284 = vrcp.pop %v1264
      %v1285 = vmul.f32 1.0, %v1284
      %v1286 = vrcp.pop %v1265
      %v1287 = vmul.f32 1.0, %v1286
      %v1288 = vrcp.pop %v1266
      %v1289 = vmul.f32 1.0, %v1288
      %v1290 = vrcp.pop %v1267
      %v1291 = vmul.f32 1.0, %v1290
      %1304 = vrot.lane.b32.xlu0 %v1269, 16
      %v1305 = vpop.permute.xlu0 %1304
      %1306 = vrot.lane.b32.xlu0 %v1271, 16
      %v1307 = vpop.permute.xlu0 %1306
      %1308 = vrot.lane.b32.xlu0 %v1273, 16
      %v1309 = vpop.permute.xlu0 %1308
      %1310 = vrot.lane.b32.xlu0 %v1275, 16
      %v1311 = vpop.permute.xlu0 %1310
      %1312 = vrot.lane.b32.xlu0 %v1277, 16
      %v1313 = vpop.permute.xlu0 %1312
      %1314 = vrot.lane.b32.xlu0 %v1279, 16
      %v1315 = vpop.permute.xlu0 %1314
      %1316 = vrot.lane.b32.xlu0 %v1281, 16
      %v1317 = vpop.permute.xlu0 %1316
      %1318 = vrot.lane.b32.xlu0 %v1283, 16
      %v1319 = vpop.permute.xlu0 %1318
      %1320 = vrot.lane.b32.xlu0 %v1285, 16
      %v1321 = vpop.permute.xlu0 %1320
      %1322 = vrot.lane.b32.xlu0 %v1287, 16
      %v1323 = vpop.permute.xlu0 %1322
      %1324 = vrot.lane.b32.xlu0 %v1289, 16
      %v1325 = vpop.permute.xlu0 %1324
      %1326 = vrot.lane.b32.xlu0 %v1291, 16
      %v1327 = vpop.permute.xlu0 %1326
      %v1340 = vmul.f32 %v336, %v1305
      %v1341 = vmul.f32 %v337, %v1307
      %v1342 = vmul.f32 %v338, %v1309
      %v1343 = vmul.f32 %v339, %v1311
      %v1344 = vmul.f32 %v340, %v1313
      %v1345 = vmul.f32 %v341, %v1315
      %v1346 = vmul.f32 %v342, %v1317
      %v1347 = vmul.f32 %v343, %v1319
      %v1348 = vmul.f32 %v344, %v1321
      %v1349 = vmul.f32 %v345, %v1323
      %v1350 = vmul.f32 %v346, %v1325
      %v1351 = vmul.f32 %v347, %v1327
      %v1352 = vadd.f32 %v1340, %v1162
      %v1353 = vadd.f32 %v1341, %v1167
      %v1354 = vadd.f32 %v1342, %v1172
      %v1355 = vadd.f32 %v1343, %v1177
      %v1356 = vadd.f32 %v1344, %v1182
      %v1357 = vadd.f32 %v1345, %v1187
      %v1358 = vadd.f32 %v1346, %v1192
      %v1359 = vadd.f32 %v1347, %v1197
      %v1360 = vadd.f32 %v1348, %v1202
      %v1361 = vadd.f32 %v1349, %v1207
      %v1362 = vadd.f32 %v1350, %v1212
      %v1363 = vadd.f32 %v1351, %v1217
      %vm1364 = vcmask 261248
      %1365 = vst.msk [vmem:[%s334] sm:$0xff] %vm1364, %v1352
      %1366 = vst.msk [vmem:[%s334 + $0x8] sm:$0xff] %vm1364, %v1353
      %1367 = vst.msk [vmem:[%s334 + $0x10] sm:$0xff] %vm1364, %v1354
      %1368 = vst.msk [vmem:[%s334 + $0x18] sm:$0xff] %vm1364, %v1355
      %1369 = vst.msk [vmem:[%s334 + $0x20] sm:$0xff] %vm1364, %v1356
      %1370 = vst.msk [vmem:[%s334 + $0x28] sm:$0xff] %vm1364, %v1357
      %1371 = vst.msk [vmem:[%s334 + $0x30] sm:$0xff] %vm1364, %v1358
      %1372 = vst.msk [vmem:[%s334 + $0x38] sm:$0xff] %vm1364, %v1359
      %1373 = vst.msk [vmem:[%s334 + $0x40] sm:$0xff] %vm1364, %v1360
      %1374 = vst.msk [vmem:[%s334 + $0x48] sm:$0xff] %vm1364, %v1361
      %1375 = vst.msk [vmem:[%s334 + $0x50] sm:$0xff] %vm1364, %v1362
      %1376 = vst.msk [vmem:[%s334 + $0x58] sm:$0xff] %vm1364, %v1363
      %s1377 = smul.u32 12, %s20
      %p1378 = scmp.lt.s32.totalorder %s1377, 71
      %s1379 = scalar_select %p1378, %s1377, 71
      %s1380 = smul.addr %s1379, 8
      %s1381 = scalar_lea.vmem %s9, %s1380
      // Predicated region
      $region57: #{maconv_forward.2} parent=55 // pred_check
        %p1382 = pneg %p232
      $region58: #{maconv_forward.2} parent=55 // pred_check_branch
        %1384 = sbr.rel (%p1382) target = $region60
      $region59: #{maconv_forward.2} parent=55 // pred_region
        %s1385 = smul.u32 12, %s20
      $region60: #{maconv_forward.2} parent=55 // pred_fallthru
        _
    $region56: #{maconv_forward.2} parent=5 // pred_fallthru
      _
    %p1386 = scmp.le.s32.totalorder 2, %s15
    // Predicated region
    $region61: #{maconv_forward.2} parent=5 // pred_check
      %p1387 = pneg %p1386
    $region62: #{maconv_forward.2} parent=5 // pred_check_branch
      %1389 = sbr.rel (%p1387) target = $region64
    $region63: #{maconv_forward.2} parent=5 // pred_region
      %s1390 = ssub.s32 %s15, 2
      // Predicated region
      $region65: #{maconv_forward.2} parent=63 // pred_check
        %p1391 = pneg %p238
      $region66: #{maconv_forward.2} parent=63 // pred_check_branch
        %1393 = sbr.rel (%p1391) target = $region68
      $region67: #{maconv_forward.2} parent=63 // pred_region
        %s1394 = smul.u32 12, %s21
        %p1395 = scmp.lt.s32.totalorder %s1394, 71
        %s1396 = scalar_select %p1395, %s1394, 71
        %s1397 = smul.addr %s1396, 8
        %s1398 = scalar_lea.vmem %s9, %s1397
      $region68: #{maconv_forward.2} parent=63 // pred_fallthru
        _
    $region64: #{maconv_forward.2} parent=5 // pred_fallthru
      _
  $region6: #{maconv_forward.2} parent=0 // loop_footer
    %s19 = sadd.s32 1, %s15
  $region7: #{maconv_forward.2} parent=0 // loop_footer_branch
    %14 = sbr.rel target = $region3
  $region8: #{maconv_forward.2} parent=0 // loop_exit
    _

// kernel: maconv_forward.3
$region0: #{maconv_forward.3}
  #allocation0 [shape = 'u32[]', space=smem, size = 0x4, offset = 0x4, fixed_abs, tag = 'smem constant byte address 0x4 - core index']
  #allocation1 [shape = 'u32[144,128]{1,0:T(1,128)}', space=vmem, size = 0x12000, scoped, tag = 'internal scratch']
  %s0 = inlined_call_operand.vmem [shape: f32[2,326,32], index: 0, kind: input, shape index: {}]
  %s1 = inlined_call_operand.vmem [shape: f32[9,16,16], index: 1, kind: input, shape index: {}]
  %s2 = inlined_call_operand.vmem [shape: f32[1,16], index: 2, kind: input, shape index: {}]
  %s3 = inlined_call_operand.vmem [shape: f32[9,16,16], index: 3, kind: input, shape index: {}]
  %s4 = inlined_call_operand.vmem [shape: f32[1,16], index: 4, kind: input, shape index: {}]
  %s5 = inlined_call_operand.vmem [shape: f32[2,288,32], index: 5, kind: output, shape index: {}]
  %s6 = sld [smem:[#allocation0]]
  $region53: #{maconv_forward.3} parent=0
    _
  %s8 = ssub.s32 1, %s6
  %s9 = scalar_select 0, %s8, %s6
  loop: start=0, step=1, limit=4
  $region2: #{maconv_forward.3} parent=0 // loop_pre_header
    _
  $region3: #{maconv_forward.3} parent=0 // loop_header
    %s11 = sphi 0, %s15
    %p12 = scmp.ge.s32.totalorder %s11, 4
    %s21 = sphi 0, %s23
    %s24 = sphi 0, %s21
    %s25 = sphi 0, %s24
    %s41 = sphi 0, %s25
    %s45 = sphi 0, %s45
    %s47 = sphi 0, %s45
    %s48 = sphi 0, %s47
    %s62 = sphi 0, %s48
    %s66 = sphi 0, %s66
    %s68 = sphi 0, %s66
    %s69 = sphi 0, %s68
    %s83 = sphi 0, %s69
    %s87 = sphi 0, %s87
    %s89 = sphi 0, %s87
    %s90 = sphi 0, %s89
    %s104 = sphi 0, %s90
    %s108 = sphi 0, %s108
    %s110 = sphi 0, %s108
    %s111 = sphi 0, %s110
    %s125 = sphi 0, %s111
    %s131 = sphi 0, %s133
    %s134 = sphi 0, %s131
    %s135 = sphi 0, %s134
    %s151 = sphi 0, %s135
  $region4: #{maconv_forward.3} parent=0 // loop_header_branch
    %14 = sbr.rel (%p12) target = $region8
  $region5: #{maconv_forward.3} parent=0 // loop_body
    %s16 = ssub.s32 %s11, 1
    %s17 = ssub.s32 %s11, 2
    %s18 = sadd.s32 %s11, 1
    %s19 = ssub.s32 %s11, %s18
    %p20 = scmp.eq.s32.totalorder %s19, 0
    %s22 = sadd.s32 %s21, 1
    %s23 = scalar_select %p20, %s21, %s22
    %p26 = pneg %p20
    %p27 = scmp.eq.s32.totalorder %s11, 1
    %p28 = por %p26, %p27
    %p29 = scmp.ne.s32.totalorder %s21, %s24
    %p30 = scmp.eq.s32.totalorder %s11, 0
    %p31 = por %p29, %p30
    %p32 = scmp.ne.s32.totalorder %s21, %s24
    %p33 = scmp.eq.s32.totalorder %s16, 1
    %p34 = por %p32, %p33
    %p35 = scmp.ne.s32.totalorder %s24, %s25
    %p36 = scmp.eq.s32.totalorder %s16, 0
    %p37 = por %p35, %p36
    %p38 = scmp.ne.s32.totalorder %s24, %s25
    %p39 = scmp.eq.s32.totalorder %s17, 1
    %p40 = por %p38, %p39
    %p42 = scmp.ne.s32.totalorder %s25, %s41
    %p43 = scmp.eq.s32.totalorder %s17, 0
    %p44 = por %p42, %p43
    %s46 = sadd.s32 %s45, 1
    %p49 = scmp.eq.s32.totalorder %s11, 1
    %p50 = scmp.ne.s32.totalorder %s45, %s47
    %p51 = scmp.eq.s32.totalorder %s11, 0
    %p52 = por %p50, %p51
    %p53 = scmp.ne.s32.totalorder %s45, %s47
    %p54 = scmp.eq.s32.totalorder %s16, 1
    %p55 = por %p53, %p54
    %p56 = scmp.ne.s32.totalorder %s47, %s48
    %p57 = scmp.eq.s32.totalorder %s16, 0
    %p58 = por %p56, %p57
    %p59 = scmp.ne.s32.totalorder %s47, %s48
    %p60 = scmp.eq.s32.totalorder %s17, 1
    %p61 = por %p59, %p60
    %p63 = scmp.ne.s32.totalorder %s48, %s62
    %p64 = scmp.eq.s32.totalorder %s17, 0
    %p65 = por %p63, %p64
    %s67 = sadd.s32 %s66, 1
    %p70 = scmp.eq.s32.totalorder %s11, 1
    %p71 = scmp.ne.s32.totalorder %s66, %s68
    %p72 = scmp.eq.s32.totalorder %s11, 0
    %p73 = por %p71, %p72
    %p74 = scmp.ne.s32.totalorder %s66, %s68
    %p75 = scmp.eq.s32.totalorder %s16, 1
    %p76 = por %p74, %p75
    %p77 = scmp.ne.s32.totalorder %s68, %s69
    %p78 = scmp.eq.s32.totalorder %s16, 0
    %p79 = por %p77, %p78
    %p80 = scmp.ne.s32.totalorder %s68, %s69
    %p81 = scmp.eq.s32.totalorder %s17, 1
    %p82 = por %p80, %p81
    %p84 = scmp.ne.s32.totalorder %s69, %s83
    %p85 = scmp.eq.s32.totalorder %s17, 0
    %p86 = por %p84, %p85
    %s88 = sadd.s32 %s87, 1
    %p91 = scmp.eq.s32.totalorder %s11, 1
    %p92 = scmp.ne.s32.totalorder %s87, %s89
    %p93 = scmp.eq.s32.totalorder %s11, 0
    %p94 = por %p92, %p93
    %p95 = scmp.ne.s32.totalorder %s87, %s89
    %p96 = scmp.eq.s32.totalorder %s16, 1
    %p97 = por %p95, %p96
    %p98 = scmp.ne.s32.totalorder %s89, %s90
    %p99 = scmp.eq.s32.totalorder %s16, 0
    %p100 = por %p98, %p99
    %p101 = scmp.ne.s32.totalorder %s89, %s90
    %p102 = scmp.eq.s32.totalorder %s17, 1
    %p103 = por %p101, %p102
    %p105 = scmp.ne.s32.totalorder %s90, %s104
    %p106 = scmp.eq.s32.totalorder %s17, 0
    %p107 = por %p105, %p106
    %s109 = sadd.s32 %s108, 1
    %p112 = scmp.eq.s32.totalorder %s11, 1
    %p113 = scmp.ne.s32.totalorder %s108, %s110
    %p114 = scmp.eq.s32.totalorder %s11, 0
    %p115 = por %p113, %p114
    %p116 = scmp.ne.s32.totalorder %s108, %s110
    %p117 = scmp.eq.s32.totalorder %s16, 1
    %p118 = por %p116, %p117
    %p119 = scmp.ne.s32.totalorder %s110, %s111
    %p120 = scmp.eq.s32.totalorder %s16, 0
    %p121 = por %p119, %p120
    %p122 = scmp.ne.s32.totalorder %s110, %s111
    %p123 = scmp.eq.s32.totalorder %s17, 1
    %p124 = por %p122, %p123
    %p126 = scmp.ne.s32.totalorder %s111, %s125
    %p127 = scmp.eq.s32.totalorder %s17, 0
    %p128 = por %p126, %p127
    %s129 = ssub.s32 %s11, %s18
    %p130 = scmp.eq.s32.totalorder %s129, 0
    %s132 = sadd.s32 %s131, 1
    %s133 = scalar_select %p130, %s131, %s132
    %p136 = pneg %p130
    %p137 = scmp.eq.s32.totalorder %s11, 1
    %p138 = por %p136, %p137
    %p139 = scmp.ne.s32.totalorder %s131, %s134
    %p140 = scmp.eq.s32.totalorder %s11, 0
    %p141 = por %p139, %p140
    %p142 = scmp.ne.s32.totalorder %s131, %s134
    %p143 = scmp.eq.s32.totalorder %s16, 1
    %p144 = por %p142, %p143
    %p145 = scmp.ne.s32.totalorder %s134, %s135
    %p146 = scmp.eq.s32.totalorder %s16, 0
    %p147 = por %p145, %p146
    %p148 = scmp.ne.s32.totalorder %s134, %s135
    %p149 = scmp.eq.s32.totalorder %s17, 1
    %p150 = por %p148, %p149
    %p152 = scmp.ne.s32.totalorder %s135, %s151
    %p153 = scmp.eq.s32.totalorder %s17, 0
    %p154 = por %p152, %p153
    %p155 = scmp.le.s32.totalorder 1, %s11
    %p156 = scmp.lt.s32.totalorder %s11, 3
    %p157 = pnand %p155, %p156
    %p158 = pneg %p157
    // Predicated region
    $region9: #{maconv_forward.3} parent=5 // pred_check
      _
    $region10: #{maconv_forward.3} parent=5 // pred_check_branch
      %160 = sbr.rel (%p157) target = $region12
    $region11: #{maconv_forward.3} parent=5 // pred_region
      %s161 = ssub.s32 %s11, 1
      // Predicated region
      $region13: #{maconv_forward.3} parent=11 // pred_check
        %p162 = pneg %p58
      $region14: #{maconv_forward.3} parent=11 // pred_check_branch
        %164 = sbr.rel (%p162) target = $region16
      $region15: #{maconv_forward.3} parent=11 // pred_region
        _
      $region16: #{maconv_forward.3} parent=11 // pred_fallthru
        _
      // Predicated region
      $region17: #{maconv_forward.3} parent=11 // pred_check
        %p165 = pneg %p79
      $region18: #{maconv_forward.3} parent=11 // pred_check_branch
        %167 = sbr.rel (%p165) target = $region20
      $region19: #{maconv_forward.3} parent=11 // pred_region
        _
      $region20: #{maconv_forward.3} parent=11 // pred_fallthru
        _
      // Predicated region
      $region21: #{maconv_forward.3} parent=11 // pred_check
        %p168 = pneg %p100
      $region22: #{maconv_forward.3} parent=11 // pred_check_branch
        %170 = sbr.rel (%p168) target = $region24
      $region23: #{maconv_forward.3} parent=11 // pred_region
        _
      $region24: #{maconv_forward.3} parent=11 // pred_fallthru
        _
      // Predicated region
      $region25: #{maconv_forward.3} parent=11 // pred_check
        %p171 = pneg %p121
      $region26: #{maconv_forward.3} parent=11 // pred_check_branch
        %173 = sbr.rel (%p171) target = $region28
      $region27: #{maconv_forward.3} parent=11 // pred_region
        _
      $region28: #{maconv_forward.3} parent=11 // pred_fallthru
        _
    $region12: #{maconv_forward.3} parent=5 // pred_fallthru
      _
    %p174 = scmp.lt.s32.totalorder %s11, 2
    // Predicated region
    $region29: #{maconv_forward.3} parent=5 // pred_check
      %p175 = pneg %p174
    $region30: #{maconv_forward.3} parent=5 // pred_check_branch
      %177 = sbr.rel (%p175) target = $region32
    $region31: #{maconv_forward.3} parent=5 // pred_region
      // Predicated region
      $region33: #{maconv_forward.3} parent=31 // pred_check
        %p178 = pneg %p31
      $region34: #{maconv_forward.3} parent=31 // pred_check_branch
        %180 = sbr.rel (%p178) target = $region36
      $region35: #{maconv_forward.3} parent=31 // pred_region
        %p181 = scmp.lt.s32.totalorder %s11, 1
        %s182 = scalar_select %p181, %s11, 1
        %s183 = smul.addr %s182, 41
        %s184 = smul.addr %s183, 8
        %s185 = scalar_lea.vmem %s0, %s184
      $region36: #{maconv_forward.3} parent=31 // pred_fallthru
        _
    $region32: #{maconv_forward.3} parent=5 // pred_fallthru
      _
    %p186 = scmp.le.s32.totalorder 1, %s11
    %p187 = scmp.lt.s32.totalorder %s11, 3
    %p188 = pnand %p186, %p187
    %p189 = pneg %p188
    // Predicated region
    $region37: #{maconv_forward.3} parent=5 // pred_check
      _
    $region38: #{maconv_forward.3} parent=5 // pred_check_branch
      %191 = sbr.rel (%p188) target = $region40
    $region39: #{maconv_forward.3} parent=5 // pred_region
      %s192 = ssub.s32 %s11, 1
      %p193 = scmp.lt.s32.totalorder %s16, 1
      %s194 = scalar_select %p193, %s16, 1
      %s195 = smul.addr %s194, 41
      %s196 = smul.addr %s195, 8
      %s197 = scalar_lea.vmem %s0, %s196
      %p198 = pneg %p37
      %p199 = pneg %p34
      %p200 = pneg %p58
      %p201 = pneg %p55
      %p202 = pneg %p79
      %p203 = pneg %p76
      %p204 = pneg %p100
      %p205 = pneg %p97
      %p206 = pneg %p121
      %p207 = pneg %p118
      %p208 = pneg %p147
      %p209 = pneg %p144
      %p210 = scmp.lt.s32.totalorder %s16, 1
      %s211 = scalar_select %p210, %s16, 1
      %s212 = smul.addr %s211, 36
      %s213 = smul.addr %s212, 8
      %s214 = scalar_lea.vmem %s5, %s213
      %p215 = scmp.lt.s32.totalorder %s16, 1
      %s216 = scalar_select %p215, %s16, 1
      %s217 = smul.addr %s216, 41
      %s218 = smul.addr %s217, 8
      %s219 = scalar_lea.vmem %s0, %s218
      %p220 = scmp.lt.s32.totalorder %s16, 1
      %s221 = scalar_select %p220, %s16, 1
      %s222 = smul.addr %s221, 36
      %s223 = smul.addr %s222, 8
      %s224 = scalar_lea.vmem %s5, %s223
      %v225 = vld [vmem:[%s219] sm:$0xff]
      %v226 = vld [vmem:[%s219 + $0x8] sm:$0xff]
      %v227 = vld [vmem:[%s219 + $0x10] sm:$0xff]
      %v228 = vld [vmem:[%s219 + $0x18] sm:$0xff]
      %v229 = vld [vmem:[%s219 + $0x20] sm:$0xff]
      %v230 = vld [vmem:[%s219 + $0x28] sm:$0xff]
      %v231 = vld [vmem:[%s219 + $0x30] sm:$0xff]
      %v232 = vld [vmem:[%s219 + $0x38] sm:$0xff]
      %v233 = vld [vmem:[%s219 + $0x40] sm:$0xff]
      %v234 = vld [vmem:[%s219 + $0x48] sm:$0xff]
      %v235 = vld [vmem:[%s219 + $0x50] sm:$0xff]
      %v236 = vld [vmem:[%s219 + $0x58] sm:$0xff]
      %v237 = vld [vmem:[%s219 + $0x60] sm:$0xff]
      %v238 = vld [vmem:[%s219 + $0x68] sm:$0xff]
      %v239 = vld [vmem:[%s219 + $0x70] sm:$0xff]
      %v240 = vld [vmem:[%s219 + $0x78] sm:$0xff]
      %v241 = vld [vmem:[%s219 + $0x80] sm:$0xff]
      %v242 = vld [vmem:[%s219 + $0x88] sm:$0xff]
      %v243 = vld [vmem:[%s219 + $0x90] sm:$0xff]
      %v244 = vld [vmem:[%s219 + $0x98] sm:$0xff]
      %v245 = vld [vmem:[%s219 + $0xa0] sm:$0xff]
      %v246 = vld [vmem:[%s219 + $0xa8] sm:$0xff]
      %v247 = vld [vmem:[%s219 + $0xb0] sm:$0xff]
      %v248 = vld [vmem:[%s219 + $0xb8] sm:$0xff]
      %v249 = vld [vmem:[%s219 + $0xc0] sm:$0xff]
      %v250 = vld [vmem:[%s219 + $0xc8] sm:$0xff]
      %v251 = vld [vmem:[%s219 + $0xd0] sm:$0xff]
      %v252 = vld [vmem:[%s219 + $0xd8] sm:$0xff]
      %v253 = vld [vmem:[%s219 + $0xe0] sm:$0xff]
      %v254 = vld [vmem:[%s219 + $0xe8] sm:$0xff]
      %v255 = vld [vmem:[%s219 + $0xf0] sm:$0xff]
      %v256 = vld [vmem:[%s219 + $0xf8] sm:$0xff]
      %v257 = vld [vmem:[%s219 + $0x100] sm:$0xff]
      %v258 = vld [vmem:[%s219 + $0x108] sm:$0xff]
      %v259 = vld [vmem:[%s219 + $0x110] sm:$0xff]
      %v260 = vld [vmem:[%s219 + $0x118] sm:$0xff]
      %v261 = vld [vmem:[%s1] sm:$0xff]
      %v262 = vld [vmem:[%s1 + $0x8] sm:$0xff]
      %v263 = vld [vmem:[%s219 + $0x1] sm:$0xff]
      %v264 = vld [vmem:[%s219 + $0x9] sm:$0xff]
      %v265 = vld [vmem:[%s219 + $0x11] sm:$0xff]
      %v266 = vld [vmem:[%s219 + $0x19] sm:$0xff]
      %v267 = vld [vmem:[%s219 + $0x21] sm:$0xff]
      %v268 = vld [vmem:[%s219 + $0x29] sm:$0xff]
      %v269 = vld [vmem:[%s219 + $0x31] sm:$0xff]
      %v270 = vld [vmem:[%s219 + $0x39] sm:$0xff]
      %v271 = vld [vmem:[%s219 + $0x41] sm:$0xff]
      %v272 = vld [vmem:[%s219 + $0x49] sm:$0xff]
      %v273 = vld [vmem:[%s219 + $0x51] sm:$0xff]
      %v274 = vld [vmem:[%s219 + $0x59] sm:$0xff]
      %v275 = vld [vmem:[%s219 + $0x61] sm:$0xff]
      %v276 = vld [vmem:[%s219 + $0x69] sm:$0xff]
      %v277 = vld [vmem:[%s219 + $0x71] sm:$0xff]
      %v278 = vld [vmem:[%s219 + $0x79] sm:$0xff]
      %v279 = vld [vmem:[%s219 + $0x81] sm:$0xff]
      %v280 = vld [vmem:[%s219 + $0x89] sm:$0xff]
      %v281 = vld [vmem:[%s219 + $0x91] sm:$0xff]
      %v282 = vld [vmem:[%s219 + $0x99] sm:$0xff]
      %v283 = vld [vmem:[%s219 + $0xa1] sm:$0xff]
      %v284 = vld [vmem:[%s219 + $0xa9] sm:$0xff]
      %v285 = vld [vmem:[%s219 + $0xb1] sm:$0xff]
      %v286 = vld [vmem:[%s219 + $0xb9] sm:$0xff]
      %v287 = vld [vmem:[%s219 + $0xc1] sm:$0xff]
      %v288 = vld [vmem:[%s219 + $0xc9] sm:$0xff]
      %v289 = vld [vmem:[%s219 + $0xd1] sm:$0xff]
      %v290 = vld [vmem:[%s219 + $0xd9] sm:$0xff]
      %v291 = vld [vmem:[%s219 + $0xe1] sm:$0xff]
      %v292 = vld [vmem:[%s219 + $0xe9] sm:$0xff]
      %v293 = vld [vmem:[%s219 + $0xf1] sm:$0xff]
      %v294 = vld [vmem:[%s219 + $0xf9] sm:$0xff]
      %v295 = vld [vmem:[%s219 + $0x101] sm:$0xff]
      %v296 = vld [vmem:[%s219 + $0x109] sm:$0xff]
      %v297 = vld [vmem:[%s219 + $0x111] sm:$0xff]
      %v298 = vld [vmem:[%s219 + $0x119] sm:$0xff]
      %s299 = scalar_lea.vmem %s1, 16
      %v300 = vld [vmem:[%s299] sm:$0xff]
      %v301 = vld [vmem:[%s299 + $0x8] sm:$0xff]
      %vm302 = vcmask 130048
      %v304 = vsel %vm302, %v263, 0
      %v307 = vsel %vm302, %v264, 0
      %v310 = vsel %vm302, %v265, 0
      %v313 = vsel %vm302, %v266, 0
      %v316 = vsel %vm302, %v267, 0
      %v319 = vsel %vm302, %v268, 0
      %v322 = vsel %vm302, %v269, 0
      %v325 = vsel %vm302, %v270, 0
      %v328 = vsel %vm302, %v271, 0
      %v331 = vsel %vm302, %v272, 0
      %v334 = vsel %vm302, %v273, 0
      %v337 = vsel %vm302, %v274, 0
      %v340 = vsel %vm302, %v275, 0
      %v343 = vsel %vm302, %v276, 0
      %v346 = vsel %vm302, %v277, 0
      %v349 = vsel %vm302, %v278, 0
      %v352 = vsel %vm302, %v279, 0
      %v355 = vsel %vm302, %v280, 0
      %v358 = vsel %vm302, %v281, 0
      %v361 = vsel %vm302, %v282, 0
      %v364 = vsel %vm302, %v283, 0
      %v367 = vsel %vm302, %v284, 0
      %v370 = vsel %vm302, %v285, 0
      %v373 = vsel %vm302, %v286, 0
      %v376 = vsel %vm302, %v287, 0
      %v379 = vsel %vm302, %v288, 0
      %v382 = vsel %vm302, %v289, 0
      %v385 = vsel %vm302, %v290, 0
      %v388 = vsel %vm302, %v291, 0
      %v391 = vsel %vm302, %v292, 0
      %v394 = vsel %vm302, %v293, 0
      %v397 = vsel %vm302, %v294, 0
      %v400 = vsel %vm302, %v295, 0
      %v403 = vsel %vm302, %v296, 0
      %v406 = vsel %vm302, %v297, 0
      %v409 = vsel %vm302, %v298, 0
      %411 = vmatprep.subr.mxu0 0.0
      %412 = vmatpush1.msra.mxu0 %v300
      %413 = vmatprep.subr.mxu0 0.0
      %414 = vmatpush1.msra.mxu0 %v301
      %415 = vmatprep.subr.mxu0 0.0
      %416 = vmatpush1.msra.mxu0 0.0
      %417 = vmatprep.subr.mxu0 0.0
      %418 = vmatpush1.msra.mxu0 0.0
      %419 = vmatprep.subr.mxu0 0.0
      %420 = vmatpush1.msra.mxu0 0.0
      %421 = vmatprep.subr.mxu0 0.0
      %422 = vmatpush1.msra.mxu0 0.0
      %423 = vmatprep.subr.mxu0 0.0
      %424 = vmatpush1.msra.mxu0 0.0
      %425 = vmatprep.subr.mxu0 0.0
      %426 = vmatpush1.msra.mxu0 0.0
      %427 = vmatprep.subr.mxu0 0.0
      %428 = vmatpush1.msra.mxu0 0.0
      %429 = vmatprep.subr.mxu0 0.0
      %430 = vmatpush1.msra.mxu0 0.0
      %431 = vmatprep.subr.mxu0 0.0
      %432 = vmatpush1.msra.mxu0 0.0
      %433 = vmatprep.subr.mxu0 0.0
      %434 = vmatpush1.msra.mxu0 0.0
      %435 = vmatprep.subr.mxu0 0.0
      %436 = vmatpush1.msra.mxu0 0.0
      %437 = vmatprep.subr.mxu0 0.0
      %438 = vmatpush1.msra.mxu0 0.0
      %439 = vmatprep.subr.mxu0 0.0
      %440 = vmatpush1.msra.mxu0 0.0
      %441 = vmatprep.subr.mxu0 0.0
      %442 = vmatpush1.msra.mxu0 0.0
      %443 = vmatprep.subr.mxu0 0.0
      %444 = vmatpush1.msra.mxu0 0.0
      %445 = vmatprep.subr.mxu0 0.0
      %446 = vmatpush1.msra.mxu0 0.0
      %447 = vmatprep.subr.mxu0 0.0
      %448 = vmatpush1.msra.mxu0 0.0
      %449 = vmatprep.subr.mxu0 0.0
      %450 = vmatpush1.msra.mxu0 0.0
      %451 = vmatprep.subr.mxu0 0.0
      %452 = vmatpush1.msra.mxu0 0.0
      %453 = vmatprep.subr.mxu0 0.0
      %454 = vmatpush1.msra.mxu0 0.0
      %455 = vmatprep.subr.mxu0 0.0
      %456 = vmatpush1.msra.mxu0 0.0
      %457 = vmatprep.subr.mxu0 0.0
      %458 = vmatpush1.msra.mxu0 0.0
      %459 = vmatprep.subr.mxu0 0.0
      %460 = vmatpush1.msra.mxu0 0.0
      %461 = vmatprep.subr.mxu0 0.0
      %462 = vmatpush1.msra.mxu0 0.0
      %463 = vmatprep.subr.mxu0 0.0
      %464 = vmatpush1.msra.mxu0 0.0
      %465 = vmatprep.subr.mxu0 0.0
      %466 = vmatpush1.msra.mxu0 0.0
      %467 = vmatprep.subr.mxu0 0.0
      %468 = vmatpush1.msra.mxu0 0.0
      %469 = vmatprep.subr.mxu0 0.0
      %470 = vmatpush1.msra.mxu0 0.0
      %471 = vmatprep.subr.mxu0 0.0
      %472 = vmatpush1.msra.mxu0 0.0
      %473 = vmatprep.subr.mxu0 0.0
      %474 = vmatpush1.msra.mxu0 0.0
      %475 = vmatprep.mubr.f32.mxu0 0.0
      %476 = vmatmul.mubr.f32.gmra.mrb[0].mxu0 %v304
      %v477 = vpop.f32.mrb[0].mxu0
      %v478 = vadd.f32 0.0, %v477
      %v479 = vpop.f32.mrb[0].mxu0
      %480 = vmatprep.mubr.f32.mxu0 0.0
      %481 = vmatmul.mubr.f32.gmra.mrb[0].mxu0 %v307
      %v482 = vpop.f32.mrb[0].mxu0
      %v483 = vadd.f32 0.0, %v482
      %v484 = vpop.f32.mrb[0].mxu0
      %485 = vmatprep.mubr.f32.mxu0 0.0
      %486 = vmatmul.mubr.f32.gmra.mrb[0].mxu0 %v310
      %v487 = vpop.f32.mrb[0].mxu0
      %v488 = vadd.f32 0.0, %v487
      %v489 = vpop.f32.mrb[0].mxu0
      %490 = vmatprep.mubr.f32.mxu0 0.0
      %491 = vmatmul.mubr.f32.gmra.mrb[0].mxu0 %v313
      %v492 = vpop.f32.mrb[0].mxu0
      %v493 = vadd.f32 0.0, %v492
      %v494 = vpop.f32.mrb[0].mxu0
      %495 = vmatprep.mubr.f32.mxu0 0.0
      %496 = vmatmul.mubr.f32.gmra.mrb[0].mxu0 %v316
      %v497 = vpop.f32.mrb[0].mxu0
      %v498 = vadd.f32 0.0, %v497
      %v499 = vpop.f32.mrb[0].mxu0
      %500 = vmatprep.mubr.f32.mxu0 0.0
      %501 = vmatmul.mubr.f32.gmra.mrb[0].mxu0 %v319
      %v502 = vpop.f32.mrb[0].mxu0
      %v503 = vadd.f32 0.0, %v502
      %v504 = vpop.f32.mrb[0].mxu0
      %505 = vmatprep.mubr.f32.mxu0 0.0
      %506 = vmatmul.mubr.f32.gmra.mrb[0].mxu0 %v322
      %v507 = vpop.f32.mrb[0].mxu0
      %v508 = vadd.f32 0.0, %v507
      %v509 = vpop.f32.mrb[0].mxu0
      %510 = vmatprep.mubr.f32.mxu0 0.0
      %511 = vmatmul.mubr.f32.gmra.mrb[0].mxu0 %v325
      %v512 = vpop.f32.mrb[0].mxu0
      %v513 = vadd.f32 0.0, %v512
      %v514 = vpop.f32.mrb[0].mxu0
      %515 = vmatprep.mubr.f32.mxu0 0.0
      %516 = vmatmul.mubr.f32.gmra.mrb[0].mxu0 %v328
      %v517 = vpop.f32.mrb[0].mxu0
      %v518 = vadd.f32 0.0, %v517
      %v519 = vpop.f32.mrb[0].mxu0
      %520 = vmatprep.mubr.f32.mxu0 0.0
      %521 = vmatmul.mubr.f32.gmra.mrb[0].mxu0 %v331
      %v522 = vpop.f32.mrb[0].mxu0
      %v523 = vadd.f32 0.0, %v522
      %v524 = vpop.f32.mrb[0].mxu0
      %525 = vmatprep.mubr.f32.mxu0 0.0
      %526 = vmatmul.mubr.f32.gmra.mrb[0].mxu0 %v334
      %v527 = vpop.f32.mrb[0].mxu0
      %v528 = vadd.f32 0.0, %v527
      %v529 = vpop.f32.mrb[0].mxu0
      %530 = vmatprep.mubr.f32.mxu0 0.0
      %531 = vmatmul.mubr.f32.gmra.mrb[0].mxu0 %v337
      %v532 = vpop.f32.mrb[0].mxu0
      %v533 = vadd.f32 0.0, %v532
      %v534 = vpop.f32.mrb[0].mxu0
      %535 = vmatprep.mubr.f32.mxu0 0.0
      %536 = vmatmul.mubr.f32.gmra.mrb[0].mxu0 %v340
      %v537 = vpop.f32.mrb[0].mxu0
      %v538 = vadd.f32 0.0, %v537
      %v539 = vpop.f32.mrb[0].mxu0
      %540 = vmatprep.mubr.f32.mxu0 0.0
      %541 = vmatmul.mubr.f32.gmra.mrb[0].mxu0 %v343
      %v542 = vpop.f32.mrb[0].mxu0
      %v543 = vadd.f32 0.0, %v542
      %v544 = vpop.f32.mrb[0].mxu0
      %545 = vmatprep.mubr.f32.mxu0 0.0
      %546 = vmatmul.mubr.f32.gmra.mrb[0].mxu0 %v346
      %v547 = vpop.f32.mrb[0].mxu0
      %v548 = vadd.f32 0.0, %v547
      %v549 = vpop.f32.mrb[0].mxu0
      %550 = vmatprep.mubr.f32.mxu0 0.0
      %551 = vmatmul.mubr.f32.gmra.mrb[0].mxu0 %v349
      %v552 = vpop.f32.mrb[0].mxu0
      %v553 = vadd.f32 0.0, %v552
      %v554 = vpop.f32.mrb[0].mxu0
      %555 = vmatprep.mubr.f32.mxu0 0.0
      %556 = vmatmul.mubr.f32.gmra.mrb[0].mxu0 %v352
      %v557 = vpop.f32.mrb[0].mxu0
      %v558 = vadd.f32 0.0, %v557
      %v559 = vpop.f32.mrb[0].mxu0
      %560 = vmatprep.mubr.f32.mxu0 0.0
      %561 = vmatmul.mubr.f32.gmra.mrb[0].mxu0 %v355
      %v562 = vpop.f32.mrb[0].mxu0
      %v563 = vadd.f32 0.0, %v562
      %v564 = vpop.f32.mrb[0].mxu0
      %565 = vmatprep.mubr.f32.mxu0 0.0
      %566 = vmatmul.mubr.f32.gmra.mrb[0].mxu0 %v358
      %v567 = vpop.f32.mrb[0].mxu0
      %v568 = vadd.f32 0.0, %v567
      %v569 = vpop.f32.mrb[0].mxu0
      %570 = vmatprep.mubr.f32.mxu0 0.0
      %571 = vmatmul.mubr.f32.gmra.mrb[0].mxu0 %v361
      %v572 = vpop.f32.mrb[0].mxu0
      %v573 = vadd.f32 0.0, %v572
      %v574 = vpop.f32.mrb[0].mxu0
      %575 = vmatprep.mubr.f32.mxu0 0.0
      %576 = vmatmul.mubr.f32.gmra.mrb[0].mxu0 %v364
      %v577 = vpop.f32.mrb[0].mxu0
      %v578 = vadd.f32 0.0, %v577
      %v579 = vpop.f32.mrb[0].mxu0
      %580 = vmatprep.mubr.f32.mxu0 0.0
      %581 = vmatmul.mubr.f32.gmra.mrb[0].mxu0 %v367
      %v582 = vpop.f32.mrb[0].mxu0
      %v583 = vadd.f32 0.0, %v582
      %v584 = vpop.f32.mrb[0].mxu0
      %585 = vmatprep.mubr.f32.mxu0 0.0
      %586 = vmatmul.mubr.f32.gmra.mrb[0].mxu0 %v370
      %v587 = vpop.f32.mrb[0].mxu0
      %v588 = vadd.f32 0.0, %v587
      %v589 = vpop.f32.mrb[0].mxu0
      %590 = vmatprep.mubr.f32.mxu0 0.0
      %591 = vmatmul.mubr.f32.gmra.mrb[0].mxu0 %v373
      %v592 = vpop.f32.mrb[0].mxu0
      %v593 = vadd.f32 0.0, %v592
      %v594 = vpop.f32.mrb[0].mxu0
      %595 = vmatprep.mubr.f32.mxu0 0.0
      %596 = vmatmul.mubr.f32.gmra.mrb[0].mxu0 %v376
      %v597 = vpop.f32.mrb[0].mxu0
      %v598 = vadd.f32 0.0, %v597
      %v599 = vpop.f32.mrb[0].mxu0
      %600 = vmatprep.mubr.f32.mxu0 0.0
      %601 = vmatmul.mubr.f32.gmra.mrb[0].mxu0 %v379
      %v602 = vpop.f32.mrb[0].mxu0
      %v603 = vadd.f32 0.0, %v602
      %v604 = vpop.f32.mrb[0].mxu0
      %605 = vmatprep.mubr.f32.mxu0 0.0
      %606 = vmatmul.mubr.f32.gmra.mrb[0].mxu0 %v382
      %v607 = vpop.f32.mrb[0].mxu0
      %v608 = vadd.f32 0.0, %v607
      %v609 = vpop.f32.mrb[0].mxu0
      %610 = vmatprep.mubr.f32.mxu0 0.0
      %611 = vmatmul.mubr.f32.gmra.mrb[0].mxu0 %v385
      %v612 = vpop.f32.mrb[0].mxu0
      %v613 = vadd.f32 0.0, %v612
      %v614 = vpop.f32.mrb[0].mxu0
      %615 = vmatprep.mubr.f32.mxu0 0.0
      %616 = vmatmul.mubr.f32.gmra.mrb[0].mxu0 %v388
      %v617 = vpop.f32.mrb[0].mxu0
      %v618 = vadd.f32 0.0, %v617
      %v619 = vpop.f32.mrb[0].mxu0
      %620 = vmatprep.mubr.f32.mxu0 0.0
      %621 = vmatmul.mubr.f32.gmra.mrb[0].mxu0 %v391
      %v622 = vpop.f32.mrb[0].mxu0
      %v623 = vadd.f32 0.0, %v622
      %v624 = vpop.f32.mrb[0].mxu0
      %625 = vmatprep.mubr.f32.mxu0 0.0
      %626 = vmatmul.mubr.f32.gmra.mrb[0].mxu0 %v394
      %v627 = vpop.f32.mrb[0].mxu0
      %v628 = vadd.f32 0.0, %v627
      %v629 = vpop.f32.mrb[0].mxu0
      %630 = vmatprep.mubr.f32.mxu0 0.0
      %631 = vmatmul.mubr.f32.gmra.mrb[0].mxu0 %v397
      %v632 = vpop.f32.mrb[0].mxu0
      %v633 = vadd.f32 0.0, %v632
      %v634 = vpop.f32.mrb[0].mxu0
      %635 = vmatprep.mubr.f32.mxu0 0.0
      %636 = vmatmul.mubr.f32.gmra.mrb[0].mxu0 %v400
      %v637 = vpop.f32.mrb[0].mxu0
      %v638 = vadd.f32 0.0, %v637
      %v639 = vpop.f32.mrb[0].mxu0
      %640 = vmatprep.mubr.f32.mxu0 0.0
      %641 = vmatmul.mubr.f32.gmra.mrb[0].mxu0 %v403
      %v642 = vpop.f32.mrb[0].mxu0
      %v643 = vadd.f32 0.0, %v642
      %v644 = vpop.f32.mrb[0].mxu0
      %645 = vmatprep.mubr.f32.mxu0 0.0
      %646 = vmatmul.mubr.f32.gmra.mrb[0].mxu0 %v406
      %v647 = vpop.f32.mrb[0].mxu0
      %v648 = vadd.f32 0.0, %v647
      %v649 = vpop.f32.mrb[0].mxu0
      %650 = vmatprep.mubr.f32.mxu0 0.0
      %651 = vmatmul.mubr.f32.gmra.mrb[0].mxu0 %v409
      %v652 = vpop.f32.mrb[0].mxu0
      %v653 = vadd.f32 0.0, %v652
      %v654 = vpop.f32.mrb[0].mxu0
      %655 = vdwg.mxu0
      %v657 = vsel %vm302, %v225, 0
      %v660 = vsel %vm302, %v226, 0
      %v663 = vsel %vm302, %v227, 0
      %v666 = vsel %vm302, %v228, 0
      %v669 = vsel %vm302, %v229, 0
      %v672 = vsel %vm302, %v230, 0
      %v675 = vsel %vm302, %v231, 0
      %v678 = vsel %vm302, %v232, 0
      %v681 = vsel %vm302, %v233, 0
      %v684 = vsel %vm302, %v234, 0
      %v687 = vsel %vm302, %v235, 0
      %v690 = vsel %vm302, %v236, 0
      %v693 = vsel %vm302, %v237, 0
      %v696 = vsel %vm302, %v238, 0
      %v699 = vsel %vm302, %v239, 0
      %v702 = vsel %vm302, %v240, 0
      %v705 = vsel %vm302, %v241, 0
      %v708 = vsel %vm302, %v242, 0
      %v711 = vsel %vm302, %v243, 0
      %v714 = vsel %vm302, %v244, 0
      %v717 = vsel %vm302, %v245, 0
      %v720 = vsel %vm302, %v246, 0
      %v723 = vsel %vm302, %v247, 0
      %v726 = vsel %vm302, %v248, 0
      %v729 = vsel %vm302, %v249, 0
      %v732 = vsel %vm302, %v250, 0
      %v735 = vsel %vm302, %v251, 0
      %v738 = vsel %vm302, %v252, 0
      %v741 = vsel %vm302, %v253, 0
      %v744 = vsel %vm302, %v254, 0
      %v747 = vsel %vm302, %v255, 0
      %v750 = vsel %vm302, %v256, 0
      %v753 = vsel %vm302, %v257, 0
      %v756 = vsel %vm302, %v258, 0
      %v759 = vsel %vm302, %v259, 0
      %v762 = vsel %vm302, %v260, 0
      %764 = vmatprep.subr.mxu0 0.0
      %765 = vmatpush1.msra.mxu0 %v261
      %766 = vmatprep.subr.mxu0 0.0
      %767 = vmatpush1.msra.mxu0 %v262
      %768 = vmatprep.subr.mxu0 0.0
      %769 = vmatpush1.msra.mxu0 0.0
      %770 = vmatprep.subr.mxu0 0.0
      %771 = vmatpush1.msra.mxu0 0.0
      %772 = vmatprep.subr.mxu0 0.0
      %773 = vmatpush1.msra.mxu0 0.0
      %774 = vmatprep.subr.mxu0 0.0
      %775 = vmatpush1.msra.mxu0 0.0
      %776 = vmatprep.subr.mxu0 0.0
      %777 = vmatpush1.msra.mxu0 0.0
      %778 = vmatprep.subr.mxu0 0.0
      %779 = vmatpush1.msra.mxu0 0.0
      %780 = vmatprep.subr.mxu0 0.0
      %781 = vmatpush1.msra.mxu0 0.0
      %782 = vmatprep.subr.mxu0 0.0
      %783 = vmatpush1.msra.mxu0 0.0
      %784 = vmatprep.subr.mxu0 0.0
      %785 = vmatpush1.msra.mxu0 0.0
      %786 = vmatprep.subr.mxu0 0.0
      %787 = vmatpush1.msra.mxu0 0.0
      %788 = vmatprep.subr.mxu0 0.0
      %789 = vmatpush1.msra.mxu0 0.0
      %790 = vmatprep.subr.mxu0 0.0
      %791 = vmatpush1.msra.mxu0 0.0
      %792 = vmatprep.subr.mxu0 0.0
      %793 = vmatpush1.msra.mxu0 0.0
      %794 = vmatprep.subr.mxu0 0.0
      %795 = vmatpush1.msra.mxu0 0.0
      %796 = vmatprep.subr.mxu0 0.0
      %797 = vmatpush1.msra.mxu0 0.0
      %798 = vmatprep.subr.mxu0 0.0
      %799 = vmatpush1.msra.mxu0 0.0
      %800 = vmatprep.subr.mxu0 0.0
      %801 = vmatpush1.msra.mxu0 0.0
      %802 = vmatprep.subr.mxu0 0.0
      %803 = vmatpush1.msra.mxu0 0.0
      %804 = vmatprep.subr.mxu0 0.0
      %805 = vmatpush1.msra.mxu0 0.0
      %806 = vmatprep.subr.mxu0 0.0
      %807 = vmatpush1.msra.mxu0 0.0
      %808 = vmatprep.subr.mxu0 0.0
      %809 = vmatpush1.msra.mxu0 0.0
      %810 = vmatprep.subr.mxu0 0.0
      %811 = vmatpush1.msra.mxu0 0.0
      %812 = vmatprep.subr.mxu0 0.0
      %813 = vmatpush1.msra.mxu0 0.0
      %814 = vmatprep.subr.mxu0 0.0
      %815 = vmatpush1.msra.mxu0 0.0
      %816 = vmatprep.subr.mxu0 0.0
      %817 = vmatpush1.msra.mxu0 0.0
      %818 = vmatprep.subr.mxu0 0.0
      %819 = vmatpush1.msra.mxu0 0.0
      %820 = vmatprep.subr.mxu0 0.0
      %821 = vmatpush1.msra.mxu0 0.0
      %822 = vmatprep.subr.mxu0 0.0
      %823 = vmatpush1.msra.mxu0 0.0
      %824 = vmatprep.subr.mxu0 0.0
      %825 = vmatpush1.msra.mxu0 0.0
      %826 = vmatprep.subr.mxu0 0.0
      %827 = vmatpush1.msra.mxu0 0.0
      %828 = vmatprep.mubr.f32.mxu0 0.0
      %829 = vmatmul.mubr.f32.gmra.mrb[0].mxu0 %v657
      %v830 = vpop.f32.mrb[0].mxu0
      %v831 = vadd.f32 %v478, %v830
      %v832 = vpop.f32.mrb[0].mxu0
      %833 = vmatprep.mubr.f32.mxu0 0.0
      %834 = vmatmul.mubr.f32.gmra.mrb[0].mxu0 %v660
      %v835 = vpop.f32.mrb[0].mxu0
      %v836 = vadd.f32 %v483, %v835
      %v837 = vpop.f32.mrb[0].mxu0
      %838 = vmatprep.mubr.f32.mxu0 0.0
      %839 = vmatmul.mubr.f32.gmra.mrb[0].mxu0 %v663
      %v840 = vpop.f32.mrb[0].mxu0
      %v841 = vadd.f32 %v488, %v840
      %v842 = vpop.f32.mrb[0].mxu0
      %843 = vmatprep.mubr.f32.mxu0 0.0
      %844 = vmatmul.mubr.f32.gmra.mrb[0].mxu0 %v666
      %v845 = vpop.f32.mrb[0].mxu0
      %v846 = vadd.f32 %v493, %v845
      %v847 = vpop.f32.mrb[0].mxu0
      %848 = vmatprep.mubr.f32.mxu0 0.0
      %849 = vmatmul.mubr.f32.gmra.mrb[0].mxu0 %v669
      %v850 = vpop.f32.mrb[0].mxu0
      %v851 = vadd.f32 %v498, %v850
      %v852 = vpop.f32.mrb[0].mxu0
      %853 = vmatprep.mubr.f32.mxu0 0.0
      %854 = vmatmul.mubr.f32.gmra.mrb[0].mxu0 %v672
      %v855 = vpop.f32.mrb[0].mxu0
      %v856 = vadd.f32 %v503, %v855
      %v857 = vpop.f32.mrb[0].mxu0
      %858 = vmatprep.mubr.f32.mxu0 0.0
      %859 = vmatmul.mubr.f32.gmra.mrb[0].mxu0 %v675
      %v860 = vpop.f32.mrb[0].mxu0
      %v861 = vadd.f32 %v508, %v860
      %v862 = vpop.f32.mrb[0].mxu0
      %863 = vmatprep.mubr.f32.mxu0 0.0
      %864 = vmatmul.mubr.f32.gmra.mrb[0].mxu0 %v678
      %v865 = vpop.f32.mrb[0].mxu0
      %v866 = vadd.f32 %v513, %v865
      %v867 = vpop.f32.mrb[0].mxu0
      %868 = vmatprep.mubr.f32.mxu0 0.0
      %869 = vmatmul.mubr.f32.gmra.mrb[0].mxu0 %v681
      %v870 = vpop.f32.mrb[0].mxu0
      %v871 = vadd.f32 %v518, %v870
      %v872 = vpop.f32.mrb[0].mxu0
      %873 = vmatprep.mubr.f32.mxu0 0.0
      %874 = vmatmul.mubr.f32.gmra.mrb[0].mxu0 %v684
      %v875 = vpop.f32.mrb[0].mxu0
      %v876 = vadd.f32 %v523, %v875
      %v877 = vpop.f32.mrb[0].mxu0
      %878 = vmatprep.mubr.f32.mxu0 0.0
      %879 = vmatmul.mubr.f32.gmra.mrb[0].mxu0 %v687
      %v880 = vpop.f32.mrb[0].mxu0
      %v881 = vadd.f32 %v528, %v880
      %v882 = vpop.f32.mrb[0].mxu0
      %883 = vmatprep.mubr.f32.mxu0 0.0
      %884 = vmatmul.mubr.f32.gmra.mrb[0].mxu0 %v690
      %v885 = vpop.f32.mrb[0].mxu0
      %v886 = vadd.f32 %v533, %v885
      %v887 = vpop.f32.mrb[0].mxu0
      %888 = vmatprep.mubr.f32.mxu0 0.0
      %889 = vmatmul.mubr.f32.gmra.mrb[0].mxu0 %v693
      %v890 = vpop.f32.mrb[0].mxu0
      %v891 = vadd.f32 %v538, %v890
      %v892 = vpop.f32.mrb[0].mxu0
      %893 = vmatprep.mubr.f32.mxu0 0.0
      %894 = vmatmul.mubr.f32.gmra.mrb[0].mxu0 %v696
      %v895 = vpop.f32.mrb[0].mxu0
      %v896 = vadd.f32 %v543, %v895
      %v897 = vpop.f32.mrb[0].mxu0
      %898 = vmatprep.mubr.f32.mxu0 0.0
      %899 = vmatmul.mubr.f32.gmra.mrb[0].mxu0 %v699
      %v900 = vpop.f32.mrb[0].mxu0
      %v901 = vadd.f32 %v548, %v900
      %v902 = vpop.f32.mrb[0].mxu0
      %903 = vmatprep.mubr.f32.mxu0 0.0
      %904 = vmatmul.mubr.f32.gmra.mrb[0].mxu0 %v702
      %v905 = vpop.f32.mrb[0].mxu0
      %v906 = vadd.f32 %v553, %v905
      %v907 = vpop.f32.mrb[0].mxu0
      %908 = vmatprep.mubr.f32.mxu0 0.0
      %909 = vmatmul.mubr.f32.gmra.mrb[0].mxu0 %v705
      %v910 = vpop.f32.mrb[0].mxu0
      %v911 = vadd.f32 %v558, %v910
      %v912 = vpop.f32.mrb[0].mxu0
      %913 = vmatprep.mubr.f32.mxu0 0.0
      %914 = vmatmul.mubr.f32.gmra.mrb[0].mxu0 %v708
      %v915 = vpop.f32.mrb[0].mxu0
      %v916 = vadd.f32 %v563, %v915
      %v917 = vpop.f32.mrb[0].mxu0
      %918 = vmatprep.mubr.f32.mxu0 0.0
      %919 = vmatmul.mubr.f32.gmra.mrb[0].mxu0 %v711
      %v920 = vpop.f32.mrb[0].mxu0
      %v921 = vadd.f32 %v568, %v920
      %v922 = vpop.f32.mrb[0].mxu0
      %923 = vmatprep.mubr.f32.mxu0 0.0
      %924 = vmatmul.mubr.f32.gmra.mrb[0].mxu0 %v714
      %v925 = vpop.f32.mrb[0].mxu0
      %v926 = vadd.f32 %v573, %v925
      %v927 = vpop.f32.mrb[0].mxu0
      %928 = vmatprep.mubr.f32.mxu0 0.0
      %929 = vmatmul.mubr.f32.gmra.mrb[0].mxu0 %v717
      %v930 = vpop.f32.mrb[0].mxu0
      %v931 = vadd.f32 %v578, %v930
      %v932 = vpop.f32.mrb[0].mxu0
      %933 = vmatprep.mubr.f32.mxu0 0.0
      %934 = vmatmul.mubr.f32.gmra.mrb[0].mxu0 %v720
      %v935 = vpop.f32.mrb[0].mxu0
      %v936 = vadd.f32 %v583, %v935
      %v937 = vpop.f32.mrb[0].mxu0
      %938 = vmatprep.mubr.f32.mxu0 0.0
      %939 = vmatmul.mubr.f32.gmra.mrb[0].mxu0 %v723
      %v940 = vpop.f32.mrb[0].mxu0
      %v941 = vadd.f32 %v588, %v940
      %v942 = vpop.f32.mrb[0].mxu0
      %943 = vmatprep.mubr.f32.mxu0 0.0
      %944 = vmatmul.mubr.f32.gmra.mrb[0].mxu0 %v726
      %v945 = vpop.f32.mrb[0].mxu0
      %v946 = vadd.f32 %v593, %v945
      %v947 = vpop.f32.mrb[0].mxu0
      %948 = vmatprep.mubr.f32.mxu0 0.0
      %949 = vmatmul.mubr.f32.gmra.mrb[0].mxu0 %v729
      %v950 = vpop.f32.mrb[0].mxu0
      %v951 = vadd.f32 %v598, %v950
      %v952 = vpop.f32.mrb[0].mxu0
      %953 = vmatprep.mubr.f32.mxu0 0.0
      %954 = vmatmul.mubr.f32.gmra.mrb[0].mxu0 %v732
      %v955 = vpop.f32.mrb[0].mxu0
      %v956 = vadd.f32 %v603, %v955
      %v957 = vpop.f32.mrb[0].mxu0
      %958 = vmatprep.mubr.f32.mxu0 0.0
      %959 = vmatmul.mubr.f32.gmra.mrb[0].mxu0 %v735
      %v960 = vpop.f32.mrb[0].mxu0
      %v961 = vadd.f32 %v608, %v960
      %v962 = vpop.f32.mrb[0].mxu0
      %963 = vmatprep.mubr.f32.mxu0 0.0
      %964 = vmatmul.mubr.f32.gmra.mrb[0].mxu0 %v738
      %v965 = vpop.f32.mrb[0].mxu0
      %v966 = vadd.f32 %v613, %v965
      %v967 = vpop.f32.mrb[0].mxu0
      %968 = vmatprep.mubr.f32.mxu0 0.0
      %969 = vmatmul.mubr.f32.gmra.mrb[0].mxu0 %v741
      %v970 = vpop.f32.mrb[0].mxu0
      %v971 = vadd.f32 %v618, %v970
      %v972 = vpop.f32.mrb[0].mxu0
      %973 = vmatprep.mubr.f32.mxu0 0.0
      %974 = vmatmul.mubr.f32.gmra.mrb[0].mxu0 %v744
      %v975 = vpop.f32.mrb[0].mxu0
      %v976 = vadd.f32 %v623, %v975
      %v977 = vpop.f32.mrb[0].mxu0
      %978 = vmatprep.mubr.f32.mxu0 0.0
      %979 = vmatmul.mubr.f32.gmra.mrb[0].mxu0 %v747
      %v980 = vpop.f32.mrb[0].mxu0
      %v981 = vadd.f32 %v628, %v980
      %v982 = vpop.f32.mrb[0].mxu0
      %983 = vmatprep.mubr.f32.mxu0 0.0
      %984 = vmatmul.mubr.f32.gmra.mrb[0].mxu0 %v750
      %v985 = vpop.f32.mrb[0].mxu0
      %v986 = vadd.f32 %v633, %v985
      %v987 = vpop.f32.mrb[0].mxu0
      %988 = vmatprep.mubr.f32.mxu0 0.0
      %989 = vmatmul.mubr.f32.gmra.mrb[0].mxu0 %v753
      %v990 = vpop.f32.mrb[0].mxu0
      %v991 = vadd.f32 %v638, %v990
      %v992 = vpop.f32.mrb[0].mxu0
      %993 = vmatprep.mubr.f32.mxu0 0.0
      %994 = vmatmul.mubr.f32.gmra.mrb[0].mxu0 %v756
      %v995 = vpop.f32.mrb[0].mxu0
      %v996 = vadd.f32 %v643, %v995
      %v997 = vpop.f32.mrb[0].mxu0
      %998 = vmatprep.mubr.f32.mxu0 0.0
      %999 = vmatmul.mubr.f32.gmra.mrb[0].mxu0 %v759
      %v1000 = vpop.f32.mrb[0].mxu0
      %v1001 = vadd.f32 %v648, %v1000
      %v1002 = vpop.f32.mrb[0].mxu0
      %1003 = vmatprep.mubr.f32.mxu0 0.0
      %1004 = vmatmul.mubr.f32.gmra.mrb[0].mxu0 %v762
      %v1005 = vpop.f32.mrb[0].mxu0
      %v1006 = vadd.f32 %v653, %v1005
      %v1007 = vpop.f32.mrb[0].mxu0
      %1008 = vdwg.mxu0
      %v1009 = vld [vmem:[%s219 + $0x2] sm:$0xff]
      %v1010 = vld [vmem:[%s219 + $0xa] sm:$0xff]
      %v1011 = vld [vmem:[%s219 + $0x12] sm:$0xff]
      %v1012 = vld [vmem:[%s219 + $0x1a] sm:$0xff]
      %v1013 = vld [vmem:[%s219 + $0x22] sm:$0xff]
      %v1014 = vld [vmem:[%s219 + $0x2a] sm:$0xff]
      %v1015 = vld [vmem:[%s219 + $0x32] sm:$0xff]
      %v1016 = vld [vmem:[%s219 + $0x3a] sm:$0xff]
      %v1017 = vld [vmem:[%s219 + $0x42] sm:$0xff]
      %v1018 = vld [vmem:[%s219 + $0x4a] sm:$0xff]
      %v1019 = vld [vmem:[%s219 + $0x52] sm:$0xff]
      %v1020 = vld [vmem:[%s219 + $0x5a] sm:$0xff]
      %v1021 = vld [vmem:[%s219 + $0x62] sm:$0xff]
      %v1022 = vld [vmem:[%s219 + $0x6a] sm:$0xff]
      %v1023 = vld [vmem:[%s219 + $0x72] sm:$0xff]
      %v1024 = vld [vmem:[%s219 + $0x7a] sm:$0xff]
      %v1025 = vld [vmem:[%s219 + $0x82] sm:$0xff]
      %v1026 = vld [vmem:[%s219 + $0x8a] sm:$0xff]
      %v1027 = vld [vmem:[%s219 + $0x92] sm:$0xff]
      %v1028 = vld [vmem:[%s219 + $0x9a] sm:$0xff]
      %v1029 = vld [vmem:[%s219 + $0xa2] sm:$0xff]
      %v1030 = vld [vmem:[%s219 + $0xaa] sm:$0xff]
      %v1031 = vld [vmem:[%s219 + $0xb2] sm:$0xff]
      %v1032 = vld [vmem:[%s219 + $0xba] sm:$0xff]
      %v1033 = vld [vmem:[%s219 + $0xc2] sm:$0xff]
      %v1034 = vld [vmem:[%s219 + $0xca] sm:$0xff]
      %v1035 = vld [vmem:[%s219 + $0xd2] sm:$0xff]
      %v1036 = vld [vmem:[%s219 + $0xda] sm:$0xff]
      %v1037 = vld [vmem:[%s219 + $0xe2] sm:$0xff]
      %v1038 = vld [vmem:[%s219 + $0xea] sm:$0xff]
      %v1039 = vld [vmem:[%s219 + $0xf2] sm:$0xff]
      %v1040 = vld [vmem:[%s219 + $0xfa] sm:$0xff]
      %v1041 = vld [vmem:[%s219 + $0x102] sm:$0xff]
      %v1042 = vld [vmem:[%s219 + $0x10a] sm:$0xff]
      %v1043 = vld [vmem:[%s219 + $0x112] sm:$0xff]
      %v1044 = vld [vmem:[%s219 + $0x11a] sm:$0xff]
      %s1045 = scalar_lea.vmem %s1, 32
      %v1046 = vld [vmem:[%s1045] sm:$0xff]
      %v1047 = vld [vmem:[%s1045 + $0x8] sm:$0xff]
      %v1049 = vsel %vm302, %v1009, 0
      %v1052 = vsel %vm302, %v1010, 0
      %v1055 = vsel %vm302, %v1011, 0
      %v1058 = vsel %vm302, %v1012, 0
      %v1061 = vsel %vm302, %v1013, 0
      %v1064 = vsel %vm302, %v1014, 0
      %v1067 = vsel %vm302, %v1015, 0
      %v1070 = vsel %vm302, %v1016, 0
      %v1073 = vsel %vm302, %v1017, 0
      %v1076 = vsel %vm302, %v1018, 0
      %v1079 = vsel %vm302, %v1019, 0
      %v1082 = vsel %vm302, %v1020, 0
      %v1085 = vsel %vm302, %v1021, 0
      %v1088 = vsel %vm302, %v1022, 0
      %v1091 = vsel %vm302, %v1023, 0
      %v1094 = vsel %vm302, %v1024, 0
      %v1097 = vsel %vm302, %v1025, 0
      %v1100 = vsel %vm302, %v1026, 0
      %v1103 = vsel %vm302, %v1027, 0
      %v1106 = vsel %vm302, %v1028, 0
      %v1109 = vsel %vm302, %v1029, 0
      %v1112 = vsel %vm302, %v1030, 0
      %v1115 = vsel %vm302, %v1031, 0
      %v1118 = vsel %vm302, %v1032, 0
      %v1121 = vsel %vm302, %v1033, 0
      %v1124 = vsel %vm302, %v1034, 0
      %v1127 = vsel %vm302, %v1035, 0
      %v1130 = vsel %vm302, %v1036, 0
      %v1133 = vsel %vm302, %v1037, 0
      %v1136 = vsel %vm302, %v1038, 0
      %v1139 = vsel %vm302, %v1039, 0
      %v1142 = vsel %vm302, %v1040, 0
      %v1145 = vsel %vm302, %v1041, 0
      %v1148 = vsel %vm302, %v1042, 0
      %v1151 = vsel %vm302, %v1043, 0
      %v1154 = vsel %vm302, %v1044, 0
      %1156 = vmatprep.subr.mxu0 0.0
      %1157 = vmatpush1.msra.mxu0 %v1046
      %1158 = vmatprep.subr.mxu0 0.0
      %1159 = vmatpush1.msra.mxu0 %v1047
      %1160 = vmatprep.subr.mxu0 0.0
      %1161 = vmatpush1.msra.mxu0 0.0
      %1162 = vmatprep.subr.mxu0 0.0
      %1163 = vmatpush1.msra.mxu0 0.0
      %1164 = vmatprep.subr.mxu0 0.0
      %1165 = vmatpush1.msra.mxu0 0.0
      %1166 = vmatprep.subr.mxu0 0.0
      %1167 = vmatpush1.msra.mxu0 0.0
      %1168 = vmatprep.subr.mxu0 0.0
      %1169 = vmatpush1.msra.mxu0 0.0
      %1170 = vmatprep.subr.mxu0 0.0
      %1171 = vmatpush1.msra.mxu0 0.0
      %1172 = vmatprep.subr.mxu0 0.0
      %1173 = vmatpush1.msra.mxu0 0.0
      %1174 = vmatprep.subr.mxu0 0.0
      %1175 = vmatpush1.msra.mxu0 0.0
      %1176 = vmatprep.subr.mxu0 0.0
      %1177 = vmatpush1.msra.mxu0 0.0
      %1178 = vmatprep.subr.mxu0 0.0
      %1179 = vmatpush1.msra.mxu0 0.0
      %1180 = vmatprep.subr.mxu0 0.0
      %1181 = vmatpush1.msra.mxu0 0.0
      %1182 = vmatprep.subr.mxu0 0.0
      %1183 = vmatpush1.msra.mxu0 0.0
      %1184 = vmatprep.subr.mxu0 0.0
      %1185 = vmatpush1.msra.mxu0 0.0
      %1186 = vmatprep.subr.mxu0 0.0
      %1187 = vmatpush1.msra.mxu0 0.0
      %1188 = vmatprep.subr.mxu0 0.0
      %1189 = vmatpush1.msra.mxu0 0.0
      %1190 = vmatprep.subr.mxu0 0.0
      %1191 = vmatpush1.msra.mxu0 0.0
      %1192 = vmatprep.subr.mxu0 0.0
      %1193 = vmatpush1.msra.mxu0 0.0
      %1194 = vmatprep.subr.mxu0 0.0
      %1195 = vmatpush1.msra.mxu0 0.0
      %1196 = vmatprep.subr.mxu0 0.0
      %1197 = vmatpush1.msra.mxu0 0.0
      %1198 = vmatprep.subr.mxu0 0.0
      %1199 = vmatpush1.msra.mxu0 0.0
      %1200 = vmatprep.subr.mxu0 0.0
      %1201 = vmatpush1.msra.mxu0 0.0
      %1202 = vmatprep.subr.mxu0 0.0
      %1203 = vmatpush1.msra.mxu0 0.0
      %1204 = vmatprep.subr.mxu0 0.0
      %1205 = vmatpush1.msra.mxu0 0.0
      %1206 = vmatprep.subr.mxu0 0.0
      %1207 = vmatpush1.msra.mxu0 0.0
      %1208 = vmatprep.subr.mxu0 0.0
      %1209 = vmatpush1.msra.mxu0 0.0
      %1210 = vmatprep.subr.mxu0 0.0
      %1211 = vmatpush1.msra.mxu0 0.0
      %1212 = vmatprep.subr.mxu0 0.0
      %1213 = vmatpush1.msra.mxu0 0.0
      %1214 = vmatprep.subr.mxu0 0.0
      %1215 = vmatpush1.msra.mxu0 0.0
      %1216 = vmatprep.subr.mxu0 0.0
      %1217 = vmatpush1.msra.mxu0 0.0
      %1218 = vmatprep.subr.mxu0 0.0
      %1219 = vmatpush1.msra.mxu0 0.0
      %1220 = vmatprep.mubr.f32.mxu0 0.0
      %1221 = vmatmul.mubr.f32.gmra.mrb[0].mxu0 %v1049
      %v1222 = vpop.f32.mrb[0].mxu0
      %v1223 = vadd.f32 0.0, %v1222
      %v1224 = vpop.f32.mrb[0].mxu0
      %1225 = vmatprep.mubr.f32.mxu0 0.0
      %1226 = vmatmul.mubr.f32.gmra.mrb[0].mxu0 %v1052
      %v1227 = vpop.f32.mrb[0].mxu0
      %v1228 = vadd.f32 0.0, %v1227
      %v1229 = vpop.f32.mrb[0].mxu0
      %1230 = vmatprep.mubr.f32.mxu0 0.0
      %1231 = vmatmul.mubr.f32.gmra.mrb[0].mxu0 %v1055
      %v1232 = vpop.f32.mrb[0].mxu0
      %v1233 = vadd.f32 0.0, %v1232
      %v1234 = vpop.f32.mrb[0].mxu0
      %1235 = vmatprep.mubr.f32.mxu0 0.0
      %1236 = vmatmul.mubr.f32.gmra.mrb[0].mxu0 %v1058
      %v1237 = vpop.f32.mrb[0].mxu0
      %v1238 = vadd.f32 0.0, %v1237
      %v1239 = vpop.f32.mrb[0].mxu0
      %1240 = vmatprep.mubr.f32.mxu0 0.0
      %1241 = vmatmul.mubr.f32.gmra.mrb[0].mxu0 %v1061
      %v1242 = vpop.f32.mrb[0].mxu0
      %v1243 = vadd.f32 0.0, %v1242
      %v1244 = vpop.f32.mrb[0].mxu0
      %1245 = vmatprep.mubr.f32.mxu0 0.0
      %1246 = vmatmul.mubr.f32.gmra.mrb[0].mxu0 %v1064
      %v1247 = vpop.f32.mrb[0].mxu0
      %v1248 = vadd.f32 0.0, %v1247
      %v1249 = vpop.f32.mrb[0].mxu0
      %1250 = vmatprep.mubr.f32.mxu0 0.0
      %1251 = vmatmul.mubr.f32.gmra.mrb[0].mxu0 %v1067
      %v1252 = vpop.f32.mrb[0].mxu0
      %v1253 = vadd.f32 0.0, %v1252
      %v1254 = vpop.f32.mrb[0].mxu0
      %1255 = vmatprep.mubr.f32.mxu0 0.0
      %1256 = vmatmul.mubr.f32.gmra.mrb[0].mxu0 %v1070
      %v1257 = vpop.f32.mrb[0].mxu0
      %v1258 = vadd.f32 0.0, %v1257
      %v1259 = vpop.f32.mrb[0].mxu0
      %1260 = vmatprep.mubr.f32.mxu0 0.0
      %1261 = vmatmul.mubr.f32.gmra.mrb[0].mxu0 %v1073
      %v1262 = vpop.f32.mrb[0].mxu0
      %v1263 = vadd.f32 0.0, %v1262
      %v1264 = vpop.f32.mrb[0].mxu0
      %1265 = vmatprep.mubr.f32.mxu0 0.0
      %1266 = vmatmul.mubr.f32.gmra.mrb[0].mxu0 %v1076
      %v1267 = vpop.f32.mrb[0].mxu0
      %v1268 = vadd.f32 0.0, %v1267
      %v1269 = vpop.f32.mrb[0].mxu0
      %1270 = vmatprep.mubr.f32.mxu0 0.0
      %1271 = vmatmul.mubr.f32.gmra.mrb[0].mxu0 %v1079
      %v1272 = vpop.f32.mrb[0].mxu0
      %v1273 = vadd.f32 0.0, %v1272
      %v1274 = vpop.f32.mrb[0].mxu0
      %1275 = vmatprep.mubr.f32.mxu0 0.0
      %1276 = vmatmul.mubr.f32.gmra.mrb[0].mxu0 %v1082
      %v1277 = vpop.f32.mrb[0].mxu0
      %v1278 = vadd.f32 0.0, %v1277
      %v1279 = vpop.f32.mrb[0].mxu0
      %1280 = vmatprep.mubr.f32.mxu0 0.0
      %1281 = vmatmul.mubr.f32.gmra.mrb[0].mxu0 %v1085
      %v1282 = vpop.f32.mrb[0].mxu0
      %v1283 = vadd.f32 0.0, %v1282
      %v1284 = vpop.f32.mrb[0].mxu0
      %1285 = vmatprep.mubr.f32.mxu0 0.0
      %1286 = vmatmul.mubr.f32.gmra.mrb[0].mxu0 %v1088
      %v1287 = vpop.f32.mrb[0].mxu0
      %v1288 = vadd.f32 0.0, %v1287
      %v1289 = vpop.f32.mrb[0].mxu0
      %1290 = vmatprep.mubr.f32.mxu0 0.0
      %1291 = vmatmul.mubr.f32.gmra.mrb[0].mxu0 %v1091
      %v1292 = vpop.f32.mrb[0].mxu0
      %v1293 = vadd.f32 0.0, %v1292
      %v1294 = vpop.f32.mrb[0].mxu0
      %1295 = vmatprep.mubr.f32.mxu0 0.0
      %1296 = vmatmul.mubr.f32.gmra.mrb[0].mxu0 %v1094
      %v1297 = vpop.f32.mrb[0].mxu0
      %v1298 = vadd.f32 0.0, %v1297
      %v1299 = vpop.f32.mrb[0].mxu0
      %1300 = vmatprep.mubr.f32.mxu0 0.0
      %1301 = vmatmul.mubr.f32.gmra.mrb[0].mxu0 %v1097
      %v1302 = vpop.f32.mrb[0].mxu0
      %v1303 = vadd.f32 0.0, %v1302
      %v1304 = vpop.f32.mrb[0].mxu0
      %1305 = vmatprep.mubr.f32.mxu0 0.0
      %1306 = vmatmul.mubr.f32.gmra.mrb[0].mxu0 %v1100
      %v1307 = vpop.f32.mrb[0].mxu0
      %v1308 = vadd.f32 0.0, %v1307
      %v1309 = vpop.f32.mrb[0].mxu0
      %1310 = vmatprep.mubr.f32.mxu0 0.0
      %1311 = vmatmul.mubr.f32.gmra.mrb[0].mxu0 %v1103
      %v1312 = vpop.f32.mrb[0].mxu0
      %v1313 = vadd.f32 0.0, %v1312
      %v1314 = vpop.f32.mrb[0].mxu0
      %1315 = vmatprep.mubr.f32.mxu0 0.0
      %1316 = vmatmul.mubr.f32.gmra.mrb[0].mxu0 %v1106
      %v1317 = vpop.f32.mrb[0].mxu0
      %v1318 = vadd.f32 0.0, %v1317
      %v1319 = vpop.f32.mrb[0].mxu0
      %1320 = vmatprep.mubr.f32.mxu0 0.0
      %1321 = vmatmul.mubr.f32.gmra.mrb[0].mxu0 %v1109
      %v1322 = vpop.f32.mrb[0].mxu0
      %v1323 = vadd.f32 0.0, %v1322
      %v1324 = vpop.f32.mrb[0].mxu0
      %1325 = vmatprep.mubr.f32.mxu0 0.0
      %1326 = vmatmul.mubr.f32.gmra.mrb[0].mxu0 %v1112
      %v1327 = vpop.f32.mrb[0].mxu0
      %v1328 = vadd.f32 0.0, %v1327
      %v1329 = vpop.f32.mrb[0].mxu0
      %1330 = vmatprep.mubr.f32.mxu0 0.0
      %1331 = vmatmul.mubr.f32.gmra.mrb[0].mxu0 %v1115
      %v1332 = vpop.f32.mrb[0].mxu0
      %v1333 = vadd.f32 0.0, %v1332
      %v1334 = vpop.f32.mrb[0].mxu0
      %1335 = vmatprep.mubr.f32.mxu0 0.0
      %1336 = vmatmul.mubr.f32.gmra.mrb[0].mxu0 %v1118
      %v1337 = vpop.f32.mrb[0].mxu0
      %v1338 = vadd.f32 0.0, %v1337
      %v1339 = vpop.f32.mrb[0].mxu0
      %1340 = vmatprep.mubr.f32.mxu0 0.0
      %1341 = vmatmul.mubr.f32.gmra.mrb[0].mxu0 %v1121
      %v1342 = vpop.f32.mrb[0].mxu0
      %v1343 = vadd.f32 0.0, %v1342
      %v1344 = vpop.f32.mrb[0].mxu0
      %1345 = vmatprep.mubr.f32.mxu0 0.0
      %1346 = vmatmul.mubr.f32.gmra.mrb[0].mxu0 %v1124
      %v1347 = vpop.f32.mrb[0].mxu0
      %v1348 = vadd.f32 0.0, %v1347
      %v1349 = vpop.f32.mrb[0].mxu0
      %1350 = vmatprep.mubr.f32.mxu0 0.0
      %1351 = vmatmul.mubr.f32.gmra.mrb[0].mxu0 %v1127
      %v1352 = vpop.f32.mrb[0].mxu0
      %v1353 = vadd.f32 0.0, %v1352
      %v1354 = vpop.f32.mrb[0].mxu0
      %1355 = vmatprep.mubr.f32.mxu0 0.0
      %1356 = vmatmul.mubr.f32.gmra.mrb[0].mxu0 %v1130
      %v1357 = vpop.f32.mrb[0].mxu0
      %v1358 = vadd.f32 0.0, %v1357
      %v1359 = vpop.f32.mrb[0].mxu0
      %1360 = vmatprep.mubr.f32.mxu0 0.0
      %1361 = vmatmul.mubr.f32.gmra.mrb[0].mxu0 %v1133
      %v1362 = vpop.f32.mrb[0].mxu0
      %v1363 = vadd.f32 0.0, %v1362
      %v1364 = vpop.f32.mrb[0].mxu0
      %1365 = vmatprep.mubr.f32.mxu0 0.0
      %1366 = vmatmul.mubr.f32.gmra.mrb[0].mxu0 %v1136
      %v1367 = vpop.f32.mrb[0].mxu0
      %v1368 = vadd.f32 0.0, %v1367
      %v1369 = vpop.f32.mrb[0].mxu0
      %1370 = vmatprep.mubr.f32.mxu0 0.0
      %1371 = vmatmul.mubr.f32.gmra.mrb[0].mxu0 %v1139
      %v1372 = vpop.f32.mrb[0].mxu0
      %v1373 = vadd.f32 0.0, %v1372
      %v1374 = vpop.f32.mrb[0].mxu0
      %1375 = vmatprep.mubr.f32.mxu0 0.0
      %1376 = vmatmul.mubr.f32.gmra.mrb[0].mxu0 %v1142
      %v1377 = vpop.f32.mrb[0].mxu0
      %v1378 = vadd.f32 0.0, %v1377
      %v1379 = vpop.f32.mrb[0].mxu0
      %1380 = vmatprep.mubr.f32.mxu0 0.0
      %1381 = vmatmul.mubr.f32.gmra.mrb[0].mxu0 %v1145
      %v1382 = vpop.f32.mrb[0].mxu0
      %v1383 = vadd.f32 0.0, %v1382
      %v1384 = vpop.f32.mrb[0].mxu0
      %1385 = vmatprep.mubr.f32.mxu0 0.0
      %1386 = vmatmul.mubr.f32.gmra.mrb[0].mxu0 %v1148
      %v1387 = vpop.f32.mrb[0].mxu0
      %v1388 = vadd.f32 0.0, %v1387
      %v1389 = vpop.f32.mrb[0].mxu0
      %1390 = vmatprep.mubr.f32.mxu0 0.0
      %1391 = vmatmul.mubr.f32.gmra.mrb[0].mxu0 %v1151
      %v1392 = vpop.f32.mrb[0].mxu0
      %v1393 = vadd.f32 0.0, %v1392
      %v1394 = vpop.f32.mrb[0].mxu0
      %1395 = vmatprep.mubr.f32.mxu0 0.0
      %1396 = vmatmul.mubr.f32.gmra.mrb[0].mxu0 %v1154
      %v1397 = vpop.f32.mrb[0].mxu0
      %v1398 = vadd.f32 0.0, %v1397
      %v1399 = vpop.f32.mrb[0].mxu0
      %1400 = vdwg.mxu0
      %v1401 = vadd.f32 %v831, %v1223
      %v1402 = vadd.f32 %v836, %v1228
      %v1403 = vadd.f32 %v841, %v1233
      %v1404 = vadd.f32 %v846, %v1238
      %v1405 = vadd.f32 %v851, %v1243
      %v1406 = vadd.f32 %v856, %v1248
      %v1407 = vadd.f32 %v861, %v1253
      %v1408 = vadd.f32 %v866, %v1258
      %v1409 = vadd.f32 %v871, %v1263
      %v1410 = vadd.f32 %v876, %v1268
      %v1411 = vadd.f32 %v881, %v1273
      %v1412 = vadd.f32 %v886, %v1278
      %v1413 = vadd.f32 %v891, %v1283
      %v1414 = vadd.f32 %v896, %v1288
      %v1415 = vadd.f32 %v901, %v1293
      %v1416 = vadd.f32 %v906, %v1298
      %v1417 = vadd.f32 %v911, %v1303
      %v1418 = vadd.f32 %v916, %v1308
      %v1419 = vadd.f32 %v921, %v1313
      %v1420 = vadd.f32 %v926, %v1318
      %v1421 = vadd.f32 %v931, %v1323
      %v1422 = vadd.f32 %v936, %v1328
      %v1423 = vadd.f32 %v941, %v1333
      %v1424 = vadd.f32 %v946, %v1338
      %v1425 = vadd.f32 %v951, %v1343
      %v1426 = vadd.f32 %v956, %v1348
      %v1427 = vadd.f32 %v961, %v1353
      %v1428 = vadd.f32 %v966, %v1358
      %v1429 = vadd.f32 %v971, %v1363
      %v1430 = vadd.f32 %v976, %v1368
      %v1431 = vadd.f32 %v981, %v1373
      %v1432 = vadd.f32 %v986, %v1378
      %v1433 = vadd.f32 %v991, %v1383
      %v1434 = vadd.f32 %v996, %v1388
      %v1435 = vadd.f32 %v1001, %v1393
      %v1436 = vadd.f32 %v1006, %v1398
      %v1437 = vld [vmem:[%s219 + $0x12] sm:$0xff]
      %v1438 = vld [vmem:[%s219 + $0x1a] sm:$0xff]
      %v1439 = vld [vmem:[%s219 + $0x22] sm:$0xff]
      %v1440 = vld [vmem:[%s219 + $0x2a] sm:$0xff]
      %v1441 = vld [vmem:[%s219 + $0x32] sm:$0xff]
      %v1442 = vld [vmem:[%s219 + $0x3a] sm:$0xff]
      %v1443 = vld [vmem:[%s219 + $0x42] sm:$0xff]
      %v1444 = vld [vmem:[%s219 + $0x4a] sm:$0xff]
      %v1445 = vld [vmem:[%s219 + $0x52] sm:$0xff]
      %v1446 = vld [vmem:[%s219 + $0x5a] sm:$0xff]
      %v1447 = vld [vmem:[%s219 + $0x62] sm:$0xff]
      %v1448 = vld [vmem:[%s219 + $0x6a] sm:$0xff]
      %v1449 = vld [vmem:[%s219 + $0x72] sm:$0xff]
      %v1450 = vld [vmem:[%s219 + $0x7a] sm:$0xff]
      %v1451 = vld [vmem:[%s219 + $0x82] sm:$0xff]
      %v1452 = vld [vmem:[%s219 + $0x8a] sm:$0xff]
      %v1453 = vld [vmem:[%s219 + $0x92] sm:$0xff]
      %v1454 = vld [vmem:[%s219 + $0x9a] sm:$0xff]
      %v1455 = vld [vmem:[%s219 + $0xa2] sm:$0xff]
      %v1456 = vld [vmem:[%s219 + $0xaa] sm:$0xff]
      %v1457 = vld [vmem:[%s219 + $0xb2] sm:$0xff]
      %v1458 = vld [vmem:[%s219 + $0xba] sm:$0xff]
      %v1459 = vld [vmem:[%s219 + $0xc2] sm:$0xff]
      %v1460 = vld [vmem:[%s219 + $0xca] sm:$0xff]
      %v1461 = vld [vmem:[%s219 + $0xd2] sm:$0xff]
      %v1462 = vld [vmem:[%s219 + $0xda] sm:$0xff]
      %v1463 = vld [vmem:[%s219 + $0xe2] sm:$0xff]
      %v1464 = vld [vmem:[%s219 + $0xea] sm:$0xff]
      %v1465 = vld [vmem:[%s219 + $0xf2] sm:$0xff]
      %v1466 = vld [vmem:[%s219 + $0xfa] sm:$0xff]
      %v1467 = vld [vmem:[%s219 + $0x102] sm:$0xff]
      %v1468 = vld [vmem:[%s219 + $0x10a] sm:$0xff]
      %v1469 = vld [vmem:[%s219 + $0x112] sm:$0xff]
      %v1470 = vld [vmem:[%s219 + $0x11a] sm:$0xff]
      %v1471 = vld [vmem:[%s219 + $0x122] sm:$0xff]
      %v1472 = vld [vmem:[%s219 + $0x12a] sm:$0xff]
      %s1473 = scalar_lea.vmem %s1, 48
      %v1474 = vld [vmem:[%s1473] sm:$0xff]
      %v1475 = vld [vmem:[%s1473 + $0x8] sm:$0xff]
      %v1477 = vsel %vm302, %v1437, 0
      %v1480 = vsel %vm302, %v1438, 0
      %v1483 = vsel %vm302, %v1439, 0
      %v1486 = vsel %vm302, %v1440, 0
      %v1489 = vsel %vm302, %v1441, 0
      %v1492 = vsel %vm302, %v1442, 0
      %v1495 = vsel %vm302, %v1443, 0
      %v1498 = vsel %vm302, %v1444, 0
      %v1501 = vsel %vm302, %v1445, 0
      %v1504 = vsel %vm302, %v1446, 0
      %v1507 = vsel %vm302, %v1447, 0
      %v1510 = vsel %vm302, %v1448, 0
      %v1513 = vsel %vm302, %v1449, 0
      %v1516 = vsel %vm302, %v1450, 0
      %v1519 = vsel %vm302, %v1451, 0
      %v1522 = vsel %vm302, %v1452, 0
      %v1525 = vsel %vm302, %v1453, 0
      %v1528 = vsel %vm302, %v1454, 0
      %v1531 = vsel %vm302, %v1455, 0
      %v1534 = vsel %vm302, %v1456, 0
      %v1537 = vsel %vm302, %v1457, 0
      %v1540 = vsel %vm302, %v1458, 0
      %v1543 = vsel %vm302, %v1459, 0
      %v1546 = vsel %vm302, %v1460, 0
      %v1549 = vsel %vm302, %v1461, 0
      %v1552 = vsel %vm302, %v1462, 0
      %v1555 = vsel %vm302, %v1463, 0
      %v1558 = vsel %vm302, %v1464, 0
      %v1561 = vsel %vm302, %v1465, 0
      %v1564 = vsel %vm302, %v1466, 0
      %v1567 = vsel %vm302, %v1467, 0
      %v1570 = vsel %vm302, %v1468, 0
      %v1573 = vsel %vm302, %v1469, 0
      %v1576 = vsel %vm302, %v1470, 0
      %v1579 = vsel %vm302, %v1471, 0
      %v1582 = vsel %vm302, %v1472, 0
      %1584 = vmatprep.subr.mxu0 0.0
      %1585 = vmatpush1.msra.mxu0 %v1474
      %1586 = vmatprep.subr.mxu0 0.0
      %1587 = vmatpush1.msra.mxu0 %v1475
      %1588 = vmatprep.subr.mxu0 0.0
      %1589 = vmatpush1.msra.mxu0 0.0
      %1590 = vmatprep.subr.mxu0 0.0
      %1591 = vmatpush1.msra.mxu0 0.0
      %1592 = vmatprep.subr.mxu0 0.0
      %1593 = vmatpush1.msra.mxu0 0.0
      %1594 = vmatprep.subr.mxu0 0.0
      %1595 = vmatpush1.msra.mxu0 0.0
      %1596 = vmatprep.subr.mxu0 0.0
      %1597 = vmatpush1.msra.mxu0 0.0
      %1598 = vmatprep.subr.mxu0 0.0
      %1599 = vmatpush1.msra.mxu0 0.0
      %1600 = vmatprep.subr.mxu0 0.0
      %1601 = vmatpush1.msra.mxu0 0.0
      %1602 = vmatprep.subr.mxu0 0.0
      %1603 = vmatpush1.msra.mxu0 0.0
      %1604 = vmatprep.subr.mxu0 0.0
      %1605 = vmatpush1.msra.mxu0 0.0
      %1606 = vmatprep.subr.mxu0 0.0
      %1607 = vmatpush1.msra.mxu0 0.0
      %1608 = vmatprep.subr.mxu0 0.0
      %1609 = vmatpush1.msra.mxu0 0.0
      %1610 = vmatprep.subr.mxu0 0.0
      %1611 = vmatpush1.msra.mxu0 0.0
      %1612 = vmatprep.subr.mxu0 0.0
      %1613 = vmatpush1.msra.mxu0 0.0
      %1614 = vmatprep.subr.mxu0 0.0
      %1615 = vmatpush1.msra.mxu0 0.0
      %1616 = vmatprep.subr.mxu0 0.0
      %1617 = vmatpush1.msra.mxu0 0.0
      %1618 = vmatprep.subr.mxu0 0.0
      %1619 = vmatpush1.msra.mxu0 0.0
      %1620 = vmatprep.subr.mxu0 0.0
      %1621 = vmatpush1.msra.mxu0 0.0
      %1622 = vmatprep.subr.mxu0 0.0
      %1623 = vmatpush1.msra.mxu0 0.0
      %1624 = vmatprep.subr.mxu0 0.0
      %1625 = vmatpush1.msra.mxu0 0.0
      %1626 = vmatprep.subr.mxu0 0.0
      %1627 = vmatpush1.msra.mxu0 0.0
      %1628 = vmatprep.subr.mxu0 0.0
      %1629 = vmatpush1.msra.mxu0 0.0
      %1630 = vmatprep.subr.mxu0 0.0
      %1631 = vmatpush1.msra.mxu0 0.0
      %1632 = vmatprep.subr.mxu0 0.0
      %1633 = vmatpush1.msra.mxu0 0.0
      %1634 = vmatprep.subr.mxu0 0.0
      %1635 = vmatpush1.msra.mxu0 0.0
      %1636 = vmatprep.subr.mxu0 0.0
      %1637 = vmatpush1.msra.mxu0 0.0
      %1638 = vmatprep.subr.mxu0 0.0
      %1639 = vmatpush1.msra.mxu0 0.0
      %1640 = vmatprep.subr.mxu0 0.0
      %1641 = vmatpush1.msra.mxu0 0.0
      %1642 = vmatprep.subr.mxu0 0.0
      %1643 = vmatpush1.msra.mxu0 0.0
      %1644 = vmatprep.subr.mxu0 0.0
      %1645 = vmatpush1.msra.mxu0 0.0
      %1646 = vmatprep.subr.mxu0 0.0
      %1647 = vmatpush1.msra.mxu0 0.0
      %1648 = vmatprep.mubr.f32.mxu0 0.0
      %1649 = vmatmul.mubr.f32.gmra.mrb[0].mxu0 %v1477
      %v1650 = vpop.f32.mrb[0].mxu0
      %v1651 = vadd.f32 0.0, %v1650
      %v1652 = vpop.f32.mrb[0].mxu0
      %1653 = vmatprep.mubr.f32.mxu0 0.0
      %1654 = vmatmul.mubr.f32.gmra.mrb[0].mxu0 %v1480
      %v1655 = vpop.f32.mrb[0].mxu0
      %v1656 = vadd.f32 0.0, %v1655
      %v1657 = vpop.f32.mrb[0].mxu0
      %1658 = vmatprep.mubr.f32.mxu0 0.0
      %1659 = vmatmul.mubr.f32.gmra.mrb[0].mxu0 %v1483
      %v1660 = vpop.f32.mrb[0].mxu0
      %v1661 = vadd.f32 0.0, %v1660
      %v1662 = vpop.f32.mrb[0].mxu0
      %1663 = vmatprep.mubr.f32.mxu0 0.0
      %1664 = vmatmul.mubr.f32.gmra.mrb[0].mxu0 %v1486
      %v1665 = vpop.f32.mrb[0].mxu0
      %v1666 = vadd.f32 0.0, %v1665
      %v1667 = vpop.f32.mrb[0].mxu0
      %1668 = vmatprep.mubr.f32.mxu0 0.0
      %1669 = vmatmul.mubr.f32.gmra.mrb[0].mxu0 %v1489
      %v1670 = vpop.f32.mrb[0].mxu0
      %v1671 = vadd.f32 0.0, %v1670
      %v1672 = vpop.f32.mrb[0].mxu0
      %1673 = vmatprep.mubr.f32.mxu0 0.0
      %1674 = vmatmul.mubr.f32.gmra.mrb[0].mxu0 %v1492
      %v1675 = vpop.f32.mrb[0].mxu0
      %v1676 = vadd.f32 0.0, %v1675
      %v1677 = vpop.f32.mrb[0].mxu0
      %1678 = vmatprep.mubr.f32.mxu0 0.0
      %1679 = vmatmul.mubr.f32.gmra.mrb[0].mxu0 %v1495
      %v1680 = vpop.f32.mrb[0].mxu0
      %v1681 = vadd.f32 0.0, %v1680
      %v1682 = vpop.f32.mrb[0].mxu0
      %1683 = vmatprep.mubr.f32.mxu0 0.0
      %1684 = vmatmul.mubr.f32.gmra.mrb[0].mxu0 %v1498
      %v1685 = vpop.f32.mrb[0].mxu0
      %v1686 = vadd.f32 0.0, %v1685
      %v1687 = vpop.f32.mrb[0].mxu0
      %1688 = vmatprep.mubr.f32.mxu0 0.0
      %1689 = vmatmul.mubr.f32.gmra.mrb[0].mxu0 %v1501
      %v1690 = vpop.f32.mrb[0].mxu0
      %v1691 = vadd.f32 0.0, %v1690
      %v1692 = vpop.f32.mrb[0].mxu0
      %1693 = vmatprep.mubr.f32.mxu0 0.0
      %1694 = vmatmul.mubr.f32.gmra.mrb[0].mxu0 %v1504
      %v1695 = vpop.f32.mrb[0].mxu0
      %v1696 = vadd.f32 0.0, %v1695
      %v1697 = vpop.f32.mrb[0].mxu0
      %1698 = vmatprep.mubr.f32.mxu0 0.0
      %1699 = vmatmul.mubr.f32.gmra.mrb[0].mxu0 %v1507
      %v1700 = vpop.f32.mrb[0].mxu0
      %v1701 = vadd.f32 0.0, %v1700
      %v1702 = vpop.f32.mrb[0].mxu0
      %1703 = vmatprep.mubr.f32.mxu0 0.0
      %1704 = vmatmul.mubr.f32.gmra.mrb[0].mxu0 %v1510
      %v1705 = vpop.f32.mrb[0].mxu0
      %v1706 = vadd.f32 0.0, %v1705
      %v1707 = vpop.f32.mrb[0].mxu0
      %1708 = vmatprep.mubr.f32.mxu0 0.0
      %1709 = vmatmul.mubr.f32.gmra.mrb[0].mxu0 %v1513
      %v1710 = vpop.f32.mrb[0].mxu0
      %v1711 = vadd.f32 0.0, %v1710
      %v1712 = vpop.f32.mrb[0].mxu0
      %1713 = vmatprep.mubr.f32.mxu0 0.0
      %1714 = vmatmul.mubr.f32.gmra.mrb[0].mxu0 %v1516
      %v1715 = vpop.f32.mrb[0].mxu0
      %v1716 = vadd.f32 0.0, %v1715
      %v1717 = vpop.f32.mrb[0].mxu0
      %1718 = vmatprep.mubr.f32.mxu0 0.0
      %1719 = vmatmul.mubr.f32.gmra.mrb[0].mxu0 %v1519
      %v1720 = vpop.f32.mrb[0].mxu0
      %v1721 = vadd.f32 0.0, %v1720
      %v1722 = vpop.f32.mrb[0].mxu0
      %1723 = vmatprep.mubr.f32.mxu0 0.0
      %1724 = vmatmul.mubr.f32.gmra.mrb[0].mxu0 %v1522
      %v1725 = vpop.f32.mrb[0].mxu0
      %v1726 = vadd.f32 0.0, %v1725
      %v1727 = vpop.f32.mrb[0].mxu0
      %1728 = vmatprep.mubr.f32.mxu0 0.0
      %1729 = vmatmul.mubr.f32.gmra.mrb[0].mxu0 %v1525
      %v1730 = vpop.f32.mrb[0].mxu0
      %v1731 = vadd.f32 0.0, %v1730
      %v1732 = vpop.f32.mrb[0].mxu0
      %1733 = vmatprep.mubr.f32.mxu0 0.0
      %1734 = vmatmul.mubr.f32.gmra.mrb[0].mxu0 %v1528
      %v1735 = vpop.f32.mrb[0].mxu0
      %v1736 = vadd.f32 0.0, %v1735
      %v1737 = vpop.f32.mrb[0].mxu0
      %1738 = vmatprep.mubr.f32.mxu0 0.0
      %1739 = vmatmul.mubr.f32.gmra.mrb[0].mxu0 %v1531
      %v1740 = vpop.f32.mrb[0].mxu0
      %v1741 = vadd.f32 0.0, %v1740
      %v1742 = vpop.f32.mrb[0].mxu0
      %1743 = vmatprep.mubr.f32.mxu0 0.0
      %1744 = vmatmul.mubr.f32.gmra.mrb[0].mxu0 %v1534
      %v1745 = vpop.f32.mrb[0].mxu0
      %v1746 = vadd.f32 0.0, %v1745
      %v1747 = vpop.f32.mrb[0].mxu0
      %1748 = vmatprep.mubr.f32.mxu0 0.0
      %1749 = vmatmul.mubr.f32.gmra.mrb[0].mxu0 %v1537
      %v1750 = vpop.f32.mrb[0].mxu0
      %v1751 = vadd.f32 0.0, %v1750
      %v1752 = vpop.f32.mrb[0].mxu0
      %1753 = vmatprep.mubr.f32.mxu0 0.0
      %1754 = vmatmul.mubr.f32.gmra.mrb[0].mxu0 %v1540
      %v1755 = vpop.f32.mrb[0].mxu0
      %v1756 = vadd.f32 0.0, %v1755
      %v1757 = vpop.f32.mrb[0].mxu0
      %1758 = vmatprep.mubr.f32.mxu0 0.0
      %1759 = vmatmul.mubr.f32.gmra.mrb[0].mxu0 %v1543
      %v1760 = vpop.f32.mrb[0].mxu0
      %v1761 = vadd.f32 0.0, %v1760
      %v1762 = vpop.f32.mrb[0].mxu0
      %1763 = vmatprep.mubr.f32.mxu0 0.0
      %1764 = vmatmul.mubr.f32.gmra.mrb[0].mxu0 %v1546
      %v1765 = vpop.f32.mrb[0].mxu0
      %v1766 = vadd.f32 0.0, %v1765
      %v1767 = vpop.f32.mrb[0].mxu0
      %1768 = vmatprep.mubr.f32.mxu0 0.0
      %1769 = vmatmul.mubr.f32.gmra.mrb[0].mxu0 %v1549
      %v1770 = vpop.f32.mrb[0].mxu0
      %v1771 = vadd.f32 0.0, %v1770
      %v1772 = vpop.f32.mrb[0].mxu0
      %1773 = vmatprep.mubr.f32.mxu0 0.0
      %1774 = vmatmul.mubr.f32.gmra.mrb[0].mxu0 %v1552
      %v1775 = vpop.f32.mrb[0].mxu0
      %v1776 = vadd.f32 0.0, %v1775
      %v1777 = vpop.f32.mrb[0].mxu0
      %1778 = vmatprep.mubr.f32.mxu0 0.0
      %1779 = vmatmul.mubr.f32.gmra.mrb[0].mxu0 %v1555
      %v1780 = vpop.f32.mrb[0].mxu0
      %v1781 = vadd.f32 0.0, %v1780
      %v1782 = vpop.f32.mrb[0].mxu0
      %1783 = vmatprep.mubr.f32.mxu0 0.0
      %1784 = vmatmul.mubr.f32.gmra.mrb[0].mxu0 %v1558
      %v1785 = vpop.f32.mrb[0].mxu0
      %v1786 = vadd.f32 0.0, %v1785
      %v1787 = vpop.f32.mrb[0].mxu0
      %1788 = vmatprep.mubr.f32.mxu0 0.0
      %1789 = vmatmul.mubr.f32.gmra.mrb[0].mxu0 %v1561
      %v1790 = vpop.f32.mrb[0].mxu0
      %v1791 = vadd.f32 0.0, %v1790
      %v1792 = vpop.f32.mrb[0].mxu0
      %1793 = vmatprep.mubr.f32.mxu0 0.0
      %1794 = vmatmul.mubr.f32.gmra.mrb[0].mxu0 %v1564
      %v1795 = vpop.f32.mrb[0].mxu0
      %v1796 = vadd.f32 0.0, %v1795
      %v1797 = vpop.f32.mrb[0].mxu0
      %1798 = vmatprep.mubr.f32.mxu0 0.0
      %1799 = vmatmul.mubr.f32.gmra.mrb[0].mxu0 %v1567
      %v1800 = vpop.f32.mrb[0].mxu0
      %v1801 = vadd.f32 0.0, %v1800
      %v1802 = vpop.f32.mrb[0].mxu0
      %1803 = vmatprep.mubr.f32.mxu0 0.0
      %1804 = vmatmul.mubr.f32.gmra.mrb[0].mxu0 %v1570
      %v1805 = vpop.f32.mrb[0].mxu0
      %v1806 = vadd.f32 0.0, %v1805
      %v1807 = vpop.f32.mrb[0].mxu0
      %1808 = vmatprep.mubr.f32.mxu0 0.0
      %1809 = vmatmul.mubr.f32.gmra.mrb[0].mxu0 %v1573
      %v1810 = vpop.f32.mrb[0].mxu0
      %v1811 = vadd.f32 0.0, %v1810
      %v1812 = vpop.f32.mrb[0].mxu0
      %1813 = vmatprep.mubr.f32.mxu0 0.0
      %1814 = vmatmul.mubr.f32.gmra.mrb[0].mxu0 %v1576
      %v1815 = vpop.f32.mrb[0].mxu0
      %v1816 = vadd.f32 0.0, %v1815
      %v1817 = vpop.f32.mrb[0].mxu0
      %1818 = vmatprep.mubr.f32.mxu0 0.0
      %1819 = vmatmul.mubr.f32.gmra.mrb[0].mxu0 %v1579
      %v1820 = vpop.f32.mrb[0].mxu0
      %v1821 = vadd.f32 0.0, %v1820
      %v1822 = vpop.f32.mrb[0].mxu0
      %1823 = vmatprep.mubr.f32.mxu0 0.0
      %1824 = vmatmul.mubr.f32.gmra.mrb[0].mxu0 %v1582
      %v1825 = vpop.f32.mrb[0].mxu0
      %v1826 = vadd.f32 0.0, %v1825
      %v1827 = vpop.f32.mrb[0].mxu0
      %1828 = vdwg.mxu0
      %v1829 = vadd.f32 %v1401, %v1651
      %v1830 = vadd.f32 %v1402, %v1656
      %v1831 = vadd.f32 %v1403, %v1661
      %v1832 = vadd.f32 %v1404, %v1666
      %v1833 = vadd.f32 %v1405, %v1671
      %v1834 = vadd.f32 %v1406, %v1676
      %v1835 = vadd.f32 %v1407, %v1681
      %v1836 = vadd.f32 %v1408, %v1686
      %v1837 = vadd.f32 %v1409, %v1691
      %v1838 = vadd.f32 %v1410, %v1696
      %v1839 = vadd.f32 %v1411, %v1701
      %v1840 = vadd.f32 %v1412, %v1706
      %v1841 = vadd.f32 %v1413, %v1711
      %v1842 = vadd.f32 %v1414, %v1716
      %v1843 = vadd.f32 %v1415, %v1721
      %v1844 = vadd.f32 %v1416, %v1726
      %v1845 = vadd.f32 %v1417, %v1731
      %v1846 = vadd.f32 %v1418, %v1736
      %v1847 = vadd.f32 %v1419, %v1741
      %v1848 = vadd.f32 %v1420, %v1746
      %v1849 = vadd.f32 %v1421, %v1751
      %v1850 = vadd.f32 %v1422, %v1756
      %v1851 = vadd.f32 %v1423, %v1761
      %v1852 = vadd.f32 %v1424, %v1766
      %v1853 = vadd.f32 %v1425, %v1771
      %v1854 = vadd.f32 %v1426, %v1776
      %v1855 = vadd.f32 %v1427, %v1781
      %v1856 = vadd.f32 %v1428, %v1786
      %v1857 = vadd.f32 %v1429, %v1791
      %v1858 = vadd.f32 %v1430, %v1796
      %v1859 = vadd.f32 %v1431, %v1801
      %v1860 = vadd.f32 %v1432, %v1806
      %v1861 = vadd.f32 %v1433, %v1811
      %v1862 = vadd.f32 %v1434, %v1816
      %v1863 = vadd.f32 %v1435, %v1821
      %v1864 = vadd.f32 %v1436, %v1826
      %v1865 = vld [vmem:[%s219 + $0x13] sm:$0xff]
      %v1866 = vld [vmem:[%s219 + $0x1b] sm:$0xff]
      %v1867 = vld [vmem:[%s219 + $0x23] sm:$0xff]
      %v1868 = vld [vmem:[%s219 + $0x2b] sm:$0xff]
      %v1869 = vld [vmem:[%s219 + $0x33] sm:$0xff]
      %v1870 = vld [vmem:[%s219 + $0x3b] sm:$0xff]
      %v1871 = vld [vmem:[%s219 + $0x43] sm:$0xff]
      %v1872 = vld [vmem:[%s219 + $0x4b] sm:$0xff]
      %v1873 = vld [vmem:[%s219 + $0x53] sm:$0xff]
      %v1874 = vld [vmem:[%s219 + $0x5b] sm:$0xff]
      %v1875 = vld [vmem:[%s219 + $0x63] sm:$0xff]
      %v1876 = vld [vmem:[%s219 + $0x6b] sm:$0xff]
      %v1877 = vld [vmem:[%s219 + $0x73] sm:$0xff]
      %v1878 = vld [vmem:[%s219 + $0x7b] sm:$0xff]
      %v1879 = vld [vmem:[%s219 + $0x83] sm:$0xff]
      %v1880 = vld [vmem:[%s219 + $0x8b] sm:$0xff]
      %v1881 = vld [vmem:[%s219 + $0x93] sm:$0xff]
      %v1882 = vld [vmem:[%s219 + $0x9b] sm:$0xff]
      %v1883 = vld [vmem:[%s219 + $0xa3] sm:$0xff]
      %v1884 = vld [vmem:[%s219 + $0xab] sm:$0xff]
      %v1885 = vld [vmem:[%s219 + $0xb3] sm:$0xff]
      %v1886 = vld [vmem:[%s219 + $0xbb] sm:$0xff]
      %v1887 = vld [vmem:[%s219 + $0xc3] sm:$0xff]
      %v1888 = vld [vmem:[%s219 + $0xcb] sm:$0xff]
      %v1889 = vld [vmem:[%s219 + $0xd3] sm:$0xff]
      %v1890 = vld [vmem:[%s219 + $0xdb] sm:$0xff]
      %v1891 = vld [vmem:[%s219 + $0xe3] sm:$0xff]
      %v1892 = vld [vmem:[%s219 + $0xeb] sm:$0xff]
      %v1893 = vld [vmem:[%s219 + $0xf3] sm:$0xff]
      %v1894 = vld [vmem:[%s219 + $0xfb] sm:$0xff]
      %v1895 = vld [vmem:[%s219 + $0x103] sm:$0xff]
      %v1896 = vld [vmem:[%s219 + $0x10b] sm:$0xff]
      %v1897 = vld [vmem:[%s219 + $0x113] sm:$0xff]
      %v1898 = vld [vmem:[%s219 + $0x11b] sm:$0xff]
      %v1899 = vld [vmem:[%s219 + $0x123] sm:$0xff]
      %v1900 = vld [vmem:[%s219 + $0x12b] sm:$0xff]
      %s1901 = scalar_lea.vmem %s1, 64
      %v1902 = vld [vmem:[%s1901] sm:$0xff]
      %v1903 = vld [vmem:[%s1901 + $0x8] sm:$0xff]
      %v1905 = vsel %vm302, %v1865, 0
      %v1908 = vsel %vm302, %v1866, 0
      %v1911 = vsel %vm302, %v1867, 0
      %v1914 = vsel %vm302, %v1868, 0
      %v1917 = vsel %vm302, %v1869, 0
      %v1920 = vsel %vm302, %v1870, 0
      %v1923 = vsel %vm302, %v1871, 0
      %v1926 = vsel %vm302, %v1872, 0
      %v1929 = vsel %vm302, %v1873, 0
      %v1932 = vsel %vm302, %v1874, 0
      %v1935 = vsel %vm302, %v1875, 0
      %v1938 = vsel %vm302, %v1876, 0
      %v1941 = vsel %vm302, %v1877, 0
      %v1944 = vsel %vm302, %v1878, 0
      %v1947 = vsel %vm302, %v1879, 0
      %v1950 = vsel %vm302, %v1880, 0
      %v1953 = vsel %vm302, %v1881, 0
      %v1956 = vsel %vm302, %v1882, 0
      %v1959 = vsel %vm302, %v1883, 0
      %v1962 = vsel %vm302, %v1884, 0
      %v1965 = vsel %vm302, %v1885, 0
      %v1968 = vsel %vm302, %v1886, 0
      %v1971 = vsel %vm302, %v1887, 0
      %v1974 = vsel %vm302, %v1888, 0
      %v1977 = vsel %vm302, %v1889, 0
      %v1980 = vsel %vm302, %v1890, 0
      %v1983 = vsel %vm302, %v1891, 0
      %v1986 = vsel %vm302, %v1892, 0
      %v1989 = vsel %vm302, %v1893, 0
      %v1992 = vsel %vm302, %v1894, 0
      %v1995 = vsel %vm302, %v1895, 0
      %v1998 = vsel %vm302, %v1896, 0
      %v2001 = vsel %vm302, %v1897, 0
      %v2004 = vsel %vm302, %v1898, 0
      %v2007 = vsel %vm302, %v1899, 0
      %v2010 = vsel %vm302, %v1900, 0
      %2012 = vmatprep.subr.mxu0 0.0
      %2013 = vmatpush1.msra.mxu0 %v1902
      %2014 = vmatprep.subr.mxu0 0.0
      %2015 = vmatpush1.msra.mxu0 %v1903
      %2016 = vmatprep.subr.mxu0 0.0
      %2017 = vmatpush1.msra.mxu0 0.0
      %2018 = vmatprep.subr.mxu0 0.0
      %2019 = vmatpush1.msra.mxu0 0.0
      %2020 = vmatprep.subr.mxu0 0.0
      %2021 = vmatpush1.msra.mxu0 0.0
      %2022 = vmatprep.subr.mxu0 0.0
      %2023 = vmatpush1.msra.mxu0 0.0
      %2024 = vmatprep.subr.mxu0 0.0
      %2025 = vmatpush1.msra.mxu0 0.0
      %2026 = vmatprep.subr.mxu0 0.0
      %2027 = vmatpush1.msra.mxu0 0.0
      %2028 = vmatprep.subr.mxu0 0.0
      %2029 = vmatpush1.msra.mxu0 0.0
      %2030 = vmatprep.subr.mxu0 0.0
      %2031 = vmatpush1.msra.mxu0 0.0
      %2032 = vmatprep.subr.mxu0 0.0
      %2033 = vmatpush1.msra.mxu0 0.0
      %2034 = vmatprep.subr.mxu0 0.0
      %2035 = vmatpush1.msra.mxu0 0.0
      %2036 = vmatprep.subr.mxu0 0.0
      %2037 = vmatpush1.msra.mxu0 0.0
      %2038 = vmatprep.subr.mxu0 0.0
      %2039 = vmatpush1.msra.mxu0 0.0
      %2040 = vmatprep.subr.mxu0 0.0
      %2041 = vmatpush1.msra.mxu0 0.0
      %2042 = vmatprep.subr.mxu0 0.0
      %2043 = vmatpush1.msra.mxu0 0.0
      %2044 = vmatprep.subr.mxu0 0.0
      %2045 = vmatpush1.msra.mxu0 0.0
      %2046 = vmatprep.subr.mxu0 0.0
      %2047 = vmatpush1.msra.mxu0 0.0
      %2048 = vmatprep.subr.mxu0 0.0
      %2049 = vmatpush1.msra.mxu0 0.0
      %2050 = vmatprep.subr.mxu0 0.0
      %2051 = vmatpush1.msra.mxu0 0.0
      %2052 = vmatprep.subr.mxu0 0.0
      %2053 = vmatpush1.msra.mxu0 0.0
      %2054 = vmatprep.subr.mxu0 0.0
      %2055 = vmatpush1.msra.mxu0 0.0
      %2056 = vmatprep.subr.mxu0 0.0
      %2057 = vmatpush1.msra.mxu0 0.0
      %2058 = vmatprep.subr.mxu0 0.0
      %2059 = vmatpush1.msra.mxu0 0.0
      %2060 = vmatprep.subr.mxu0 0.0
      %2061 = vmatpush1.msra.mxu0 0.0
      %2062 = vmatprep.subr.mxu0 0.0
      %2063 = vmatpush1.msra.mxu0 0.0
      %2064 = vmatprep.subr.mxu0 0.0
      %2065 = vmatpush1.msra.mxu0 0.0
      %2066 = vmatprep.subr.mxu0 0.0
      %2067 = vmatpush1.msra.mxu0 0.0
      %2068 = vmatprep.subr.mxu0 0.0
      %2069 = vmatpush1.msra.mxu0 0.0
      %2070 = vmatprep.subr.mxu0 0.0
      %2071 = vmatpush1.msra.mxu0 0.0
      %2072 = vmatprep.subr.mxu0 0.0
      %2073 = vmatpush1.msra.mxu0 0.0
      %2074 = vmatprep.subr.mxu0 0.0
      %2075 = vmatpush1.msra.mxu0 0.0
      %2076 = vmatprep.mubr.f32.mxu0 0.0
      %2077 = vmatmul.mubr.f32.gmra.mrb[0].mxu0 %v1905
      %v2078 = vpop.f32.mrb[0].mxu0
      %v2079 = vadd.f32 0.0, %v2078
      %v2080 = vpop.f32.mrb[0].mxu0
      %2081 = vmatprep.mubr.f32.mxu0 0.0
      %2082 = vmatmul.mubr.f32.gmra.mrb[0].mxu0 %v1908
      %v2083 = vpop.f32.mrb[0].mxu0
      %v2084 = vadd.f32 0.0, %v2083
      %v2085 = vpop.f32.mrb[0].mxu0
      %2086 = vmatprep.mubr.f32.mxu0 0.0
      %2087 = vmatmul.mubr.f32.gmra.mrb[0].mxu0 %v1911
      %v2088 = vpop.f32.mrb[0].mxu0
      %v2089 = vadd.f32 0.0, %v2088
      %v2090 = vpop.f32.mrb[0].mxu0
      %2091 = vmatprep.mubr.f32.mxu0 0.0
      %2092 = vmatmul.mubr.f32.gmra.mrb[0].mxu0 %v1914
      %v2093 = vpop.f32.mrb[0].mxu0
      %v2094 = vadd.f32 0.0, %v2093
      %v2095 = vpop.f32.mrb[0].mxu0
      %2096 = vmatprep.mubr.f32.mxu0 0.0
      %2097 = vmatmul.mubr.f32.gmra.mrb[0].mxu0 %v1917
      %v2098 = vpop.f32.mrb[0].mxu0
      %v2099 = vadd.f32 0.0, %v2098
      %v2100 = vpop.f32.mrb[0].mxu0
      %2101 = vmatprep.mubr.f32.mxu0 0.0
      %2102 = vmatmul.mubr.f32.gmra.mrb[0].mxu0 %v1920
      %v2103 = vpop.f32.mrb[0].mxu0
      %v2104 = vadd.f32 0.0, %v2103
      %v2105 = vpop.f32.mrb[0].mxu0
      %2106 = vmatprep.mubr.f32.mxu0 0.0
      %2107 = vmatmul.mubr.f32.gmra.mrb[0].mxu0 %v1923
      %v2108 = vpop.f32.mrb[0].mxu0
      %v2109 = vadd.f32 0.0, %v2108
      %v2110 = vpop.f32.mrb[0].mxu0
      %2111 = vmatprep.mubr.f32.mxu0 0.0
      %2112 = vmatmul.mubr.f32.gmra.mrb[0].mxu0 %v1926
      %v2113 = vpop.f32.mrb[0].mxu0
      %v2114 = vadd.f32 0.0, %v2113
      %v2115 = vpop.f32.mrb[0].mxu0
      %2116 = vmatprep.mubr.f32.mxu0 0.0
      %2117 = vmatmul.mubr.f32.gmra.mrb[0].mxu0 %v1929
      %v2118 = vpop.f32.mrb[0].mxu0
      %v2119 = vadd.f32 0.0, %v2118
      %v2120 = vpop.f32.mrb[0].mxu0
      %2121 = vmatprep.mubr.f32.mxu0 0.0
      %2122 = vmatmul.mubr.f32.gmra.mrb[0].mxu0 %v1932
      %v2123 = vpop.f32.mrb[0].mxu0
      %v2124 = vadd.f32 0.0, %v2123
      %v2125 = vpop.f32.mrb[0].mxu0
      %2126 = vmatprep.mubr.f32.mxu0 0.0
      %2127 = vmatmul.mubr.f32.gmra.mrb[0].mxu0 %v1935
      %v2128 = vpop.f32.mrb[0].mxu0
      %v2129 = vadd.f32 0.0, %v2128
      %v2130 = vpop.f32.mrb[0].mxu0
      %2131 = vmatprep.mubr.f32.mxu0 0.0
      %2132 = vmatmul.mubr.f32.gmra.mrb[0].mxu0 %v1938
      %v2133 = vpop.f32.mrb[0].mxu0
      %v2134 = vadd.f32 0.0, %v2133
      %v2135 = vpop.f32.mrb[0].mxu0
      %2136 = vmatprep.mubr.f32.mxu0 0.0
      %2137 = vmatmul.mubr.f32.gmra.mrb[0].mxu0 %v1941
      %v2138 = vpop.f32.mrb[0].mxu0
      %v2139 = vadd.f32 0.0, %v2138
      %v2140 = vpop.f32.mrb[0].mxu0
      %2141 = vmatprep.mubr.f32.mxu0 0.0
      %2142 = vmatmul.mubr.f32.gmra.mrb[0].mxu0 %v1944
      %v2143 = vpop.f32.mrb[0].mxu0
      %v2144 = vadd.f32 0.0, %v2143
      %v2145 = vpop.f32.mrb[0].mxu0
      %2146 = vmatprep.mubr.f32.mxu0 0.0
      %2147 = vmatmul.mubr.f32.gmra.mrb[0].mxu0 %v1947
      %v2148 = vpop.f32.mrb[0].mxu0
      %v2149 = vadd.f32 0.0, %v2148
      %v2150 = vpop.f32.mrb[0].mxu0
      %2151 = vmatprep.mubr.f32.mxu0 0.0
      %2152 = vmatmul.mubr.f32.gmra.mrb[0].mxu0 %v1950
      %v2153 = vpop.f32.mrb[0].mxu0
      %v2154 = vadd.f32 0.0, %v2153
      %v2155 = vpop.f32.mrb[0].mxu0
      %2156 = vmatprep.mubr.f32.mxu0 0.0
      %2157 = vmatmul.mubr.f32.gmra.mrb[0].mxu0 %v1953
      %v2158 = vpop.f32.mrb[0].mxu0
      %v2159 = vadd.f32 0.0, %v2158
      %v2160 = vpop.f32.mrb[0].mxu0
      %2161 = vmatprep.mubr.f32.mxu0 0.0
      %2162 = vmatmul.mubr.f32.gmra.mrb[0].mxu0 %v1956
      %v2163 = vpop.f32.mrb[0].mxu0
      %v2164 = vadd.f32 0.0, %v2163
      %v2165 = vpop.f32.mrb[0].mxu0
      %2166 = vmatprep.mubr.f32.mxu0 0.0
      %2167 = vmatmul.mubr.f32.gmra.mrb[0].mxu0 %v1959
      %v2168 = vpop.f32.mrb[0].mxu0
      %v2169 = vadd.f32 0.0, %v2168
      %v2170 = vpop.f32.mrb[0].mxu0
      %2171 = vmatprep.mubr.f32.mxu0 0.0
      %2172 = vmatmul.mubr.f32.gmra.mrb[0].mxu0 %v1962
      %v2173 = vpop.f32.mrb[0].mxu0
      %v2174 = vadd.f32 0.0, %v2173
      %v2175 = vpop.f32.mrb[0].mxu0
      %2176 = vmatprep.mubr.f32.mxu0 0.0
      %2177 = vmatmul.mubr.f32.gmra.mrb[0].mxu0 %v1965
      %v2178 = vpop.f32.mrb[0].mxu0
      %v2179 = vadd.f32 0.0, %v2178
      %v2180 = vpop.f32.mrb[0].mxu0
      %2181 = vmatprep.mubr.f32.mxu0 0.0
      %2182 = vmatmul.mubr.f32.gmra.mrb[0].mxu0 %v1968
      %v2183 = vpop.f32.mrb[0].mxu0
      %v2184 = vadd.f32 0.0, %v2183
      %v2185 = vpop.f32.mrb[0].mxu0
      %2186 = vmatprep.mubr.f32.mxu0 0.0
      %2187 = vmatmul.mubr.f32.gmra.mrb[0].mxu0 %v1971
      %v2188 = vpop.f32.mrb[0].mxu0
      %v2189 = vadd.f32 0.0, %v2188
      %v2190 = vpop.f32.mrb[0].mxu0
      %2191 = vmatprep.mubr.f32.mxu0 0.0
      %2192 = vmatmul.mubr.f32.gmra.mrb[0].mxu0 %v1974
      %v2193 = vpop.f32.mrb[0].mxu0
      %v2194 = vadd.f32 0.0, %v2193
      %v2195 = vpop.f32.mrb[0].mxu0
      %2196 = vmatprep.mubr.f32.mxu0 0.0
      %2197 = vmatmul.mubr.f32.gmra.mrb[0].mxu0 %v1977
      %v2198 = vpop.f32.mrb[0].mxu0
      %v2199 = vadd.f32 0.0, %v2198
      %v2200 = vpop.f32.mrb[0].mxu0
      %2201 = vmatprep.mubr.f32.mxu0 0.0
      %2202 = vmatmul.mubr.f32.gmra.mrb[0].mxu0 %v1980
      %v2203 = vpop.f32.mrb[0].mxu0
      %v2204 = vadd.f32 0.0, %v2203
      %v2205 = vpop.f32.mrb[0].mxu0
      %2206 = vmatprep.mubr.f32.mxu0 0.0
      %2207 = vmatmul.mubr.f32.gmra.mrb[0].mxu0 %v1983
      %v2208 = vpop.f32.mrb[0].mxu0
      %v2209 = vadd.f32 0.0, %v2208
      %v2210 = vpop.f32.mrb[0].mxu0
      %2211 = vmatprep.mubr.f32.mxu0 0.0
      %2212 = vmatmul.mubr.f32.gmra.mrb[0].mxu0 %v1986
      %v2213 = vpop.f32.mrb[0].mxu0
      %v2214 = vadd.f32 0.0, %v2213
      %v2215 = vpop.f32.mrb[0].mxu0
      %2216 = vmatprep.mubr.f32.mxu0 0.0
      %2217 = vmatmul.mubr.f32.gmra.mrb[0].mxu0 %v1989
      %v2218 = vpop.f32.mrb[0].mxu0
      %v2219 = vadd.f32 0.0, %v2218
      %v2220 = vpop.f32.mrb[0].mxu0
      %2221 = vmatprep.mubr.f32.mxu0 0.0
      %2222 = vmatmul.mubr.f32.gmra.mrb[0].mxu0 %v1992
      %v2223 = vpop.f32.mrb[0].mxu0
      %v2224 = vadd.f32 0.0, %v2223
      %v2225 = vpop.f32.mrb[0].mxu0
      %2226 = vmatprep.mubr.f32.mxu0 0.0
      %2227 = vmatmul.mubr.f32.gmra.mrb[0].mxu0 %v1995
      %v2228 = vpop.f32.mrb[0].mxu0
      %v2229 = vadd.f32 0.0, %v2228
      %v2230 = vpop.f32.mrb[0].mxu0
      %2231 = vmatprep.mubr.f32.mxu0 0.0
      %2232 = vmatmul.mubr.f32.gmra.mrb[0].mxu0 %v1998
      %v2233 = vpop.f32.mrb[0].mxu0
      %v2234 = vadd.f32 0.0, %v2233
      %v2235 = vpop.f32.mrb[0].mxu0
      %2236 = vmatprep.mubr.f32.mxu0 0.0
      %2237 = vmatmul.mubr.f32.gmra.mrb[0].mxu0 %v2001
      %v2238 = vpop.f32.mrb[0].mxu0
      %v2239 = vadd.f32 0.0, %v2238
      %v2240 = vpop.f32.mrb[0].mxu0
      %2241 = vmatprep.mubr.f32.mxu0 0.0
      %2242 = vmatmul.mubr.f32.gmra.mrb[0].mxu0 %v2004
      %v2243 = vpop.f32.mrb[0].mxu0
      %v2244 = vadd.f32 0.0, %v2243
      %v2245 = vpop.f32.mrb[0].mxu0
      %2246 = vmatprep.mubr.f32.mxu0 0.0
      %2247 = vmatmul.mubr.f32.gmra.mrb[0].mxu0 %v2007
      %v2248 = vpop.f32.mrb[0].mxu0
      %v2249 = vadd.f32 0.0, %v2248
      %v2250 = vpop.f32.mrb[0].mxu0
      %2251 = vmatprep.mubr.f32.mxu0 0.0
      %2252 = vmatmul.mubr.f32.gmra.mrb[0].mxu0 %v2010
      %v2253 = vpop.f32.mrb[0].mxu0
      %v2254 = vadd.f32 0.0, %v2253
      %v2255 = vpop.f32.mrb[0].mxu0
      %2256 = vdwg.mxu0
      %v2257 = vadd.f32 %v1829, %v2079
      %v2258 = vadd.f32 %v1830, %v2084
      %v2259 = vadd.f32 %v1831, %v2089
      %v2260 = vadd.f32 %v1832, %v2094
      %v2261 = vadd.f32 %v1833, %v2099
      %v2262 = vadd.f32 %v1834, %v2104
      %v2263 = vadd.f32 %v1835, %v2109
      %v2264 = vadd.f32 %v1836, %v2114
      %v2265 = vadd.f32 %v1837, %v2119
      %v2266 = vadd.f32 %v1838, %v2124
      %v2267 = vadd.f32 %v1839, %v2129
      %v2268 = vadd.f32 %v1840, %v2134
      %v2269 = vadd.f32 %v1841, %v2139
      %v2270 = vadd.f32 %v1842, %v2144
      %v2271 = vadd.f32 %v1843, %v2149
      %v2272 = vadd.f32 %v1844, %v2154
      %v2273 = vadd.f32 %v1845, %v2159
      %v2274 = vadd.f32 %v1846, %v2164
      %v2275 = vadd.f32 %v1847, %v2169
      %v2276 = vadd.f32 %v1848, %v2174
      %v2277 = vadd.f32 %v1849, %v2179
      %v2278 = vadd.f32 %v1850, %v2184
      %v2279 = vadd.f32 %v1851, %v2189
      %v2280 = vadd.f32 %v1852, %v2194
      %v2281 = vadd.f32 %v1853, %v2199
      %v2282 = vadd.f32 %v1854, %v2204
      %v2283 = vadd.f32 %v1855, %v2209
      %v2284 = vadd.f32 %v1856, %v2214
      %v2285 = vadd.f32 %v1857, %v2219
      %v2286 = vadd.f32 %v1858, %v2224
      %v2287 = vadd.f32 %v1859, %v2229
      %v2288 = vadd.f32 %v1860, %v2234
      %v2289 = vadd.f32 %v1861, %v2239
      %v2290 = vadd.f32 %v1862, %v2244
      %v2291 = vadd.f32 %v1863, %v2249
      %v2292 = vadd.f32 %v1864, %v2254
      %v2293 = vld [vmem:[%s219 + $0x14] sm:$0xff]
      %v2294 = vld [vmem:[%s219 + $0x1c] sm:$0xff]
      %v2295 = vld [vmem:[%s219 + $0x24] sm:$0xff]
      %v2296 = vld [vmem:[%s219 + $0x2c] sm:$0xff]
      %v2297 = vld [vmem:[%s219 + $0x34] sm:$0xff]
      %v2298 = vld [vmem:[%s219 + $0x3c] sm:$0xff]
      %v2299 = vld [vmem:[%s219 + $0x44] sm:$0xff]
      %v2300 = vld [vmem:[%s219 + $0x4c] sm:$0xff]
      %v2301 = vld [vmem:[%s219 + $0x54] sm:$0xff]
      %v2302 = vld [vmem:[%s219 + $0x5c] sm:$0xff]
      %v2303 = vld [vmem:[%s219 + $0x64] sm:$0xff]
      %v2304 = vld [vmem:[%s219 + $0x6c] sm:$0xff]
      %v2305 = vld [vmem:[%s219 + $0x74] sm:$0xff]
      %v2306 = vld [vmem:[%s219 + $0x7c] sm:$0xff]
      %v2307 = vld [vmem:[%s219 + $0x84] sm:$0xff]
      %v2308 = vld [vmem:[%s219 + $0x8c] sm:$0xff]
      %v2309 = vld [vmem:[%s219 + $0x94] sm:$0xff]
      %v2310 = vld [vmem:[%s219 + $0x9c] sm:$0xff]
      %v2311 = vld [vmem:[%s219 + $0xa4] sm:$0xff]
      %v2312 = vld [vmem:[%s219 + $0xac] sm:$0xff]
      %v2313 = vld [vmem:[%s219 + $0xb4] sm:$0xff]
      %v2314 = vld [vmem:[%s219 + $0xbc] sm:$0xff]
      %v2315 = vld [vmem:[%s219 + $0xc4] sm:$0xff]
      %v2316 = vld [vmem:[%s219 + $0xcc] sm:$0xff]
      %v2317 = vld [vmem:[%s219 + $0xd4] sm:$0xff]
      %v2318 = vld [vmem:[%s219 + $0xdc] sm:$0xff]
      %v2319 = vld [vmem:[%s219 + $0xe4] sm:$0xff]
      %v2320 = vld [vmem:[%s219 + $0xec] sm:$0xff]
      %v2321 = vld [vmem:[%s219 + $0xf4] sm:$0xff]
      %v2322 = vld [vmem:[%s219 + $0xfc] sm:$0xff]
      %v2323 = vld [vmem:[%s219 + $0x104] sm:$0xff]
      %v2324 = vld [vmem:[%s219 + $0x10c] sm:$0xff]
      %v2325 = vld [vmem:[%s219 + $0x114] sm:$0xff]
      %v2326 = vld [vmem:[%s219 + $0x11c] sm:$0xff]
      %v2327 = vld [vmem:[%s219 + $0x124] sm:$0xff]
      %v2328 = vld [vmem:[%s219 + $0x12c] sm:$0xff]
      %s2329 = scalar_lea.vmem %s1, 80
      %v2330 = vld [vmem:[%s2329] sm:$0xff]
      %v2331 = vld [vmem:[%s2329 + $0x8] sm:$0xff]
      %v2333 = vsel %vm302, %v2293, 0
      %v2336 = vsel %vm302, %v2294, 0
      %v2339 = vsel %vm302, %v2295, 0
      %v2342 = vsel %vm302, %v2296, 0
      %v2345 = vsel %vm302, %v2297, 0
      %v2348 = vsel %vm302, %v2298, 0
      %v2351 = vsel %vm302, %v2299, 0
      %v2354 = vsel %vm302, %v2300, 0
      %v2357 = vsel %vm302, %v2301, 0
      %v2360 = vsel %vm302, %v2302, 0
      %v2363 = vsel %vm302, %v2303, 0
      %v2366 = vsel %vm302, %v2304, 0
      %v2369 = vsel %vm302, %v2305, 0
      %v2372 = vsel %vm302, %v2306, 0
      %v2375 = vsel %vm302, %v2307, 0
      %v2378 = vsel %vm302, %v2308, 0
      %v2381 = vsel %vm302, %v2309, 0
      %v2384 = vsel %vm302, %v2310, 0
      %v2387 = vsel %vm302, %v2311, 0
      %v2390 = vsel %vm302, %v2312, 0
      %v2393 = vsel %vm302, %v2313, 0
      %v2396 = vsel %vm302, %v2314, 0
      %v2399 = vsel %vm302, %v2315, 0
      %v2402 = vsel %vm302, %v2316, 0
      %v2405 = vsel %vm302, %v2317, 0
      %v2408 = vsel %vm302, %v2318, 0
      %v2411 = vsel %vm302, %v2319, 0
      %v2414 = vsel %vm302, %v2320, 0
      %v2417 = vsel %vm302, %v2321, 0
      %v2420 = vsel %vm302, %v2322, 0
      %v2423 = vsel %vm302, %v2323, 0
      %v2426 = vsel %vm302, %v2324, 0
      %v2429 = vsel %vm302, %v2325, 0
      %v2432 = vsel %vm302, %v2326, 0
      %v2435 = vsel %vm302, %v2327, 0
      %v2438 = vsel %vm302, %v2328, 0
      %2440 = vmatprep.subr.mxu0 0.0
      %2441 = vmatpush1.msra.mxu0 %v2330
      %2442 = vmatprep.subr.mxu0 0.0
      %2443 = vmatpush1.msra.mxu0 %v2331
      %2444 = vmatprep.subr.mxu0 0.0
      %2445 = vmatpush1.msra.mxu0 0.0
      %2446 = vmatprep.subr.mxu0 0.0
      %2447 = vmatpush1.msra.mxu0 0.0
      %2448 = vmatprep.subr.mxu0 0.0
      %2449 = vmatpush1.msra.mxu0 0.0
      %2450 = vmatprep.subr.mxu0 0.0
      %2451 = vmatpush1.msra.mxu0 0.0
      %2452 = vmatprep.subr.mxu0 0.0
      %2453 = vmatpush1.msra.mxu0 0.0
      %2454 = vmatprep.subr.mxu0 0.0
      %2455 = vmatpush1.msra.mxu0 0.0
      %2456 = vmatprep.subr.mxu0 0.0
      %2457 = vmatpush1.msra.mxu0 0.0
      %2458 = vmatprep.subr.mxu0 0.0
      %2459 = vmatpush1.msra.mxu0 0.0
      %2460 = vmatprep.subr.mxu0 0.0
      %2461 = vmatpush1.msra.mxu0 0.0
      %2462 = vmatprep.subr.mxu0 0.0
      %2463 = vmatpush1.msra.mxu0 0.0
      %2464 = vmatprep.subr.mxu0 0.0
      %2465 = vmatpush1.msra.mxu0 0.0
      %2466 = vmatprep.subr.mxu0 0.0
      %2467 = vmatpush1.msra.mxu0 0.0
      %2468 = vmatprep.subr.mxu0 0.0
      %2469 = vmatpush1.msra.mxu0 0.0
      %2470 = vmatprep.subr.mxu0 0.0
      %2471 = vmatpush1.msra.mxu0 0.0
      %2472 = vmatprep.subr.mxu0 0.0
      %2473 = vmatpush1.msra.mxu0 0.0
      %2474 = vmatprep.subr.mxu0 0.0
      %2475 = vmatpush1.msra.mxu0 0.0
      %2476 = vmatprep.subr.mxu0 0.0
      %2477 = vmatpush1.msra.mxu0 0.0
      %2478 = vmatprep.subr.mxu0 0.0
      %2479 = vmatpush1.msra.mxu0 0.0
      %2480 = vmatprep.subr.mxu0 0.0
      %2481 = vmatpush1.msra.mxu0 0.0
      %2482 = vmatprep.subr.mxu0 0.0
      %2483 = vmatpush1.msra.mxu0 0.0
      %2484 = vmatprep.subr.mxu0 0.0
      %2485 = vmatpush1.msra.mxu0 0.0
      %2486 = vmatprep.subr.mxu0 0.0
      %2487 = vmatpush1.msra.mxu0 0.0
      %2488 = vmatprep.subr.mxu0 0.0
      %2489 = vmatpush1.msra.mxu0 0.0
      %2490 = vmatprep.subr.mxu0 0.0
      %2491 = vmatpush1.msra.mxu0 0.0
      %2492 = vmatprep.subr.mxu0 0.0
      %2493 = vmatpush1.msra.mxu0 0.0
      %2494 = vmatprep.subr.mxu0 0.0
      %2495 = vmatpush1.msra.mxu0 0.0
      %2496 = vmatprep.subr.mxu0 0.0
      %2497 = vmatpush1.msra.mxu0 0.0
      %2498 = vmatprep.subr.mxu0 0.0
      %2499 = vmatpush1.msra.mxu0 0.0
      %2500 = vmatprep.subr.mxu0 0.0
      %2501 = vmatpush1.msra.mxu0 0.0
      %2502 = vmatprep.subr.mxu0 0.0
      %2503 = vmatpush1.msra.mxu0 0.0
      %2504 = vmatprep.mubr.f32.mxu0 0.0
      %2505 = vmatmul.mubr.f32.gmra.mrb[0].mxu0 %v2333
      %v2506 = vpop.f32.mrb[0].mxu0
      %v2507 = vadd.f32 0.0, %v2506
      %v2508 = vpop.f32.mrb[0].mxu0
      %2509 = vmatprep.mubr.f32.mxu0 0.0
      %2510 = vmatmul.mubr.f32.gmra.mrb[0].mxu0 %v2336
      %v2511 = vpop.f32.mrb[0].mxu0
      %v2512 = vadd.f32 0.0, %v2511
      %v2513 = vpop.f32.mrb[0].mxu0
      %2514 = vmatprep.mubr.f32.mxu0 0.0
      %2515 = vmatmul.mubr.f32.gmra.mrb[0].mxu0 %v2339
      %v2516 = vpop.f32.mrb[0].mxu0
      %v2517 = vadd.f32 0.0, %v2516
      %v2518 = vpop.f32.mrb[0].mxu0
      %2519 = vmatprep.mubr.f32.mxu0 0.0
      %2520 = vmatmul.mubr.f32.gmra.mrb[0].mxu0 %v2342
      %v2521 = vpop.f32.mrb[0].mxu0
      %v2522 = vadd.f32 0.0, %v2521
      %v2523 = vpop.f32.mrb[0].mxu0
      %2524 = vmatprep.mubr.f32.mxu0 0.0
      %2525 = vmatmul.mubr.f32.gmra.mrb[0].mxu0 %v2345
      %v2526 = vpop.f32.mrb[0].mxu0
      %v2527 = vadd.f32 0.0, %v2526
      %v2528 = vpop.f32.mrb[0].mxu0
      %2529 = vmatprep.mubr.f32.mxu0 0.0
      %2530 = vmatmul.mubr.f32.gmra.mrb[0].mxu0 %v2348
      %v2531 = vpop.f32.mrb[0].mxu0
      %v2532 = vadd.f32 0.0, %v2531
      %v2533 = vpop.f32.mrb[0].mxu0
      %2534 = vmatprep.mubr.f32.mxu0 0.0
      %2535 = vmatmul.mubr.f32.gmra.mrb[0].mxu0 %v2351
      %v2536 = vpop.f32.mrb[0].mxu0
      %v2537 = vadd.f32 0.0, %v2536
      %v2538 = vpop.f32.mrb[0].mxu0
      %2539 = vmatprep.mubr.f32.mxu0 0.0
      %2540 = vmatmul.mubr.f32.gmra.mrb[0].mxu0 %v2354
      %v2541 = vpop.f32.mrb[0].mxu0
      %v2542 = vadd.f32 0.0, %v2541
      %v2543 = vpop.f32.mrb[0].mxu0
      %2544 = vmatprep.mubr.f32.mxu0 0.0
      %2545 = vmatmul.mubr.f32.gmra.mrb[0].mxu0 %v2357
      %v2546 = vpop.f32.mrb[0].mxu0
      %v2547 = vadd.f32 0.0, %v2546
      %v2548 = vpop.f32.mrb[0].mxu0
      %2549 = vmatprep.mubr.f32.mxu0 0.0
      %2550 = vmatmul.mubr.f32.gmra.mrb[0].mxu0 %v2360
      %v2551 = vpop.f32.mrb[0].mxu0
      %v2552 = vadd.f32 0.0, %v2551
      %v2553 = vpop.f32.mrb[0].mxu0
      %2554 = vmatprep.mubr.f32.mxu0 0.0
      %2555 = vmatmul.mubr.f32.gmra.mrb[0].mxu0 %v2363
      %v2556 = vpop.f32.mrb[0].mxu0
      %v2557 = vadd.f32 0.0, %v2556
      %v2558 = vpop.f32.mrb[0].mxu0
      %2559 = vmatprep.mubr.f32.mxu0 0.0
      %2560 = vmatmul.mubr.f32.gmra.mrb[0].mxu0 %v2366
      %v2561 = vpop.f32.mrb[0].mxu0
      %v2562 = vadd.f32 0.0, %v2561
      %v2563 = vpop.f32.mrb[0].mxu0
      %2564 = vmatprep.mubr.f32.mxu0 0.0
      %2565 = vmatmul.mubr.f32.gmra.mrb[0].mxu0 %v2369
      %v2566 = vpop.f32.mrb[0].mxu0
      %v2567 = vadd.f32 0.0, %v2566
      %v2568 = vpop.f32.mrb[0].mxu0
      %2569 = vmatprep.mubr.f32.mxu0 0.0
      %2570 = vmatmul.mubr.f32.gmra.mrb[0].mxu0 %v2372
      %v2571 = vpop.f32.mrb[0].mxu0
      %v2572 = vadd.f32 0.0, %v2571
      %v2573 = vpop.f32.mrb[0].mxu0
      %2574 = vmatprep.mubr.f32.mxu0 0.0
      %2575 = vmatmul.mubr.f32.gmra.mrb[0].mxu0 %v2375
      %v2576 = vpop.f32.mrb[0].mxu0
      %v2577 = vadd.f32 0.0, %v2576
      %v2578 = vpop.f32.mrb[0].mxu0
      %2579 = vmatprep.mubr.f32.mxu0 0.0
      %2580 = vmatmul.mubr.f32.gmra.mrb[0].mxu0 %v2378
      %v2581 = vpop.f32.mrb[0].mxu0
      %v2582 = vadd.f32 0.0, %v2581
      %v2583 = vpop.f32.mrb[0].mxu0
      %2584 = vmatprep.mubr.f32.mxu0 0.0
      %2585 = vmatmul.mubr.f32.gmra.mrb[0].mxu0 %v2381
      %v2586 = vpop.f32.mrb[0].mxu0
      %v2587 = vadd.f32 0.0, %v2586
      %v2588 = vpop.f32.mrb[0].mxu0
      %2589 = vmatprep.mubr.f32.mxu0 0.0
      %2590 = vmatmul.mubr.f32.gmra.mrb[0].mxu0 %v2384
      %v2591 = vpop.f32.mrb[0].mxu0
      %v2592 = vadd.f32 0.0, %v2591
      %v2593 = vpop.f32.mrb[0].mxu0
      %2594 = vmatprep.mubr.f32.mxu0 0.0
      %2595 = vmatmul.mubr.f32.gmra.mrb[0].mxu0 %v2387
      %v2596 = vpop.f32.mrb[0].mxu0
      %v2597 = vadd.f32 0.0, %v2596
      %v2598 = vpop.f32.mrb[0].mxu0
      %2599 = vmatprep.mubr.f32.mxu0 0.0
      %2600 = vmatmul.mubr.f32.gmra.mrb[0].mxu0 %v2390
      %v2601 = vpop.f32.mrb[0].mxu0
      %v2602 = vadd.f32 0.0, %v2601
      %v2603 = vpop.f32.mrb[0].mxu0
      %2604 = vmatprep.mubr.f32.mxu0 0.0
      %2605 = vmatmul.mubr.f32.gmra.mrb[0].mxu0 %v2393
      %v2606 = vpop.f32.mrb[0].mxu0
      %v2607 = vadd.f32 0.0, %v2606
      %v2608 = vpop.f32.mrb[0].mxu0
      %2609 = vmatprep.mubr.f32.mxu0 0.0
      %2610 = vmatmul.mubr.f32.gmra.mrb[0].mxu0 %v2396
      %v2611 = vpop.f32.mrb[0].mxu0
      %v2612 = vadd.f32 0.0, %v2611
      %v2613 = vpop.f32.mrb[0].mxu0
      %2614 = vmatprep.mubr.f32.mxu0 0.0
      %2615 = vmatmul.mubr.f32.gmra.mrb[0].mxu0 %v2399
      %v2616 = vpop.f32.mrb[0].mxu0
      %v2617 = vadd.f32 0.0, %v2616
      %v2618 = vpop.f32.mrb[0].mxu0
      %2619 = vmatprep.mubr.f32.mxu0 0.0
      %2620 = vmatmul.mubr.f32.gmra.mrb[0].mxu0 %v2402
      %v2621 = vpop.f32.mrb[0].mxu0
      %v2622 = vadd.f32 0.0, %v2621
      %v2623 = vpop.f32.mrb[0].mxu0
      %2624 = vmatprep.mubr.f32.mxu0 0.0
      %2625 = vmatmul.mubr.f32.gmra.mrb[0].mxu0 %v2405
      %v2626 = vpop.f32.mrb[0].mxu0
      %v2627 = vadd.f32 0.0, %v2626
      %v2628 = vpop.f32.mrb[0].mxu0
      %2629 = vmatprep.mubr.f32.mxu0 0.0
      %2630 = vmatmul.mubr.f32.gmra.mrb[0].mxu0 %v2408
      %v2631 = vpop.f32.mrb[0].mxu0
      %v2632 = vadd.f32 0.0, %v2631
      %v2633 = vpop.f32.mrb[0].mxu0
      %2634 = vmatprep.mubr.f32.mxu0 0.0
      %2635 = vmatmul.mubr.f32.gmra.mrb[0].mxu0 %v2411
      %v2636 = vpop.f32.mrb[0].mxu0
      %v2637 = vadd.f32 0.0, %v2636
      %v2638 = vpop.f32.mrb[0].mxu0
      %2639 = vmatprep.mubr.f32.mxu0 0.0
      %2640 = vmatmul.mubr.f32.gmra.mrb[0].mxu0 %v2414
      %v2641 = vpop.f32.mrb[0].mxu0
      %v2642 = vadd.f32 0.0, %v2641
      %v2643 = vpop.f32.mrb[0].mxu0
      %2644 = vmatprep.mubr.f32.mxu0 0.0
      %2645 = vmatmul.mubr.f32.gmra.mrb[0].mxu0 %v2417
      %v2646 = vpop.f32.mrb[0].mxu0
      %v2647 = vadd.f32 0.0, %v2646
      %v2648 = vpop.f32.mrb[0].mxu0
      %2649 = vmatprep.mubr.f32.mxu0 0.0
      %2650 = vmatmul.mubr.f32.gmra.mrb[0].mxu0 %v2420
      %v2651 = vpop.f32.mrb[0].mxu0
      %v2652 = vadd.f32 0.0, %v2651
      %v2653 = vpop.f32.mrb[0].mxu0
      %2654 = vmatprep.mubr.f32.mxu0 0.0
      %2655 = vmatmul.mubr.f32.gmra.mrb[0].mxu0 %v2423
      %v2656 = vpop.f32.mrb[0].mxu0
      %v2657 = vadd.f32 0.0, %v2656
      %v2658 = vpop.f32.mrb[0].mxu0
      %2659 = vmatprep.mubr.f32.mxu0 0.0
      %2660 = vmatmul.mubr.f32.gmra.mrb[0].mxu0 %v2426
      %v2661 = vpop.f32.mrb[0].mxu0
      %v2662 = vadd.f32 0.0, %v2661
      %v2663 = vpop.f32.mrb[0].mxu0
      %2664 = vmatprep.mubr.f32.mxu0 0.0
      %2665 = vmatmul.mubr.f32.gmra.mrb[0].mxu0 %v2429
      %v2666 = vpop.f32.mrb[0].mxu0
      %v2667 = vadd.f32 0.0, %v2666
      %v2668 = vpop.f32.mrb[0].mxu0
      %2669 = vmatprep.mubr.f32.mxu0 0.0
      %2670 = vmatmul.mubr.f32.gmra.mrb[0].mxu0 %v2432
      %v2671 = vpop.f32.mrb[0].mxu0
      %v2672 = vadd.f32 0.0, %v2671
      %v2673 = vpop.f32.mrb[0].mxu0
      %2674 = vmatprep.mubr.f32.mxu0 0.0
      %2675 = vmatmul.mubr.f32.gmra.mrb[0].mxu0 %v2435
      %v2676 = vpop.f32.mrb[0].mxu0
      %v2677 = vadd.f32 0.0, %v2676
      %v2678 = vpop.f32.mrb[0].mxu0
      %2679 = vmatprep.mubr.f32.mxu0 0.0
      %2680 = vmatmul.mubr.f32.gmra.mrb[0].mxu0 %v2438
      %v2681 = vpop.f32.mrb[0].mxu0
      %v2682 = vadd.f32 0.0, %v2681
      %v2683 = vpop.f32.mrb[0].mxu0
      %2684 = vdwg.mxu0
      %v2685 = vadd.f32 %v2257, %v2507
      %v2686 = vadd.f32 %v2258, %v2512
      %v2687 = vadd.f32 %v2259, %v2517
      %v2688 = vadd.f32 %v2260, %v2522
      %v2689 = vadd.f32 %v2261, %v2527
      %v2690 = vadd.f32 %v2262, %v2532
      %v2691 = vadd.f32 %v2263, %v2537
      %v2692 = vadd.f32 %v2264, %v2542
      %v2693 = vadd.f32 %v2265, %v2547
      %v2694 = vadd.f32 %v2266, %v2552
      %v2695 = vadd.f32 %v2267, %v2557
      %v2696 = vadd.f32 %v2268, %v2562
      %v2697 = vadd.f32 %v2269, %v2567
      %v2698 = vadd.f32 %v2270, %v2572
      %v2699 = vadd.f32 %v2271, %v2577
      %v2700 = vadd.f32 %v2272, %v2582
      %v2701 = vadd.f32 %v2273, %v2587
      %v2702 = vadd.f32 %v2274, %v2592
      %v2703 = vadd.f32 %v2275, %v2597
      %v2704 = vadd.f32 %v2276, %v2602
      %v2705 = vadd.f32 %v2277, %v2607
      %v2706 = vadd.f32 %v2278, %v2612
      %v2707 = vadd.f32 %v2279, %v2617
      %v2708 = vadd.f32 %v2280, %v2622
      %v2709 = vadd.f32 %v2281, %v2627
      %v2710 = vadd.f32 %v2282, %v2632
      %v2711 = vadd.f32 %v2283, %v2637
      %v2712 = vadd.f32 %v2284, %v2642
      %v2713 = vadd.f32 %v2285, %v2647
      %v2714 = vadd.f32 %v2286, %v2652
      %v2715 = vadd.f32 %v2287, %v2657
      %v2716 = vadd.f32 %v2288, %v2662
      %v2717 = vadd.f32 %v2289, %v2667
      %v2718 = vadd.f32 %v2290, %v2672
      %v2719 = vadd.f32 %v2291, %v2677
      %v2720 = vadd.f32 %v2292, %v2682
      %v2721 = vld [vmem:[%s219 + $0x24] sm:$0xff]
      %v2722 = vld [vmem:[%s219 + $0x2c] sm:$0xff]
      %v2723 = vld [vmem:[%s219 + $0x34] sm:$0xff]
      %v2724 = vld [vmem:[%s219 + $0x3c] sm:$0xff]
      %v2725 = vld [vmem:[%s219 + $0x44] sm:$0xff]
      %v2726 = vld [vmem:[%s219 + $0x4c] sm:$0xff]
      %v2727 = vld [vmem:[%s219 + $0x54] sm:$0xff]
      %v2728 = vld [vmem:[%s219 + $0x5c] sm:$0xff]
      %v2729 = vld [vmem:[%s219 + $0x64] sm:$0xff]
      %v2730 = vld [vmem:[%s219 + $0x6c] sm:$0xff]
      %v2731 = vld [vmem:[%s219 + $0x74] sm:$0xff]
      %v2732 = vld [vmem:[%s219 + $0x7c] sm:$0xff]
      %v2733 = vld [vmem:[%s219 + $0x84] sm:$0xff]
      %v2734 = vld [vmem:[%s219 + $0x8c] sm:$0xff]
      %v2735 = vld [vmem:[%s219 + $0x94] sm:$0xff]
      %v2736 = vld [vmem:[%s219 + $0x9c] sm:$0xff]
      %v2737 = vld [vmem:[%s219 + $0xa4] sm:$0xff]
      %v2738 = vld [vmem:[%s219 + $0xac] sm:$0xff]
      %v2739 = vld [vmem:[%s219 + $0xb4] sm:$0xff]
      %v2740 = vld [vmem:[%s219 + $0xbc] sm:$0xff]
      %v2741 = vld [vmem:[%s219 + $0xc4] sm:$0xff]
      %v2742 = vld [vmem:[%s219 + $0xcc] sm:$0xff]
      %v2743 = vld [vmem:[%s219 + $0xd4] sm:$0xff]
      %v2744 = vld [vmem:[%s219 + $0xdc] sm:$0xff]
      %v2745 = vld [vmem:[%s219 + $0xe4] sm:$0xff]
      %v2746 = vld [vmem:[%s219 + $0xec] sm:$0xff]
      %v2747 = vld [vmem:[%s219 + $0xf4] sm:$0xff]
      %v2748 = vld [vmem:[%s219 + $0xfc] sm:$0xff]
      %v2749 = vld [vmem:[%s219 + $0x104] sm:$0xff]
      %v2750 = vld [vmem:[%s219 + $0x10c] sm:$0xff]
      %v2751 = vld [vmem:[%s219 + $0x114] sm:$0xff]
      %v2752 = vld [vmem:[%s219 + $0x11c] sm:$0xff]
      %v2753 = vld [vmem:[%s219 + $0x124] sm:$0xff]
      %v2754 = vld [vmem:[%s219 + $0x12c] sm:$0xff]
      %v2755 = vld [vmem:[%s219 + $0x134] sm:$0xff]
      %v2756 = vld [vmem:[%s219 + $0x13c] sm:$0xff]
      %s2757 = scalar_lea.vmem %s1, 96
      %v2758 = vld [vmem:[%s2757] sm:$0xff]
      %v2759 = vld [vmem:[%s2757 + $0x8] sm:$0xff]
      %v2761 = vsel %vm302, %v2721, 0
      %v2764 = vsel %vm302, %v2722, 0
      %v2767 = vsel %vm302, %v2723, 0
      %v2770 = vsel %vm302, %v2724, 0
      %v2773 = vsel %vm302, %v2725, 0
      %v2776 = vsel %vm302, %v2726, 0
      %v2779 = vsel %vm302, %v2727, 0
      %v2782 = vsel %vm302, %v2728, 0
      %v2785 = vsel %vm302, %v2729, 0
      %v2788 = vsel %vm302, %v2730, 0
      %v2791 = vsel %vm302, %v2731, 0
      %v2794 = vsel %vm302, %v2732, 0
      %v2797 = vsel %vm302, %v2733, 0
      %v2800 = vsel %vm302, %v2734, 0
      %v2803 = vsel %vm302, %v2735, 0
      %v2806 = vsel %vm302, %v2736, 0
      %v2809 = vsel %vm302, %v2737, 0
      %v2812 = vsel %vm302, %v2738, 0
      %v2815 = vsel %vm302, %v2739, 0
      %v2818 = vsel %vm302, %v2740, 0
      %v2821 = vsel %vm302, %v2741, 0
      %v2824 = vsel %vm302, %v2742, 0
      %v2827 = vsel %vm302, %v2743, 0
      %v2830 = vsel %vm302, %v2744, 0
      %v2833 = vsel %vm302, %v2745, 0
      %v2836 = vsel %vm302, %v2746, 0
      %v2839 = vsel %vm302, %v2747, 0
      %v2842 = vsel %vm302, %v2748, 0
      %v2845 = vsel %vm302, %v2749, 0
      %v2848 = vsel %vm302, %v2750, 0
      %v2851 = vsel %vm302, %v2751, 0
      %v2854 = vsel %vm302, %v2752, 0
      %v2857 = vsel %vm302, %v2753, 0
      %v2860 = vsel %vm302, %v2754, 0
      %v2863 = vsel %vm302, %v2755, 0
      %v2866 = vsel %vm302, %v2756, 0
      %2868 = vmatprep.subr.mxu0 0.0
      %2869 = vmatpush1.msra.mxu0 %v2758
      %2870 = vmatprep.subr.mxu0 0.0
      %2871 = vmatpush1.msra.mxu0 %v2759
      %2872 = vmatprep.subr.mxu0 0.0
      %2873 = vmatpush1.msra.mxu0 0.0
      %2874 = vmatprep.subr.mxu0 0.0
      %2875 = vmatpush1.msra.mxu0 0.0
      %2876 = vmatprep.subr.mxu0 0.0
      %2877 = vmatpush1.msra.mxu0 0.0
      %2878 = vmatprep.subr.mxu0 0.0
      %2879 = vmatpush1.msra.mxu0 0.0
      %2880 = vmatprep.subr.mxu0 0.0
      %2881 = vmatpush1.msra.mxu0 0.0
      %2882 = vmatprep.subr.mxu0 0.0
      %2883 = vmatpush1.msra.mxu0 0.0
      %2884 = vmatprep.subr.mxu0 0.0
      %2885 = vmatpush1.msra.mxu0 0.0
      %2886 = vmatprep.subr.mxu0 0.0
      %2887 = vmatpush1.msra.mxu0 0.0
      %2888 = vmatprep.subr.mxu0 0.0
      %2889 = vmatpush1.msra.mxu0 0.0
      %2890 = vmatprep.subr.mxu0 0.0
      %2891 = vmatpush1.msra.mxu0 0.0
      %2892 = vmatprep.subr.mxu0 0.0
      %2893 = vmatpush1.msra.mxu0 0.0
      %2894 = vmatprep.subr.mxu0 0.0
      %2895 = vmatpush1.msra.mxu0 0.0
      %2896 = vmatprep.subr.mxu0 0.0
      %2897 = vmatpush1.msra.mxu0 0.0
      %2898 = vmatprep.subr.mxu0 0.0
      %2899 = vmatpush1.msra.mxu0 0.0
      %2900 = vmatprep.subr.mxu0 0.0
      %2901 = vmatpush1.msra.mxu0 0.0
      %2902 = vmatprep.subr.mxu0 0.0
      %2903 = vmatpush1.msra.mxu0 0.0
      %2904 = vmatprep.subr.mxu0 0.0
      %2905 = vmatpush1.msra.mxu0 0.0
      %2906 = vmatprep.subr.mxu0 0.0
      %2907 = vmatpush1.msra.mxu0 0.0
      %2908 = vmatprep.subr.mxu0 0.0
      %2909 = vmatpush1.msra.mxu0 0.0
      %2910 = vmatprep.subr.mxu0 0.0
      %2911 = vmatpush1.msra.mxu0 0.0
      %2912 = vmatprep.subr.mxu0 0.0
      %2913 = vmatpush1.msra.mxu0 0.0
      %2914 = vmatprep.subr.mxu0 0.0
      %2915 = vmatpush1.msra.mxu0 0.0
      %2916 = vmatprep.subr.mxu0 0.0
      %2917 = vmatpush1.msra.mxu0 0.0
      %2918 = vmatprep.subr.mxu0 0.0
      %2919 = vmatpush1.msra.mxu0 0.0
      %2920 = vmatprep.subr.mxu0 0.0
      %2921 = vmatpush1.msra.mxu0 0.0
      %2922 = vmatprep.subr.mxu0 0.0
      %2923 = vmatpush1.msra.mxu0 0.0
      %2924 = vmatprep.subr.mxu0 0.0
      %2925 = vmatpush1.msra.mxu0 0.0
      %2926 = vmatprep.subr.mxu0 0.0
      %2927 = vmatpush1.msra.mxu0 0.0
      %2928 = vmatprep.subr.mxu0 0.0
      %2929 = vmatpush1.msra.mxu0 0.0
      %2930 = vmatprep.subr.mxu0 0.0
      %2931 = vmatpush1.msra.mxu0 0.0
      %2932 = vmatprep.mubr.f32.mxu0 0.0
      %2933 = vmatmul.mubr.f32.gmra.mrb[0].mxu0 %v2761
      %v2934 = vpop.f32.mrb[0].mxu0
      %v2935 = vadd.f32 0.0, %v2934
      %v2936 = vpop.f32.mrb[0].mxu0
      %2937 = vmatprep.mubr.f32.mxu0 0.0
      %2938 = vmatmul.mubr.f32.gmra.mrb[0].mxu0 %v2764
      %v2939 = vpop.f32.mrb[0].mxu0
      %v2940 = vadd.f32 0.0, %v2939
      %v2941 = vpop.f32.mrb[0].mxu0
      %2942 = vmatprep.mubr.f32.mxu0 0.0
      %2943 = vmatmul.mubr.f32.gmra.mrb[0].mxu0 %v2767
      %v2944 = vpop.f32.mrb[0].mxu0
      %v2945 = vadd.f32 0.0, %v2944
      %v2946 = vpop.f32.mrb[0].mxu0
      %2947 = vmatprep.mubr.f32.mxu0 0.0
      %2948 = vmatmul.mubr.f32.gmra.mrb[0].mxu0 %v2770
      %v2949 = vpop.f32.mrb[0].mxu0
      %v2950 = vadd.f32 0.0, %v2949
      %v2951 = vpop.f32.mrb[0].mxu0
      %2952 = vmatprep.mubr.f32.mxu0 0.0
      %2953 = vmatmul.mubr.f32.gmra.mrb[0].mxu0 %v2773
      %v2954 = vpop.f32.mrb[0].mxu0
      %v2955 = vadd.f32 0.0, %v2954
      %v2956 = vpop.f32.mrb[0].mxu0
      %2957 = vmatprep.mubr.f32.mxu0 0.0
      %2958 = vmatmul.mubr.f32.gmra.mrb[0].mxu0 %v2776
      %v2959 = vpop.f32.mrb[0].mxu0
      %v2960 = vadd.f32 0.0, %v2959
      %v2961 = vpop.f32.mrb[0].mxu0
      %2962 = vmatprep.mubr.f32.mxu0 0.0
      %2963 = vmatmul.mubr.f32.gmra.mrb[0].mxu0 %v2779
      %v2964 = vpop.f32.mrb[0].mxu0
      %v2965 = vadd.f32 0.0, %v2964
      %v2966 = vpop.f32.mrb[0].mxu0
      %2967 = vmatprep.mubr.f32.mxu0 0.0
      %2968 = vmatmul.mubr.f32.gmra.mrb[0].mxu0 %v2782
      %v2969 = vpop.f32.mrb[0].mxu0
      %v2970 = vadd.f32 0.0, %v2969
      %v2971 = vpop.f32.mrb[0].mxu0
      %2972 = vmatprep.mubr.f32.mxu0 0.0
      %2973 = vmatmul.mubr.f32.gmra.mrb[0].mxu0 %v2785
      %v2974 = vpop.f32.mrb[0].mxu0
      %v2975 = vadd.f32 0.0, %v2974
      %v2976 = vpop.f32.mrb[0].mxu0
      %2977 = vmatprep.mubr.f32.mxu0 0.0
      %2978 = vmatmul.mubr.f32.gmra.mrb[0].mxu0 %v2788
      %v2979 = vpop.f32.mrb[0].mxu0
      %v2980 = vadd.f32 0.0, %v2979
      %v2981 = vpop.f32.mrb[0].mxu0
      %2982 = vmatprep.mubr.f32.mxu0 0.0
      %2983 = vmatmul.mubr.f32.gmra.mrb[0].mxu0 %v2791
      %v2984 = vpop.f32.mrb[0].mxu0
      %v2985 = vadd.f32 0.0, %v2984
      %v2986 = vpop.f32.mrb[0].mxu0
      %2987 = vmatprep.mubr.f32.mxu0 0.0
      %2988 = vmatmul.mubr.f32.gmra.mrb[0].mxu0 %v2794
      %v2989 = vpop.f32.mrb[0].mxu0
      %v2990 = vadd.f32 0.0, %v2989
      %v2991 = vpop.f32.mrb[0].mxu0
      %2992 = vmatprep.mubr.f32.mxu0 0.0
      %2993 = vmatmul.mubr.f32.gmra.mrb[0].mxu0 %v2797
      %v2994 = vpop.f32.mrb[0].mxu0
      %v2995 = vadd.f32 0.0, %v2994
      %v2996 = vpop.f32.mrb[0].mxu0
      %2997 = vmatprep.mubr.f32.mxu0 0.0
      %2998 = vmatmul.mubr.f32.gmra.mrb[0].mxu0 %v2800
      %v2999 = vpop.f32.mrb[0].mxu0
      %v3000 = vadd.f32 0.0, %v2999
      %v3001 = vpop.f32.mrb[0].mxu0
      %3002 = vmatprep.mubr.f32.mxu0 0.0
      %3003 = vmatmul.mubr.f32.gmra.mrb[0].mxu0 %v2803
      %v3004 = vpop.f32.mrb[0].mxu0
      %v3005 = vadd.f32 0.0, %v3004
      %v3006 = vpop.f32.mrb[0].mxu0
      %3007 = vmatprep.mubr.f32.mxu0 0.0
      %3008 = vmatmul.mubr.f32.gmra.mrb[0].mxu0 %v2806
      %v3009 = vpop.f32.mrb[0].mxu0
      %v3010 = vadd.f32 0.0, %v3009
      %v3011 = vpop.f32.mrb[0].mxu0
      %3012 = vmatprep.mubr.f32.mxu0 0.0
      %3013 = vmatmul.mubr.f32.gmra.mrb[0].mxu0 %v2809
      %v3014 = vpop.f32.mrb[0].mxu0
      %v3015 = vadd.f32 0.0, %v3014
      %v3016 = vpop.f32.mrb[0].mxu0
      %3017 = vmatprep.mubr.f32.mxu0 0.0
      %3018 = vmatmul.mubr.f32.gmra.mrb[0].mxu0 %v2812
      %v3019 = vpop.f32.mrb[0].mxu0
      %v3020 = vadd.f32 0.0, %v3019
      %v3021 = vpop.f32.mrb[0].mxu0
      %3022 = vmatprep.mubr.f32.mxu0 0.0
      %3023 = vmatmul.mubr.f32.gmra.mrb[0].mxu0 %v2815
      %v3024 = vpop.f32.mrb[0].mxu0
      %v3025 = vadd.f32 0.0, %v3024
      %v3026 = vpop.f32.mrb[0].mxu0
      %3027 = vmatprep.mubr.f32.mxu0 0.0
      %3028 = vmatmul.mubr.f32.gmra.mrb[0].mxu0 %v2818
      %v3029 = vpop.f32.mrb[0].mxu0
      %v3030 = vadd.f32 0.0, %v3029
      %v3031 = vpop.f32.mrb[0].mxu0
      %3032 = vmatprep.mubr.f32.mxu0 0.0
      %3033 = vmatmul.mubr.f32.gmra.mrb[0].mxu0 %v2821
      %v3034 = vpop.f32.mrb[0].mxu0
      %v3035 = vadd.f32 0.0, %v3034
      %v3036 = vpop.f32.mrb[0].mxu0
      %3037 = vmatprep.mubr.f32.mxu0 0.0
      %3038 = vmatmul.mubr.f32.gmra.mrb[0].mxu0 %v2824
      %v3039 = vpop.f32.mrb[0].mxu0
      %v3040 = vadd.f32 0.0, %v3039
      %v3041 = vpop.f32.mrb[0].mxu0
      %3042 = vmatprep.mubr.f32.mxu0 0.0
      %3043 = vmatmul.mubr.f32.gmra.mrb[0].mxu0 %v2827
      %v3044 = vpop.f32.mrb[0].mxu0
      %v3045 = vadd.f32 0.0, %v3044
      %v3046 = vpop.f32.mrb[0].mxu0
      %3047 = vmatprep.mubr.f32.mxu0 0.0
      %3048 = vmatmul.mubr.f32.gmra.mrb[0].mxu0 %v2830
      %v3049 = vpop.f32.mrb[0].mxu0
      %v3050 = vadd.f32 0.0, %v3049
      %v3051 = vpop.f32.mrb[0].mxu0
      %3052 = vmatprep.mubr.f32.mxu0 0.0
      %3053 = vmatmul.mubr.f32.gmra.mrb[0].mxu0 %v2833
      %v3054 = vpop.f32.mrb[0].mxu0
      %v3055 = vadd.f32 0.0, %v3054
      %v3056 = vpop.f32.mrb[0].mxu0
      %3057 = vmatprep.mubr.f32.mxu0 0.0
      %3058 = vmatmul.mubr.f32.gmra.mrb[0].mxu0 %v2836
      %v3059 = vpop.f32.mrb[0].mxu0
      %v3060 = vadd.f32 0.0, %v3059
      %v3061 = vpop.f32.mrb[0].mxu0
      %3062 = vmatprep.mubr.f32.mxu0 0.0
      %3063 = vmatmul.mubr.f32.gmra.mrb[0].mxu0 %v2839
      %v3064 = vpop.f32.mrb[0].mxu0
      %v3065 = vadd.f32 0.0, %v3064
      %v3066 = vpop.f32.mrb[0].mxu0
      %3067 = vmatprep.mubr.f32.mxu0 0.0
      %3068 = vmatmul.mubr.f32.gmra.mrb[0].mxu0 %v2842
      %v3069 = vpop.f32.mrb[0].mxu0
      %v3070 = vadd.f32 0.0, %v3069
      %v3071 = vpop.f32.mrb[0].mxu0
      %3072 = vmatprep.mubr.f32.mxu0 0.0
      %3073 = vmatmul.mubr.f32.gmra.mrb[0].mxu0 %v2845
      %v3074 = vpop.f32.mrb[0].mxu0
      %v3075 = vadd.f32 0.0, %v3074
      %v3076 = vpop.f32.mrb[0].mxu0
      %3077 = vmatprep.mubr.f32.mxu0 0.0
      %3078 = vmatmul.mubr.f32.gmra.mrb[0].mxu0 %v2848
      %v3079 = vpop.f32.mrb[0].mxu0
      %v3080 = vadd.f32 0.0, %v3079
      %v3081 = vpop.f32.mrb[0].mxu0
      %3082 = vmatprep.mubr.f32.mxu0 0.0
      %3083 = vmatmul.mubr.f32.gmra.mrb[0].mxu0 %v2851
      %v3084 = vpop.f32.mrb[0].mxu0
      %v3085 = vadd.f32 0.0, %v3084
      %v3086 = vpop.f32.mrb[0].mxu0
      %3087 = vmatprep.mubr.f32.mxu0 0.0
      %3088 = vmatmul.mubr.f32.gmra.mrb[0].mxu0 %v2854
      %v3089 = vpop.f32.mrb[0].mxu0
      %v3090 = vadd.f32 0.0, %v3089
      %v3091 = vpop.f32.mrb[0].mxu0
      %3092 = vmatprep.mubr.f32.mxu0 0.0
      %3093 = vmatmul.mubr.f32.gmra.mrb[0].mxu0 %v2857
      %v3094 = vpop.f32.mrb[0].mxu0
      %v3095 = vadd.f32 0.0, %v3094
      %v3096 = vpop.f32.mrb[0].mxu0
      %3097 = vmatprep.mubr.f32.mxu0 0.0
      %3098 = vmatmul.mubr.f32.gmra.mrb[0].mxu0 %v2860
      %v3099 = vpop.f32.mrb[0].mxu0
      %v3100 = vadd.f32 0.0, %v3099
      %v3101 = vpop.f32.mrb[0].mxu0
      %3102 = vmatprep.mubr.f32.mxu0 0.0
      %3103 = vmatmul.mubr.f32.gmra.mrb[0].mxu0 %v2863
      %v3104 = vpop.f32.mrb[0].mxu0
      %v3105 = vadd.f32 0.0, %v3104
      %v3106 = vpop.f32.mrb[0].mxu0
      %3107 = vmatprep.mubr.f32.mxu0 0.0
      %3108 = vmatmul.mubr.f32.gmra.mrb[0].mxu0 %v2866
      %v3109 = vpop.f32.mrb[0].mxu0
      %v3110 = vadd.f32 0.0, %v3109
      %v3111 = vpop.f32.mrb[0].mxu0
      %3112 = vdwg.mxu0
      %v3113 = vadd.f32 %v2685, %v2935
      %v3114 = vadd.f32 %v2686, %v2940
      %v3115 = vadd.f32 %v2687, %v2945
      %v3116 = vadd.f32 %v2688, %v2950
      %v3117 = vadd.f32 %v2689, %v2955
      %v3118 = vadd.f32 %v2690, %v2960
      %v3119 = vadd.f32 %v2691, %v2965
      %v3120 = vadd.f32 %v2692, %v2970
      %v3121 = vadd.f32 %v2693, %v2975
      %v3122 = vadd.f32 %v2694, %v2980
      %v3123 = vadd.f32 %v2695, %v2985
      %v3124 = vadd.f32 %v2696, %v2990
      %v3125 = vadd.f32 %v2697, %v2995
      %v3126 = vadd.f32 %v2698, %v3000
      %v3127 = vadd.f32 %v2699, %v3005
      %v3128 = vadd.f32 %v2700, %v3010
      %v3129 = vadd.f32 %v2701, %v3015
      %v3130 = vadd.f32 %v2702, %v3020
      %v3131 = vadd.f32 %v2703, %v3025
      %v3132 = vadd.f32 %v2704, %v3030
      %v3133 = vadd.f32 %v2705, %v3035
      %v3134 = vadd.f32 %v2706, %v3040
      %v3135 = vadd.f32 %v2707, %v3045
      %v3136 = vadd.f32 %v2708, %v3050
      %v3137 = vadd.f32 %v2709, %v3055
      %v3138 = vadd.f32 %v2710, %v3060
      %v3139 = vadd.f32 %v2711, %v3065
      %v3140 = vadd.f32 %v2712, %v3070
      %v3141 = vadd.f32 %v2713, %v3075
      %v3142 = vadd.f32 %v2714, %v3080
      %v3143 = vadd.f32 %v2715, %v3085
      %v3144 = vadd.f32 %v2716, %v3090
      %v3145 = vadd.f32 %v2717, %v3095
      %v3146 = vadd.f32 %v2718, %v3100
      %v3147 = vadd.f32 %v2719, %v3105
      %v3148 = vadd.f32 %v2720, %v3110
      %v3149 = vld [vmem:[%s219 + $0x25] sm:$0xff]
      %v3150 = vld [vmem:[%s219 + $0x2d] sm:$0xff]
      %v3151 = vld [vmem:[%s219 + $0x35] sm:$0xff]
      %v3152 = vld [vmem:[%s219 + $0x3d] sm:$0xff]
      %v3153 = vld [vmem:[%s219 + $0x45] sm:$0xff]
      %v3154 = vld [vmem:[%s219 + $0x4d] sm:$0xff]
      %v3155 = vld [vmem:[%s219 + $0x55] sm:$0xff]
      %v3156 = vld [vmem:[%s219 + $0x5d] sm:$0xff]
      %v3157 = vld [vmem:[%s219 + $0x65] sm:$0xff]
      %v3158 = vld [vmem:[%s219 + $0x6d] sm:$0xff]
      %v3159 = vld [vmem:[%s219 + $0x75] sm:$0xff]
      %v3160 = vld [vmem:[%s219 + $0x7d] sm:$0xff]
      %v3161 = vld [vmem:[%s219 + $0x85] sm:$0xff]
      %v3162 = vld [vmem:[%s219 + $0x8d] sm:$0xff]
      %v3163 = vld [vmem:[%s219 + $0x95] sm:$0xff]
      %v3164 = vld [vmem:[%s219 + $0x9d] sm:$0xff]
      %v3165 = vld [vmem:[%s219 + $0xa5] sm:$0xff]
      %v3166 = vld [vmem:[%s219 + $0xad] sm:$0xff]
      %v3167 = vld [vmem:[%s219 + $0xb5] sm:$0xff]
      %v3168 = vld [vmem:[%s219 + $0xbd] sm:$0xff]
      %v3169 = vld [vmem:[%s219 + $0xc5] sm:$0xff]
      %v3170 = vld [vmem:[%s219 + $0xcd] sm:$0xff]
      %v3171 = vld [vmem:[%s219 + $0xd5] sm:$0xff]
      %v3172 = vld [vmem:[%s219 + $0xdd] sm:$0xff]
      %v3173 = vld [vmem:[%s219 + $0xe5] sm:$0xff]
      %v3174 = vld [vmem:[%s219 + $0xed] sm:$0xff]
      %v3175 = vld [vmem:[%s219 + $0xf5] sm:$0xff]
      %v3176 = vld [vmem:[%s219 + $0xfd] sm:$0xff]
      %v3177 = vld [vmem:[%s219 + $0x105] sm:$0xff]
      %v3178 = vld [vmem:[%s219 + $0x10d] sm:$0xff]
      %v3179 = vld [vmem:[%s219 + $0x115] sm:$0xff]
      %v3180 = vld [vmem:[%s219 + $0x11d] sm:$0xff]
      %v3181 = vld [vmem:[%s219 + $0x125] sm:$0xff]
      %v3182 = vld [vmem:[%s219 + $0x12d] sm:$0xff]
      %v3183 = vld [vmem:[%s219 + $0x135] sm:$0xff]
      %v3184 = vld [vmem:[%s219 + $0x13d] sm:$0xff]
      %s3185 = scalar_lea.vmem %s1, 112
      %v3186 = vld [vmem:[%s3185] sm:$0xff]
      %v3187 = vld [vmem:[%s3185 + $0x8] sm:$0xff]
      %v3189 = vsel %vm302, %v3149, 0
      %v3192 = vsel %vm302, %v3150, 0
      %v3195 = vsel %vm302, %v3151, 0
      %v3198 = vsel %vm302, %v3152, 0
      %v3201 = vsel %vm302, %v3153, 0
      %v3204 = vsel %vm302, %v3154, 0
      %v3207 = vsel %vm302, %v3155, 0
      %v3210 = vsel %vm302, %v3156, 0
      %v3213 = vsel %vm302, %v3157, 0
      %v3216 = vsel %vm302, %v3158, 0
      %v3219 = vsel %vm302, %v3159, 0
      %v3222 = vsel %vm302, %v3160, 0
      %v3225 = vsel %vm302, %v3161, 0
      %v3228 = vsel %vm302, %v3162, 0
      %v3231 = vsel %vm302, %v3163, 0
      %v3234 = vsel %vm302, %v3164, 0
      %v3237 = vsel %vm302, %v3165, 0
      %v3240 = vsel %vm302, %v3166, 0
      %v3243 = vsel %vm302, %v3167, 0
      %v3246 = vsel %vm302, %v3168, 0
      %v3249 = vsel %vm302, %v3169, 0
      %v3252 = vsel %vm302, %v3170, 0
      %v3255 = vsel %vm302, %v3171, 0
      %v3258 = vsel %vm302, %v3172, 0
      %v3261 = vsel %vm302, %v3173, 0
      %v3264 = vsel %vm302, %v3174, 0
      %v3267 = vsel %vm302, %v3175, 0
      %v3270 = vsel %vm302, %v3176, 0
      %v3273 = vsel %vm302, %v3177, 0
      %v3276 = vsel %vm302, %v3178, 0
      %v3279 = vsel %vm302, %v3179, 0
      %v3282 = vsel %vm302, %v3180, 0
      %v3285 = vsel %vm302, %v3181, 0
      %v3288 = vsel %vm302, %v3182, 0
      %v3291 = vsel %vm302, %v3183, 0
      %v3294 = vsel %vm302, %v3184, 0
      %3296 = vmatprep.subr.mxu0 0.0
      %3297 = vmatpush1.msra.mxu0 %v3186
      %3298 = vmatprep.subr.mxu0 0.0
      %3299 = vmatpush1.msra.mxu0 %v3187
      %3300 = vmatprep.subr.mxu0 0.0
      %3301 = vmatpush1.msra.mxu0 0.0
      %3302 = vmatprep.subr.mxu0 0.0
      %3303 = vmatpush1.msra.mxu0 0.0
      %3304 = vmatprep.subr.mxu0 0.0
      %3305 = vmatpush1.msra.mxu0 0.0
      %3306 = vmatprep.subr.mxu0 0.0
      %3307 = vmatpush1.msra.mxu0 0.0
      %3308 = vmatprep.subr.mxu0 0.0
      %3309 = vmatpush1.msra.mxu0 0.0
      %3310 = vmatprep.subr.mxu0 0.0
      %3311 = vmatpush1.msra.mxu0 0.0
      %3312 = vmatprep.subr.mxu0 0.0
      %3313 = vmatpush1.msra.mxu0 0.0
      %3314 = vmatprep.subr.mxu0 0.0
      %3315 = vmatpush1.msra.mxu0 0.0
      %3316 = vmatprep.subr.mxu0 0.0
      %3317 = vmatpush1.msra.mxu0 0.0
      %3318 = vmatprep.subr.mxu0 0.0
      %3319 = vmatpush1.msra.mxu0 0.0
      %3320 = vmatprep.subr.mxu0 0.0
      %3321 = vmatpush1.msra.mxu0 0.0
      %3322 = vmatprep.subr.mxu0 0.0
      %3323 = vmatpush1.msra.mxu0 0.0
      %3324 = vmatprep.subr.mxu0 0.0
      %3325 = vmatpush1.msra.mxu0 0.0
      %3326 = vmatprep.subr.mxu0 0.0
      %3327 = vmatpush1.msra.mxu0 0.0
      %3328 = vmatprep.subr.mxu0 0.0
      %3329 = vmatpush1.msra.mxu0 0.0
      %3330 = vmatprep.subr.mxu0 0.0
      %3331 = vmatpush1.msra.mxu0 0.0
      %3332 = vmatprep.subr.mxu0 0.0
      %3333 = vmatpush1.msra.mxu0 0.0
      %3334 = vmatprep.subr.mxu0 0.0
      %3335 = vmatpush1.msra.mxu0 0.0
      %3336 = vmatprep.subr.mxu0 0.0
      %3337 = vmatpush1.msra.mxu0 0.0
      %3338 = vmatprep.subr.mxu0 0.0
      %3339 = vmatpush1.msra.mxu0 0.0
      %3340 = vmatprep.subr.mxu0 0.0
      %3341 = vmatpush1.msra.mxu0 0.0
      %3342 = vmatprep.subr.mxu0 0.0
      %3343 = vmatpush1.msra.mxu0 0.0
      %3344 = vmatprep.subr.mxu0 0.0
      %3345 = vmatpush1.msra.mxu0 0.0
      %3346 = vmatprep.subr.mxu0 0.0
      %3347 = vmatpush1.msra.mxu0 0.0
      %3348 = vmatprep.subr.mxu0 0.0
      %3349 = vmatpush1.msra.mxu0 0.0
      %3350 = vmatprep.subr.mxu0 0.0
      %3351 = vmatpush1.msra.mxu0 0.0
      %3352 = vmatprep.subr.mxu0 0.0
      %3353 = vmatpush1.msra.mxu0 0.0
      %3354 = vmatprep.subr.mxu0 0.0
      %3355 = vmatpush1.msra.mxu0 0.0
      %3356 = vmatprep.subr.mxu0 0.0
      %3357 = vmatpush1.msra.mxu0 0.0
      %3358 = vmatprep.subr.mxu0 0.0
      %3359 = vmatpush1.msra.mxu0 0.0
      %3360 = vmatprep.mubr.f32.mxu0 0.0
      %3361 = vmatmul.mubr.f32.gmra.mrb[0].mxu0 %v3189
      %v3362 = vpop.f32.mrb[0].mxu0
      %v3363 = vadd.f32 0.0, %v3362
      %v3364 = vpop.f32.mrb[0].mxu0
      %3365 = vmatprep.mubr.f32.mxu0 0.0
      %3366 = vmatmul.mubr.f32.gmra.mrb[0].mxu0 %v3192
      %v3367 = vpop.f32.mrb[0].mxu0
      %v3368 = vadd.f32 0.0, %v3367
      %v3369 = vpop.f32.mrb[0].mxu0
      %3370 = vmatprep.mubr.f32.mxu0 0.0
      %3371 = vmatmul.mubr.f32.gmra.mrb[0].mxu0 %v3195
      %v3372 = vpop.f32.mrb[0].mxu0
      %v3373 = vadd.f32 0.0, %v3372
      %v3374 = vpop.f32.mrb[0].mxu0
      %3375 = vmatprep.mubr.f32.mxu0 0.0
      %3376 = vmatmul.mubr.f32.gmra.mrb[0].mxu0 %v3198
      %v3377 = vpop.f32.mrb[0].mxu0
      %v3378 = vadd.f32 0.0, %v3377
      %v3379 = vpop.f32.mrb[0].mxu0
      %3380 = vmatprep.mubr.f32.mxu0 0.0
      %3381 = vmatmul.mubr.f32.gmra.mrb[0].mxu0 %v3201
      %v3382 = vpop.f32.mrb[0].mxu0
      %v3383 = vadd.f32 0.0, %v3382
      %v3384 = vpop.f32.mrb[0].mxu0
      %3385 = vmatprep.mubr.f32.mxu0 0.0
      %3386 = vmatmul.mubr.f32.gmra.mrb[0].mxu0 %v3204
      %v3387 = vpop.f32.mrb[0].mxu0
      %v3388 = vadd.f32 0.0, %v3387
      %v3389 = vpop.f32.mrb[0].mxu0
      %3390 = vmatprep.mubr.f32.mxu0 0.0
      %3391 = vmatmul.mubr.f32.gmra.mrb[0].mxu0 %v3207
      %v3392 = vpop.f32.mrb[0].mxu0
      %v3393 = vadd.f32 0.0, %v3392
      %v3394 = vpop.f32.mrb[0].mxu0
      %3395 = vmatprep.mubr.f32.mxu0 0.0
      %3396 = vmatmul.mubr.f32.gmra.mrb[0].mxu0 %v3210
      %v3397 = vpop.f32.mrb[0].mxu0
      %v3398 = vadd.f32 0.0, %v3397
      %v3399 = vpop.f32.mrb[0].mxu0
      %3400 = vmatprep.mubr.f32.mxu0 0.0
      %3401 = vmatmul.mubr.f32.gmra.mrb[0].mxu0 %v3213
      %v3402 = vpop.f32.mrb[0].mxu0
      %v3403 = vadd.f32 0.0, %v3402
      %v3404 = vpop.f32.mrb[0].mxu0
      %3405 = vmatprep.mubr.f32.mxu0 0.0
      %3406 = vmatmul.mubr.f32.gmra.mrb[0].mxu0 %v3216
      %v3407 = vpop.f32.mrb[0].mxu0
      %v3408 = vadd.f32 0.0, %v3407
      %v3409 = vpop.f32.mrb[0].mxu0
      %3410 = vmatprep.mubr.f32.mxu0 0.0
      %3411 = vmatmul.mubr.f32.gmra.mrb[0].mxu0 %v3219
      %v3412 = vpop.f32.mrb[0].mxu0
      %v3413 = vadd.f32 0.0, %v3412
      %v3414 = vpop.f32.mrb[0].mxu0
      %3415 = vmatprep.mubr.f32.mxu0 0.0
      %3416 = vmatmul.mubr.f32.gmra.mrb[0].mxu0 %v3222
      %v3417 = vpop.f32.mrb[0].mxu0
      %v3418 = vadd.f32 0.0, %v3417
      %v3419 = vpop.f32.mrb[0].mxu0
      %3420 = vmatprep.mubr.f32.mxu0 0.0
      %3421 = vmatmul.mubr.f32.gmra.mrb[0].mxu0 %v3225
      %v3422 = vpop.f32.mrb[0].mxu0
      %v3423 = vadd.f32 0.0, %v3422
      %v3424 = vpop.f32.mrb[0].mxu0
      %3425 = vmatprep.mubr.f32.mxu0 0.0
      %3426 = vmatmul.mubr.f32.gmra.mrb[0].mxu0 %v3228
      %v3427 = vpop.f32.mrb[0].mxu0
      %v3428 = vadd.f32 0.0, %v3427
      %v3429 = vpop.f32.mrb[0].mxu0
      %3430 = vmatprep.mubr.f32.mxu0 0.0
      %3431 = vmatmul.mubr.f32.gmra.mrb[0].mxu0 %v3231
      %v3432 = vpop.f32.mrb[0].mxu0
      %v3433 = vadd.f32 0.0, %v3432
      %v3434 = vpop.f32.mrb[0].mxu0
      %3435 = vmatprep.mubr.f32.mxu0 0.0
      %3436 = vmatmul.mubr.f32.gmra.mrb[0].mxu0 %v3234
      %v3437 = vpop.f32.mrb[0].mxu0
      %v3438 = vadd.f32 0.0, %v3437
      %v3439 = vpop.f32.mrb[0].mxu0
      %3440 = vmatprep.mubr.f32.mxu0 0.0
      %3441 = vmatmul.mubr.f32.gmra.mrb[0].mxu0 %v3237
      %v3442 = vpop.f32.mrb[0].mxu0
      %v3443 = vadd.f32 0.0, %v3442
      %v3444 = vpop.f32.mrb[0].mxu0
      %3445 = vmatprep.mubr.f32.mxu0 0.0
      %3446 = vmatmul.mubr.f32.gmra.mrb[0].mxu0 %v3240
      %v3447 = vpop.f32.mrb[0].mxu0
      %v3448 = vadd.f32 0.0, %v3447
      %v3449 = vpop.f32.mrb[0].mxu0
      %3450 = vmatprep.mubr.f32.mxu0 0.0
      %3451 = vmatmul.mubr.f32.gmra.mrb[0].mxu0 %v3243
      %v3452 = vpop.f32.mrb[0].mxu0
      %v3453 = vadd.f32 0.0, %v3452
      %v3454 = vpop.f32.mrb[0].mxu0
      %3455 = vmatprep.mubr.f32.mxu0 0.0
      %3456 = vmatmul.mubr.f32.gmra.mrb[0].mxu0 %v3246
      %v3457 = vpop.f32.mrb[0].mxu0
      %v3458 = vadd.f32 0.0, %v3457
      %v3459 = vpop.f32.mrb[0].mxu0
      %3460 = vmatprep.mubr.f32.mxu0 0.0
      %3461 = vmatmul.mubr.f32.gmra.mrb[0].mxu0 %v3249
      %v3462 = vpop.f32.mrb[0].mxu0
      %v3463 = vadd.f32 0.0, %v3462
      %v3464 = vpop.f32.mrb[0].mxu0
      %3465 = vmatprep.mubr.f32.mxu0 0.0
      %3466 = vmatmul.mubr.f32.gmra.mrb[0].mxu0 %v3252
      %v3467 = vpop.f32.mrb[0].mxu0
      %v3468 = vadd.f32 0.0, %v3467
      %v3469 = vpop.f32.mrb[0].mxu0
      %3470 = vmatprep.mubr.f32.mxu0 0.0
      %3471 = vmatmul.mubr.f32.gmra.mrb[0].mxu0 %v3255
      %v3472 = vpop.f32.mrb[0].mxu0
      %v3473 = vadd.f32 0.0, %v3472
      %v3474 = vpop.f32.mrb[0].mxu0
      %3475 = vmatprep.mubr.f32.mxu0 0.0
      %3476 = vmatmul.mubr.f32.gmra.mrb[0].mxu0 %v3258
      %v3477 = vpop.f32.mrb[0].mxu0
      %v3478 = vadd.f32 0.0, %v3477
      %v3479 = vpop.f32.mrb[0].mxu0
      %3480 = vmatprep.mubr.f32.mxu0 0.0
      %3481 = vmatmul.mubr.f32.gmra.mrb[0].mxu0 %v3261
      %v3482 = vpop.f32.mrb[0].mxu0
      %v3483 = vadd.f32 0.0, %v3482
      %v3484 = vpop.f32.mrb[0].mxu0
      %3485 = vmatprep.mubr.f32.mxu0 0.0
      %3486 = vmatmul.mubr.f32.gmra.mrb[0].mxu0 %v3264
      %v3487 = vpop.f32.mrb[0].mxu0
      %v3488 = vadd.f32 0.0, %v3487
      %v3489 = vpop.f32.mrb[0].mxu0
      %3490 = vmatprep.mubr.f32.mxu0 0.0
      %3491 = vmatmul.mubr.f32.gmra.mrb[0].mxu0 %v3267
      %v3492 = vpop.f32.mrb[0].mxu0
      %v3493 = vadd.f32 0.0, %v3492
      %v3494 = vpop.f32.mrb[0].mxu0
      %3495 = vmatprep.mubr.f32.mxu0 0.0
      %3496 = vmatmul.mubr.f32.gmra.mrb[0].mxu0 %v3270
      %v3497 = vpop.f32.mrb[0].mxu0
      %v3498 = vadd.f32 0.0, %v3497
      %v3499 = vpop.f32.mrb[0].mxu0
      %3500 = vmatprep.mubr.f32.mxu0 0.0
      %3501 = vmatmul.mubr.f32.gmra.mrb[0].mxu0 %v3273
      %v3502 = vpop.f32.mrb[0].mxu0
      %v3503 = vadd.f32 0.0, %v3502
      %v3504 = vpop.f32.mrb[0].mxu0
      %3505 = vmatprep.mubr.f32.mxu0 0.0
      %3506 = vmatmul.mubr.f32.gmra.mrb[0].mxu0 %v3276
      %v3507 = vpop.f32.mrb[0].mxu0
      %v3508 = vadd.f32 0.0, %v3507
      %v3509 = vpop.f32.mrb[0].mxu0
      %3510 = vmatprep.mubr.f32.mxu0 0.0
      %3511 = vmatmul.mubr.f32.gmra.mrb[0].mxu0 %v3279
      %v3512 = vpop.f32.mrb[0].mxu0
      %v3513 = vadd.f32 0.0, %v3512
      %v3514 = vpop.f32.mrb[0].mxu0
      %3515 = vmatprep.mubr.f32.mxu0 0.0
      %3516 = vmatmul.mubr.f32.gmra.mrb[0].mxu0 %v3282
      %v3517 = vpop.f32.mrb[0].mxu0
      %v3518 = vadd.f32 0.0, %v3517
      %v3519 = vpop.f32.mrb[0].mxu0
      %3520 = vmatprep.mubr.f32.mxu0 0.0
      %3521 = vmatmul.mubr.f32.gmra.mrb[0].mxu0 %v3285
      %v3522 = vpop.f32.mrb[0].mxu0
      %v3523 = vadd.f32 0.0, %v3522
      %v3524 = vpop.f32.mrb[0].mxu0
      %3525 = vmatprep.mubr.f32.mxu0 0.0
      %3526 = vmatmul.mubr.f32.gmra.mrb[0].mxu0 %v3288
      %v3527 = vpop.f32.mrb[0].mxu0
      %v3528 = vadd.f32 0.0, %v3527
      %v3529 = vpop.f32.mrb[0].mxu0
      %3530 = vmatprep.mubr.f32.mxu0 0.0
      %3531 = vmatmul.mubr.f32.gmra.mrb[0].mxu0 %v3291
      %v3532 = vpop.f32.mrb[0].mxu0
      %v3533 = vadd.f32 0.0, %v3532
      %v3534 = vpop.f32.mrb[0].mxu0
      %3535 = vmatprep.mubr.f32.mxu0 0.0
      %3536 = vmatmul.mubr.f32.gmra.mrb[0].mxu0 %v3294
      %v3537 = vpop.f32.mrb[0].mxu0
      %v3538 = vadd.f32 0.0, %v3537
      %v3539 = vpop.f32.mrb[0].mxu0
      %3540 = vdwg.mxu0
      %v3541 = vadd.f32 %v3113, %v3363
      %v3542 = vadd.f32 %v3114, %v3368
      %v3543 = vadd.f32 %v3115, %v3373
      %v3544 = vadd.f32 %v3116, %v3378
      %v3545 = vadd.f32 %v3117, %v3383
      %v3546 = vadd.f32 %v3118, %v3388
      %v3547 = vadd.f32 %v3119, %v3393
      %v3548 = vadd.f32 %v3120, %v3398
      %v3549 = vadd.f32 %v3121, %v3403
      %v3550 = vadd.f32 %v3122, %v3408
      %v3551 = vadd.f32 %v3123, %v3413
      %v3552 = vadd.f32 %v3124, %v3418
      %v3553 = vadd.f32 %v3125, %v3423
      %v3554 = vadd.f32 %v3126, %v3428
      %v3555 = vadd.f32 %v3127, %v3433
      %v3556 = vadd.f32 %v3128, %v3438
      %v3557 = vadd.f32 %v3129, %v3443
      %v3558 = vadd.f32 %v3130, %v3448
      %v3559 = vadd.f32 %v3131, %v3453
      %v3560 = vadd.f32 %v3132, %v3458
      %v3561 = vadd.f32 %v3133, %v3463
      %v3562 = vadd.f32 %v3134, %v3468
      %v3563 = vadd.f32 %v3135, %v3473
      %v3564 = vadd.f32 %v3136, %v3478
      %v3565 = vadd.f32 %v3137, %v3483
      %v3566 = vadd.f32 %v3138, %v3488
      %v3567 = vadd.f32 %v3139, %v3493
      %v3568 = vadd.f32 %v3140, %v3498
      %v3569 = vadd.f32 %v3141, %v3503
      %v3570 = vadd.f32 %v3142, %v3508
      %v3571 = vadd.f32 %v3143, %v3513
      %v3572 = vadd.f32 %v3144, %v3518
      %v3573 = vadd.f32 %v3145, %v3523
      %v3574 = vadd.f32 %v3146, %v3528
      %v3575 = vadd.f32 %v3147, %v3533
      %v3576 = vadd.f32 %v3148, %v3538
      %v3577 = vld [vmem:[%s219 + $0x26] sm:$0xff]
      %v3578 = vld [vmem:[%s219 + $0x2e] sm:$0xff]
      %v3579 = vld [vmem:[%s219 + $0x36] sm:$0xff]
      %v3580 = vld [vmem:[%s219 + $0x3e] sm:$0xff]
      %v3581 = vld [vmem:[%s219 + $0x46] sm:$0xff]
      %v3582 = vld [vmem:[%s219 + $0x4e] sm:$0xff]
      %v3583 = vld [vmem:[%s219 + $0x56] sm:$0xff]
      %v3584 = vld [vmem:[%s219 + $0x5e] sm:$0xff]
      %v3585 = vld [vmem:[%s219 + $0x66] sm:$0xff]
      %v3586 = vld [vmem:[%s219 + $0x6e] sm:$0xff]
      %v3587 = vld [vmem:[%s219 + $0x76] sm:$0xff]
      %v3588 = vld [vmem:[%s219 + $0x7e] sm:$0xff]
      %v3589 = vld [vmem:[%s219 + $0x86] sm:$0xff]
      %v3590 = vld [vmem:[%s219 + $0x8e] sm:$0xff]
      %v3591 = vld [vmem:[%s219 + $0x96] sm:$0xff]
      %v3592 = vld [vmem:[%s219 + $0x9e] sm:$0xff]
      %v3593 = vld [vmem:[%s219 + $0xa6] sm:$0xff]
      %v3594 = vld [vmem:[%s219 + $0xae] sm:$0xff]
      %v3595 = vld [vmem:[%s219 + $0xb6] sm:$0xff]
      %v3596 = vld [vmem:[%s219 + $0xbe] sm:$0xff]
      %v3597 = vld [vmem:[%s219 + $0xc6] sm:$0xff]
      %v3598 = vld [vmem:[%s219 + $0xce] sm:$0xff]
      %v3599 = vld [vmem:[%s219 + $0xd6] sm:$0xff]
      %v3600 = vld [vmem:[%s219 + $0xde] sm:$0xff]
      %v3601 = vld [vmem:[%s219 + $0xe6] sm:$0xff]
      %v3602 = vld [vmem:[%s219 + $0xee] sm:$0xff]
      %v3603 = vld [vmem:[%s219 + $0xf6] sm:$0xff]
      %v3604 = vld [vmem:[%s219 + $0xfe] sm:$0xff]
      %v3605 = vld [vmem:[%s219 + $0x106] sm:$0xff]
      %v3606 = vld [vmem:[%s219 + $0x10e] sm:$0xff]
      %v3607 = vld [vmem:[%s219 + $0x116] sm:$0xff]
      %v3608 = vld [vmem:[%s219 + $0x11e] sm:$0xff]
      %v3609 = vld [vmem:[%s219 + $0x126] sm:$0xff]
      %v3610 = vld [vmem:[%s219 + $0x12e] sm:$0xff]
      %v3611 = vld [vmem:[%s219 + $0x136] sm:$0xff]
      %v3612 = vld [vmem:[%s219 + $0x13e] sm:$0xff]
      %s3613 = scalar_lea.vmem %s1, 128
      %v3614 = vld [vmem:[%s3613] sm:$0xff]
      %v3615 = vld [vmem:[%s3613 + $0x8] sm:$0xff]
      %v3617 = vsel %vm302, %v3577, 0
      %v3620 = vsel %vm302, %v3578, 0
      %v3623 = vsel %vm302, %v3579, 0
      %v3626 = vsel %vm302, %v3580, 0
      %v3629 = vsel %vm302, %v3581, 0
      %v3632 = vsel %vm302, %v3582, 0
      %v3635 = vsel %vm302, %v3583, 0
      %v3638 = vsel %vm302, %v3584, 0
      %v3641 = vsel %vm302, %v3585, 0
      %v3644 = vsel %vm302, %v3586, 0
      %v3647 = vsel %vm302, %v3587, 0
      %v3650 = vsel %vm302, %v3588, 0
      %v3653 = vsel %vm302, %v3589, 0
      %v3656 = vsel %vm302, %v3590, 0
      %v3659 = vsel %vm302, %v3591, 0
      %v3662 = vsel %vm302, %v3592, 0
      %v3665 = vsel %vm302, %v3593, 0
      %v3668 = vsel %vm302, %v3594, 0
      %v3671 = vsel %vm302, %v3595, 0
      %v3674 = vsel %vm302, %v3596, 0
      %v3677 = vsel %vm302, %v3597, 0
      %v3680 = vsel %vm302, %v3598, 0
      %v3683 = vsel %vm302, %v3599, 0
      %v3686 = vsel %vm302, %v3600, 0
      %v3689 = vsel %vm302, %v3601, 0
      %v3692 = vsel %vm302, %v3602, 0
      %v3695 = vsel %vm302, %v3603, 0
      %v3698 = vsel %vm302, %v3604, 0
      %v3701 = vsel %vm302, %v3605, 0
      %v3704 = vsel %vm302, %v3606, 0
      %v3707 = vsel %vm302, %v3607, 0
      %v3710 = vsel %vm302, %v3608, 0
      %v3713 = vsel %vm302, %v3609, 0
      %v3716 = vsel %vm302, %v3610, 0
      %v3719 = vsel %vm302, %v3611, 0
      %v3722 = vsel %vm302, %v3612, 0
      %3724 = vmatprep.subr.mxu0 0.0
      %3725 = vmatpush1.msra.mxu0 %v3614
      %3726 = vmatprep.subr.mxu0 0.0
      %3727 = vmatpush1.msra.mxu0 %v3615
      %3728 = vmatprep.subr.mxu0 0.0
      %3729 = vmatpush1.msra.mxu0 0.0
      %3730 = vmatprep.subr.mxu0 0.0
      %3731 = vmatpush1.msra.mxu0 0.0
      %3732 = vmatprep.subr.mxu0 0.0
      %3733 = vmatpush1.msra.mxu0 0.0
      %3734 = vmatprep.subr.mxu0 0.0
      %3735 = vmatpush1.msra.mxu0 0.0
      %3736 = vmatprep.subr.mxu0 0.0
      %3737 = vmatpush1.msra.mxu0 0.0
      %3738 = vmatprep.subr.mxu0 0.0
      %3739 = vmatpush1.msra.mxu0 0.0
      %3740 = vmatprep.subr.mxu0 0.0
      %3741 = vmatpush1.msra.mxu0 0.0
      %3742 = vmatprep.subr.mxu0 0.0
      %3743 = vmatpush1.msra.mxu0 0.0
      %3744 = vmatprep.subr.mxu0 0.0
      %3745 = vmatpush1.msra.mxu0 0.0
      %3746 = vmatprep.subr.mxu0 0.0
      %3747 = vmatpush1.msra.mxu0 0.0
      %3748 = vmatprep.subr.mxu0 0.0
      %3749 = vmatpush1.msra.mxu0 0.0
      %3750 = vmatprep.subr.mxu0 0.0
      %3751 = vmatpush1.msra.mxu0 0.0
      %3752 = vmatprep.subr.mxu0 0.0
      %3753 = vmatpush1.msra.mxu0 0.0
      %3754 = vmatprep.subr.mxu0 0.0
      %3755 = vmatpush1.msra.mxu0 0.0
      %3756 = vmatprep.subr.mxu0 0.0
      %3757 = vmatpush1.msra.mxu0 0.0
      %3758 = vmatprep.subr.mxu0 0.0
      %3759 = vmatpush1.msra.mxu0 0.0
      %3760 = vmatprep.subr.mxu0 0.0
      %3761 = vmatpush1.msra.mxu0 0.0
      %3762 = vmatprep.subr.mxu0 0.0
      %3763 = vmatpush1.msra.mxu0 0.0
      %3764 = vmatprep.subr.mxu0 0.0
      %3765 = vmatpush1.msra.mxu0 0.0
      %3766 = vmatprep.subr.mxu0 0.0
      %3767 = vmatpush1.msra.mxu0 0.0
      %3768 = vmatprep.subr.mxu0 0.0
      %3769 = vmatpush1.msra.mxu0 0.0
      %3770 = vmatprep.subr.mxu0 0.0
      %3771 = vmatpush1.msra.mxu0 0.0
      %3772 = vmatprep.subr.mxu0 0.0
      %3773 = vmatpush1.msra.mxu0 0.0
      %3774 = vmatprep.subr.mxu0 0.0
      %3775 = vmatpush1.msra.mxu0 0.0
      %3776 = vmatprep.subr.mxu0 0.0
      %3777 = vmatpush1.msra.mxu0 0.0
      %3778 = vmatprep.subr.mxu0 0.0
      %3779 = vmatpush1.msra.mxu0 0.0
      %3780 = vmatprep.subr.mxu0 0.0
      %3781 = vmatpush1.msra.mxu0 0.0
      %3782 = vmatprep.subr.mxu0 0.0
      %3783 = vmatpush1.msra.mxu0 0.0
      %3784 = vmatprep.subr.mxu0 0.0
      %3785 = vmatpush1.msra.mxu0 0.0
      %3786 = vmatprep.subr.mxu0 0.0
      %3787 = vmatpush1.msra.mxu0 0.0
      %3788 = vmatprep.mubr.f32.mxu0 0.0
      %3789 = vmatmul.mubr.f32.gmra.mrb[0].mxu0 %v3617
      %v3790 = vpop.f32.mrb[0].mxu0
      %v3791 = vadd.f32 0.0, %v3790
      %v3792 = vpop.f32.mrb[0].mxu0
      %3793 = vmatprep.mubr.f32.mxu0 0.0
      %3794 = vmatmul.mubr.f32.gmra.mrb[0].mxu0 %v3620
      %v3795 = vpop.f32.mrb[0].mxu0
      %v3796 = vadd.f32 0.0, %v3795
      %v3797 = vpop.f32.mrb[0].mxu0
      %3798 = vmatprep.mubr.f32.mxu0 0.0
      %3799 = vmatmul.mubr.f32.gmra.mrb[0].mxu0 %v3623
      %v3800 = vpop.f32.mrb[0].mxu0
      %v3801 = vadd.f32 0.0, %v3800
      %v3802 = vpop.f32.mrb[0].mxu0
      %3803 = vmatprep.mubr.f32.mxu0 0.0
      %3804 = vmatmul.mubr.f32.gmra.mrb[0].mxu0 %v3626
      %v3805 = vpop.f32.mrb[0].mxu0
      %v3806 = vadd.f32 0.0, %v3805
      %v3807 = vpop.f32.mrb[0].mxu0
      %3808 = vmatprep.mubr.f32.mxu0 0.0
      %3809 = vmatmul.mubr.f32.gmra.mrb[0].mxu0 %v3629
      %v3810 = vpop.f32.mrb[0].mxu0
      %v3811 = vadd.f32 0.0, %v3810
      %v3812 = vpop.f32.mrb[0].mxu0
      %3813 = vmatprep.mubr.f32.mxu0 0.0
      %3814 = vmatmul.mubr.f32.gmra.mrb[0].mxu0 %v3632
      %v3815 = vpop.f32.mrb[0].mxu0
      %v3816 = vadd.f32 0.0, %v3815
      %v3817 = vpop.f32.mrb[0].mxu0
      %3818 = vmatprep.mubr.f32.mxu0 0.0
      %3819 = vmatmul.mubr.f32.gmra.mrb[0].mxu0 %v3635
      %v3820 = vpop.f32.mrb[0].mxu0
      %v3821 = vadd.f32 0.0, %v3820
      %v3822 = vpop.f32.mrb[0].mxu0
      %3823 = vmatprep.mubr.f32.mxu0 0.0
      %3824 = vmatmul.mubr.f32.gmra.mrb[0].mxu0 %v3638
      %v3825 = vpop.f32.mrb[0].mxu0
      %v3826 = vadd.f32 0.0, %v3825
      %v3827 = vpop.f32.mrb[0].mxu0
      %3828 = vmatprep.mubr.f32.mxu0 0.0
      %3829 = vmatmul.mubr.f32.gmra.mrb[0].mxu0 %v3641
      %v3830 = vpop.f32.mrb[0].mxu0
      %v3831 = vadd.f32 0.0, %v3830
      %v3832 = vpop.f32.mrb[0].mxu0
      %3833 = vmatprep.mubr.f32.mxu0 0.0
      %3834 = vmatmul.mubr.f32.gmra.mrb[0].mxu0 %v3644
      %v3835 = vpop.f32.mrb[0].mxu0
      %v3836 = vadd.f32 0.0, %v3835
      %v3837 = vpop.f32.mrb[0].mxu0
      %3838 = vmatprep.mubr.f32.mxu0 0.0
      %3839 = vmatmul.mubr.f32.gmra.mrb[0].mxu0 %v3647
      %v3840 = vpop.f32.mrb[0].mxu0
      %v3841 = vadd.f32 0.0, %v3840
      %v3842 = vpop.f32.mrb[0].mxu0
      %3843 = vmatprep.mubr.f32.mxu0 0.0
      %3844 = vmatmul.mubr.f32.gmra.mrb[0].mxu0 %v3650
      %v3845 = vpop.f32.mrb[0].mxu0
      %v3846 = vadd.f32 0.0, %v3845
      %v3847 = vpop.f32.mrb[0].mxu0
      %3848 = vmatprep.mubr.f32.mxu0 0.0
      %3849 = vmatmul.mubr.f32.gmra.mrb[0].mxu0 %v3653
      %v3850 = vpop.f32.mrb[0].mxu0
      %v3851 = vadd.f32 0.0, %v3850
      %v3852 = vpop.f32.mrb[0].mxu0
      %3853 = vmatprep.mubr.f32.mxu0 0.0
      %3854 = vmatmul.mubr.f32.gmra.mrb[0].mxu0 %v3656
      %v3855 = vpop.f32.mrb[0].mxu0
      %v3856 = vadd.f32 0.0, %v3855
      %v3857 = vpop.f32.mrb[0].mxu0
      %3858 = vmatprep.mubr.f32.mxu0 0.0
      %3859 = vmatmul.mubr.f32.gmra.mrb[0].mxu0 %v3659
      %v3860 = vpop.f32.mrb[0].mxu0
      %v3861 = vadd.f32 0.0, %v3860
      %v3862 = vpop.f32.mrb[0].mxu0
      %3863 = vmatprep.mubr.f32.mxu0 0.0
      %3864 = vmatmul.mubr.f32.gmra.mrb[0].mxu0 %v3662
      %v3865 = vpop.f32.mrb[0].mxu0
      %v3866 = vadd.f32 0.0, %v3865
      %v3867 = vpop.f32.mrb[0].mxu0
      %3868 = vmatprep.mubr.f32.mxu0 0.0
      %3869 = vmatmul.mubr.f32.gmra.mrb[0].mxu0 %v3665
      %v3870 = vpop.f32.mrb[0].mxu0
      %v3871 = vadd.f32 0.0, %v3870
      %v3872 = vpop.f32.mrb[0].mxu0
      %3873 = vmatprep.mubr.f32.mxu0 0.0
      %3874 = vmatmul.mubr.f32.gmra.mrb[0].mxu0 %v3668
      %v3875 = vpop.f32.mrb[0].mxu0
      %v3876 = vadd.f32 0.0, %v3875
      %v3877 = vpop.f32.mrb[0].mxu0
      %3878 = vmatprep.mubr.f32.mxu0 0.0
      %3879 = vmatmul.mubr.f32.gmra.mrb[0].mxu0 %v3671
      %v3880 = vpop.f32.mrb[0].mxu0
      %v3881 = vadd.f32 0.0, %v3880
      %v3882 = vpop.f32.mrb[0].mxu0
      %3883 = vmatprep.mubr.f32.mxu0 0.0
      %3884 = vmatmul.mubr.f32.gmra.mrb[0].mxu0 %v3674
      %v3885 = vpop.f32.mrb[0].mxu0
      %v3886 = vadd.f32 0.0, %v3885
      %v3887 = vpop.f32.mrb[0].mxu0
      %3888 = vmatprep.mubr.f32.mxu0 0.0
      %3889 = vmatmul.mubr.f32.gmra.mrb[0].mxu0 %v3677
      %v3890 = vpop.f32.mrb[0].mxu0
      %v3891 = vadd.f32 0.0, %v3890
      %v3892 = vpop.f32.mrb[0].mxu0
      %3893 = vmatprep.mubr.f32.mxu0 0.0
      %3894 = vmatmul.mubr.f32.gmra.mrb[0].mxu0 %v3680
      %v3895 = vpop.f32.mrb[0].mxu0
      %v3896 = vadd.f32 0.0, %v3895
      %v3897 = vpop.f32.mrb[0].mxu0
      %3898 = vmatprep.mubr.f32.mxu0 0.0
      %3899 = vmatmul.mubr.f32.gmra.mrb[0].mxu0 %v3683
      %v3900 = vpop.f32.mrb[0].mxu0
      %v3901 = vadd.f32 0.0, %v3900
      %v3902 = vpop.f32.mrb[0].mxu0
      %3903 = vmatprep.mubr.f32.mxu0 0.0
      %3904 = vmatmul.mubr.f32.gmra.mrb[0].mxu0 %v3686
      %v3905 = vpop.f32.mrb[0].mxu0
      %v3906 = vadd.f32 0.0, %v3905
      %v3907 = vpop.f32.mrb[0].mxu0
      %3908 = vmatprep.mubr.f32.mxu0 0.0
      %3909 = vmatmul.mubr.f32.gmra.mrb[0].mxu0 %v3689
      %v3910 = vpop.f32.mrb[0].mxu0
      %v3911 = vadd.f32 0.0, %v3910
      %v3912 = vpop.f32.mrb[0].mxu0
      %3913 = vmatprep.mubr.f32.mxu0 0.0
      %3914 = vmatmul.mubr.f32.gmra.mrb[0].mxu0 %v3692
      %v3915 = vpop.f32.mrb[0].mxu0
      %v3916 = vadd.f32 0.0, %v3915
      %v3917 = vpop.f32.mrb[0].mxu0
      %3918 = vmatprep.mubr.f32.mxu0 0.0
      %3919 = vmatmul.mubr.f32.gmra.mrb[0].mxu0 %v3695
      %v3920 = vpop.f32.mrb[0].mxu0
      %v3921 = vadd.f32 0.0, %v3920
      %v3922 = vpop.f32.mrb[0].mxu0
      %3923 = vmatprep.mubr.f32.mxu0 0.0
      %3924 = vmatmul.mubr.f32.gmra.mrb[0].mxu0 %v3698
      %v3925 = vpop.f32.mrb[0].mxu0
      %v3926 = vadd.f32 0.0, %v3925
      %v3927 = vpop.f32.mrb[0].mxu0
      %3928 = vmatprep.mubr.f32.mxu0 0.0
      %3929 = vmatmul.mubr.f32.gmra.mrb[0].mxu0 %v3701
      %v3930 = vpop.f32.mrb[0].mxu0
      %v3931 = vadd.f32 0.0, %v3930
      %v3932 = vpop.f32.mrb[0].mxu0
      %3933 = vmatprep.mubr.f32.mxu0 0.0
      %3934 = vmatmul.mubr.f32.gmra.mrb[0].mxu0 %v3704
      %v3935 = vpop.f32.mrb[0].mxu0
      %v3936 = vadd.f32 0.0, %v3935
      %v3937 = vpop.f32.mrb[0].mxu0
      %3938 = vmatprep.mubr.f32.mxu0 0.0
      %3939 = vmatmul.mubr.f32.gmra.mrb[0].mxu0 %v3707
      %v3940 = vpop.f32.mrb[0].mxu0
      %v3941 = vadd.f32 0.0, %v3940
      %v3942 = vpop.f32.mrb[0].mxu0
      %3943 = vmatprep.mubr.f32.mxu0 0.0
      %3944 = vmatmul.mubr.f32.gmra.mrb[0].mxu0 %v3710
      %v3945 = vpop.f32.mrb[0].mxu0
      %v3946 = vadd.f32 0.0, %v3945
      %v3947 = vpop.f32.mrb[0].mxu0
      %3948 = vmatprep.mubr.f32.mxu0 0.0
      %3949 = vmatmul.mubr.f32.gmra.mrb[0].mxu0 %v3713
      %v3950 = vpop.f32.mrb[0].mxu0
      %v3951 = vadd.f32 0.0, %v3950
      %v3952 = vpop.f32.mrb[0].mxu0
      %3953 = vmatprep.mubr.f32.mxu0 0.0
      %3954 = vmatmul.mubr.f32.gmra.mrb[0].mxu0 %v3716
      %v3955 = vpop.f32.mrb[0].mxu0
      %v3956 = vadd.f32 0.0, %v3955
      %v3957 = vpop.f32.mrb[0].mxu0
      %3958 = vmatprep.mubr.f32.mxu0 0.0
      %3959 = vmatmul.mubr.f32.gmra.mrb[0].mxu0 %v3719
      %v3960 = vpop.f32.mrb[0].mxu0
      %v3961 = vadd.f32 0.0, %v3960
      %v3962 = vpop.f32.mrb[0].mxu0
      %3963 = vmatprep.mubr.f32.mxu0 0.0
      %3964 = vmatmul.mubr.f32.gmra.mrb[0].mxu0 %v3722
      %v3965 = vpop.f32.mrb[0].mxu0
      %v3966 = vadd.f32 0.0, %v3965
      %v3967 = vpop.f32.mrb[0].mxu0
      %3968 = vdwg.mxu0
      %v3969 = vadd.f32 %v3541, %v3791
      %v3970 = vadd.f32 %v3542, %v3796
      %v3971 = vadd.f32 %v3543, %v3801
      %v3972 = vadd.f32 %v3544, %v3806
      %v3973 = vadd.f32 %v3545, %v3811
      %v3974 = vadd.f32 %v3546, %v3816
      %v3975 = vadd.f32 %v3547, %v3821
      %v3976 = vadd.f32 %v3548, %v3826
      %v3977 = vadd.f32 %v3549, %v3831
      %v3978 = vadd.f32 %v3550, %v3836
      %v3979 = vadd.f32 %v3551, %v3841
      %v3980 = vadd.f32 %v3552, %v3846
      %v3981 = vadd.f32 %v3553, %v3851
      %v3982 = vadd.f32 %v3554, %v3856
      %v3983 = vadd.f32 %v3555, %v3861
      %v3984 = vadd.f32 %v3556, %v3866
      %v3985 = vadd.f32 %v3557, %v3871
      %v3986 = vadd.f32 %v3558, %v3876
      %v3987 = vadd.f32 %v3559, %v3881
      %v3988 = vadd.f32 %v3560, %v3886
      %v3989 = vadd.f32 %v3561, %v3891
      %v3990 = vadd.f32 %v3562, %v3896
      %v3991 = vadd.f32 %v3563, %v3901
      %v3992 = vadd.f32 %v3564, %v3906
      %v3993 = vadd.f32 %v3565, %v3911
      %v3994 = vadd.f32 %v3566, %v3916
      %v3995 = vadd.f32 %v3567, %v3921
      %v3996 = vadd.f32 %v3568, %v3926
      %v3997 = vadd.f32 %v3569, %v3931
      %v3998 = vadd.f32 %v3570, %v3936
      %v3999 = vadd.f32 %v3571, %v3941
      %v4000 = vadd.f32 %v3572, %v3946
      %v4001 = vadd.f32 %v3573, %v3951
      %v4002 = vadd.f32 %v3574, %v3956
      %v4003 = vadd.f32 %v3575, %v3961
      %v4004 = vadd.f32 %v3576, %v3966
      %v4005 = vld [vmem:[%s2] sm:$0x1]
      %v4007 = vlaneseq
      %v4008 = vshrl.u32 %v4007, 7
      %v4009 = vsub.s32 0, %v4008
      %v4010 = vrot.slane %v4005, %v4009
      %v4012 = vadd.f32 %v3969, %v4010
      %v4013 = vadd.f32 %v3970, %v4010
      %v4014 = vadd.f32 %v3971, %v4010
      %v4015 = vadd.f32 %v3972, %v4010
      %v4016 = vadd.f32 %v3973, %v4010
      %v4017 = vadd.f32 %v3974, %v4010
      %v4018 = vadd.f32 %v3975, %v4010
      %v4019 = vadd.f32 %v3976, %v4010
      %v4020 = vadd.f32 %v3977, %v4010
      %v4021 = vadd.f32 %v3978, %v4010
      %v4022 = vadd.f32 %v3979, %v4010
      %v4023 = vadd.f32 %v3980, %v4010
      %v4024 = vadd.f32 %v3981, %v4010
      %v4025 = vadd.f32 %v3982, %v4010
      %v4026 = vadd.f32 %v3983, %v4010
      %v4027 = vadd.f32 %v3984, %v4010
      %v4028 = vadd.f32 %v3985, %v4010
      %v4029 = vadd.f32 %v3986, %v4010
      %v4030 = vadd.f32 %v3987, %v4010
      %v4031 = vadd.f32 %v3988, %v4010
      %v4032 = vadd.f32 %v3989, %v4010
      %v4033 = vadd.f32 %v3990, %v4010
      %v4034 = vadd.f32 %v3991, %v4010
      %v4035 = vadd.f32 %v3992, %v4010
      %v4036 = vadd.f32 %v3993, %v4010
      %v4037 = vadd.f32 %v3994, %v4010
      %v4038 = vadd.f32 %v3995, %v4010
      %v4039 = vadd.f32 %v3996, %v4010
      %v4040 = vadd.f32 %v3997, %v4010
      %v4041 = vadd.f32 %v3998, %v4010
      %v4042 = vadd.f32 %v3999, %v4010
      %v4043 = vadd.f32 %v4000, %v4010
      %v4044 = vadd.f32 %v4001, %v4010
      %v4045 = vadd.f32 %v4002, %v4010
      %v4046 = vadd.f32 %v4003, %v4010
      %v4047 = vadd.f32 %v4004, %v4010
      %4048 = vst.msk [vmem:[%s224] sm:$0xff] %vm302, %v4012
      %4049 = vst.msk [vmem:[%s224 + $0x8] sm:$0xff] %vm302, %v4013
      %4050 = vst.msk [vmem:[%s224 + $0x10] sm:$0xff] %vm302, %v4014
      %4051 = vst.msk [vmem:[%s224 + $0x18] sm:$0xff] %vm302, %v4015
      %4052 = vst.msk [vmem:[%s224 + $0x20] sm:$0xff] %vm302, %v4016
      %4053 = vst.msk [vmem:[%s224 + $0x28] sm:$0xff] %vm302, %v4017
      %4054 = vst.msk [vmem:[%s224 + $0x30] sm:$0xff] %vm302, %v4018
      %4055 = vst.msk [vmem:[%s224 + $0x38] sm:$0xff] %vm302, %v4019
      %4056 = vst.msk [vmem:[%s224 + $0x40] sm:$0xff] %vm302, %v4020
      %4057 = vst.msk [vmem:[%s224 + $0x48] sm:$0xff] %vm302, %v4021
      %4058 = vst.msk [vmem:[%s224 + $0x50] sm:$0xff] %vm302, %v4022
      %4059 = vst.msk [vmem:[%s224 + $0x58] sm:$0xff] %vm302, %v4023
      %4060 = vst.msk [vmem:[%s224 + $0x60] sm:$0xff] %vm302, %v4024
      %4061 = vst.msk [vmem:[%s224 + $0x68] sm:$0xff] %vm302, %v4025
      %4062 = vst.msk [vmem:[%s224 + $0x70] sm:$0xff] %vm302, %v4026
      %4063 = vst.msk [vmem:[%s224 + $0x78] sm:$0xff] %vm302, %v4027
      %4064 = vst.msk [vmem:[%s224 + $0x80] sm:$0xff] %vm302, %v4028
      %4065 = vst.msk [vmem:[%s224 + $0x88] sm:$0xff] %vm302, %v4029
      %4066 = vst.msk [vmem:[%s224 + $0x90] sm:$0xff] %vm302, %v4030
      %4067 = vst.msk [vmem:[%s224 + $0x98] sm:$0xff] %vm302, %v4031
      %4068 = vst.msk [vmem:[%s224 + $0xa0] sm:$0xff] %vm302, %v4032
      %4069 = vst.msk [vmem:[%s224 + $0xa8] sm:$0xff] %vm302, %v4033
      %4070 = vst.msk [vmem:[%s224 + $0xb0] sm:$0xff] %vm302, %v4034
      %4071 = vst.msk [vmem:[%s224 + $0xb8] sm:$0xff] %vm302, %v4035
      %4072 = vst.msk [vmem:[%s224 + $0xc0] sm:$0xff] %vm302, %v4036
      %4073 = vst.msk [vmem:[%s224 + $0xc8] sm:$0xff] %vm302, %v4037
      %4074 = vst.msk [vmem:[%s224 + $0xd0] sm:$0xff] %vm302, %v4038
      %4075 = vst.msk [vmem:[%s224 + $0xd8] sm:$0xff] %vm302, %v4039
      %4076 = vst.msk [vmem:[%s224 + $0xe0] sm:$0xff] %vm302, %v4040
      %4077 = vst.msk [vmem:[%s224 + $0xe8] sm:$0xff] %vm302, %v4041
      %4078 = vst.msk [vmem:[%s224 + $0xf0] sm:$0xff] %vm302, %v4042
      %4079 = vst.msk [vmem:[%s224 + $0xf8] sm:$0xff] %vm302, %v4043
      %4080 = vst.msk [vmem:[%s224 + $0x100] sm:$0xff] %vm302, %v4044
      %4081 = vst.msk [vmem:[%s224 + $0x108] sm:$0xff] %vm302, %v4045
      %4082 = vst.msk [vmem:[%s224 + $0x110] sm:$0xff] %vm302, %v4046
      %4083 = vst.msk [vmem:[%s224 + $0x118] sm:$0xff] %vm302, %v4047
      %v4084 = vld [vmem:[%s219] sm:$0xff]
      %v4085 = vld [vmem:[%s219 + $0x8] sm:$0xff]
      %v4086 = vld [vmem:[%s219 + $0x10] sm:$0xff]
      %v4087 = vld [vmem:[%s219 + $0x18] sm:$0xff]
      %v4088 = vld [vmem:[%s219 + $0x20] sm:$0xff]
      %v4089 = vld [vmem:[%s219 + $0x28] sm:$0xff]
      %v4090 = vld [vmem:[%s219 + $0x30] sm:$0xff]
      %v4091 = vld [vmem:[%s219 + $0x38] sm:$0xff]
      %v4092 = vld [vmem:[%s219 + $0x40] sm:$0xff]
      %v4093 = vld [vmem:[%s219 + $0x48] sm:$0xff]
      %v4094 = vld [vmem:[%s219 + $0x50] sm:$0xff]
      %v4095 = vld [vmem:[%s219 + $0x58] sm:$0xff]
      %v4096 = vld [vmem:[%s219 + $0x60] sm:$0xff]
      %v4097 = vld [vmem:[%s219 + $0x68] sm:$0xff]
      %v4098 = vld [vmem:[%s219 + $0x70] sm:$0xff]
      %v4099 = vld [vmem:[%s219 + $0x78] sm:$0xff]
      %v4100 = vld [vmem:[%s219 + $0x80] sm:$0xff]
      %v4101 = vld [vmem:[%s219 + $0x88] sm:$0xff]
      %v4102 = vld [vmem:[%s219 + $0x90] sm:$0xff]
      %v4103 = vld [vmem:[%s219 + $0x98] sm:$0xff]
      %v4104 = vld [vmem:[%s219 + $0xa0] sm:$0xff]
      %v4105 = vld [vmem:[%s219 + $0xa8] sm:$0xff]
      %v4106 = vld [vmem:[%s219 + $0xb0] sm:$0xff]
      %v4107 = vld [vmem:[%s219 + $0xb8] sm:$0xff]
      %v4108 = vld [vmem:[%s219 + $0xc0] sm:$0xff]
      %v4109 = vld [vmem:[%s219 + $0xc8] sm:$0xff]
      %v4110 = vld [vmem:[%s219 + $0xd0] sm:$0xff]
      %v4111 = vld [vmem:[%s219 + $0xd8] sm:$0xff]
      %v4112 = vld [vmem:[%s219 + $0xe0] sm:$0xff]
      %v4113 = vld [vmem:[%s219 + $0xe8] sm:$0xff]
      %v4114 = vld [vmem:[%s219 + $0xf0] sm:$0xff]
      %v4115 = vld [vmem:[%s219 + $0xf8] sm:$0xff]
      %v4116 = vld [vmem:[%s219 + $0x100] sm:$0xff]
      %v4117 = vld [vmem:[%s219 + $0x108] sm:$0xff]
      %v4118 = vld [vmem:[%s219 + $0x110] sm:$0xff]
      %v4119 = vld [vmem:[%s219 + $0x118] sm:$0xff]
      %v4120 = vld [vmem:[%s3] sm:$0xff]
      %v4121 = vld [vmem:[%s3 + $0x8] sm:$0xff]
      %v4122 = vld [vmem:[%s219 + $0x1] sm:$0xff]
      %v4123 = vld [vmem:[%s219 + $0x9] sm:$0xff]
      %v4124 = vld [vmem:[%s219 + $0x11] sm:$0xff]
      %v4125 = vld [vmem:[%s219 + $0x19] sm:$0xff]
      %v4126 = vld [vmem:[%s219 + $0x21] sm:$0xff]
      %v4127 = vld [vmem:[%s219 + $0x29] sm:$0xff]
      %v4128 = vld [vmem:[%s219 + $0x31] sm:$0xff]
      %v4129 = vld [vmem:[%s219 + $0x39] sm:$0xff]
      %v4130 = vld [vmem:[%s219 + $0x41] sm:$0xff]
      %v4131 = vld [vmem:[%s219 + $0x49] sm:$0xff]
      %v4132 = vld [vmem:[%s219 + $0x51] sm:$0xff]
      %v4133 = vld [vmem:[%s219 + $0x59] sm:$0xff]
      %v4134 = vld [vmem:[%s219 + $0x61] sm:$0xff]
      %v4135 = vld [vmem:[%s219 + $0x69] sm:$0xff]
      %v4136 = vld [vmem:[%s219 + $0x71] sm:$0xff]
      %v4137 = vld [vmem:[%s219 + $0x79] sm:$0xff]
      %v4138 = vld [vmem:[%s219 + $0x81] sm:$0xff]
      %v4139 = vld [vmem:[%s219 + $0x89] sm:$0xff]
      %v4140 = vld [vmem:[%s219 + $0x91] sm:$0xff]
      %v4141 = vld [vmem:[%s219 + $0x99] sm:$0xff]
      %v4142 = vld [vmem:[%s219 + $0xa1] sm:$0xff]
      %v4143 = vld [vmem:[%s219 + $0xa9] sm:$0xff]
      %v4144 = vld [vmem:[%s219 + $0xb1] sm:$0xff]
      %v4145 = vld [vmem:[%s219 + $0xb9] sm:$0xff]
      %v4146 = vld [vmem:[%s219 + $0xc1] sm:$0xff]
      %v4147 = vld [vmem:[%s219 + $0xc9] sm:$0xff]
      %v4148 = vld [vmem:[%s219 + $0xd1] sm:$0xff]
      %v4149 = vld [vmem:[%s219 + $0xd9] sm:$0xff]
      %v4150 = vld [vmem:[%s219 + $0xe1] sm:$0xff]
      %v4151 = vld [vmem:[%s219 + $0xe9] sm:$0xff]
      %v4152 = vld [vmem:[%s219 + $0xf1] sm:$0xff]
      %v4153 = vld [vmem:[%s219 + $0xf9] sm:$0xff]
      %v4154 = vld [vmem:[%s219 + $0x101] sm:$0xff]
      %v4155 = vld [vmem:[%s219 + $0x109] sm:$0xff]
      %v4156 = vld [vmem:[%s219 + $0x111] sm:$0xff]
      %v4157 = vld [vmem:[%s219 + $0x119] sm:$0xff]
      %s4158 = scalar_lea.vmem %s3, 16
      %v4159 = vld [vmem:[%s4158] sm:$0xff]
      %v4160 = vld [vmem:[%s4158 + $0x8] sm:$0xff]
      %4197 = vrot.lane.b32.xlu0 %v4122, 112
      %v4198 = vpop.permute.xlu0 %4197
      %4199 = vrot.lane.b32.xlu0 %v4123, 112
      %v4200 = vpop.permute.xlu0 %4199
      %4201 = vrot.lane.b32.xlu0 %v4124, 112
      %v4202 = vpop.permute.xlu0 %4201
      %4203 = vrot.lane.b32.xlu0 %v4125, 112
      %v4204 = vpop.permute.xlu0 %4203
      %4205 = vrot.lane.b32.xlu0 %v4126, 112
      %v4206 = vpop.permute.xlu0 %4205
      %4207 = vrot.lane.b32.xlu0 %v4127, 112
      %v4208 = vpop.permute.xlu0 %4207
      %4209 = vrot.lane.b32.xlu0 %v4128, 112
      %v4210 = vpop.permute.xlu0 %4209
      %4211 = vrot.lane.b32.xlu0 %v4129, 112
      %v4212 = vpop.permute.xlu0 %4211
      %4213 = vrot.lane.b32.xlu0 %v4130, 112
      %v4214 = vpop.permute.xlu0 %4213
      %4215 = vrot.lane.b32.xlu0 %v4131, 112
      %v4216 = vpop.permute.xlu0 %4215
      %4217 = vrot.lane.b32.xlu0 %v4132, 112
      %v4218 = vpop.permute.xlu0 %4217
      %4219 = vrot.lane.b32.xlu0 %v4133, 112
      %v4220 = vpop.permute.xlu0 %4219
      %4221 = vrot.lane.b32.xlu0 %v4134, 112
      %v4222 = vpop.permute.xlu0 %4221
      %4223 = vrot.lane.b32.xlu0 %v4135, 112
      %v4224 = vpop.permute.xlu0 %4223
      %4225 = vrot.lane.b32.xlu0 %v4136, 112
      %v4226 = vpop.permute.xlu0 %4225
      %4227 = vrot.lane.b32.xlu0 %v4137, 112
      %v4228 = vpop.permute.xlu0 %4227
      %4229 = vrot.lane.b32.xlu0 %v4138, 112
      %v4230 = vpop.permute.xlu0 %4229
      %4231 = vrot.lane.b32.xlu0 %v4139, 112
      %v4232 = vpop.permute.xlu0 %4231
      %4233 = vrot.lane.b32.xlu0 %v4140, 112
      %v4234 = vpop.permute.xlu0 %4233
      %4235 = vrot.lane.b32.xlu0 %v4141, 112
      %v4236 = vpop.permute.xlu0 %4235
      %4237 = vrot.lane.b32.xlu0 %v4142, 112
      %v4238 = vpop.permute.xlu0 %4237
      %4239 = vrot.lane.b32.xlu0 %v4143, 112
      %v4240 = vpop.permute.xlu0 %4239
      %4241 = vrot.lane.b32.xlu0 %v4144, 112
      %v4242 = vpop.permute.xlu0 %4241
      %4243 = vrot.lane.b32.xlu0 %v4145, 112
      %v4244 = vpop.permute.xlu0 %4243
      %4245 = vrot.lane.b32.xlu0 %v4146, 112
      %v4246 = vpop.permute.xlu0 %4245
      %4247 = vrot.lane.b32.xlu0 %v4147, 112
      %v4248 = vpop.permute.xlu0 %4247
      %4249 = vrot.lane.b32.xlu0 %v4148, 112
      %v4250 = vpop.permute.xlu0 %4249
      %4251 = vrot.lane.b32.xlu0 %v4149, 112
      %v4252 = vpop.permute.xlu0 %4251
      %4253 = vrot.lane.b32.xlu0 %v4150, 112
      %v4254 = vpop.permute.xlu0 %4253
      %4255 = vrot.lane.b32.xlu0 %v4151, 112
      %v4256 = vpop.permute.xlu0 %4255
      %4257 = vrot.lane.b32.xlu0 %v4152, 112
      %v4258 = vpop.permute.xlu0 %4257
      %4259 = vrot.lane.b32.xlu0 %v4153, 112
      %v4260 = vpop.permute.xlu0 %4259
      %4261 = vrot.lane.b32.xlu0 %v4154, 112
      %v4262 = vpop.permute.xlu0 %4261
      %4263 = vrot.lane.b32.xlu0 %v4155, 112
      %v4264 = vpop.permute.xlu0 %4263
      %4265 = vrot.lane.b32.xlu0 %v4156, 112
      %v4266 = vpop.permute.xlu0 %4265
      %4267 = vrot.lane.b32.xlu0 %v4157, 112
      %v4268 = vpop.permute.xlu0 %4267
      %v4269 = vsel %vm302, %v4198, 0
      %v4271 = vsel %vm302, %v4200, 0
      %v4273 = vsel %vm302, %v4202, 0
      %v4275 = vsel %vm302, %v4204, 0
      %v4277 = vsel %vm302, %v4206, 0
      %v4279 = vsel %vm302, %v4208, 0
      %v4281 = vsel %vm302, %v4210, 0
      %v4283 = vsel %vm302, %v4212, 0
      %v4285 = vsel %vm302, %v4214, 0
      %v4287 = vsel %vm302, %v4216, 0
      %v4289 = vsel %vm302, %v4218, 0
      %v4291 = vsel %vm302, %v4220, 0
      %v4293 = vsel %vm302, %v4222, 0
      %v4295 = vsel %vm302, %v4224, 0
      %v4297 = vsel %vm302, %v4226, 0
      %v4299 = vsel %vm302, %v4228, 0
      %v4301 = vsel %vm302, %v4230, 0
      %v4303 = vsel %vm302, %v4232, 0
      %v4305 = vsel %vm302, %v4234, 0
      %v4307 = vsel %vm302, %v4236, 0
      %v4309 = vsel %vm302, %v4238, 0
      %v4311 = vsel %vm302, %v4240, 0
      %v4313 = vsel %vm302, %v4242, 0
      %v4315 = vsel %vm302, %v4244, 0
      %v4317 = vsel %vm302, %v4246, 0
      %v4319 = vsel %vm302, %v4248, 0
      %v4321 = vsel %vm302, %v4250, 0
      %v4323 = vsel %vm302, %v4252, 0
      %v4325 = vsel %vm302, %v4254, 0
      %v4327 = vsel %vm302, %v4256, 0
      %v4329 = vsel %vm302, %v4258, 0
      %v4331 = vsel %vm302, %v4260, 0
      %v4333 = vsel %vm302, %v4262, 0
      %v4335 = vsel %vm302, %v4264, 0
      %v4337 = vsel %vm302, %v4266, 0
      %v4339 = vsel %vm302, %v4268, 0
      %4341 = vmatprep.subr.mxu0 0.0
      %4342 = vmatpush1.msra.mxu0 %v4159
      %4343 = vmatprep.subr.mxu0 0.0
      %4344 = vmatpush1.msra.mxu0 %v4160
      %4345 = vmatprep.subr.mxu0 0.0
      %4346 = vmatpush1.msra.mxu0 0.0
      %4347 = vmatprep.subr.mxu0 0.0
      %4348 = vmatpush1.msra.mxu0 0.0
      %4349 = vmatprep.subr.mxu0 0.0
      %4350 = vmatpush1.msra.mxu0 0.0
      %4351 = vmatprep.subr.mxu0 0.0
      %4352 = vmatpush1.msra.mxu0 0.0
      %4353 = vmatprep.subr.mxu0 0.0
      %4354 = vmatpush1.msra.mxu0 0.0
      %4355 = vmatprep.subr.mxu0 0.0
      %4356 = vmatpush1.msra.mxu0 0.0
      %4357 = vmatprep.subr.mxu0 0.0
      %4358 = vmatpush1.msra.mxu0 0.0
      %4359 = vmatprep.subr.mxu0 0.0
      %4360 = vmatpush1.msra.mxu0 0.0
      %4361 = vmatprep.subr.mxu0 0.0
      %4362 = vmatpush1.msra.mxu0 0.0
      %4363 = vmatprep.subr.mxu0 0.0
      %4364 = vmatpush1.msra.mxu0 0.0
      %4365 = vmatprep.subr.mxu0 0.0
      %4366 = vmatpush1.msra.mxu0 0.0
      %4367 = vmatprep.subr.mxu0 0.0
      %4368 = vmatpush1.msra.mxu0 0.0
      %4369 = vmatprep.subr.mxu0 0.0
      %4370 = vmatpush1.msra.mxu0 0.0
      %4371 = vmatprep.subr.mxu0 0.0
      %4372 = vmatpush1.msra.mxu0 0.0
      %4373 = vmatprep.subr.mxu0 0.0
      %4374 = vmatpush1.msra.mxu0 0.0
      %4375 = vmatprep.subr.mxu0 0.0
      %4376 = vmatpush1.msra.mxu0 0.0
      %4377 = vmatprep.subr.mxu0 0.0
      %4378 = vmatpush1.msra.mxu0 0.0
      %4379 = vmatprep.subr.mxu0 0.0
      %4380 = vmatpush1.msra.mxu0 0.0
      %4381 = vmatprep.subr.mxu0 0.0
      %4382 = vmatpush1.msra.mxu0 0.0
      %4383 = vmatprep.subr.mxu0 0.0
      %4384 = vmatpush1.msra.mxu0 0.0
      %4385 = vmatprep.subr.mxu0 0.0
      %4386 = vmatpush1.msra.mxu0 0.0
      %4387 = vmatprep.subr.mxu0 0.0
      %4388 = vmatpush1.msra.mxu0 0.0
      %4389 = vmatprep.subr.mxu0 0.0
      %4390 = vmatpush1.msra.mxu0 0.0
      %4391 = vmatprep.subr.mxu0 0.0
      %4392 = vmatpush1.msra.mxu0 0.0
      %4393 = vmatprep.subr.mxu0 0.0
      %4394 = vmatpush1.msra.mxu0 0.0
      %4395 = vmatprep.subr.mxu0 0.0
      %4396 = vmatpush1.msra.mxu0 0.0
      %4397 = vmatprep.subr.mxu0 0.0
      %4398 = vmatpush1.msra.mxu0 0.0
      %4399 = vmatprep.subr.mxu0 0.0
      %4400 = vmatpush1.msra.mxu0 0.0
      %4401 = vmatprep.subr.mxu0 0.0
      %4402 = vmatpush1.msra.mxu0 0.0
      %4403 = vmatprep.subr.mxu0 0.0
      %4404 = vmatpush1.msra.mxu0 0.0
      %4405 = vmatprep.mubr.f32.mxu0 0.0
      %4406 = vmatmul.mubr.f32.gmra.mrb[0].mxu0 %v4269
      %v4407 = vpop.f32.mrb[0].mxu0
      %v4408 = vadd.f32 0.0, %v4407
      %v4409 = vpop.f32.mrb[0].mxu0
      %4410 = vmatprep.mubr.f32.mxu0 0.0
      %4411 = vmatmul.mubr.f32.gmra.mrb[0].mxu0 %v4271
      %v4412 = vpop.f32.mrb[0].mxu0
      %v4413 = vadd.f32 0.0, %v4412
      %v4414 = vpop.f32.mrb[0].mxu0
      %4415 = vmatprep.mubr.f32.mxu0 0.0
      %4416 = vmatmul.mubr.f32.gmra.mrb[0].mxu0 %v4273
      %v4417 = vpop.f32.mrb[0].mxu0
      %v4418 = vadd.f32 0.0, %v4417
      %v4419 = vpop.f32.mrb[0].mxu0
      %4420 = vmatprep.mubr.f32.mxu0 0.0
      %4421 = vmatmul.mubr.f32.gmra.mrb[0].mxu0 %v4275
      %v4422 = vpop.f32.mrb[0].mxu0
      %v4423 = vadd.f32 0.0, %v4422
      %v4424 = vpop.f32.mrb[0].mxu0
      %4425 = vmatprep.mubr.f32.mxu0 0.0
      %4426 = vmatmul.mubr.f32.gmra.mrb[0].mxu0 %v4277
      %v4427 = vpop.f32.mrb[0].mxu0
      %v4428 = vadd.f32 0.0, %v4427
      %v4429 = vpop.f32.mrb[0].mxu0
      %4430 = vmatprep.mubr.f32.mxu0 0.0
      %4431 = vmatmul.mubr.f32.gmra.mrb[0].mxu0 %v4279
      %v4432 = vpop.f32.mrb[0].mxu0
      %v4433 = vadd.f32 0.0, %v4432
      %v4434 = vpop.f32.mrb[0].mxu0
      %4435 = vmatprep.mubr.f32.mxu0 0.0
      %4436 = vmatmul.mubr.f32.gmra.mrb[0].mxu0 %v4281
      %v4437 = vpop.f32.mrb[0].mxu0
      %v4438 = vadd.f32 0.0, %v4437
      %v4439 = vpop.f32.mrb[0].mxu0
      %4440 = vmatprep.mubr.f32.mxu0 0.0
      %4441 = vmatmul.mubr.f32.gmra.mrb[0].mxu0 %v4283
      %v4442 = vpop.f32.mrb[0].mxu0
      %v4443 = vadd.f32 0.0, %v4442
      %v4444 = vpop.f32.mrb[0].mxu0
      %4445 = vmatprep.mubr.f32.mxu0 0.0
      %4446 = vmatmul.mubr.f32.gmra.mrb[0].mxu0 %v4285
      %v4447 = vpop.f32.mrb[0].mxu0
      %v4448 = vadd.f32 0.0, %v4447
      %v4449 = vpop.f32.mrb[0].mxu0
      %4450 = vmatprep.mubr.f32.mxu0 0.0
      %4451 = vmatmul.mubr.f32.gmra.mrb[0].mxu0 %v4287
      %v4452 = vpop.f32.mrb[0].mxu0
      %v4453 = vadd.f32 0.0, %v4452
      %v4454 = vpop.f32.mrb[0].mxu0
      %4455 = vmatprep.mubr.f32.mxu0 0.0
      %4456 = vmatmul.mubr.f32.gmra.mrb[0].mxu0 %v4289
      %v4457 = vpop.f32.mrb[0].mxu0
      %v4458 = vadd.f32 0.0, %v4457
      %v4459 = vpop.f32.mrb[0].mxu0
      %4460 = vmatprep.mubr.f32.mxu0 0.0
      %4461 = vmatmul.mubr.f32.gmra.mrb[0].mxu0 %v4291
      %v4462 = vpop.f32.mrb[0].mxu0
      %v4463 = vadd.f32 0.0, %v4462
      %v4464 = vpop.f32.mrb[0].mxu0
      %4465 = vmatprep.mubr.f32.mxu0 0.0
      %4466 = vmatmul.mubr.f32.gmra.mrb[0].mxu0 %v4293
      %v4467 = vpop.f32.mrb[0].mxu0
      %v4468 = vadd.f32 0.0, %v4467
      %v4469 = vpop.f32.mrb[0].mxu0
      %4470 = vmatprep.mubr.f32.mxu0 0.0
      %4471 = vmatmul.mubr.f32.gmra.mrb[0].mxu0 %v4295
      %v4472 = vpop.f32.mrb[0].mxu0
      %v4473 = vadd.f32 0.0, %v4472
      %v4474 = vpop.f32.mrb[0].mxu0
      %4475 = vmatprep.mubr.f32.mxu0 0.0
      %4476 = vmatmul.mubr.f32.gmra.mrb[0].mxu0 %v4297
      %v4477 = vpop.f32.mrb[0].mxu0
      %v4478 = vadd.f32 0.0, %v4477
      %v4479 = vpop.f32.mrb[0].mxu0
      %4480 = vmatprep.mubr.f32.mxu0 0.0
      %4481 = vmatmul.mubr.f32.gmra.mrb[0].mxu0 %v4299
      %v4482 = vpop.f32.mrb[0].mxu0
      %v4483 = vadd.f32 0.0, %v4482
      %v4484 = vpop.f32.mrb[0].mxu0
      %4485 = vmatprep.mubr.f32.mxu0 0.0
      %4486 = vmatmul.mubr.f32.gmra.mrb[0].mxu0 %v4301
      %v4487 = vpop.f32.mrb[0].mxu0
      %v4488 = vadd.f32 0.0, %v4487
      %v4489 = vpop.f32.mrb[0].mxu0
      %4490 = vmatprep.mubr.f32.mxu0 0.0
      %4491 = vmatmul.mubr.f32.gmra.mrb[0].mxu0 %v4303
      %v4492 = vpop.f32.mrb[0].mxu0
      %v4493 = vadd.f32 0.0, %v4492
      %v4494 = vpop.f32.mrb[0].mxu0
      %4495 = vmatprep.mubr.f32.mxu0 0.0
      %4496 = vmatmul.mubr.f32.gmra.mrb[0].mxu0 %v4305
      %v4497 = vpop.f32.mrb[0].mxu0
      %v4498 = vadd.f32 0.0, %v4497
      %v4499 = vpop.f32.mrb[0].mxu0
      %4500 = vmatprep.mubr.f32.mxu0 0.0
      %4501 = vmatmul.mubr.f32.gmra.mrb[0].mxu0 %v4307
      %v4502 = vpop.f32.mrb[0].mxu0
      %v4503 = vadd.f32 0.0, %v4502
      %v4504 = vpop.f32.mrb[0].mxu0
      %4505 = vmatprep.mubr.f32.mxu0 0.0
      %4506 = vmatmul.mubr.f32.gmra.mrb[0].mxu0 %v4309
      %v4507 = vpop.f32.mrb[0].mxu0
      %v4508 = vadd.f32 0.0, %v4507
      %v4509 = vpop.f32.mrb[0].mxu0
      %4510 = vmatprep.mubr.f32.mxu0 0.0
      %4511 = vmatmul.mubr.f32.gmra.mrb[0].mxu0 %v4311
      %v4512 = vpop.f32.mrb[0].mxu0
      %v4513 = vadd.f32 0.0, %v4512
      %v4514 = vpop.f32.mrb[0].mxu0
      %4515 = vmatprep.mubr.f32.mxu0 0.0
      %4516 = vmatmul.mubr.f32.gmra.mrb[0].mxu0 %v4313
      %v4517 = vpop.f32.mrb[0].mxu0
      %v4518 = vadd.f32 0.0, %v4517
      %v4519 = vpop.f32.mrb[0].mxu0
      %4520 = vmatprep.mubr.f32.mxu0 0.0
      %4521 = vmatmul.mubr.f32.gmra.mrb[0].mxu0 %v4315
      %v4522 = vpop.f32.mrb[0].mxu0
      %v4523 = vadd.f32 0.0, %v4522
      %v4524 = vpop.f32.mrb[0].mxu0
      %4525 = vmatprep.mubr.f32.mxu0 0.0
      %4526 = vmatmul.mubr.f32.gmra.mrb[0].mxu0 %v4317
      %v4527 = vpop.f32.mrb[0].mxu0
      %v4528 = vadd.f32 0.0, %v4527
      %v4529 = vpop.f32.mrb[0].mxu0
      %4530 = vmatprep.mubr.f32.mxu0 0.0
      %4531 = vmatmul.mubr.f32.gmra.mrb[0].mxu0 %v4319
      %v4532 = vpop.f32.mrb[0].mxu0
      %v4533 = vadd.f32 0.0, %v4532
      %v4534 = vpop.f32.mrb[0].mxu0
      %4535 = vmatprep.mubr.f32.mxu0 0.0
      %4536 = vmatmul.mubr.f32.gmra.mrb[0].mxu0 %v4321
      %v4537 = vpop.f32.mrb[0].mxu0
      %v4538 = vadd.f32 0.0, %v4537
      %v4539 = vpop.f32.mrb[0].mxu0
      %4540 = vmatprep.mubr.f32.mxu0 0.0
      %4541 = vmatmul.mubr.f32.gmra.mrb[0].mxu0 %v4323
      %v4542 = vpop.f32.mrb[0].mxu0
      %v4543 = vadd.f32 0.0, %v4542
      %v4544 = vpop.f32.mrb[0].mxu0
      %4545 = vmatprep.mubr.f32.mxu0 0.0
      %4546 = vmatmul.mubr.f32.gmra.mrb[0].mxu0 %v4325
      %v4547 = vpop.f32.mrb[0].mxu0
      %v4548 = vadd.f32 0.0, %v4547
      %v4549 = vpop.f32.mrb[0].mxu0
      %4550 = vmatprep.mubr.f32.mxu0 0.0
      %4551 = vmatmul.mubr.f32.gmra.mrb[0].mxu0 %v4327
      %v4552 = vpop.f32.mrb[0].mxu0
      %v4553 = vadd.f32 0.0, %v4552
      %v4554 = vpop.f32.mrb[0].mxu0
      %4555 = vmatprep.mubr.f32.mxu0 0.0
      %4556 = vmatmul.mubr.f32.gmra.mrb[0].mxu0 %v4329
      %v4557 = vpop.f32.mrb[0].mxu0
      %v4558 = vadd.f32 0.0, %v4557
      %v4559 = vpop.f32.mrb[0].mxu0
      %4560 = vmatprep.mubr.f32.mxu0 0.0
      %4561 = vmatmul.mubr.f32.gmra.mrb[0].mxu0 %v4331
      %v4562 = vpop.f32.mrb[0].mxu0
      %v4563 = vadd.f32 0.0, %v4562
      %v4564 = vpop.f32.mrb[0].mxu0
      %4565 = vmatprep.mubr.f32.mxu0 0.0
      %4566 = vmatmul.mubr.f32.gmra.mrb[0].mxu0 %v4333
      %v4567 = vpop.f32.mrb[0].mxu0
      %v4568 = vadd.f32 0.0, %v4567
      %v4569 = vpop.f32.mrb[0].mxu0
      %4570 = vmatprep.mubr.f32.mxu0 0.0
      %4571 = vmatmul.mubr.f32.gmra.mrb[0].mxu0 %v4335
      %v4572 = vpop.f32.mrb[0].mxu0
      %v4573 = vadd.f32 0.0, %v4572
      %v4574 = vpop.f32.mrb[0].mxu0
      %4575 = vmatprep.mubr.f32.mxu0 0.0
      %4576 = vmatmul.mubr.f32.gmra.mrb[0].mxu0 %v4337
      %v4577 = vpop.f32.mrb[0].mxu0
      %v4578 = vadd.f32 0.0, %v4577
      %v4579 = vpop.f32.mrb[0].mxu0
      %4580 = vmatprep.mubr.f32.mxu0 0.0
      %4581 = vmatmul.mubr.f32.gmra.mrb[0].mxu0 %v4339
      %v4582 = vpop.f32.mrb[0].mxu0
      %v4583 = vadd.f32 0.0, %v4582
      %v4584 = vpop.f32.mrb[0].mxu0
      %4585 = vdwg.mxu0
      %4622 = vrot.lane.b32.xlu0 %v4084, 112
      %v4623 = vpop.permute.xlu0 %4622
      %4624 = vrot.lane.b32.xlu0 %v4085, 112
      %v4625 = vpop.permute.xlu0 %4624
      %4626 = vrot.lane.b32.xlu0 %v4086, 112
      %v4627 = vpop.permute.xlu0 %4626
      %4628 = vrot.lane.b32.xlu0 %v4087, 112
      %v4629 = vpop.permute.xlu0 %4628
      %4630 = vrot.lane.b32.xlu0 %v4088, 112
      %v4631 = vpop.permute.xlu0 %4630
      %4632 = vrot.lane.b32.xlu0 %v4089, 112
      %v4633 = vpop.permute.xlu0 %4632
      %4634 = vrot.lane.b32.xlu0 %v4090, 112
      %v4635 = vpop.permute.xlu0 %4634
      %4636 = vrot.lane.b32.xlu0 %v4091, 112
      %v4637 = vpop.permute.xlu0 %4636
      %4638 = vrot.lane.b32.xlu0 %v4092, 112
      %v4639 = vpop.permute.xlu0 %4638
      %4640 = vrot.lane.b32.xlu0 %v4093, 112
      %v4641 = vpop.permute.xlu0 %4640
      %4642 = vrot.lane.b32.xlu0 %v4094, 112
      %v4643 = vpop.permute.xlu0 %4642
      %4644 = vrot.lane.b32.xlu0 %v4095, 112
      %v4645 = vpop.permute.xlu0 %4644
      %4646 = vrot.lane.b32.xlu0 %v4096, 112
      %v4647 = vpop.permute.xlu0 %4646
      %4648 = vrot.lane.b32.xlu0 %v4097, 112
      %v4649 = vpop.permute.xlu0 %4648
      %4650 = vrot.lane.b32.xlu0 %v4098, 112
      %v4651 = vpop.permute.xlu0 %4650
      %4652 = vrot.lane.b32.xlu0 %v4099, 112
      %v4653 = vpop.permute.xlu0 %4652
      %4654 = vrot.lane.b32.xlu0 %v4100, 112
      %v4655 = vpop.permute.xlu0 %4654
      %4656 = vrot.lane.b32.xlu0 %v4101, 112
      %v4657 = vpop.permute.xlu0 %4656
      %4658 = vrot.lane.b32.xlu0 %v4102, 112
      %v4659 = vpop.permute.xlu0 %4658
      %4660 = vrot.lane.b32.xlu0 %v4103, 112
      %v4661 = vpop.permute.xlu0 %4660
      %4662 = vrot.lane.b32.xlu0 %v4104, 112
      %v4663 = vpop.permute.xlu0 %4662
      %4664 = vrot.lane.b32.xlu0 %v4105, 112
      %v4665 = vpop.permute.xlu0 %4664
      %4666 = vrot.lane.b32.xlu0 %v4106, 112
      %v4667 = vpop.permute.xlu0 %4666
      %4668 = vrot.lane.b32.xlu0 %v4107, 112
      %v4669 = vpop.permute.xlu0 %4668
      %4670 = vrot.lane.b32.xlu0 %v4108, 112
      %v4671 = vpop.permute.xlu0 %4670
      %4672 = vrot.lane.b32.xlu0 %v4109, 112
      %v4673 = vpop.permute.xlu0 %4672
      %4674 = vrot.lane.b32.xlu0 %v4110, 112
      %v4675 = vpop.permute.xlu0 %4674
      %4676 = vrot.lane.b32.xlu0 %v4111, 112
      %v4677 = vpop.permute.xlu0 %4676
      %4678 = vrot.lane.b32.xlu0 %v4112, 112
      %v4679 = vpop.permute.xlu0 %4678
      %4680 = vrot.lane.b32.xlu0 %v4113, 112
      %v4681 = vpop.permute.xlu0 %4680
      %4682 = vrot.lane.b32.xlu0 %v4114, 112
      %v4683 = vpop.permute.xlu0 %4682
      %4684 = vrot.lane.b32.xlu0 %v4115, 112
      %v4685 = vpop.permute.xlu0 %4684
      %4686 = vrot.lane.b32.xlu0 %v4116, 112
      %v4687 = vpop.permute.xlu0 %4686
      %4688 = vrot.lane.b32.xlu0 %v4117, 112
      %v4689 = vpop.permute.xlu0 %4688
      %4690 = vrot.lane.b32.xlu0 %v4118, 112
      %v4691 = vpop.permute.xlu0 %4690
      %4692 = vrot.lane.b32.xlu0 %v4119, 112
      %v4693 = vpop.permute.xlu0 %4692
      %v4694 = vsel %vm302, %v4623, 0
      %v4696 = vsel %vm302, %v4625, 0
      %v4698 = vsel %vm302, %v4627, 0
      %v4700 = vsel %vm302, %v4629, 0
      %v4702 = vsel %vm302, %v4631, 0
      %v4704 = vsel %vm302, %v4633, 0
      %v4706 = vsel %vm302, %v4635, 0
      %v4708 = vsel %vm302, %v4637, 0
      %v4710 = vsel %vm302, %v4639, 0
      %v4712 = vsel %vm302, %v4641, 0
      %v4714 = vsel %vm302, %v4643, 0
      %v4716 = vsel %vm302, %v4645, 0
      %v4718 = vsel %vm302, %v4647, 0
      %v4720 = vsel %vm302, %v4649, 0
      %v4722 = vsel %vm302, %v4651, 0
      %v4724 = vsel %vm302, %v4653, 0
      %v4726 = vsel %vm302, %v4655, 0
      %v4728 = vsel %vm302, %v4657, 0
      %v4730 = vsel %vm302, %v4659, 0
      %v4732 = vsel %vm302, %v4661, 0
      %v4734 = vsel %vm302, %v4663, 0
      %v4736 = vsel %vm302, %v4665, 0
      %v4738 = vsel %vm302, %v4667, 0
      %v4740 = vsel %vm302, %v4669, 0
      %v4742 = vsel %vm302, %v4671, 0
      %v4744 = vsel %vm302, %v4673, 0
      %v4746 = vsel %vm302, %v4675, 0
      %v4748 = vsel %vm302, %v4677, 0
      %v4750 = vsel %vm302, %v4679, 0
      %v4752 = vsel %vm302, %v4681, 0
      %v4754 = vsel %vm302, %v4683, 0
      %v4756 = vsel %vm302, %v4685, 0
      %v4758 = vsel %vm302, %v4687, 0
      %v4760 = vsel %vm302, %v4689, 0
      %v4762 = vsel %vm302, %v4691, 0
      %v4764 = vsel %vm302, %v4693, 0
      %4766 = vmatprep.subr.mxu0 0.0
      %4767 = vmatpush1.msra.mxu0 %v4120
      %4768 = vmatprep.subr.mxu0 0.0
      %4769 = vmatpush1.msra.mxu0 %v4121
      %4770 = vmatprep.subr.mxu0 0.0
      %4771 = vmatpush1.msra.mxu0 0.0
      %4772 = vmatprep.subr.mxu0 0.0
      %4773 = vmatpush1.msra.mxu0 0.0
      %4774 = vmatprep.subr.mxu0 0.0
      %4775 = vmatpush1.msra.mxu0 0.0
      %4776 = vmatprep.subr.mxu0 0.0
      %4777 = vmatpush1.msra.mxu0 0.0
      %4778 = vmatprep.subr.mxu0 0.0
      %4779 = vmatpush1.msra.mxu0 0.0
      %4780 = vmatprep.subr.mxu0 0.0
      %4781 = vmatpush1.msra.mxu0 0.0
      %4782 = vmatprep.subr.mxu0 0.0
      %4783 = vmatpush1.msra.mxu0 0.0
      %4784 = vmatprep.subr.mxu0 0.0
      %4785 = vmatpush1.msra.mxu0 0.0
      %4786 = vmatprep.subr.mxu0 0.0
      %4787 = vmatpush1.msra.mxu0 0.0
      %4788 = vmatprep.subr.mxu0 0.0
      %4789 = vmatpush1.msra.mxu0 0.0
      %4790 = vmatprep.subr.mxu0 0.0
      %4791 = vmatpush1.msra.mxu0 0.0
      %4792 = vmatprep.subr.mxu0 0.0
      %4793 = vmatpush1.msra.mxu0 0.0
      %4794 = vmatprep.subr.mxu0 0.0
      %4795 = vmatpush1.msra.mxu0 0.0
      %4796 = vmatprep.subr.mxu0 0.0
      %4797 = vmatpush1.msra.mxu0 0.0
      %4798 = vmatprep.subr.mxu0 0.0
      %4799 = vmatpush1.msra.mxu0 0.0
      %4800 = vmatprep.subr.mxu0 0.0
      %4801 = vmatpush1.msra.mxu0 0.0
      %4802 = vmatprep.subr.mxu0 0.0
      %4803 = vmatpush1.msra.mxu0 0.0
      %4804 = vmatprep.subr.mxu0 0.0
      %4805 = vmatpush1.msra.mxu0 0.0
      %4806 = vmatprep.subr.mxu0 0.0
      %4807 = vmatpush1.msra.mxu0 0.0
      %4808 = vmatprep.subr.mxu0 0.0
      %4809 = vmatpush1.msra.mxu0 0.0
      %4810 = vmatprep.subr.mxu0 0.0
      %4811 = vmatpush1.msra.mxu0 0.0
      %4812 = vmatprep.subr.mxu0 0.0
      %4813 = vmatpush1.msra.mxu0 0.0
      %4814 = vmatprep.subr.mxu0 0.0
      %4815 = vmatpush1.msra.mxu0 0.0
      %4816 = vmatprep.subr.mxu0 0.0
      %4817 = vmatpush1.msra.mxu0 0.0
      %4818 = vmatprep.subr.mxu0 0.0
      %4819 = vmatpush1.msra.mxu0 0.0
      %4820 = vmatprep.subr.mxu0 0.0
      %4821 = vmatpush1.msra.mxu0 0.0
      %4822 = vmatprep.subr.mxu0 0.0
      %4823 = vmatpush1.msra.mxu0 0.0
      %4824 = vmatprep.subr.mxu0 0.0
      %4825 = vmatpush1.msra.mxu0 0.0
      %4826 = vmatprep.subr.mxu0 0.0
      %4827 = vmatpush1.msra.mxu0 0.0
      %4828 = vmatprep.subr.mxu0 0.0
      %4829 = vmatpush1.msra.mxu0 0.0
      %4830 = vmatprep.mubr.f32.mxu0 0.0
      %4831 = vmatmul.mubr.f32.gmra.mrb[0].mxu0 %v4694
      %v4832 = vpop.f32.mrb[0].mxu0
      %v4833 = vadd.f32 %v4408, %v4832
      %v4834 = vpop.f32.mrb[0].mxu0
      %4835 = vmatprep.mubr.f32.mxu0 0.0
      %4836 = vmatmul.mubr.f32.gmra.mrb[0].mxu0 %v4696
      %v4837 = vpop.f32.mrb[0].mxu0
      %v4838 = vadd.f32 %v4413, %v4837
      %v4839 = vpop.f32.mrb[0].mxu0
      %4840 = vmatprep.mubr.f32.mxu0 0.0
      %4841 = vmatmul.mubr.f32.gmra.mrb[0].mxu0 %v4698
      %v4842 = vpop.f32.mrb[0].mxu0
      %v4843 = vadd.f32 %v4418, %v4842
      %v4844 = vpop.f32.mrb[0].mxu0
      %4845 = vmatprep.mubr.f32.mxu0 0.0
      %4846 = vmatmul.mubr.f32.gmra.mrb[0].mxu0 %v4700
      %v4847 = vpop.f32.mrb[0].mxu0
      %v4848 = vadd.f32 %v4423, %v4847
      %v4849 = vpop.f32.mrb[0].mxu0
      %4850 = vmatprep.mubr.f32.mxu0 0.0
      %4851 = vmatmul.mubr.f32.gmra.mrb[0].mxu0 %v4702
      %v4852 = vpop.f32.mrb[0].mxu0
      %v4853 = vadd.f32 %v4428, %v4852
      %v4854 = vpop.f32.mrb[0].mxu0
      %4855 = vmatprep.mubr.f32.mxu0 0.0
      %4856 = vmatmul.mubr.f32.gmra.mrb[0].mxu0 %v4704
      %v4857 = vpop.f32.mrb[0].mxu0
      %v4858 = vadd.f32 %v4433, %v4857
      %v4859 = vpop.f32.mrb[0].mxu0
      %4860 = vmatprep.mubr.f32.mxu0 0.0
      %4861 = vmatmul.mubr.f32.gmra.mrb[0].mxu0 %v4706
      %v4862 = vpop.f32.mrb[0].mxu0
      %v4863 = vadd.f32 %v4438, %v4862
      %v4864 = vpop.f32.mrb[0].mxu0
      %4865 = vmatprep.mubr.f32.mxu0 0.0
      %4866 = vmatmul.mubr.f32.gmra.mrb[0].mxu0 %v4708
      %v4867 = vpop.f32.mrb[0].mxu0
      %v4868 = vadd.f32 %v4443, %v4867
      %v4869 = vpop.f32.mrb[0].mxu0
      %4870 = vmatprep.mubr.f32.mxu0 0.0
      %4871 = vmatmul.mubr.f32.gmra.mrb[0].mxu0 %v4710
      %v4872 = vpop.f32.mrb[0].mxu0
      %v4873 = vadd.f32 %v4448, %v4872
      %v4874 = vpop.f32.mrb[0].mxu0
      %4875 = vmatprep.mubr.f32.mxu0 0.0
      %4876 = vmatmul.mubr.f32.gmra.mrb[0].mxu0 %v4712
      %v4877 = vpop.f32.mrb[0].mxu0
      %v4878 = vadd.f32 %v4453, %v4877
      %v4879 = vpop.f32.mrb[0].mxu0
      %4880 = vmatprep.mubr.f32.mxu0 0.0
      %4881 = vmatmul.mubr.f32.gmra.mrb[0].mxu0 %v4714
      %v4882 = vpop.f32.mrb[0].mxu0
      %v4883 = vadd.f32 %v4458, %v4882
      %v4884 = vpop.f32.mrb[0].mxu0
      %4885 = vmatprep.mubr.f32.mxu0 0.0
      %4886 = vmatmul.mubr.f32.gmra.mrb[0].mxu0 %v4716
      %v4887 = vpop.f32.mrb[0].mxu0
      %v4888 = vadd.f32 %v4463, %v4887
      %v4889 = vpop.f32.mrb[0].mxu0
      %4890 = vmatprep.mubr.f32.mxu0 0.0
      %4891 = vmatmul.mubr.f32.gmra.mrb[0].mxu0 %v4718
      %v4892 = vpop.f32.mrb[0].mxu0
      %v4893 = vadd.f32 %v4468, %v4892
      %v4894 = vpop.f32.mrb[0].mxu0
      %4895 = vmatprep.mubr.f32.mxu0 0.0
      %4896 = vmatmul.mubr.f32.gmra.mrb[0].mxu0 %v4720
      %v4897 = vpop.f32.mrb[0].mxu0
      %v4898 = vadd.f32 %v4473, %v4897
      %v4899 = vpop.f32.mrb[0].mxu0
      %4900 = vmatprep.mubr.f32.mxu0 0.0
      %4901 = vmatmul.mubr.f32.gmra.mrb[0].mxu0 %v4722
      %v4902 = vpop.f32.mrb[0].mxu0
      %v4903 = vadd.f32 %v4478, %v4902
      %v4904 = vpop.f32.mrb[0].mxu0
      %4905 = vmatprep.mubr.f32.mxu0 0.0
      %4906 = vmatmul.mubr.f32.gmra.mrb[0].mxu0 %v4724
      %v4907 = vpop.f32.mrb[0].mxu0
      %v4908 = vadd.f32 %v4483, %v4907
      %v4909 = vpop.f32.mrb[0].mxu0
      %4910 = vmatprep.mubr.f32.mxu0 0.0
      %4911 = vmatmul.mubr.f32.gmra.mrb[0].mxu0 %v4726
      %v4912 = vpop.f32.mrb[0].mxu0
      %v4913 = vadd.f32 %v4488, %v4912
      %v4914 = vpop.f32.mrb[0].mxu0
      %4915 = vmatprep.mubr.f32.mxu0 0.0
      %4916 = vmatmul.mubr.f32.gmra.mrb[0].mxu0 %v4728
      %v4917 = vpop.f32.mrb[0].mxu0
      %v4918 = vadd.f32 %v4493, %v4917
      %v4919 = vpop.f32.mrb[0].mxu0
      %4920 = vmatprep.mubr.f32.mxu0 0.0
      %4921 = vmatmul.mubr.f32.gmra.mrb[0].mxu0 %v4730
      %v4922 = vpop.f32.mrb[0].mxu0
      %v4923 = vadd.f32 %v4498, %v4922
      %v4924 = vpop.f32.mrb[0].mxu0
      %4925 = vmatprep.mubr.f32.mxu0 0.0
      %4926 = vmatmul.mubr.f32.gmra.mrb[0].mxu0 %v4732
      %v4927 = vpop.f32.mrb[0].mxu0
      %v4928 = vadd.f32 %v4503, %v4927
      %v4929 = vpop.f32.mrb[0].mxu0
      %4930 = vmatprep.mubr.f32.mxu0 0.0
      %4931 = vmatmul.mubr.f32.gmra.mrb[0].mxu0 %v4734
      %v4932 = vpop.f32.mrb[0].mxu0
      %v4933 = vadd.f32 %v4508, %v4932
      %v4934 = vpop.f32.mrb[0].mxu0
      %4935 = vmatprep.mubr.f32.mxu0 0.0
      %4936 = vmatmul.mubr.f32.gmra.mrb[0].mxu0 %v4736
      %v4937 = vpop.f32.mrb[0].mxu0
      %v4938 = vadd.f32 %v4513, %v4937
      %v4939 = vpop.f32.mrb[0].mxu0
      %4940 = vmatprep.mubr.f32.mxu0 0.0
      %4941 = vmatmul.mubr.f32.gmra.mrb[0].mxu0 %v4738
      %v4942 = vpop.f32.mrb[0].mxu0
      %v4943 = vadd.f32 %v4518, %v4942
      %v4944 = vpop.f32.mrb[0].mxu0
      %4945 = vmatprep.mubr.f32.mxu0 0.0
      %4946 = vmatmul.mubr.f32.gmra.mrb[0].mxu0 %v4740
      %v4947 = vpop.f32.mrb[0].mxu0
      %v4948 = vadd.f32 %v4523, %v4947
      %v4949 = vpop.f32.mrb[0].mxu0
      %4950 = vmatprep.mubr.f32.mxu0 0.0
      %4951 = vmatmul.mubr.f32.gmra.mrb[0].mxu0 %v4742
      %v4952 = vpop.f32.mrb[0].mxu0
      %v4953 = vadd.f32 %v4528, %v4952
      %v4954 = vpop.f32.mrb[0].mxu0
      %4955 = vmatprep.mubr.f32.mxu0 0.0
      %4956 = vmatmul.mubr.f32.gmra.mrb[0].mxu0 %v4744
      %v4957 = vpop.f32.mrb[0].mxu0
      %v4958 = vadd.f32 %v4533, %v4957
      %v4959 = vpop.f32.mrb[0].mxu0
      %4960 = vmatprep.mubr.f32.mxu0 0.0
      %4961 = vmatmul.mubr.f32.gmra.mrb[0].mxu0 %v4746
      %v4962 = vpop.f32.mrb[0].mxu0
      %v4963 = vadd.f32 %v4538, %v4962
      %v4964 = vpop.f32.mrb[0].mxu0
      %4965 = vmatprep.mubr.f32.mxu0 0.0
      %4966 = vmatmul.mubr.f32.gmra.mrb[0].mxu0 %v4748
      %v4967 = vpop.f32.mrb[0].mxu0
      %v4968 = vadd.f32 %v4543, %v4967
      %v4969 = vpop.f32.mrb[0].mxu0
      %4970 = vmatprep.mubr.f32.mxu0 0.0
      %4971 = vmatmul.mubr.f32.gmra.mrb[0].mxu0 %v4750
      %v4972 = vpop.f32.mrb[0].mxu0
      %v4973 = vadd.f32 %v4548, %v4972
      %v4974 = vpop.f32.mrb[0].mxu0
      %4975 = vmatprep.mubr.f32.mxu0 0.0
      %4976 = vmatmul.mubr.f32.gmra.mrb[0].mxu0 %v4752
      %v4977 = vpop.f32.mrb[0].mxu0
      %v4978 = vadd.f32 %v4553, %v4977
      %v4979 = vpop.f32.mrb[0].mxu0
      %4980 = vmatprep.mubr.f32.mxu0 0.0
      %4981 = vmatmul.mubr.f32.gmra.mrb[0].mxu0 %v4754
      %v4982 = vpop.f32.mrb[0].mxu0
      %v4983 = vadd.f32 %v4558, %v4982
      %v4984 = vpop.f32.mrb[0].mxu0
      %4985 = vmatprep.mubr.f32.mxu0 0.0
      %4986 = vmatmul.mubr.f32.gmra.mrb[0].mxu0 %v4756
      %v4987 = vpop.f32.mrb[0].mxu0
      %v4988 = vadd.f32 %v4563, %v4987
      %v4989 = vpop.f32.mrb[0].mxu0
      %4990 = vmatprep.mubr.f32.mxu0 0.0
      %4991 = vmatmul.mubr.f32.gmra.mrb[0].mxu0 %v4758
      %v4992 = vpop.f32.mrb[0].mxu0
      %v4993 = vadd.f32 %v4568, %v4992
      %v4994 = vpop.f32.mrb[0].mxu0
      %4995 = vmatprep.mubr.f32.mxu0 0.0
      %4996 = vmatmul.mubr.f32.gmra.mrb[0].mxu0 %v4760
      %v4997 = vpop.f32.mrb[0].mxu0
      %v4998 = vadd.f32 %v4573, %v4997
      %v4999 = vpop.f32.mrb[0].mxu0
      %5000 = vmatprep.mubr.f32.mxu0 0.0
      %5001 = vmatmul.mubr.f32.gmra.mrb[0].mxu0 %v4762
      %v5002 = vpop.f32.mrb[0].mxu0
      %v5003 = vadd.f32 %v4578, %v5002
      %v5004 = vpop.f32.mrb[0].mxu0
      %5005 = vmatprep.mubr.f32.mxu0 0.0
      %5006 = vmatmul.mubr.f32.gmra.mrb[0].mxu0 %v4764
      %v5007 = vpop.f32.mrb[0].mxu0
      %v5008 = vadd.f32 %v4583, %v5007
      %v5009 = vpop.f32.mrb[0].mxu0
      %5010 = vdwg.mxu0
      %v5011 = vld [vmem:[%s219 + $0x2] sm:$0xff]
      %v5012 = vld [vmem:[%s219 + $0xa] sm:$0xff]
      %v5013 = vld [vmem:[%s219 + $0x12] sm:$0xff]
      %v5014 = vld [vmem:[%s219 + $0x1a] sm:$0xff]
      %v5015 = vld [vmem:[%s219 + $0x22] sm:$0xff]
      %v5016 = vld [vmem:[%s219 + $0x2a] sm:$0xff]
      %v5017 = vld [vmem:[%s219 + $0x32] sm:$0xff]
      %v5018 = vld [vmem:[%s219 + $0x3a] sm:$0xff]
      %v5019 = vld [vmem:[%s219 + $0x42] sm:$0xff]
      %v5020 = vld [vmem:[%s219 + $0x4a] sm:$0xff]
      %v5021 = vld [vmem:[%s219 + $0x52] sm:$0xff]
      %v5022 = vld [vmem:[%s219 + $0x5a] sm:$0xff]
      %v5023 = vld [vmem:[%s219 + $0x62] sm:$0xff]
      %v5024 = vld [vmem:[%s219 + $0x6a] sm:$0xff]
      %v5025 = vld [vmem:[%s219 + $0x72] sm:$0xff]
      %v5026 = vld [vmem:[%s219 + $0x7a] sm:$0xff]
      %v5027 = vld [vmem:[%s219 + $0x82] sm:$0xff]
      %v5028 = vld [vmem:[%s219 + $0x8a] sm:$0xff]
      %v5029 = vld [vmem:[%s219 + $0x92] sm:$0xff]
      %v5030 = vld [vmem:[%s219 + $0x9a] sm:$0xff]
      %v5031 = vld [vmem:[%s219 + $0xa2] sm:$0xff]
      %v5032 = vld [vmem:[%s219 + $0xaa] sm:$0xff]
      %v5033 = vld [vmem:[%s219 + $0xb2] sm:$0xff]
      %v5034 = vld [vmem:[%s219 + $0xba] sm:$0xff]
      %v5035 = vld [vmem:[%s219 + $0xc2] sm:$0xff]
      %v5036 = vld [vmem:[%s219 + $0xca] sm:$0xff]
      %v5037 = vld [vmem:[%s219 + $0xd2] sm:$0xff]
      %v5038 = vld [vmem:[%s219 + $0xda] sm:$0xff]
      %v5039 = vld [vmem:[%s219 + $0xe2] sm:$0xff]
      %v5040 = vld [vmem:[%s219 + $0xea] sm:$0xff]
      %v5041 = vld [vmem:[%s219 + $0xf2] sm:$0xff]
      %v5042 = vld [vmem:[%s219 + $0xfa] sm:$0xff]
      %v5043 = vld [vmem:[%s219 + $0x102] sm:$0xff]
      %v5044 = vld [vmem:[%s219 + $0x10a] sm:$0xff]
      %v5045 = vld [vmem:[%s219 + $0x112] sm:$0xff]
      %v5046 = vld [vmem:[%s219 + $0x11a] sm:$0xff]
      %s5047 = scalar_lea.vmem %s3, 32
      %v5048 = vld [vmem:[%s5047] sm:$0xff]
      %v5049 = vld [vmem:[%s5047 + $0x8] sm:$0xff]
      %5086 = vrot.lane.b32.xlu0 %v5011, 112
      %v5087 = vpop.permute.xlu0 %5086
      %5088 = vrot.lane.b32.xlu0 %v5012, 112
      %v5089 = vpop.permute.xlu0 %5088
      %5090 = vrot.lane.b32.xlu0 %v5013, 112
      %v5091 = vpop.permute.xlu0 %5090
      %5092 = vrot.lane.b32.xlu0 %v5014, 112
      %v5093 = vpop.permute.xlu0 %5092
      %5094 = vrot.lane.b32.xlu0 %v5015, 112
      %v5095 = vpop.permute.xlu0 %5094
      %5096 = vrot.lane.b32.xlu0 %v5016, 112
      %v5097 = vpop.permute.xlu0 %5096
      %5098 = vrot.lane.b32.xlu0 %v5017, 112
      %v5099 = vpop.permute.xlu0 %5098
      %5100 = vrot.lane.b32.xlu0 %v5018, 112
      %v5101 = vpop.permute.xlu0 %5100
      %5102 = vrot.lane.b32.xlu0 %v5019, 112
      %v5103 = vpop.permute.xlu0 %5102
      %5104 = vrot.lane.b32.xlu0 %v5020, 112
      %v5105 = vpop.permute.xlu0 %5104
      %5106 = vrot.lane.b32.xlu0 %v5021, 112
      %v5107 = vpop.permute.xlu0 %5106
      %5108 = vrot.lane.b32.xlu0 %v5022, 112
      %v5109 = vpop.permute.xlu0 %5108
      %5110 = vrot.lane.b32.xlu0 %v5023, 112
      %v5111 = vpop.permute.xlu0 %5110
      %5112 = vrot.lane.b32.xlu0 %v5024, 112
      %v5113 = vpop.permute.xlu0 %5112
      %5114 = vrot.lane.b32.xlu0 %v5025, 112
      %v5115 = vpop.permute.xlu0 %5114
      %5116 = vrot.lane.b32.xlu0 %v5026, 112
      %v5117 = vpop.permute.xlu0 %5116
      %5118 = vrot.lane.b32.xlu0 %v5027, 112
      %v5119 = vpop.permute.xlu0 %5118
      %5120 = vrot.lane.b32.xlu0 %v5028, 112
      %v5121 = vpop.permute.xlu0 %5120
      %5122 = vrot.lane.b32.xlu0 %v5029, 112
      %v5123 = vpop.permute.xlu0 %5122
      %5124 = vrot.lane.b32.xlu0 %v5030, 112
      %v5125 = vpop.permute.xlu0 %5124
      %5126 = vrot.lane.b32.xlu0 %v5031, 112
      %v5127 = vpop.permute.xlu0 %5126
      %5128 = vrot.lane.b32.xlu0 %v5032, 112
      %v5129 = vpop.permute.xlu0 %5128
      %5130 = vrot.lane.b32.xlu0 %v5033, 112
      %v5131 = vpop.permute.xlu0 %5130
      %5132 = vrot.lane.b32.xlu0 %v5034, 112
      %v5133 = vpop.permute.xlu0 %5132
      %5134 = vrot.lane.b32.xlu0 %v5035, 112
      %v5135 = vpop.permute.xlu0 %5134
      %5136 = vrot.lane.b32.xlu0 %v5036, 112
      %v5137 = vpop.permute.xlu0 %5136
      %5138 = vrot.lane.b32.xlu0 %v5037, 112
      %v5139 = vpop.permute.xlu0 %5138
      %5140 = vrot.lane.b32.xlu0 %v5038, 112
      %v5141 = vpop.permute.xlu0 %5140
      %5142 = vrot.lane.b32.xlu0 %v5039, 112
      %v5143 = vpop.permute.xlu0 %5142
      %5144 = vrot.lane.b32.xlu0 %v5040, 112
      %v5145 = vpop.permute.xlu0 %5144
      %5146 = vrot.lane.b32.xlu0 %v5041, 112
      %v5147 = vpop.permute.xlu0 %5146
      %5148 = vrot.lane.b32.xlu0 %v5042, 112
      %v5149 = vpop.permute.xlu0 %5148
      %5150 = vrot.lane.b32.xlu0 %v5043, 112
      %v5151 = vpop.permute.xlu0 %5150
      %5152 = vrot.lane.b32.xlu0 %v5044, 112
      %v5153 = vpop.permute.xlu0 %5152
      %5154 = vrot.lane.b32.xlu0 %v5045, 112
      %v5155 = vpop.permute.xlu0 %5154
      %5156 = vrot.lane.b32.xlu0 %v5046, 112
      %v5157 = vpop.permute.xlu0 %5156
      %v5158 = vsel %vm302, %v5087, 0
      %v5160 = vsel %vm302, %v5089, 0
      %v5162 = vsel %vm302, %v5091, 0
      %v5164 = vsel %vm302, %v5093, 0
      %v5166 = vsel %vm302, %v5095, 0
      %v5168 = vsel %vm302, %v5097, 0
      %v5170 = vsel %vm302, %v5099, 0
      %v5172 = vsel %vm302, %v5101, 0
      %v5174 = vsel %vm302, %v5103, 0
      %v5176 = vsel %vm302, %v5105, 0
      %v5178 = vsel %vm302, %v5107, 0
      %v5180 = vsel %vm302, %v5109, 0
      %v5182 = vsel %vm302, %v5111, 0
      %v5184 = vsel %vm302, %v5113, 0
      %v5186 = vsel %vm302, %v5115, 0
      %v5188 = vsel %vm302, %v5117, 0
      %v5190 = vsel %vm302, %v5119, 0
      %v5192 = vsel %vm302, %v5121, 0
      %v5194 = vsel %vm302, %v5123, 0
      %v5196 = vsel %vm302, %v5125, 0
      %v5198 = vsel %vm302, %v5127, 0
      %v5200 = vsel %vm302, %v5129, 0
      %v5202 = vsel %vm302, %v5131, 0
      %v5204 = vsel %vm302, %v5133, 0
      %v5206 = vsel %vm302, %v5135, 0
      %v5208 = vsel %vm302, %v5137, 0
      %v5210 = vsel %vm302, %v5139, 0
      %v5212 = vsel %vm302, %v5141, 0
      %v5214 = vsel %vm302, %v5143, 0
      %v5216 = vsel %vm302, %v5145, 0
      %v5218 = vsel %vm302, %v5147, 0
      %v5220 = vsel %vm302, %v5149, 0
      %v5222 = vsel %vm302, %v5151, 0
      %v5224 = vsel %vm302, %v5153, 0
      %v5226 = vsel %vm302, %v5155, 0
      %v5228 = vsel %vm302, %v5157, 0
      %5230 = vmatprep.subr.mxu0 0.0
      %5231 = vmatpush1.msra.mxu0 %v5048
      %5232 = vmatprep.subr.mxu0 0.0
      %5233 = vmatpush1.msra.mxu0 %v5049
      %5234 = vmatprep.subr.mxu0 0.0
      %5235 = vmatpush1.msra.mxu0 0.0
      %5236 = vmatprep.subr.mxu0 0.0
      %5237 = vmatpush1.msra.mxu0 0.0
      %5238 = vmatprep.subr.mxu0 0.0
      %5239 = vmatpush1.msra.mxu0 0.0
      %5240 = vmatprep.subr.mxu0 0.0
      %5241 = vmatpush1.msra.mxu0 0.0
      %5242 = vmatprep.subr.mxu0 0.0
      %5243 = vmatpush1.msra.mxu0 0.0
      %5244 = vmatprep.subr.mxu0 0.0
      %5245 = vmatpush1.msra.mxu0 0.0
      %5246 = vmatprep.subr.mxu0 0.0
      %5247 = vmatpush1.msra.mxu0 0.0
      %5248 = vmatprep.subr.mxu0 0.0
      %5249 = vmatpush1.msra.mxu0 0.0
      %5250 = vmatprep.subr.mxu0 0.0
      %5251 = vmatpush1.msra.mxu0 0.0
      %5252 = vmatprep.subr.mxu0 0.0
      %5253 = vmatpush1.msra.mxu0 0.0
      %5254 = vmatprep.subr.mxu0 0.0
      %5255 = vmatpush1.msra.mxu0 0.0
      %5256 = vmatprep.subr.mxu0 0.0
      %5257 = vmatpush1.msra.mxu0 0.0
      %5258 = vmatprep.subr.mxu0 0.0
      %5259 = vmatpush1.msra.mxu0 0.0
      %5260 = vmatprep.subr.mxu0 0.0
      %5261 = vmatpush1.msra.mxu0 0.0
      %5262 = vmatprep.subr.mxu0 0.0
      %5263 = vmatpush1.msra.mxu0 0.0
      %5264 = vmatprep.subr.mxu0 0.0
      %5265 = vmatpush1.msra.mxu0 0.0
      %5266 = vmatprep.subr.mxu0 0.0
      %5267 = vmatpush1.msra.mxu0 0.0
      %5268 = vmatprep.subr.mxu0 0.0
      %5269 = vmatpush1.msra.mxu0 0.0
      %5270 = vmatprep.subr.mxu0 0.0
      %5271 = vmatpush1.msra.mxu0 0.0
      %5272 = vmatprep.subr.mxu0 0.0
      %5273 = vmatpush1.msra.mxu0 0.0
      %5274 = vmatprep.subr.mxu0 0.0
      %5275 = vmatpush1.msra.mxu0 0.0
      %5276 = vmatprep.subr.mxu0 0.0
      %5277 = vmatpush1.msra.mxu0 0.0
      %5278 = vmatprep.subr.mxu0 0.0
      %5279 = vmatpush1.msra.mxu0 0.0
      %5280 = vmatprep.subr.mxu0 0.0
      %5281 = vmatpush1.msra.mxu0 0.0
      %5282 = vmatprep.subr.mxu0 0.0
      %5283 = vmatpush1.msra.mxu0 0.0
      %5284 = vmatprep.subr.mxu0 0.0
      %5285 = vmatpush1.msra.mxu0 0.0
      %5286 = vmatprep.subr.mxu0 0.0
      %5287 = vmatpush1.msra.mxu0 0.0
      %5288 = vmatprep.subr.mxu0 0.0
      %5289 = vmatpush1.msra.mxu0 0.0
      %5290 = vmatprep.subr.mxu0 0.0
      %5291 = vmatpush1.msra.mxu0 0.0
      %5292 = vmatprep.subr.mxu0 0.0
      %5293 = vmatpush1.msra.mxu0 0.0
      %5294 = vmatprep.mubr.f32.mxu0 0.0
      %5295 = vmatmul.mubr.f32.gmra.mrb[0].mxu0 %v5158
      %v5296 = vpop.f32.mrb[0].mxu0
      %v5297 = vadd.f32 0.0, %v5296
      %v5298 = vpop.f32.mrb[0].mxu0
      %5299 = vmatprep.mubr.f32.mxu0 0.0
      %5300 = vmatmul.mubr.f32.gmra.mrb[0].mxu0 %v5160
      %v5301 = vpop.f32.mrb[0].mxu0
      %v5302 = vadd.f32 0.0, %v5301
      %v5303 = vpop.f32.mrb[0].mxu0
      %5304 = vmatprep.mubr.f32.mxu0 0.0
      %5305 = vmatmul.mubr.f32.gmra.mrb[0].mxu0 %v5162
      %v5306 = vpop.f32.mrb[0].mxu0
      %v5307 = vadd.f32 0.0, %v5306
      %v5308 = vpop.f32.mrb[0].mxu0
      %5309 = vmatprep.mubr.f32.mxu0 0.0
      %5310 = vmatmul.mubr.f32.gmra.mrb[0].mxu0 %v5164
      %v5311 = vpop.f32.mrb[0].mxu0
      %v5312 = vadd.f32 0.0, %v5311
      %v5313 = vpop.f32.mrb[0].mxu0
      %5314 = vmatprep.mubr.f32.mxu0 0.0
      %5315 = vmatmul.mubr.f32.gmra.mrb[0].mxu0 %v5166
      %v5316 = vpop.f32.mrb[0].mxu0
      %v5317 = vadd.f32 0.0, %v5316
      %v5318 = vpop.f32.mrb[0].mxu0
      %5319 = vmatprep.mubr.f32.mxu0 0.0
      %5320 = vmatmul.mubr.f32.gmra.mrb[0].mxu0 %v5168
      %v5321 = vpop.f32.mrb[0].mxu0
      %v5322 = vadd.f32 0.0, %v5321
      %v5323 = vpop.f32.mrb[0].mxu0
      %5324 = vmatprep.mubr.f32.mxu0 0.0
      %5325 = vmatmul.mubr.f32.gmra.mrb[0].mxu0 %v5170
      %v5326 = vpop.f32.mrb[0].mxu0
      %v5327 = vadd.f32 0.0, %v5326
      %v5328 = vpop.f32.mrb[0].mxu0
      %5329 = vmatprep.mubr.f32.mxu0 0.0
      %5330 = vmatmul.mubr.f32.gmra.mrb[0].mxu0 %v5172
      %v5331 = vpop.f32.mrb[0].mxu0
      %v5332 = vadd.f32 0.0, %v5331
      %v5333 = vpop.f32.mrb[0].mxu0
      %5334 = vmatprep.mubr.f32.mxu0 0.0
      %5335 = vmatmul.mubr.f32.gmra.mrb[0].mxu0 %v5174
      %v5336 = vpop.f32.mrb[0].mxu0
      %v5337 = vadd.f32 0.0, %v5336
      %v5338 = vpop.f32.mrb[0].mxu0
      %5339 = vmatprep.mubr.f32.mxu0 0.0
      %5340 = vmatmul.mubr.f32.gmra.mrb[0].mxu0 %v5176
      %v5341 = vpop.f32.mrb[0].mxu0
      %v5342 = vadd.f32 0.0, %v5341
      %v5343 = vpop.f32.mrb[0].mxu0
      %5344 = vmatprep.mubr.f32.mxu0 0.0
      %5345 = vmatmul.mubr.f32.gmra.mrb[0].mxu0 %v5178
      %v5346 = vpop.f32.mrb[0].mxu0
      %v5347 = vadd.f32 0.0, %v5346
      %v5348 = vpop.f32.mrb[0].mxu0
      %5349 = vmatprep.mubr.f32.mxu0 0.0
      %5350 = vmatmul.mubr.f32.gmra.mrb[0].mxu0 %v5180
      %v5351 = vpop.f32.mrb[0].mxu0
      %v5352 = vadd.f32 0.0, %v5351
      %v5353 = vpop.f32.mrb[0].mxu0
      %5354 = vmatprep.mubr.f32.mxu0 0.0
      %5355 = vmatmul.mubr.f32.gmra.mrb[0].mxu0 %v5182
      %v5356 = vpop.f32.mrb[0].mxu0
      %v5357 = vadd.f32 0.0, %v5356
      %v5358 = vpop.f32.mrb[0].mxu0
      %5359 = vmatprep.mubr.f32.mxu0 0.0
      %5360 = vmatmul.mubr.f32.gmra.mrb[0].mxu0 %v5184
      %v5361 = vpop.f32.mrb[0].mxu0
      %v5362 = vadd.f32 0.0, %v5361
      %v5363 = vpop.f32.mrb[0].mxu0
      %5364 = vmatprep.mubr.f32.mxu0 0.0
      %5365 = vmatmul.mubr.f32.gmra.mrb[0].mxu0 %v5186
      %v5366 = vpop.f32.mrb[0].mxu0
      %v5367 = vadd.f32 0.0, %v5366
      %v5368 = vpop.f32.mrb[0].mxu0
      %5369 = vmatprep.mubr.f32.mxu0 0.0
      %5370 = vmatmul.mubr.f32.gmra.mrb[0].mxu0 %v5188
      %v5371 = vpop.f32.mrb[0].mxu0
      %v5372 = vadd.f32 0.0, %v5371
      %v5373 = vpop.f32.mrb[0].mxu0
      %5374 = vmatprep.mubr.f32.mxu0 0.0
      %5375 = vmatmul.mubr.f32.gmra.mrb[0].mxu0 %v5190
      %v5376 = vpop.f32.mrb[0].mxu0
      %v5377 = vadd.f32 0.0, %v5376
      %v5378 = vpop.f32.mrb[0].mxu0
      %5379 = vmatprep.mubr.f32.mxu0 0.0
      %5380 = vmatmul.mubr.f32.gmra.mrb[0].mxu0 %v5192
      %v5381 = vpop.f32.mrb[0].mxu0
      %v5382 = vadd.f32 0.0, %v5381
      %v5383 = vpop.f32.mrb[0].mxu0
      %5384 = vmatprep.mubr.f32.mxu0 0.0
      %5385 = vmatmul.mubr.f32.gmra.mrb[0].mxu0 %v5194
      %v5386 = vpop.f32.mrb[0].mxu0
      %v5387 = vadd.f32 0.0, %v5386
      %v5388 = vpop.f32.mrb[0].mxu0
      %5389 = vmatprep.mubr.f32.mxu0 0.0
      %5390 = vmatmul.mubr.f32.gmra.mrb[0].mxu0 %v5196
      %v5391 = vpop.f32.mrb[0].mxu0
      %v5392 = vadd.f32 0.0, %v5391
      %v5393 = vpop.f32.mrb[0].mxu0
      %5394 = vmatprep.mubr.f32.mxu0 0.0
      %5395 = vmatmul.mubr.f32.gmra.mrb[0].mxu0 %v5198
      %v5396 = vpop.f32.mrb[0].mxu0
      %v5397 = vadd.f32 0.0, %v5396
      %v5398 = vpop.f32.mrb[0].mxu0
      %5399 = vmatprep.mubr.f32.mxu0 0.0
      %5400 = vmatmul.mubr.f32.gmra.mrb[0].mxu0 %v5200
      %v5401 = vpop.f32.mrb[0].mxu0
      %v5402 = vadd.f32 0.0, %v5401
      %v5403 = vpop.f32.mrb[0].mxu0
      %5404 = vmatprep.mubr.f32.mxu0 0.0
      %5405 = vmatmul.mubr.f32.gmra.mrb[0].mxu0 %v5202
      %v5406 = vpop.f32.mrb[0].mxu0
      %v5407 = vadd.f32 0.0, %v5406
      %v5408 = vpop.f32.mrb[0].mxu0
      %5409 = vmatprep.mubr.f32.mxu0 0.0
      %5410 = vmatmul.mubr.f32.gmra.mrb[0].mxu0 %v5204
      %v5411 = vpop.f32.mrb[0].mxu0
      %v5412 = vadd.f32 0.0, %v5411
      %v5413 = vpop.f32.mrb[0].mxu0
      %5414 = vmatprep.mubr.f32.mxu0 0.0
      %5415 = vmatmul.mubr.f32.gmra.mrb[0].mxu0 %v5206
      %v5416 = vpop.f32.mrb[0].mxu0
      %v5417 = vadd.f32 0.0, %v5416
      %v5418 = vpop.f32.mrb[0].mxu0
      %5419 = vmatprep.mubr.f32.mxu0 0.0
      %5420 = vmatmul.mubr.f32.gmra.mrb[0].mxu0 %v5208
      %v5421 = vpop.f32.mrb[0].mxu0
      %v5422 = vadd.f32 0.0, %v5421
      %v5423 = vpop.f32.mrb[0].mxu0
      %5424 = vmatprep.mubr.f32.mxu0 0.0
      %5425 = vmatmul.mubr.f32.gmra.mrb[0].mxu0 %v5210
      %v5426 = vpop.f32.mrb[0].mxu0
      %v5427 = vadd.f32 0.0, %v5426
      %v5428 = vpop.f32.mrb[0].mxu0
      %5429 = vmatprep.mubr.f32.mxu0 0.0
      %5430 = vmatmul.mubr.f32.gmra.mrb[0].mxu0 %v5212
      %v5431 = vpop.f32.mrb[0].mxu0
      %v5432 = vadd.f32 0.0, %v5431
      %v5433 = vpop.f32.mrb[0].mxu0
      %5434 = vmatprep.mubr.f32.mxu0 0.0
      %5435 = vmatmul.mubr.f32.gmra.mrb[0].mxu0 %v5214
      %v5436 = vpop.f32.mrb[0].mxu0
      %v5437 = vadd.f32 0.0, %v5436
      %v5438 = vpop.f32.mrb[0].mxu0
      %5439 = vmatprep.mubr.f32.mxu0 0.0
      %5440 = vmatmul.mubr.f32.gmra.mrb[0].mxu0 %v5216
      %v5441 = vpop.f32.mrb[0].mxu0
      %v5442 = vadd.f32 0.0, %v5441
      %v5443 = vpop.f32.mrb[0].mxu0
      %5444 = vmatprep.mubr.f32.mxu0 0.0
      %5445 = vmatmul.mubr.f32.gmra.mrb[0].mxu0 %v5218
      %v5446 = vpop.f32.mrb[0].mxu0
      %v5447 = vadd.f32 0.0, %v5446
      %v5448 = vpop.f32.mrb[0].mxu0
      %5449 = vmatprep.mubr.f32.mxu0 0.0
      %5450 = vmatmul.mubr.f32.gmra.mrb[0].mxu0 %v5220
      %v5451 = vpop.f32.mrb[0].mxu0
      %v5452 = vadd.f32 0.0, %v5451
      %v5453 = vpop.f32.mrb[0].mxu0
      %5454 = vmatprep.mubr.f32.mxu0 0.0
      %5455 = vmatmul.mubr.f32.gmra.mrb[0].mxu0 %v5222
      %v5456 = vpop.f32.mrb[0].mxu0
      %v5457 = vadd.f32 0.0, %v5456
      %v5458 = vpop.f32.mrb[0].mxu0
      %5459 = vmatprep.mubr.f32.mxu0 0.0
      %5460 = vmatmul.mubr.f32.gmra.mrb[0].mxu0 %v5224
      %v5461 = vpop.f32.mrb[0].mxu0
      %v5462 = vadd.f32 0.0, %v5461
      %v5463 = vpop.f32.mrb[0].mxu0
      %5464 = vmatprep.mubr.f32.mxu0 0.0
      %5465 = vmatmul.mubr.f32.gmra.mrb[0].mxu0 %v5226
      %v5466 = vpop.f32.mrb[0].mxu0
      %v5467 = vadd.f32 0.0, %v5466
      %v5468 = vpop.f32.mrb[0].mxu0
      %5469 = vmatprep.mubr.f32.mxu0 0.0
      %5470 = vmatmul.mubr.f32.gmra.mrb[0].mxu0 %v5228
      %v5471 = vpop.f32.mrb[0].mxu0
      %v5472 = vadd.f32 0.0, %v5471
      %v5473 = vpop.f32.mrb[0].mxu0
      %5474 = vdwg.mxu0
      %v5475 = vadd.f32 %v4833, %v5297
      %v5476 = vadd.f32 %v4838, %v5302
      %v5477 = vadd.f32 %v4843, %v5307
      %v5478 = vadd.f32 %v4848, %v5312
      %v5479 = vadd.f32 %v4853, %v5317
      %v5480 = vadd.f32 %v4858, %v5322
      %v5481 = vadd.f32 %v4863, %v5327
      %v5482 = vadd.f32 %v4868, %v5332
      %v5483 = vadd.f32 %v4873, %v5337
      %v5484 = vadd.f32 %v4878, %v5342
      %v5485 = vadd.f32 %v4883, %v5347
      %v5486 = vadd.f32 %v4888, %v5352
      %v5487 = vadd.f32 %v4893, %v5357
      %v5488 = vadd.f32 %v4898, %v5362
      %v5489 = vadd.f32 %v4903, %v5367
      %v5490 = vadd.f32 %v4908, %v5372
      %v5491 = vadd.f32 %v4913, %v5377
      %v5492 = vadd.f32 %v4918, %v5382
      %v5493 = vadd.f32 %v4923, %v5387
      %v5494 = vadd.f32 %v4928, %v5392
      %v5495 = vadd.f32 %v4933, %v5397
      %v5496 = vadd.f32 %v4938, %v5402
      %v5497 = vadd.f32 %v4943, %v5407
      %v5498 = vadd.f32 %v4948, %v5412
      %v5499 = vadd.f32 %v4953, %v5417
      %v5500 = vadd.f32 %v4958, %v5422
      %v5501 = vadd.f32 %v4963, %v5427
      %v5502 = vadd.f32 %v4968, %v5432
      %v5503 = vadd.f32 %v4973, %v5437
      %v5504 = vadd.f32 %v4978, %v5442
      %v5505 = vadd.f32 %v4983, %v5447
      %v5506 = vadd.f32 %v4988, %v5452
      %v5507 = vadd.f32 %v4993, %v5457
      %v5508 = vadd.f32 %v4998, %v5462
      %v5509 = vadd.f32 %v5003, %v5467
      %v5510 = vadd.f32 %v5008, %v5472
      %v5511 = vld [vmem:[%s219 + $0x12] sm:$0xff]
      %v5512 = vld [vmem:[%s219 + $0x1a] sm:$0xff]
      %v5513 = vld [vmem:[%s219 + $0x22] sm:$0xff]
      %v5514 = vld [vmem:[%s219 + $0x2a] sm:$0xff]
      %v5515 = vld [vmem:[%s219 + $0x32] sm:$0xff]
      %v5516 = vld [vmem:[%s219 + $0x3a] sm:$0xff]
      %v5517 = vld [vmem:[%s219 + $0x42] sm:$0xff]
      %v5518 = vld [vmem:[%s219 + $0x4a] sm:$0xff]
      %v5519 = vld [vmem:[%s219 + $0x52] sm:$0xff]
      %v5520 = vld [vmem:[%s219 + $0x5a] sm:$0xff]
      %v5521 = vld [vmem:[%s219 + $0x62] sm:$0xff]
      %v5522 = vld [vmem:[%s219 + $0x6a] sm:$0xff]
      %v5523 = vld [vmem:[%s219 + $0x72] sm:$0xff]
      %v5524 = vld [vmem:[%s219 + $0x7a] sm:$0xff]
      %v5525 = vld [vmem:[%s219 + $0x82] sm:$0xff]
      %v5526 = vld [vmem:[%s219 + $0x8a] sm:$0xff]
      %v5527 = vld [vmem:[%s219 + $0x92] sm:$0xff]
      %v5528 = vld [vmem:[%s219 + $0x9a] sm:$0xff]
      %v5529 = vld [vmem:[%s219 + $0xa2] sm:$0xff]
      %v5530 = vld [vmem:[%s219 + $0xaa] sm:$0xff]
      %v5531 = vld [vmem:[%s219 + $0xb2] sm:$0xff]
      %v5532 = vld [vmem:[%s219 + $0xba] sm:$0xff]
      %v5533 = vld [vmem:[%s219 + $0xc2] sm:$0xff]
      %v5534 = vld [vmem:[%s219 + $0xca] sm:$0xff]
      %v5535 = vld [vmem:[%s219 + $0xd2] sm:$0xff]
      %v5536 = vld [vmem:[%s219 + $0xda] sm:$0xff]
      %v5537 = vld [vmem:[%s219 + $0xe2] sm:$0xff]
      %v5538 = vld [vmem:[%s219 + $0xea] sm:$0xff]
      %v5539 = vld [vmem:[%s219 + $0xf2] sm:$0xff]
      %v5540 = vld [vmem:[%s219 + $0xfa] sm:$0xff]
      %v5541 = vld [vmem:[%s219 + $0x102] sm:$0xff]
      %v5542 = vld [vmem:[%s219 + $0x10a] sm:$0xff]
      %v5543 = vld [vmem:[%s219 + $0x112] sm:$0xff]
      %v5544 = vld [vmem:[%s219 + $0x11a] sm:$0xff]
      %v5545 = vld [vmem:[%s219 + $0x122] sm:$0xff]
      %v5546 = vld [vmem:[%s219 + $0x12a] sm:$0xff]
      %s5547 = scalar_lea.vmem %s3, 48
      %v5548 = vld [vmem:[%s5547] sm:$0xff]
      %v5549 = vld [vmem:[%s5547 + $0x8] sm:$0xff]
      %5586 = vrot.lane.b32.xlu0 %v5511, 112
      %v5587 = vpop.permute.xlu0 %5586
      %5588 = vrot.lane.b32.xlu0 %v5512, 112
      %v5589 = vpop.permute.xlu0 %5588
      %5590 = vrot.lane.b32.xlu0 %v5513, 112
      %v5591 = vpop.permute.xlu0 %5590
      %5592 = vrot.lane.b32.xlu0 %v5514, 112
      %v5593 = vpop.permute.xlu0 %5592
      %5594 = vrot.lane.b32.xlu0 %v5515, 112
      %v5595 = vpop.permute.xlu0 %5594
      %5596 = vrot.lane.b32.xlu0 %v5516, 112
      %v5597 = vpop.permute.xlu0 %5596
      %5598 = vrot.lane.b32.xlu0 %v5517, 112
      %v5599 = vpop.permute.xlu0 %5598
      %5600 = vrot.lane.b32.xlu0 %v5518, 112
      %v5601 = vpop.permute.xlu0 %5600
      %5602 = vrot.lane.b32.xlu0 %v5519, 112
      %v5603 = vpop.permute.xlu0 %5602
      %5604 = vrot.lane.b32.xlu0 %v5520, 112
      %v5605 = vpop.permute.xlu0 %5604
      %5606 = vrot.lane.b32.xlu0 %v5521, 112
      %v5607 = vpop.permute.xlu0 %5606
      %5608 = vrot.lane.b32.xlu0 %v5522, 112
      %v5609 = vpop.permute.xlu0 %5608
      %5610 = vrot.lane.b32.xlu0 %v5523, 112
      %v5611 = vpop.permute.xlu0 %5610
      %5612 = vrot.lane.b32.xlu0 %v5524, 112
      %v5613 = vpop.permute.xlu0 %5612
      %5614 = vrot.lane.b32.xlu0 %v5525, 112
      %v5615 = vpop.permute.xlu0 %5614
      %5616 = vrot.lane.b32.xlu0 %v5526, 112
      %v5617 = vpop.permute.xlu0 %5616
      %5618 = vrot.lane.b32.xlu0 %v5527, 112
      %v5619 = vpop.permute.xlu0 %5618
      %5620 = vrot.lane.b32.xlu0 %v5528, 112
      %v5621 = vpop.permute.xlu0 %5620
      %5622 = vrot.lane.b32.xlu0 %v5529, 112
      %v5623 = vpop.permute.xlu0 %5622
      %5624 = vrot.lane.b32.xlu0 %v5530, 112
      %v5625 = vpop.permute.xlu0 %5624
      %5626 = vrot.lane.b32.xlu0 %v5531, 112
      %v5627 = vpop.permute.xlu0 %5626
      %5628 = vrot.lane.b32.xlu0 %v5532, 112
      %v5629 = vpop.permute.xlu0 %5628
      %5630 = vrot.lane.b32.xlu0 %v5533, 112
      %v5631 = vpop.permute.xlu0 %5630
      %5632 = vrot.lane.b32.xlu0 %v5534, 112
      %v5633 = vpop.permute.xlu0 %5632
      %5634 = vrot.lane.b32.xlu0 %v5535, 112
      %v5635 = vpop.permute.xlu0 %5634
      %5636 = vrot.lane.b32.xlu0 %v5536, 112
      %v5637 = vpop.permute.xlu0 %5636
      %5638 = vrot.lane.b32.xlu0 %v5537, 112
      %v5639 = vpop.permute.xlu0 %5638
      %5640 = vrot.lane.b32.xlu0 %v5538, 112
      %v5641 = vpop.permute.xlu0 %5640
      %5642 = vrot.lane.b32.xlu0 %v5539, 112
      %v5643 = vpop.permute.xlu0 %5642
      %5644 = vrot.lane.b32.xlu0 %v5540, 112
      %v5645 = vpop.permute.xlu0 %5644
      %5646 = vrot.lane.b32.xlu0 %v5541, 112
      %v5647 = vpop.permute.xlu0 %5646
      %5648 = vrot.lane.b32.xlu0 %v5542, 112
      %v5649 = vpop.permute.xlu0 %5648
      %5650 = vrot.lane.b32.xlu0 %v5543, 112
      %v5651 = vpop.permute.xlu0 %5650
      %5652 = vrot.lane.b32.xlu0 %v5544, 112
      %v5653 = vpop.permute.xlu0 %5652
      %5654 = vrot.lane.b32.xlu0 %v5545, 112
      %v5655 = vpop.permute.xlu0 %5654
      %5656 = vrot.lane.b32.xlu0 %v5546, 112
      %v5657 = vpop.permute.xlu0 %5656
      %v5658 = vsel %vm302, %v5587, 0
      %v5660 = vsel %vm302, %v5589, 0
      %v5662 = vsel %vm302, %v5591, 0
      %v5664 = vsel %vm302, %v5593, 0
      %v5666 = vsel %vm302, %v5595, 0
      %v5668 = vsel %vm302, %v5597, 0
      %v5670 = vsel %vm302, %v5599, 0
      %v5672 = vsel %vm302, %v5601, 0
      %v5674 = vsel %vm302, %v5603, 0
      %v5676 = vsel %vm302, %v5605, 0
      %v5678 = vsel %vm302, %v5607, 0
      %v5680 = vsel %vm302, %v5609, 0
      %v5682 = vsel %vm302, %v5611, 0
      %v5684 = vsel %vm302, %v5613, 0
      %v5686 = vsel %vm302, %v5615, 0
      %v5688 = vsel %vm302, %v5617, 0
      %v5690 = vsel %vm302, %v5619, 0
      %v5692 = vsel %vm302, %v5621, 0
      %v5694 = vsel %vm302, %v5623, 0
      %v5696 = vsel %vm302, %v5625, 0
      %v5698 = vsel %vm302, %v5627, 0
      %v5700 = vsel %vm302, %v5629, 0
      %v5702 = vsel %vm302, %v5631, 0
      %v5704 = vsel %vm302, %v5633, 0
      %v5706 = vsel %vm302, %v5635, 0
      %v5708 = vsel %vm302, %v5637, 0
      %v5710 = vsel %vm302, %v5639, 0
      %v5712 = vsel %vm302, %v5641, 0
      %v5714 = vsel %vm302, %v5643, 0
      %v5716 = vsel %vm302, %v5645, 0
      %v5718 = vsel %vm302, %v5647, 0
      %v5720 = vsel %vm302, %v5649, 0
      %v5722 = vsel %vm302, %v5651, 0
      %v5724 = vsel %vm302, %v5653, 0
      %v5726 = vsel %vm302, %v5655, 0
      %v5728 = vsel %vm302, %v5657, 0
      %5730 = vmatprep.subr.mxu0 0.0
      %5731 = vmatpush1.msra.mxu0 %v5548
      %5732 = vmatprep.subr.mxu0 0.0
      %5733 = vmatpush1.msra.mxu0 %v5549
      %5734 = vmatprep.subr.mxu0 0.0
      %5735 = vmatpush1.msra.mxu0 0.0
      %5736 = vmatprep.subr.mxu0 0.0
      %5737 = vmatpush1.msra.mxu0 0.0
      %5738 = vmatprep.subr.mxu0 0.0
      %5739 = vmatpush1.msra.mxu0 0.0
      %5740 = vmatprep.subr.mxu0 0.0
      %5741 = vmatpush1.msra.mxu0 0.0
      %5742 = vmatprep.subr.mxu0 0.0
      %5743 = vmatpush1.msra.mxu0 0.0
      %5744 = vmatprep.subr.mxu0 0.0
      %5745 = vmatpush1.msra.mxu0 0.0
      %5746 = vmatprep.subr.mxu0 0.0
      %5747 = vmatpush1.msra.mxu0 0.0
      %5748 = vmatprep.subr.mxu0 0.0
      %5749 = vmatpush1.msra.mxu0 0.0
      %5750 = vmatprep.subr.mxu0 0.0
      %5751 = vmatpush1.msra.mxu0 0.0
      %5752 = vmatprep.subr.mxu0 0.0
      %5753 = vmatpush1.msra.mxu0 0.0
      %5754 = vmatprep.subr.mxu0 0.0
      %5755 = vmatpush1.msra.mxu0 0.0
      %5756 = vmatprep.subr.mxu0 0.0
      %5757 = vmatpush1.msra.mxu0 0.0
      %5758 = vmatprep.subr.mxu0 0.0
      %5759 = vmatpush1.msra.mxu0 0.0
      %5760 = vmatprep.subr.mxu0 0.0
      %5761 = vmatpush1.msra.mxu0 0.0
      %5762 = vmatprep.subr.mxu0 0.0
      %5763 = vmatpush1.msra.mxu0 0.0
      %5764 = vmatprep.subr.mxu0 0.0
      %5765 = vmatpush1.msra.mxu0 0.0
      %5766 = vmatprep.subr.mxu0 0.0
      %5767 = vmatpush1.msra.mxu0 0.0
      %5768 = vmatprep.subr.mxu0 0.0
      %5769 = vmatpush1.msra.mxu0 0.0
      %5770 = vmatprep.subr.mxu0 0.0
      %5771 = vmatpush1.msra.mxu0 0.0
      %5772 = vmatprep.subr.mxu0 0.0
      %5773 = vmatpush1.msra.mxu0 0.0
      %5774 = vmatprep.subr.mxu0 0.0
      %5775 = vmatpush1.msra.mxu0 0.0
      %5776 = vmatprep.subr.mxu0 0.0
      %5777 = vmatpush1.msra.mxu0 0.0
      %5778 = vmatprep.subr.mxu0 0.0
      %5779 = vmatpush1.msra.mxu0 0.0
      %5780 = vmatprep.subr.mxu0 0.0
      %5781 = vmatpush1.msra.mxu0 0.0
      %5782 = vmatprep.subr.mxu0 0.0
      %5783 = vmatpush1.msra.mxu0 0.0
      %5784 = vmatprep.subr.mxu0 0.0
      %5785 = vmatpush1.msra.mxu0 0.0
      %5786 = vmatprep.subr.mxu0 0.0
      %5787 = vmatpush1.msra.mxu0 0.0
      %5788 = vmatprep.subr.mxu0 0.0
      %5789 = vmatpush1.msra.mxu0 0.0
      %5790 = vmatprep.subr.mxu0 0.0
      %5791 = vmatpush1.msra.mxu0 0.0
      %5792 = vmatprep.subr.mxu0 0.0
      %5793 = vmatpush1.msra.mxu0 0.0
      %5794 = vmatprep.mubr.f32.mxu0 0.0
      %5795 = vmatmul.mubr.f32.gmra.mrb[0].mxu0 %v5658
      %v5796 = vpop.f32.mrb[0].mxu0
      %v5797 = vadd.f32 0.0, %v5796
      %v5798 = vpop.f32.mrb[0].mxu0
      %5799 = vmatprep.mubr.f32.mxu0 0.0
      %5800 = vmatmul.mubr.f32.gmra.mrb[0].mxu0 %v5660
      %v5801 = vpop.f32.mrb[0].mxu0
      %v5802 = vadd.f32 0.0, %v5801
      %v5803 = vpop.f32.mrb[0].mxu0
      %5804 = vmatprep.mubr.f32.mxu0 0.0
      %5805 = vmatmul.mubr.f32.gmra.mrb[0].mxu0 %v5662
      %v5806 = vpop.f32.mrb[0].mxu0
      %v5807 = vadd.f32 0.0, %v5806
      %v5808 = vpop.f32.mrb[0].mxu0
      %5809 = vmatprep.mubr.f32.mxu0 0.0
      %5810 = vmatmul.mubr.f32.gmra.mrb[0].mxu0 %v5664
      %v5811 = vpop.f32.mrb[0].mxu0
      %v5812 = vadd.f32 0.0, %v5811
      %v5813 = vpop.f32.mrb[0].mxu0
      %5814 = vmatprep.mubr.f32.mxu0 0.0
      %5815 = vmatmul.mubr.f32.gmra.mrb[0].mxu0 %v5666
      %v5816 = vpop.f32.mrb[0].mxu0
      %v5817 = vadd.f32 0.0, %v5816
      %v5818 = vpop.f32.mrb[0].mxu0
      %5819 = vmatprep.mubr.f32.mxu0 0.0
      %5820 = vmatmul.mubr.f32.gmra.mrb[0].mxu0 %v5668
      %v5821 = vpop.f32.mrb[0].mxu0
      %v5822 = vadd.f32 0.0, %v5821
      %v5823 = vpop.f32.mrb[0].mxu0
      %5824 = vmatprep.mubr.f32.mxu0 0.0
      %5825 = vmatmul.mubr.f32.gmra.mrb[0].mxu0 %v5670
      %v5826 = vpop.f32.mrb[0].mxu0
      %v5827 = vadd.f32 0.0, %v5826
      %v5828 = vpop.f32.mrb[0].mxu0
      %5829 = vmatprep.mubr.f32.mxu0 0.0
      %5830 = vmatmul.mubr.f32.gmra.mrb[0].mxu0 %v5672
      %v5831 = vpop.f32.mrb[0].mxu0
      %v5832 = vadd.f32 0.0, %v5831
      %v5833 = vpop.f32.mrb[0].mxu0
      %5834 = vmatprep.mubr.f32.mxu0 0.0
      %5835 = vmatmul.mubr.f32.gmra.mrb[0].mxu0 %v5674
      %v5836 = vpop.f32.mrb[0].mxu0
      %v5837 = vadd.f32 0.0, %v5836
      %v5838 = vpop.f32.mrb[0].mxu0
      %5839 = vmatprep.mubr.f32.mxu0 0.0
      %5840 = vmatmul.mubr.f32.gmra.mrb[0].mxu0 %v5676
      %v5841 = vpop.f32.mrb[0].mxu0
      %v5842 = vadd.f32 0.0, %v5841
      %v5843 = vpop.f32.mrb[0].mxu0
      %5844 = vmatprep.mubr.f32.mxu0 0.0
      %5845 = vmatmul.mubr.f32.gmra.mrb[0].mxu0 %v5678
      %v5846 = vpop.f32.mrb[0].mxu0
      %v5847 = vadd.f32 0.0, %v5846
      %v5848 = vpop.f32.mrb[0].mxu0
      %5849 = vmatprep.mubr.f32.mxu0 0.0
      %5850 = vmatmul.mubr.f32.gmra.mrb[0].mxu0 %v5680
      %v5851 = vpop.f32.mrb[0].mxu0
      %v5852 = vadd.f32 0.0, %v5851
      %v5853 = vpop.f32.mrb[0].mxu0
      %5854 = vmatprep.mubr.f32.mxu0 0.0
      %5855 = vmatmul.mubr.f32.gmra.mrb[0].mxu0 %v5682
      %v5856 = vpop.f32.mrb[0].mxu0
      %v5857 = vadd.f32 0.0, %v5856
      %v5858 = vpop.f32.mrb[0].mxu0
      %5859 = vmatprep.mubr.f32.mxu0 0.0
      %5860 = vmatmul.mubr.f32.gmra.mrb[0].mxu0 %v5684
      %v5861 = vpop.f32.mrb[0].mxu0
      %v5862 = vadd.f32 0.0, %v5861
      %v5863 = vpop.f32.mrb[0].mxu0
      %5864 = vmatprep.mubr.f32.mxu0 0.0
      %5865 = vmatmul.mubr.f32.gmra.mrb[0].mxu0 %v5686
      %v5866 = vpop.f32.mrb[0].mxu0
      %v5867 = vadd.f32 0.0, %v5866
      %v5868 = vpop.f32.mrb[0].mxu0
      %5869 = vmatprep.mubr.f32.mxu0 0.0
      %5870 = vmatmul.mubr.f32.gmra.mrb[0].mxu0 %v5688
      %v5871 = vpop.f32.mrb[0].mxu0
      %v5872 = vadd.f32 0.0, %v5871
      %v5873 = vpop.f32.mrb[0].mxu0
      %5874 = vmatprep.mubr.f32.mxu0 0.0
      %5875 = vmatmul.mubr.f32.gmra.mrb[0].mxu0 %v5690
      %v5876 = vpop.f32.mrb[0].mxu0
      %v5877 = vadd.f32 0.0, %v5876
      %v5878 = vpop.f32.mrb[0].mxu0
      %5879 = vmatprep.mubr.f32.mxu0 0.0
      %5880 = vmatmul.mubr.f32.gmra.mrb[0].mxu0 %v5692
      %v5881 = vpop.f32.mrb[0].mxu0
      %v5882 = vadd.f32 0.0, %v5881
      %v5883 = vpop.f32.mrb[0].mxu0
      %5884 = vmatprep.mubr.f32.mxu0 0.0
      %5885 = vmatmul.mubr.f32.gmra.mrb[0].mxu0 %v5694
      %v5886 = vpop.f32.mrb[0].mxu0
      %v5887 = vadd.f32 0.0, %v5886
      %v5888 = vpop.f32.mrb[0].mxu0
      %5889 = vmatprep.mubr.f32.mxu0 0.0
      %5890 = vmatmul.mubr.f32.gmra.mrb[0].mxu0 %v5696
      %v5891 = vpop.f32.mrb[0].mxu0
      %v5892 = vadd.f32 0.0, %v5891
      %v5893 = vpop.f32.mrb[0].mxu0
      %5894 = vmatprep.mubr.f32.mxu0 0.0
      %5895 = vmatmul.mubr.f32.gmra.mrb[0].mxu0 %v5698
      %v5896 = vpop.f32.mrb[0].mxu0
      %v5897 = vadd.f32 0.0, %v5896
      %v5898 = vpop.f32.mrb[0].mxu0
      %5899 = vmatprep.mubr.f32.mxu0 0.0
      %5900 = vmatmul.mubr.f32.gmra.mrb[0].mxu0 %v5700
      %v5901 = vpop.f32.mrb[0].mxu0
      %v5902 = vadd.f32 0.0, %v5901
      %v5903 = vpop.f32.mrb[0].mxu0
      %5904 = vmatprep.mubr.f32.mxu0 0.0
      %5905 = vmatmul.mubr.f32.gmra.mrb[0].mxu0 %v5702
      %v5906 = vpop.f32.mrb[0].mxu0
      %v5907 = vadd.f32 0.0, %v5906
      %v5908 = vpop.f32.mrb[0].mxu0
      %5909 = vmatprep.mubr.f32.mxu0 0.0
      %5910 = vmatmul.mubr.f32.gmra.mrb[0].mxu0 %v5704
      %v5911 = vpop.f32.mrb[0].mxu0
      %v5912 = vadd.f32 0.0, %v5911
      %v5913 = vpop.f32.mrb[0].mxu0
      %5914 = vmatprep.mubr.f32.mxu0 0.0
      %5915 = vmatmul.mubr.f32.gmra.mrb[0].mxu0 %v5706
      %v5916 = vpop.f32.mrb[0].mxu0
      %v5917 = vadd.f32 0.0, %v5916
      %v5918 = vpop.f32.mrb[0].mxu0
      %5919 = vmatprep.mubr.f32.mxu0 0.0
      %5920 = vmatmul.mubr.f32.gmra.mrb[0].mxu0 %v5708
      %v5921 = vpop.f32.mrb[0].mxu0
      %v5922 = vadd.f32 0.0, %v5921
      %v5923 = vpop.f32.mrb[0].mxu0
      %5924 = vmatprep.mubr.f32.mxu0 0.0
      %5925 = vmatmul.mubr.f32.gmra.mrb[0].mxu0 %v5710
      %v5926 = vpop.f32.mrb[0].mxu0
      %v5927 = vadd.f32 0.0, %v5926
      %v5928 = vpop.f32.mrb[0].mxu0
      %5929 = vmatprep.mubr.f32.mxu0 0.0
      %5930 = vmatmul.mubr.f32.gmra.mrb[0].mxu0 %v5712
      %v5931 = vpop.f32.mrb[0].mxu0
      %v5932 = vadd.f32 0.0, %v5931
      %v5933 = vpop.f32.mrb[0].mxu0
      %5934 = vmatprep.mubr.f32.mxu0 0.0
      %5935 = vmatmul.mubr.f32.gmra.mrb[0].mxu0 %v5714
      %v5936 = vpop.f32.mrb[0].mxu0
      %v5937 = vadd.f32 0.0, %v5936
      %v5938 = vpop.f32.mrb[0].mxu0
      %5939 = vmatprep.mubr.f32.mxu0 0.0
      %5940 = vmatmul.mubr.f32.gmra.mrb[0].mxu0 %v5716
      %v5941 = vpop.f32.mrb[0].mxu0
      %v5942 = vadd.f32 0.0, %v5941
      %v5943 = vpop.f32.mrb[0].mxu0
      %5944 = vmatprep.mubr.f32.mxu0 0.0
      %5945 = vmatmul.mubr.f32.gmra.mrb[0].mxu0 %v5718
      %v5946 = vpop.f32.mrb[0].mxu0
      %v5947 = vadd.f32 0.0, %v5946
      %v5948 = vpop.f32.mrb[0].mxu0
      %5949 = vmatprep.mubr.f32.mxu0 0.0
      %5950 = vmatmul.mubr.f32.gmra.mrb[0].mxu0 %v5720
      %v5951 = vpop.f32.mrb[0].mxu0
      %v5952 = vadd.f32 0.0, %v5951
      %v5953 = vpop.f32.mrb[0].mxu0
      %5954 = vmatprep.mubr.f32.mxu0 0.0
      %5955 = vmatmul.mubr.f32.gmra.mrb[0].mxu0 %v5722
      %v5956 = vpop.f32.mrb[0].mxu0
      %v5957 = vadd.f32 0.0, %v5956
      %v5958 = vpop.f32.mrb[0].mxu0
      %5959 = vmatprep.mubr.f32.mxu0 0.0
      %5960 = vmatmul.mubr.f32.gmra.mrb[0].mxu0 %v5724
      %v5961 = vpop.f32.mrb[0].mxu0
      %v5962 = vadd.f32 0.0, %v5961
      %v5963 = vpop.f32.mrb[0].mxu0
      %5964 = vmatprep.mubr.f32.mxu0 0.0
      %5965 = vmatmul.mubr.f32.gmra.mrb[0].mxu0 %v5726
      %v5966 = vpop.f32.mrb[0].mxu0
      %v5967 = vadd.f32 0.0, %v5966
      %v5968 = vpop.f32.mrb[0].mxu0
      %5969 = vmatprep.mubr.f32.mxu0 0.0
      %5970 = vmatmul.mubr.f32.gmra.mrb[0].mxu0 %v5728
      %v5971 = vpop.f32.mrb[0].mxu0
      %v5972 = vadd.f32 0.0, %v5971
      %v5973 = vpop.f32.mrb[0].mxu0
      %5974 = vdwg.mxu0
      %v5975 = vadd.f32 %v5475, %v5797
      %v5976 = vadd.f32 %v5476, %v5802
      %v5977 = vadd.f32 %v5477, %v5807
      %v5978 = vadd.f32 %v5478, %v5812
      %v5979 = vadd.f32 %v5479, %v5817
      %v5980 = vadd.f32 %v5480, %v5822
      %v5981 = vadd.f32 %v5481, %v5827
      %v5982 = vadd.f32 %v5482, %v5832
      %v5983 = vadd.f32 %v5483, %v5837
      %v5984 = vadd.f32 %v5484, %v5842
      %v5985 = vadd.f32 %v5485, %v5847
      %v5986 = vadd.f32 %v5486, %v5852
      %v5987 = vadd.f32 %v5487, %v5857
      %v5988 = vadd.f32 %v5488, %v5862
      %v5989 = vadd.f32 %v5489, %v5867
      %v5990 = vadd.f32 %v5490, %v5872
      %v5991 = vadd.f32 %v5491, %v5877
      %v5992 = vadd.f32 %v5492, %v5882
      %v5993 = vadd.f32 %v5493, %v5887
      %v5994 = vadd.f32 %v5494, %v5892
      %v5995 = vadd.f32 %v5495, %v5897
      %v5996 = vadd.f32 %v5496, %v5902
      %v5997 = vadd.f32 %v5497, %v5907
      %v5998 = vadd.f32 %v5498, %v5912
      %v5999 = vadd.f32 %v5499, %v5917
      %v6000 = vadd.f32 %v5500, %v5922
      %v6001 = vadd.f32 %v5501, %v5927
      %v6002 = vadd.f32 %v5502, %v5932
      %v6003 = vadd.f32 %v5503, %v5937
      %v6004 = vadd.f32 %v5504, %v5942
      %v6005 = vadd.f32 %v5505, %v5947
      %v6006 = vadd.f32 %v5506, %v5952
      %v6007 = vadd.f32 %v5507, %v5957
      %v6008 = vadd.f32 %v5508, %v5962
      %v6009 = vadd.f32 %v5509, %v5967
      %v6010 = vadd.f32 %v5510, %v5972
      %v6011 = vld [vmem:[%s219 + $0x13] sm:$0xff]
      %v6012 = vld [vmem:[%s219 + $0x1b] sm:$0xff]
      %v6013 = vld [vmem:[%s219 + $0x23] sm:$0xff]
      %v6014 = vld [vmem:[%s219 + $0x2b] sm:$0xff]
      %v6015 = vld [vmem:[%s219 + $0x33] sm:$0xff]
      %v6016 = vld [vmem:[%s219 + $0x3b] sm:$0xff]
      %v6017 = vld [vmem:[%s219 + $0x43] sm:$0xff]
      %v6018 = vld [vmem:[%s219 + $0x4b] sm:$0xff]
      %v6019 = vld [vmem:[%s219 + $0x53] sm:$0xff]
      %v6020 = vld [vmem:[%s219 + $0x5b] sm:$0xff]
      %v6021 = vld [vmem:[%s219 + $0x63] sm:$0xff]
      %v6022 = vld [vmem:[%s219 + $0x6b] sm:$0xff]
      %v6023 = vld [vmem:[%s219 + $0x73] sm:$0xff]
      %v6024 = vld [vmem:[%s219 + $0x7b] sm:$0xff]
      %v6025 = vld [vmem:[%s219 + $0x83] sm:$0xff]
      %v6026 = vld [vmem:[%s219 + $0x8b] sm:$0xff]
      %v6027 = vld [vmem:[%s219 + $0x93] sm:$0xff]
      %v6028 = vld [vmem:[%s219 + $0x9b] sm:$0xff]
      %v6029 = vld [vmem:[%s219 + $0xa3] sm:$0xff]
      %v6030 = vld [vmem:[%s219 + $0xab] sm:$0xff]
      %v6031 = vld [vmem:[%s219 + $0xb3] sm:$0xff]
      %v6032 = vld [vmem:[%s219 + $0xbb] sm:$0xff]
      %v6033 = vld [vmem:[%s219 + $0xc3] sm:$0xff]
      %v6034 = vld [vmem:[%s219 + $0xcb] sm:$0xff]
      %v6035 = vld [vmem:[%s219 + $0xd3] sm:$0xff]
      %v6036 = vld [vmem:[%s219 + $0xdb] sm:$0xff]
      %v6037 = vld [vmem:[%s219 + $0xe3] sm:$0xff]
      %v6038 = vld [vmem:[%s219 + $0xeb] sm:$0xff]
      %v6039 = vld [vmem:[%s219 + $0xf3] sm:$0xff]
      %v6040 = vld [vmem:[%s219 + $0xfb] sm:$0xff]
      %v6041 = vld [vmem:[%s219 + $0x103] sm:$0xff]
      %v6042 = vld [vmem:[%s219 + $0x10b] sm:$0xff]
      %v6043 = vld [vmem:[%s219 + $0x113] sm:$0xff]
      %v6044 = vld [vmem:[%s219 + $0x11b] sm:$0xff]
      %v6045 = vld [vmem:[%s219 + $0x123] sm:$0xff]
      %v6046 = vld [vmem:[%s219 + $0x12b] sm:$0xff]
      %s6047 = scalar_lea.vmem %s3, 64
      %v6048 = vld [vmem:[%s6047] sm:$0xff]
      %v6049 = vld [vmem:[%s6047 + $0x8] sm:$0xff]
      %6086 = vrot.lane.b32.xlu0 %v6011, 112
      %v6087 = vpop.permute.xlu0 %6086
      %6088 = vrot.lane.b32.xlu0 %v6012, 112
      %v6089 = vpop.permute.xlu0 %6088
      %6090 = vrot.lane.b32.xlu0 %v6013, 112
      %v6091 = vpop.permute.xlu0 %6090
      %6092 = vrot.lane.b32.xlu0 %v6014, 112
      %v6093 = vpop.permute.xlu0 %6092
      %6094 = vrot.lane.b32.xlu0 %v6015, 112
      %v6095 = vpop.permute.xlu0 %6094
      %6096 = vrot.lane.b32.xlu0 %v6016, 112
      %v6097 = vpop.permute.xlu0 %6096
      %6098 = vrot.lane.b32.xlu0 %v6017, 112
      %v6099 = vpop.permute.xlu0 %6098
      %6100 = vrot.lane.b32.xlu0 %v6018, 112
      %v6101 = vpop.permute.xlu0 %6100
      %6102 = vrot.lane.b32.xlu0 %v6019, 112
      %v6103 = vpop.permute.xlu0 %6102
      %6104 = vrot.lane.b32.xlu0 %v6020, 112
      %v6105 = vpop.permute.xlu0 %6104
      %6106 = vrot.lane.b32.xlu0 %v6021, 112
      %v6107 = vpop.permute.xlu0 %6106
      %6108 = vrot.lane.b32.xlu0 %v6022, 112
      %v6109 = vpop.permute.xlu0 %6108
      %6110 = vrot.lane.b32.xlu0 %v6023, 112
      %v6111 = vpop.permute.xlu0 %6110
      %6112 = vrot.lane.b32.xlu0 %v6024, 112
      %v6113 = vpop.permute.xlu0 %6112
      %6114 = vrot.lane.b32.xlu0 %v6025, 112
      %v6115 = vpop.permute.xlu0 %6114
      %6116 = vrot.lane.b32.xlu0 %v6026, 112
      %v6117 = vpop.permute.xlu0 %6116
      %6118 = vrot.lane.b32.xlu0 %v6027, 112
      %v6119 = vpop.permute.xlu0 %6118
      %6120 = vrot.lane.b32.xlu0 %v6028, 112
      %v6121 = vpop.permute.xlu0 %6120
      %6122 = vrot.lane.b32.xlu0 %v6029, 112
      %v6123 = vpop.permute.xlu0 %6122
      %6124 = vrot.lane.b32.xlu0 %v6030, 112
      %v6125 = vpop.permute.xlu0 %6124
      %6126 = vrot.lane.b32.xlu0 %v6031, 112
      %v6127 = vpop.permute.xlu0 %6126
      %6128 = vrot.lane.b32.xlu0 %v6032, 112
      %v6129 = vpop.permute.xlu0 %6128
      %6130 = vrot.lane.b32.xlu0 %v6033, 112
      %v6131 = vpop.permute.xlu0 %6130
      %6132 = vrot.lane.b32.xlu0 %v6034, 112
      %v6133 = vpop.permute.xlu0 %6132
      %6134 = vrot.lane.b32.xlu0 %v6035, 112
      %v6135 = vpop.permute.xlu0 %6134
      %6136 = vrot.lane.b32.xlu0 %v6036, 112
      %v6137 = vpop.permute.xlu0 %6136
      %6138 = vrot.lane.b32.xlu0 %v6037, 112
      %v6139 = vpop.permute.xlu0 %6138
      %6140 = vrot.lane.b32.xlu0 %v6038, 112
      %v6141 = vpop.permute.xlu0 %6140
      %6142 = vrot.lane.b32.xlu0 %v6039, 112
      %v6143 = vpop.permute.xlu0 %6142
      %6144 = vrot.lane.b32.xlu0 %v6040, 112
      %v6145 = vpop.permute.xlu0 %6144
      %6146 = vrot.lane.b32.xlu0 %v6041, 112
      %v6147 = vpop.permute.xlu0 %6146
      %6148 = vrot.lane.b32.xlu0 %v6042, 112
      %v6149 = vpop.permute.xlu0 %6148
      %6150 = vrot.lane.b32.xlu0 %v6043, 112
      %v6151 = vpop.permute.xlu0 %6150
      %6152 = vrot.lane.b32.xlu0 %v6044, 112
      %v6153 = vpop.permute.xlu0 %6152
      %6154 = vrot.lane.b32.xlu0 %v6045, 112
      %v6155 = vpop.permute.xlu0 %6154
      %6156 = vrot.lane.b32.xlu0 %v6046, 112
      %v6157 = vpop.permute.xlu0 %6156
      %v6158 = vsel %vm302, %v6087, 0
      %v6160 = vsel %vm302, %v6089, 0
      %v6162 = vsel %vm302, %v6091, 0
      %v6164 = vsel %vm302, %v6093, 0
      %v6166 = vsel %vm302, %v6095, 0
      %v6168 = vsel %vm302, %v6097, 0
      %v6170 = vsel %vm302, %v6099, 0
      %v6172 = vsel %vm302, %v6101, 0
      %v6174 = vsel %vm302, %v6103, 0
      %v6176 = vsel %vm302, %v6105, 0
      %v6178 = vsel %vm302, %v6107, 0
      %v6180 = vsel %vm302, %v6109, 0
      %v6182 = vsel %vm302, %v6111, 0
      %v6184 = vsel %vm302, %v6113, 0
      %v6186 = vsel %vm302, %v6115, 0
      %v6188 = vsel %vm302, %v6117, 0
      %v6190 = vsel %vm302, %v6119, 0
      %v6192 = vsel %vm302, %v6121, 0
      %v6194 = vsel %vm302, %v6123, 0
      %v6196 = vsel %vm302, %v6125, 0
      %v6198 = vsel %vm302, %v6127, 0
      %v6200 = vsel %vm302, %v6129, 0
      %v6202 = vsel %vm302, %v6131, 0
      %v6204 = vsel %vm302, %v6133, 0
      %v6206 = vsel %vm302, %v6135, 0
      %v6208 = vsel %vm302, %v6137, 0
      %v6210 = vsel %vm302, %v6139, 0
      %v6212 = vsel %vm302, %v6141, 0
      %v6214 = vsel %vm302, %v6143, 0
      %v6216 = vsel %vm302, %v6145, 0
      %v6218 = vsel %vm302, %v6147, 0
      %v6220 = vsel %vm302, %v6149, 0
      %v6222 = vsel %vm302, %v6151, 0
      %v6224 = vsel %vm302, %v6153, 0
      %v6226 = vsel %vm302, %v6155, 0
      %v6228 = vsel %vm302, %v6157, 0
      %6230 = vmatprep.subr.mxu0 0.0
      %6231 = vmatpush1.msra.mxu0 %v6048
      %6232 = vmatprep.subr.mxu0 0.0
      %6233 = vmatpush1.msra.mxu0 %v6049
      %6234 = vmatprep.subr.mxu0 0.0
      %6235 = vmatpush1.msra.mxu0 0.0
      %6236 = vmatprep.subr.mxu0 0.0
      %6237 = vmatpush1.msra.mxu0 0.0
      %6238 = vmatprep.subr.mxu0 0.0
      %6239 = vmatpush1.msra.mxu0 0.0
      %6240 = vmatprep.subr.mxu0 0.0
      %6241 = vmatpush1.msra.mxu0 0.0
      %6242 = vmatprep.subr.mxu0 0.0
      %6243 = vmatpush1.msra.mxu0 0.0
      %6244 = vmatprep.subr.mxu0 0.0
      %6245 = vmatpush1.msra.mxu0 0.0
      %6246 = vmatprep.subr.mxu0 0.0
      %6247 = vmatpush1.msra.mxu0 0.0
      %6248 = vmatprep.subr.mxu0 0.0
      %6249 = vmatpush1.msra.mxu0 0.0
      %6250 = vmatprep.subr.mxu0 0.0
      %6251 = vmatpush1.msra.mxu0 0.0
      %6252 = vmatprep.subr.mxu0 0.0
      %6253 = vmatpush1.msra.mxu0 0.0
      %6254 = vmatprep.subr.mxu0 0.0
      %6255 = vmatpush1.msra.mxu0 0.0
      %6256 = vmatprep.subr.mxu0 0.0
      %6257 = vmatpush1.msra.mxu0 0.0
      %6258 = vmatprep.subr.mxu0 0.0
      %6259 = vmatpush1.msra.mxu0 0.0
      %6260 = vmatprep.subr.mxu0 0.0
      %6261 = vmatpush1.msra.mxu0 0.0
      %6262 = vmatprep.subr.mxu0 0.0
      %6263 = vmatpush1.msra.mxu0 0.0
      %6264 = vmatprep.subr.mxu0 0.0
      %6265 = vmatpush1.msra.mxu0 0.0
      %6266 = vmatprep.subr.mxu0 0.0
      %6267 = vmatpush1.msra.mxu0 0.0
      %6268 = vmatprep.subr.mxu0 0.0
      %6269 = vmatpush1.msra.mxu0 0.0
      %6270 = vmatprep.subr.mxu0 0.0
      %6271 = vmatpush1.msra.mxu0 0.0
      %6272 = vmatprep.subr.mxu0 0.0
      %6273 = vmatpush1.msra.mxu0 0.0
      %6274 = vmatprep.subr.mxu0 0.0
      %6275 = vmatpush1.msra.mxu0 0.0
      %6276 = vmatprep.subr.mxu0 0.0
      %6277 = vmatpush1.msra.mxu0 0.0
      %6278 = vmatprep.subr.mxu0 0.0
      %6279 = vmatpush1.msra.mxu0 0.0
      %6280 = vmatprep.subr.mxu0 0.0
      %6281 = vmatpush1.msra.mxu0 0.0
      %6282 = vmatprep.subr.mxu0 0.0
      %6283 = vmatpush1.msra.mxu0 0.0
      %6284 = vmatprep.subr.mxu0 0.0
      %6285 = vmatpush1.msra.mxu0 0.0
      %6286 = vmatprep.subr.mxu0 0.0
      %6287 = vmatpush1.msra.mxu0 0.0
      %6288 = vmatprep.subr.mxu0 0.0
      %6289 = vmatpush1.msra.mxu0 0.0
      %6290 = vmatprep.subr.mxu0 0.0
      %6291 = vmatpush1.msra.mxu0 0.0
      %6292 = vmatprep.subr.mxu0 0.0
      %6293 = vmatpush1.msra.mxu0 0.0
      %6294 = vmatprep.mubr.f32.mxu0 0.0
      %6295 = vmatmul.mubr.f32.gmra.mrb[0].mxu0 %v6158
      %v6296 = vpop.f32.mrb[0].mxu0
      %v6297 = vadd.f32 0.0, %v6296
      %v6298 = vpop.f32.mrb[0].mxu0
      %6299 = vmatprep.mubr.f32.mxu0 0.0
      %6300 = vmatmul.mubr.f32.gmra.mrb[0].mxu0 %v6160
      %v6301 = vpop.f32.mrb[0].mxu0
      %v6302 = vadd.f32 0.0, %v6301
      %v6303 = vpop.f32.mrb[0].mxu0
      %6304 = vmatprep.mubr.f32.mxu0 0.0
      %6305 = vmatmul.mubr.f32.gmra.mrb[0].mxu0 %v6162
      %v6306 = vpop.f32.mrb[0].mxu0
      %v6307 = vadd.f32 0.0, %v6306
      %v6308 = vpop.f32.mrb[0].mxu0
      %6309 = vmatprep.mubr.f32.mxu0 0.0
      %6310 = vmatmul.mubr.f32.gmra.mrb[0].mxu0 %v6164
      %v6311 = vpop.f32.mrb[0].mxu0
      %v6312 = vadd.f32 0.0, %v6311
      %v6313 = vpop.f32.mrb[0].mxu0
      %6314 = vmatprep.mubr.f32.mxu0 0.0
      %6315 = vmatmul.mubr.f32.gmra.mrb[0].mxu0 %v6166
      %v6316 = vpop.f32.mrb[0].mxu0
      %v6317 = vadd.f32 0.0, %v6316
      %v6318 = vpop.f32.mrb[0].mxu0
      %6319 = vmatprep.mubr.f32.mxu0 0.0
      %6320 = vmatmul.mubr.f32.gmra.mrb[0].mxu0 %v6168
      %v6321 = vpop.f32.mrb[0].mxu0
      %v6322 = vadd.f32 0.0, %v6321
      %v6323 = vpop.f32.mrb[0].mxu0
      %6324 = vmatprep.mubr.f32.mxu0 0.0
      %6325 = vmatmul.mubr.f32.gmra.mrb[0].mxu0 %v6170
      %v6326 = vpop.f32.mrb[0].mxu0
      %v6327 = vadd.f32 0.0, %v6326
      %v6328 = vpop.f32.mrb[0].mxu0
      %6329 = vmatprep.mubr.f32.mxu0 0.0
      %6330 = vmatmul.mubr.f32.gmra.mrb[0].mxu0 %v6172
      %v6331 = vpop.f32.mrb[0].mxu0
      %v6332 = vadd.f32 0.0, %v6331
      %v6333 = vpop.f32.mrb[0].mxu0
      %6334 = vmatprep.mubr.f32.mxu0 0.0
      %6335 = vmatmul.mubr.f32.gmra.mrb[0].mxu0 %v6174
      %v6336 = vpop.f32.mrb[0].mxu0
      %v6337 = vadd.f32 0.0, %v6336
      %v6338 = vpop.f32.mrb[0].mxu0
      %6339 = vmatprep.mubr.f32.mxu0 0.0
      %6340 = vmatmul.mubr.f32.gmra.mrb[0].mxu0 %v6176
      %v6341 = vpop.f32.mrb[0].mxu0
      %v6342 = vadd.f32 0.0, %v6341
      %v6343 = vpop.f32.mrb[0].mxu0
      %6344 = vmatprep.mubr.f32.mxu0 0.0
      %6345 = vmatmul.mubr.f32.gmra.mrb[0].mxu0 %v6178
      %v6346 = vpop.f32.mrb[0].mxu0
      %v6347 = vadd.f32 0.0, %v6346
      %v6348 = vpop.f32.mrb[0].mxu0
      %6349 = vmatprep.mubr.f32.mxu0 0.0
      %6350 = vmatmul.mubr.f32.gmra.mrb[0].mxu0 %v6180
      %v6351 = vpop.f32.mrb[0].mxu0
      %v6352 = vadd.f32 0.0, %v6351
      %v6353 = vpop.f32.mrb[0].mxu0
      %6354 = vmatprep.mubr.f32.mxu0 0.0
      %6355 = vmatmul.mubr.f32.gmra.mrb[0].mxu0 %v6182
      %v6356 = vpop.f32.mrb[0].mxu0
      %v6357 = vadd.f32 0.0, %v6356
      %v6358 = vpop.f32.mrb[0].mxu0
      %6359 = vmatprep.mubr.f32.mxu0 0.0
      %6360 = vmatmul.mubr.f32.gmra.mrb[0].mxu0 %v6184
      %v6361 = vpop.f32.mrb[0].mxu0
      %v6362 = vadd.f32 0.0, %v6361
      %v6363 = vpop.f32.mrb[0].mxu0
      %6364 = vmatprep.mubr.f32.mxu0 0.0
      %6365 = vmatmul.mubr.f32.gmra.mrb[0].mxu0 %v6186
      %v6366 = vpop.f32.mrb[0].mxu0
      %v6367 = vadd.f32 0.0, %v6366
      %v6368 = vpop.f32.mrb[0].mxu0
      %6369 = vmatprep.mubr.f32.mxu0 0.0
      %6370 = vmatmul.mubr.f32.gmra.mrb[0].mxu0 %v6188
      %v6371 = vpop.f32.mrb[0].mxu0
      %v6372 = vadd.f32 0.0, %v6371
      %v6373 = vpop.f32.mrb[0].mxu0
      %6374 = vmatprep.mubr.f32.mxu0 0.0
      %6375 = vmatmul.mubr.f32.gmra.mrb[0].mxu0 %v6190
      %v6376 = vpop.f32.mrb[0].mxu0
      %v6377 = vadd.f32 0.0, %v6376
      %v6378 = vpop.f32.mrb[0].mxu0
      %6379 = vmatprep.mubr.f32.mxu0 0.0
      %6380 = vmatmul.mubr.f32.gmra.mrb[0].mxu0 %v6192
      %v6381 = vpop.f32.mrb[0].mxu0
      %v6382 = vadd.f32 0.0, %v6381
      %v6383 = vpop.f32.mrb[0].mxu0
      %6384 = vmatprep.mubr.f32.mxu0 0.0
      %6385 = vmatmul.mubr.f32.gmra.mrb[0].mxu0 %v6194
      %v6386 = vpop.f32.mrb[0].mxu0
      %v6387 = vadd.f32 0.0, %v6386
      %v6388 = vpop.f32.mrb[0].mxu0
      %6389 = vmatprep.mubr.f32.mxu0 0.0
      %6390 = vmatmul.mubr.f32.gmra.mrb[0].mxu0 %v6196
      %v6391 = vpop.f32.mrb[0].mxu0
      %v6392 = vadd.f32 0.0, %v6391
      %v6393 = vpop.f32.mrb[0].mxu0
      %6394 = vmatprep.mubr.f32.mxu0 0.0
      %6395 = vmatmul.mubr.f32.gmra.mrb[0].mxu0 %v6198
      %v6396 = vpop.f32.mrb[0].mxu0
      %v6397 = vadd.f32 0.0, %v6396
      %v6398 = vpop.f32.mrb[0].mxu0
      %6399 = vmatprep.mubr.f32.mxu0 0.0
      %6400 = vmatmul.mubr.f32.gmra.mrb[0].mxu0 %v6200
      %v6401 = vpop.f32.mrb[0].mxu0
      %v6402 = vadd.f32 0.0, %v6401
      %v6403 = vpop.f32.mrb[0].mxu0
      %6404 = vmatprep.mubr.f32.mxu0 0.0
      %6405 = vmatmul.mubr.f32.gmra.mrb[0].mxu0 %v6202
      %v6406 = vpop.f32.mrb[0].mxu0
      %v6407 = vadd.f32 0.0, %v6406
      %v6408 = vpop.f32.mrb[0].mxu0
      %6409 = vmatprep.mubr.f32.mxu0 0.0
      %6410 = vmatmul.mubr.f32.gmra.mrb[0].mxu0 %v6204
      %v6411 = vpop.f32.mrb[0].mxu0
      %v6412 = vadd.f32 0.0, %v6411
      %v6413 = vpop.f32.mrb[0].mxu0
      %6414 = vmatprep.mubr.f32.mxu0 0.0
      %6415 = vmatmul.mubr.f32.gmra.mrb[0].mxu0 %v6206
      %v6416 = vpop.f32.mrb[0].mxu0
      %v6417 = vadd.f32 0.0, %v6416
      %v6418 = vpop.f32.mrb[0].mxu0
      %6419 = vmatprep.mubr.f32.mxu0 0.0
      %6420 = vmatmul.mubr.f32.gmra.mrb[0].mxu0 %v6208
      %v6421 = vpop.f32.mrb[0].mxu0
      %v6422 = vadd.f32 0.0, %v6421
      %v6423 = vpop.f32.mrb[0].mxu0
      %6424 = vmatprep.mubr.f32.mxu0 0.0
      %6425 = vmatmul.mubr.f32.gmra.mrb[0].mxu0 %v6210
      %v6426 = vpop.f32.mrb[0].mxu0
      %v6427 = vadd.f32 0.0, %v6426
      %v6428 = vpop.f32.mrb[0].mxu0
      %6429 = vmatprep.mubr.f32.mxu0 0.0
      %6430 = vmatmul.mubr.f32.gmra.mrb[0].mxu0 %v6212
      %v6431 = vpop.f32.mrb[0].mxu0
      %v6432 = vadd.f32 0.0, %v6431
      %v6433 = vpop.f32.mrb[0].mxu0
      %6434 = vmatprep.mubr.f32.mxu0 0.0
      %6435 = vmatmul.mubr.f32.gmra.mrb[0].mxu0 %v6214
      %v6436 = vpop.f32.mrb[0].mxu0
      %v6437 = vadd.f32 0.0, %v6436
      %v6438 = vpop.f32.mrb[0].mxu0
      %6439 = vmatprep.mubr.f32.mxu0 0.0
      %6440 = vmatmul.mubr.f32.gmra.mrb[0].mxu0 %v6216
      %v6441 = vpop.f32.mrb[0].mxu0
      %v6442 = vadd.f32 0.0, %v6441
      %v6443 = vpop.f32.mrb[0].mxu0
      %6444 = vmatprep.mubr.f32.mxu0 0.0
      %6445 = vmatmul.mubr.f32.gmra.mrb[0].mxu0 %v6218
      %v6446 = vpop.f32.mrb[0].mxu0
      %v6447 = vadd.f32 0.0, %v6446
      %v6448 = vpop.f32.mrb[0].mxu0
      %6449 = vmatprep.mubr.f32.mxu0 0.0
      %6450 = vmatmul.mubr.f32.gmra.mrb[0].mxu0 %v6220
      %v6451 = vpop.f32.mrb[0].mxu0
      %v6452 = vadd.f32 0.0, %v6451
      %v6453 = vpop.f32.mrb[0].mxu0
      %6454 = vmatprep.mubr.f32.mxu0 0.0
      %6455 = vmatmul.mubr.f32.gmra.mrb[0].mxu0 %v6222
      %v6456 = vpop.f32.mrb[0].mxu0
      %v6457 = vadd.f32 0.0, %v6456
      %v6458 = vpop.f32.mrb[0].mxu0
      %6459 = vmatprep.mubr.f32.mxu0 0.0
      %6460 = vmatmul.mubr.f32.gmra.mrb[0].mxu0 %v6224
      %v6461 = vpop.f32.mrb[0].mxu0
      %v6462 = vadd.f32 0.0, %v6461
      %v6463 = vpop.f32.mrb[0].mxu0
      %6464 = vmatprep.mubr.f32.mxu0 0.0
      %6465 = vmatmul.mubr.f32.gmra.mrb[0].mxu0 %v6226
      %v6466 = vpop.f32.mrb[0].mxu0
      %v6467 = vadd.f32 0.0, %v6466
      %v6468 = vpop.f32.mrb[0].mxu0
      %6469 = vmatprep.mubr.f32.mxu0 0.0
      %6470 = vmatmul.mubr.f32.gmra.mrb[0].mxu0 %v6228
      %v6471 = vpop.f32.mrb[0].mxu0
      %v6472 = vadd.f32 0.0, %v6471
      %v6473 = vpop.f32.mrb[0].mxu0
      %6474 = vdwg.mxu0
      %v6475 = vadd.f32 %v5975, %v6297
      %v6476 = vadd.f32 %v5976, %v6302
      %v6477 = vadd.f32 %v5977, %v6307
      %v6478 = vadd.f32 %v5978, %v6312
      %v6479 = vadd.f32 %v5979, %v6317
      %v6480 = vadd.f32 %v5980, %v6322
      %v6481 = vadd.f32 %v5981, %v6327
      %v6482 = vadd.f32 %v5982, %v6332
      %v6483 = vadd.f32 %v5983, %v6337
      %v6484 = vadd.f32 %v5984, %v6342
      %v6485 = vadd.f32 %v5985, %v6347
      %v6486 = vadd.f32 %v5986, %v6352
      %v6487 = vadd.f32 %v5987, %v6357
      %v6488 = vadd.f32 %v5988, %v6362
      %v6489 = vadd.f32 %v5989, %v6367
      %v6490 = vadd.f32 %v5990, %v6372
      %v6491 = vadd.f32 %v5991, %v6377
      %v6492 = vadd.f32 %v5992, %v6382
      %v6493 = vadd.f32 %v5993, %v6387
      %v6494 = vadd.f32 %v5994, %v6392
      %v6495 = vadd.f32 %v5995, %v6397
      %v6496 = vadd.f32 %v5996, %v6402
      %v6497 = vadd.f32 %v5997, %v6407
      %v6498 = vadd.f32 %v5998, %v6412
      %v6499 = vadd.f32 %v5999, %v6417
      %v6500 = vadd.f32 %v6000, %v6422
      %v6501 = vadd.f32 %v6001, %v6427
      %v6502 = vadd.f32 %v6002, %v6432
      %v6503 = vadd.f32 %v6003, %v6437
      %v6504 = vadd.f32 %v6004, %v6442
      %v6505 = vadd.f32 %v6005, %v6447
      %v6506 = vadd.f32 %v6006, %v6452
      %v6507 = vadd.f32 %v6007, %v6457
      %v6508 = vadd.f32 %v6008, %v6462
      %v6509 = vadd.f32 %v6009, %v6467
      %v6510 = vadd.f32 %v6010, %v6472
      %v6511 = vld [vmem:[%s219 + $0x14] sm:$0xff]
      %v6512 = vld [vmem:[%s219 + $0x1c] sm:$0xff]
      %v6513 = vld [vmem:[%s219 + $0x24] sm:$0xff]
      %v6514 = vld [vmem:[%s219 + $0x2c] sm:$0xff]
      %v6515 = vld [vmem:[%s219 + $0x34] sm:$0xff]
      %v6516 = vld [vmem:[%s219 + $0x3c] sm:$0xff]
      %v6517 = vld [vmem:[%s219 + $0x44] sm:$0xff]
      %v6518 = vld [vmem:[%s219 + $0x4c] sm:$0xff]
      %v6519 = vld [vmem:[%s219 + $0x54] sm:$0xff]
      %v6520 = vld [vmem:[%s219 + $0x5c] sm:$0xff]
      %v6521 = vld [vmem:[%s219 + $0x64] sm:$0xff]
      %v6522 = vld [vmem:[%s219 + $0x6c] sm:$0xff]
      %v6523 = vld [vmem:[%s219 + $0x74] sm:$0xff]
      %v6524 = vld [vmem:[%s219 + $0x7c] sm:$0xff]
      %v6525 = vld [vmem:[%s219 + $0x84] sm:$0xff]
      %v6526 = vld [vmem:[%s219 + $0x8c] sm:$0xff]
      %v6527 = vld [vmem:[%s219 + $0x94] sm:$0xff]
      %v6528 = vld [vmem:[%s219 + $0x9c] sm:$0xff]
      %v6529 = vld [vmem:[%s219 + $0xa4] sm:$0xff]
      %v6530 = vld [vmem:[%s219 + $0xac] sm:$0xff]
      %v6531 = vld [vmem:[%s219 + $0xb4] sm:$0xff]
      %v6532 = vld [vmem:[%s219 + $0xbc] sm:$0xff]
      %v6533 = vld [vmem:[%s219 + $0xc4] sm:$0xff]
      %v6534 = vld [vmem:[%s219 + $0xcc] sm:$0xff]
      %v6535 = vld [vmem:[%s219 + $0xd4] sm:$0xff]
      %v6536 = vld [vmem:[%s219 + $0xdc] sm:$0xff]
      %v6537 = vld [vmem:[%s219 + $0xe4] sm:$0xff]
      %v6538 = vld [vmem:[%s219 + $0xec] sm:$0xff]
      %v6539 = vld [vmem:[%s219 + $0xf4] sm:$0xff]
      %v6540 = vld [vmem:[%s219 + $0xfc] sm:$0xff]
      %v6541 = vld [vmem:[%s219 + $0x104] sm:$0xff]
      %v6542 = vld [vmem:[%s219 + $0x10c] sm:$0xff]
      %v6543 = vld [vmem:[%s219 + $0x114] sm:$0xff]
      %v6544 = vld [vmem:[%s219 + $0x11c] sm:$0xff]
      %v6545 = vld [vmem:[%s219 + $0x124] sm:$0xff]
      %v6546 = vld [vmem:[%s219 + $0x12c] sm:$0xff]
      %s6547 = scalar_lea.vmem %s3, 80
      %v6548 = vld [vmem:[%s6547] sm:$0xff]
      %v6549 = vld [vmem:[%s6547 + $0x8] sm:$0xff]
      %6586 = vrot.lane.b32.xlu0 %v6511, 112
      %v6587 = vpop.permute.xlu0 %6586
      %6588 = vrot.lane.b32.xlu0 %v6512, 112
      %v6589 = vpop.permute.xlu0 %6588
      %6590 = vrot.lane.b32.xlu0 %v6513, 112
      %v6591 = vpop.permute.xlu0 %6590
      %6592 = vrot.lane.b32.xlu0 %v6514, 112
      %v6593 = vpop.permute.xlu0 %6592
      %6594 = vrot.lane.b32.xlu0 %v6515, 112
      %v6595 = vpop.permute.xlu0 %6594
      %6596 = vrot.lane.b32.xlu0 %v6516, 112
      %v6597 = vpop.permute.xlu0 %6596
      %6598 = vrot.lane.b32.xlu0 %v6517, 112
      %v6599 = vpop.permute.xlu0 %6598
      %6600 = vrot.lane.b32.xlu0 %v6518, 112
      %v6601 = vpop.permute.xlu0 %6600
      %6602 = vrot.lane.b32.xlu0 %v6519, 112
      %v6603 = vpop.permute.xlu0 %6602
      %6604 = vrot.lane.b32.xlu0 %v6520, 112
      %v6605 = vpop.permute.xlu0 %6604
      %6606 = vrot.lane.b32.xlu0 %v6521, 112
      %v6607 = vpop.permute.xlu0 %6606
      %6608 = vrot.lane.b32.xlu0 %v6522, 112
      %v6609 = vpop.permute.xlu0 %6608
      %6610 = vrot.lane.b32.xlu0 %v6523, 112
      %v6611 = vpop.permute.xlu0 %6610
      %6612 = vrot.lane.b32.xlu0 %v6524, 112
      %v6613 = vpop.permute.xlu0 %6612
      %6614 = vrot.lane.b32.xlu0 %v6525, 112
      %v6615 = vpop.permute.xlu0 %6614
      %6616 = vrot.lane.b32.xlu0 %v6526, 112
      %v6617 = vpop.permute.xlu0 %6616
      %6618 = vrot.lane.b32.xlu0 %v6527, 112
      %v6619 = vpop.permute.xlu0 %6618
      %6620 = vrot.lane.b32.xlu0 %v6528, 112
      %v6621 = vpop.permute.xlu0 %6620
      %6622 = vrot.lane.b32.xlu0 %v6529, 112
      %v6623 = vpop.permute.xlu0 %6622
      %6624 = vrot.lane.b32.xlu0 %v6530, 112
      %v6625 = vpop.permute.xlu0 %6624
      %6626 = vrot.lane.b32.xlu0 %v6531, 112
      %v6627 = vpop.permute.xlu0 %6626
      %6628 = vrot.lane.b32.xlu0 %v6532, 112
      %v6629 = vpop.permute.xlu0 %6628
      %6630 = vrot.lane.b32.xlu0 %v6533, 112
      %v6631 = vpop.permute.xlu0 %6630
      %6632 = vrot.lane.b32.xlu0 %v6534, 112
      %v6633 = vpop.permute.xlu0 %6632
      %6634 = vrot.lane.b32.xlu0 %v6535, 112
      %v6635 = vpop.permute.xlu0 %6634
      %6636 = vrot.lane.b32.xlu0 %v6536, 112
      %v6637 = vpop.permute.xlu0 %6636
      %6638 = vrot.lane.b32.xlu0 %v6537, 112
      %v6639 = vpop.permute.xlu0 %6638
      %6640 = vrot.lane.b32.xlu0 %v6538, 112
      %v6641 = vpop.permute.xlu0 %6640
      %6642 = vrot.lane.b32.xlu0 %v6539, 112
      %v6643 = vpop.permute.xlu0 %6642
      %6644 = vrot.lane.b32.xlu0 %v6540, 112
      %v6645 = vpop.permute.xlu0 %6644
      %6646 = vrot.lane.b32.xlu0 %v6541, 112
      %v6647 = vpop.permute.xlu0 %6646
      %6648 = vrot.lane.b32.xlu0 %v6542, 112
      %v6649 = vpop.permute.xlu0 %6648
      %6650 = vrot.lane.b32.xlu0 %v6543, 112
      %v6651 = vpop.permute.xlu0 %6650
      %6652 = vrot.lane.b32.xlu0 %v6544, 112
      %v6653 = vpop.permute.xlu0 %6652
      %6654 = vrot.lane.b32.xlu0 %v6545, 112
      %v6655 = vpop.permute.xlu0 %6654
      %6656 = vrot.lane.b32.xlu0 %v6546, 112
      %v6657 = vpop.permute.xlu0 %6656
      %v6658 = vsel %vm302, %v6587, 0
      %v6660 = vsel %vm302, %v6589, 0
      %v6662 = vsel %vm302, %v6591, 0
      %v6664 = vsel %vm302, %v6593, 0
      %v6666 = vsel %vm302, %v6595, 0
      %v6668 = vsel %vm302, %v6597, 0
      %v6670 = vsel %vm302, %v6599, 0
      %v6672 = vsel %vm302, %v6601, 0
      %v6674 = vsel %vm302, %v6603, 0
      %v6676 = vsel %vm302, %v6605, 0
      %v6678 = vsel %vm302, %v6607, 0
      %v6680 = vsel %vm302, %v6609, 0
      %v6682 = vsel %vm302, %v6611, 0
      %v6684 = vsel %vm302, %v6613, 0
      %v6686 = vsel %vm302, %v6615, 0
      %v6688 = vsel %vm302, %v6617, 0
      %v6690 = vsel %vm302, %v6619, 0
      %v6692 = vsel %vm302, %v6621, 0
      %v6694 = vsel %vm302, %v6623, 0
      %v6696 = vsel %vm302, %v6625, 0
      %v6698 = vsel %vm302, %v6627, 0
      %v6700 = vsel %vm302, %v6629, 0
      %v6702 = vsel %vm302, %v6631, 0
      %v6704 = vsel %vm302, %v6633, 0
      %v6706 = vsel %vm302, %v6635, 0
      %v6708 = vsel %vm302, %v6637, 0
      %v6710 = vsel %vm302, %v6639, 0
      %v6712 = vsel %vm302, %v6641, 0
      %v6714 = vsel %vm302, %v6643, 0
      %v6716 = vsel %vm302, %v6645, 0
      %v6718 = vsel %vm302, %v6647, 0
      %v6720 = vsel %vm302, %v6649, 0
      %v6722 = vsel %vm302, %v6651, 0
      %v6724 = vsel %vm302, %v6653, 0
      %v6726 = vsel %vm302, %v6655, 0
      %v6728 = vsel %vm302, %v6657, 0
      %6730 = vmatprep.subr.mxu0 0.0
      %6731 = vmatpush1.msra.mxu0 %v6548
      %6732 = vmatprep.subr.mxu0 0.0
      %6733 = vmatpush1.msra.mxu0 %v6549
      %6734 = vmatprep.subr.mxu0 0.0
      %6735 = vmatpush1.msra.mxu0 0.0
      %6736 = vmatprep.subr.mxu0 0.0
      %6737 = vmatpush1.msra.mxu0 0.0
      %6738 = vmatprep.subr.mxu0 0.0
      %6739 = vmatpush1.msra.mxu0 0.0
      %6740 = vmatprep.subr.mxu0 0.0
      %6741 = vmatpush1.msra.mxu0 0.0
      %6742 = vmatprep.subr.mxu0 0.0
      %6743 = vmatpush1.msra.mxu0 0.0
      %6744 = vmatprep.subr.mxu0 0.0
      %6745 = vmatpush1.msra.mxu0 0.0
      %6746 = vmatprep.subr.mxu0 0.0
      %6747 = vmatpush1.msra.mxu0 0.0
      %6748 = vmatprep.subr.mxu0 0.0
      %6749 = vmatpush1.msra.mxu0 0.0
      %6750 = vmatprep.subr.mxu0 0.0
      %6751 = vmatpush1.msra.mxu0 0.0
      %6752 = vmatprep.subr.mxu0 0.0
      %6753 = vmatpush1.msra.mxu0 0.0
      %6754 = vmatprep.subr.mxu0 0.0
      %6755 = vmatpush1.msra.mxu0 0.0
      %6756 = vmatprep.subr.mxu0 0.0
      %6757 = vmatpush1.msra.mxu0 0.0
      %6758 = vmatprep.subr.mxu0 0.0
      %6759 = vmatpush1.msra.mxu0 0.0
      %6760 = vmatprep.subr.mxu0 0.0
      %6761 = vmatpush1.msra.mxu0 0.0
      %6762 = vmatprep.subr.mxu0 0.0
      %6763 = vmatpush1.msra.mxu0 0.0
      %6764 = vmatprep.subr.mxu0 0.0
      %6765 = vmatpush1.msra.mxu0 0.0
      %6766 = vmatprep.subr.mxu0 0.0
      %6767 = vmatpush1.msra.mxu0 0.0
      %6768 = vmatprep.subr.mxu0 0.0
      %6769 = vmatpush1.msra.mxu0 0.0
      %6770 = vmatprep.subr.mxu0 0.0
      %6771 = vmatpush1.msra.mxu0 0.0
      %6772 = vmatprep.subr.mxu0 0.0
      %6773 = vmatpush1.msra.mxu0 0.0
      %6774 = vmatprep.subr.mxu0 0.0
      %6775 = vmatpush1.msra.mxu0 0.0
      %6776 = vmatprep.subr.mxu0 0.0
      %6777 = vmatpush1.msra.mxu0 0.0
      %6778 = vmatprep.subr.mxu0 0.0
      %6779 = vmatpush1.msra.mxu0 0.0
      %6780 = vmatprep.subr.mxu0 0.0
      %6781 = vmatpush1.msra.mxu0 0.0
      %6782 = vmatprep.subr.mxu0 0.0
      %6783 = vmatpush1.msra.mxu0 0.0
      %6784 = vmatprep.subr.mxu0 0.0
      %6785 = vmatpush1.msra.mxu0 0.0
      %6786 = vmatprep.subr.mxu0 0.0
      %6787 = vmatpush1.msra.mxu0 0.0
      %6788 = vmatprep.subr.mxu0 0.0
      %6789 = vmatpush1.msra.mxu0 0.0
      %6790 = vmatprep.subr.mxu0 0.0
      %6791 = vmatpush1.msra.mxu0 0.0
      %6792 = vmatprep.subr.mxu0 0.0
      %6793 = vmatpush1.msra.mxu0 0.0
      %6794 = vmatprep.mubr.f32.mxu0 0.0
      %6795 = vmatmul.mubr.f32.gmra.mrb[0].mxu0 %v6658
      %v6796 = vpop.f32.mrb[0].mxu0
      %v6797 = vadd.f32 0.0, %v6796
      %v6798 = vpop.f32.mrb[0].mxu0
      %6799 = vmatprep.mubr.f32.mxu0 0.0
      %6800 = vmatmul.mubr.f32.gmra.mrb[0].mxu0 %v6660
      %v6801 = vpop.f32.mrb[0].mxu0
      %v6802 = vadd.f32 0.0, %v6801
      %v6803 = vpop.f32.mrb[0].mxu0
      %6804 = vmatprep.mubr.f32.mxu0 0.0
      %6805 = vmatmul.mubr.f32.gmra.mrb[0].mxu0 %v6662
      %v6806 = vpop.f32.mrb[0].mxu0
      %v6807 = vadd.f32 0.0, %v6806
      %v6808 = vpop.f32.mrb[0].mxu0
      %6809 = vmatprep.mubr.f32.mxu0 0.0
      %6810 = vmatmul.mubr.f32.gmra.mrb[0].mxu0 %v6664
      %v6811 = vpop.f32.mrb[0].mxu0
      %v6812 = vadd.f32 0.0, %v6811
      %v6813 = vpop.f32.mrb[0].mxu0
      %6814 = vmatprep.mubr.f32.mxu0 0.0
      %6815 = vmatmul.mubr.f32.gmra.mrb[0].mxu0 %v6666
      %v6816 = vpop.f32.mrb[0].mxu0
      %v6817 = vadd.f32 0.0, %v6816
      %v6818 = vpop.f32.mrb[0].mxu0
      %6819 = vmatprep.mubr.f32.mxu0 0.0
      %6820 = vmatmul.mubr.f32.gmra.mrb[0].mxu0 %v6668
      %v6821 = vpop.f32.mrb[0].mxu0
      %v6822 = vadd.f32 0.0, %v6821
      %v6823 = vpop.f32.mrb[0].mxu0
      %6824 = vmatprep.mubr.f32.mxu0 0.0
      %6825 = vmatmul.mubr.f32.gmra.mrb[0].mxu0 %v6670
      %v6826 = vpop.f32.mrb[0].mxu0
      %v6827 = vadd.f32 0.0, %v6826
      %v6828 = vpop.f32.mrb[0].mxu0
      %6829 = vmatprep.mubr.f32.mxu0 0.0
      %6830 = vmatmul.mubr.f32.gmra.mrb[0].mxu0 %v6672
      %v6831 = vpop.f32.mrb[0].mxu0
      %v6832 = vadd.f32 0.0, %v6831
      %v6833 = vpop.f32.mrb[0].mxu0
      %6834 = vmatprep.mubr.f32.mxu0 0.0
      %6835 = vmatmul.mubr.f32.gmra.mrb[0].mxu0 %v6674
      %v6836 = vpop.f32.mrb[0].mxu0
      %v6837 = vadd.f32 0.0, %v6836
      %v6838 = vpop.f32.mrb[0].mxu0
      %6839 = vmatprep.mubr.f32.mxu0 0.0
      %6840 = vmatmul.mubr.f32.gmra.mrb[0].mxu0 %v6676
      %v6841 = vpop.f32.mrb[0].mxu0
      %v6842 = vadd.f32 0.0, %v6841
      %v6843 = vpop.f32.mrb[0].mxu0
      %6844 = vmatprep.mubr.f32.mxu0 0.0
      %6845 = vmatmul.mubr.f32.gmra.mrb[0].mxu0 %v6678
      %v6846 = vpop.f32.mrb[0].mxu0
      %v6847 = vadd.f32 0.0, %v6846
      %v6848 = vpop.f32.mrb[0].mxu0
      %6849 = vmatprep.mubr.f32.mxu0 0.0
      %6850 = vmatmul.mubr.f32.gmra.mrb[0].mxu0 %v6680
      %v6851 = vpop.f32.mrb[0].mxu0
      %v6852 = vadd.f32 0.0, %v6851
      %v6853 = vpop.f32.mrb[0].mxu0
      %6854 = vmatprep.mubr.f32.mxu0 0.0
      %6855 = vmatmul.mubr.f32.gmra.mrb[0].mxu0 %v6682
      %v6856 = vpop.f32.mrb[0].mxu0
      %v6857 = vadd.f32 0.0, %v6856
      %v6858 = vpop.f32.mrb[0].mxu0
      %6859 = vmatprep.mubr.f32.mxu0 0.0
      %6860 = vmatmul.mubr.f32.gmra.mrb[0].mxu0 %v6684
      %v6861 = vpop.f32.mrb[0].mxu0
      %v6862 = vadd.f32 0.0, %v6861
      %v6863 = vpop.f32.mrb[0].mxu0
      %6864 = vmatprep.mubr.f32.mxu0 0.0
      %6865 = vmatmul.mubr.f32.gmra.mrb[0].mxu0 %v6686
      %v6866 = vpop.f32.mrb[0].mxu0
      %v6867 = vadd.f32 0.0, %v6866
      %v6868 = vpop.f32.mrb[0].mxu0
      %6869 = vmatprep.mubr.f32.mxu0 0.0
      %6870 = vmatmul.mubr.f32.gmra.mrb[0].mxu0 %v6688
      %v6871 = vpop.f32.mrb[0].mxu0
      %v6872 = vadd.f32 0.0, %v6871
      %v6873 = vpop.f32.mrb[0].mxu0
      %6874 = vmatprep.mubr.f32.mxu0 0.0
      %6875 = vmatmul.mubr.f32.gmra.mrb[0].mxu0 %v6690
      %v6876 = vpop.f32.mrb[0].mxu0
      %v6877 = vadd.f32 0.0, %v6876
      %v6878 = vpop.f32.mrb[0].mxu0
      %6879 = vmatprep.mubr.f32.mxu0 0.0
      %6880 = vmatmul.mubr.f32.gmra.mrb[0].mxu0 %v6692
      %v6881 = vpop.f32.mrb[0].mxu0
      %v6882 = vadd.f32 0.0, %v6881
      %v6883 = vpop.f32.mrb[0].mxu0
      %6884 = vmatprep.mubr.f32.mxu0 0.0
      %6885 = vmatmul.mubr.f32.gmra.mrb[0].mxu0 %v6694
      %v6886 = vpop.f32.mrb[0].mxu0
      %v6887 = vadd.f32 0.0, %v6886
      %v6888 = vpop.f32.mrb[0].mxu0
      %6889 = vmatprep.mubr.f32.mxu0 0.0
      %6890 = vmatmul.mubr.f32.gmra.mrb[0].mxu0 %v6696
      %v6891 = vpop.f32.mrb[0].mxu0
      %v6892 = vadd.f32 0.0, %v6891
      %v6893 = vpop.f32.mrb[0].mxu0
      %6894 = vmatprep.mubr.f32.mxu0 0.0
      %6895 = vmatmul.mubr.f32.gmra.mrb[0].mxu0 %v6698
      %v6896 = vpop.f32.mrb[0].mxu0
      %v6897 = vadd.f32 0.0, %v6896
      %v6898 = vpop.f32.mrb[0].mxu0
      %6899 = vmatprep.mubr.f32.mxu0 0.0
      %6900 = vmatmul.mubr.f32.gmra.mrb[0].mxu0 %v6700
      %v6901 = vpop.f32.mrb[0].mxu0
      %v6902 = vadd.f32 0.0, %v6901
      %v6903 = vpop.f32.mrb[0].mxu0
      %6904 = vmatprep.mubr.f32.mxu0 0.0
      %6905 = vmatmul.mubr.f32.gmra.mrb[0].mxu0 %v6702
      %v6906 = vpop.f32.mrb[0].mxu0
      %v6907 = vadd.f32 0.0, %v6906
      %v6908 = vpop.f32.mrb[0].mxu0
      %6909 = vmatprep.mubr.f32.mxu0 0.0
      %6910 = vmatmul.mubr.f32.gmra.mrb[0].mxu0 %v6704
      %v6911 = vpop.f32.mrb[0].mxu0
      %v6912 = vadd.f32 0.0, %v6911
      %v6913 = vpop.f32.mrb[0].mxu0
      %6914 = vmatprep.mubr.f32.mxu0 0.0
      %6915 = vmatmul.mubr.f32.gmra.mrb[0].mxu0 %v6706
      %v6916 = vpop.f32.mrb[0].mxu0
      %v6917 = vadd.f32 0.0, %v6916
      %v6918 = vpop.f32.mrb[0].mxu0
      %6919 = vmatprep.mubr.f32.mxu0 0.0
      %6920 = vmatmul.mubr.f32.gmra.mrb[0].mxu0 %v6708
      %v6921 = vpop.f32.mrb[0].mxu0
      %v6922 = vadd.f32 0.0, %v6921
      %v6923 = vpop.f32.mrb[0].mxu0
      %6924 = vmatprep.mubr.f32.mxu0 0.0
      %6925 = vmatmul.mubr.f32.gmra.mrb[0].mxu0 %v6710
      %v6926 = vpop.f32.mrb[0].mxu0
      %v6927 = vadd.f32 0.0, %v6926
      %v6928 = vpop.f32.mrb[0].mxu0
      %6929 = vmatprep.mubr.f32.mxu0 0.0
      %6930 = vmatmul.mubr.f32.gmra.mrb[0].mxu0 %v6712
      %v6931 = vpop.f32.mrb[0].mxu0
      %v6932 = vadd.f32 0.0, %v6931
      %v6933 = vpop.f32.mrb[0].mxu0
      %6934 = vmatprep.mubr.f32.mxu0 0.0
      %6935 = vmatmul.mubr.f32.gmra.mrb[0].mxu0 %v6714
      %v6936 = vpop.f32.mrb[0].mxu0
      %v6937 = vadd.f32 0.0, %v6936
      %v6938 = vpop.f32.mrb[0].mxu0
      %6939 = vmatprep.mubr.f32.mxu0 0.0
      %6940 = vmatmul.mubr.f32.gmra.mrb[0].mxu0 %v6716
      %v6941 = vpop.f32.mrb[0].mxu0
      %v6942 = vadd.f32 0.0, %v6941
      %v6943 = vpop.f32.mrb[0].mxu0
      %6944 = vmatprep.mubr.f32.mxu0 0.0
      %6945 = vmatmul.mubr.f32.gmra.mrb[0].mxu0 %v6718
      %v6946 = vpop.f32.mrb[0].mxu0
      %v6947 = vadd.f32 0.0, %v6946
      %v6948 = vpop.f32.mrb[0].mxu0
      %6949 = vmatprep.mubr.f32.mxu0 0.0
      %6950 = vmatmul.mubr.f32.gmra.mrb[0].mxu0 %v6720
      %v6951 = vpop.f32.mrb[0].mxu0
      %v6952 = vadd.f32 0.0, %v6951
      %v6953 = vpop.f32.mrb[0].mxu0
      %6954 = vmatprep.mubr.f32.mxu0 0.0
      %6955 = vmatmul.mubr.f32.gmra.mrb[0].mxu0 %v6722
      %v6956 = vpop.f32.mrb[0].mxu0
      %v6957 = vadd.f32 0.0, %v6956
      %v6958 = vpop.f32.mrb[0].mxu0
      %6959 = vmatprep.mubr.f32.mxu0 0.0
      %6960 = vmatmul.mubr.f32.gmra.mrb[0].mxu0 %v6724
      %v6961 = vpop.f32.mrb[0].mxu0
      %v6962 = vadd.f32 0.0, %v6961
      %v6963 = vpop.f32.mrb[0].mxu0
      %6964 = vmatprep.mubr.f32.mxu0 0.0
      %6965 = vmatmul.mubr.f32.gmra.mrb[0].mxu0 %v6726
      %v6966 = vpop.f32.mrb[0].mxu0
      %v6967 = vadd.f32 0.0, %v6966
      %v6968 = vpop.f32.mrb[0].mxu0
      %6969 = vmatprep.mubr.f32.mxu0 0.0
      %6970 = vmatmul.mubr.f32.gmra.mrb[0].mxu0 %v6728
      %v6971 = vpop.f32.mrb[0].mxu0
      %v6972 = vadd.f32 0.0, %v6971
      %v6973 = vpop.f32.mrb[0].mxu0
      %6974 = vdwg.mxu0
      %v6975 = vadd.f32 %v6475, %v6797
      %v6976 = vadd.f32 %v6476, %v6802
      %v6977 = vadd.f32 %v6477, %v6807
      %v6978 = vadd.f32 %v6478, %v6812
      %v6979 = vadd.f32 %v6479, %v6817
      %v6980 = vadd.f32 %v6480, %v6822
      %v6981 = vadd.f32 %v6481, %v6827
      %v6982 = vadd.f32 %v6482, %v6832
      %v6983 = vadd.f32 %v6483, %v6837
      %v6984 = vadd.f32 %v6484, %v6842
      %v6985 = vadd.f32 %v6485, %v6847
      %v6986 = vadd.f32 %v6486, %v6852
      %v6987 = vadd.f32 %v6487, %v6857
      %v6988 = vadd.f32 %v6488, %v6862
      %v6989 = vadd.f32 %v6489, %v6867
      %v6990 = vadd.f32 %v6490, %v6872
      %v6991 = vadd.f32 %v6491, %v6877
      %v6992 = vadd.f32 %v6492, %v6882
      %v6993 = vadd.f32 %v6493, %v6887
      %v6994 = vadd.f32 %v6494, %v6892
      %v6995 = vadd.f32 %v6495, %v6897
      %v6996 = vadd.f32 %v6496, %v6902
      %v6997 = vadd.f32 %v6497, %v6907
      %v6998 = vadd.f32 %v6498, %v6912
      %v6999 = vadd.f32 %v6499, %v6917
      %v7000 = vadd.f32 %v6500, %v6922
      %v7001 = vadd.f32 %v6501, %v6927
      %v7002 = vadd.f32 %v6502, %v6932
      %v7003 = vadd.f32 %v6503, %v6937
      %v7004 = vadd.f32 %v6504, %v6942
      %v7005 = vadd.f32 %v6505, %v6947
      %v7006 = vadd.f32 %v6506, %v6952
      %v7007 = vadd.f32 %v6507, %v6957
      %v7008 = vadd.f32 %v6508, %v6962
      %v7009 = vadd.f32 %v6509, %v6967
      %v7010 = vadd.f32 %v6510, %v6972
      %v7011 = vld [vmem:[%s219 + $0x24] sm:$0xff]
      %v7012 = vld [vmem:[%s219 + $0x2c] sm:$0xff]
      %v7013 = vld [vmem:[%s219 + $0x34] sm:$0xff]
      %v7014 = vld [vmem:[%s219 + $0x3c] sm:$0xff]
      %v7015 = vld [vmem:[%s219 + $0x44] sm:$0xff]
      %v7016 = vld [vmem:[%s219 + $0x4c] sm:$0xff]
      %v7017 = vld [vmem:[%s219 + $0x54] sm:$0xff]
      %v7018 = vld [vmem:[%s219 + $0x5c] sm:$0xff]
      %v7019 = vld [vmem:[%s219 + $0x64] sm:$0xff]
      %v7020 = vld [vmem:[%s219 + $0x6c] sm:$0xff]
      %v7021 = vld [vmem:[%s219 + $0x74] sm:$0xff]
      %v7022 = vld [vmem:[%s219 + $0x7c] sm:$0xff]
      %v7023 = vld [vmem:[%s219 + $0x84] sm:$0xff]
      %v7024 = vld [vmem:[%s219 + $0x8c] sm:$0xff]
      %v7025 = vld [vmem:[%s219 + $0x94] sm:$0xff]
      %v7026 = vld [vmem:[%s219 + $0x9c] sm:$0xff]
      %v7027 = vld [vmem:[%s219 + $0xa4] sm:$0xff]
      %v7028 = vld [vmem:[%s219 + $0xac] sm:$0xff]
      %v7029 = vld [vmem:[%s219 + $0xb4] sm:$0xff]
      %v7030 = vld [vmem:[%s219 + $0xbc] sm:$0xff]
      %v7031 = vld [vmem:[%s219 + $0xc4] sm:$0xff]
      %v7032 = vld [vmem:[%s219 + $0xcc] sm:$0xff]
      %v7033 = vld [vmem:[%s219 + $0xd4] sm:$0xff]
      %v7034 = vld [vmem:[%s219 + $0xdc] sm:$0xff]
      %v7035 = vld [vmem:[%s219 + $0xe4] sm:$0xff]
      %v7036 = vld [vmem:[%s219 + $0xec] sm:$0xff]
      %v7037 = vld [vmem:[%s219 + $0xf4] sm:$0xff]
      %v7038 = vld [vmem:[%s219 + $0xfc] sm:$0xff]
      %v7039 = vld [vmem:[%s219 + $0x104] sm:$0xff]
      %v7040 = vld [vmem:[%s219 + $0x10c] sm:$0xff]
      %v7041 = vld [vmem:[%s219 + $0x114] sm:$0xff]
      %v7042 = vld [vmem:[%s219 + $0x11c] sm:$0xff]
      %v7043 = vld [vmem:[%s219 + $0x124] sm:$0xff]
      %v7044 = vld [vmem:[%s219 + $0x12c] sm:$0xff]
      %v7045 = vld [vmem:[%s219 + $0x134] sm:$0xff]
      %v7046 = vld [vmem:[%s219 + $0x13c] sm:$0xff]
      %s7047 = scalar_lea.vmem %s3, 96
      %v7048 = vld [vmem:[%s7047] sm:$0xff]
      %v7049 = vld [vmem:[%s7047 + $0x8] sm:$0xff]
      %7086 = vrot.lane.b32.xlu0 %v7011, 112
      %v7087 = vpop.permute.xlu0 %7086
      %7088 = vrot.lane.b32.xlu0 %v7012, 112
      %v7089 = vpop.permute.xlu0 %7088
      %7090 = vrot.lane.b32.xlu0 %v7013, 112
      %v7091 = vpop.permute.xlu0 %7090
      %7092 = vrot.lane.b32.xlu0 %v7014, 112
      %v7093 = vpop.permute.xlu0 %7092
      %7094 = vrot.lane.b32.xlu0 %v7015, 112
      %v7095 = vpop.permute.xlu0 %7094
      %7096 = vrot.lane.b32.xlu0 %v7016, 112
      %v7097 = vpop.permute.xlu0 %7096
      %7098 = vrot.lane.b32.xlu0 %v7017, 112
      %v7099 = vpop.permute.xlu0 %7098
      %7100 = vrot.lane.b32.xlu0 %v7018, 112
      %v7101 = vpop.permute.xlu0 %7100
      %7102 = vrot.lane.b32.xlu0 %v7019, 112
      %v7103 = vpop.permute.xlu0 %7102
      %7104 = vrot.lane.b32.xlu0 %v7020, 112
      %v7105 = vpop.permute.xlu0 %7104
      %7106 = vrot.lane.b32.xlu0 %v7021, 112
      %v7107 = vpop.permute.xlu0 %7106
      %7108 = vrot.lane.b32.xlu0 %v7022, 112
      %v7109 = vpop.permute.xlu0 %7108
      %7110 = vrot.lane.b32.xlu0 %v7023, 112
      %v7111 = vpop.permute.xlu0 %7110
      %7112 = vrot.lane.b32.xlu0 %v7024, 112
      %v7113 = vpop.permute.xlu0 %7112
      %7114 = vrot.lane.b32.xlu0 %v7025, 112
      %v7115 = vpop.permute.xlu0 %7114
      %7116 = vrot.lane.b32.xlu0 %v7026, 112
      %v7117 = vpop.permute.xlu0 %7116
      %7118 = vrot.lane.b32.xlu0 %v7027, 112
      %v7119 = vpop.permute.xlu0 %7118
      %7120 = vrot.lane.b32.xlu0 %v7028, 112
      %v7121 = vpop.permute.xlu0 %7120
      %7122 = vrot.lane.b32.xlu0 %v7029, 112
      %v7123 = vpop.permute.xlu0 %7122
      %7124 = vrot.lane.b32.xlu0 %v7030, 112
      %v7125 = vpop.permute.xlu0 %7124
      %7126 = vrot.lane.b32.xlu0 %v7031, 112
      %v7127 = vpop.permute.xlu0 %7126
      %7128 = vrot.lane.b32.xlu0 %v7032, 112
      %v7129 = vpop.permute.xlu0 %7128
      %7130 = vrot.lane.b32.xlu0 %v7033, 112
      %v7131 = vpop.permute.xlu0 %7130
      %7132 = vrot.lane.b32.xlu0 %v7034, 112
      %v7133 = vpop.permute.xlu0 %7132
      %7134 = vrot.lane.b32.xlu0 %v7035, 112
      %v7135 = vpop.permute.xlu0 %7134
      %7136 = vrot.lane.b32.xlu0 %v7036, 112
      %v7137 = vpop.permute.xlu0 %7136
      %7138 = vrot.lane.b32.xlu0 %v7037, 112
      %v7139 = vpop.permute.xlu0 %7138
      %7140 = vrot.lane.b32.xlu0 %v7038, 112
      %v7141 = vpop.permute.xlu0 %7140
      %7142 = vrot.lane.b32.xlu0 %v7039, 112
      %v7143 = vpop.permute.xlu0 %7142
      %7144 = vrot.lane.b32.xlu0 %v7040, 112
      %v7145 = vpop.permute.xlu0 %7144
      %7146 = vrot.lane.b32.xlu0 %v7041, 112
      %v7147 = vpop.permute.xlu0 %7146
      %7148 = vrot.lane.b32.xlu0 %v7042, 112
      %v7149 = vpop.permute.xlu0 %7148
      %7150 = vrot.lane.b32.xlu0 %v7043, 112
      %v7151 = vpop.permute.xlu0 %7150
      %7152 = vrot.lane.b32.xlu0 %v7044, 112
      %v7153 = vpop.permute.xlu0 %7152
      %7154 = vrot.lane.b32.xlu0 %v7045, 112
      %v7155 = vpop.permute.xlu0 %7154
      %7156 = vrot.lane.b32.xlu0 %v7046, 112
      %v7157 = vpop.permute.xlu0 %7156
      %v7158 = vsel %vm302, %v7087, 0
      %v7160 = vsel %vm302, %v7089, 0
      %v7162 = vsel %vm302, %v7091, 0
      %v7164 = vsel %vm302, %v7093, 0
      %v7166 = vsel %vm302, %v7095, 0
      %v7168 = vsel %vm302, %v7097, 0
      %v7170 = vsel %vm302, %v7099, 0
      %v7172 = vsel %vm302, %v7101, 0
      %v7174 = vsel %vm302, %v7103, 0
      %v7176 = vsel %vm302, %v7105, 0
      %v7178 = vsel %vm302, %v7107, 0
      %v7180 = vsel %vm302, %v7109, 0
      %v7182 = vsel %vm302, %v7111, 0
      %v7184 = vsel %vm302, %v7113, 0
      %v7186 = vsel %vm302, %v7115, 0
      %v7188 = vsel %vm302, %v7117, 0
      %v7190 = vsel %vm302, %v7119, 0
      %v7192 = vsel %vm302, %v7121, 0
      %v7194 = vsel %vm302, %v7123, 0
      %v7196 = vsel %vm302, %v7125, 0
      %v7198 = vsel %vm302, %v7127, 0
      %v7200 = vsel %vm302, %v7129, 0
      %v7202 = vsel %vm302, %v7131, 0
      %v7204 = vsel %vm302, %v7133, 0
      %v7206 = vsel %vm302, %v7135, 0
      %v7208 = vsel %vm302, %v7137, 0
      %v7210 = vsel %vm302, %v7139, 0
      %v7212 = vsel %vm302, %v7141, 0
      %v7214 = vsel %vm302, %v7143, 0
      %v7216 = vsel %vm302, %v7145, 0
      %v7218 = vsel %vm302, %v7147, 0
      %v7220 = vsel %vm302, %v7149, 0
      %v7222 = vsel %vm302, %v7151, 0
      %v7224 = vsel %vm302, %v7153, 0
      %v7226 = vsel %vm302, %v7155, 0
      %v7228 = vsel %vm302, %v7157, 0
      %7230 = vmatprep.subr.mxu0 0.0
      %7231 = vmatpush1.msra.mxu0 %v7048
      %7232 = vmatprep.subr.mxu0 0.0
      %7233 = vmatpush1.msra.mxu0 %v7049
      %7234 = vmatprep.subr.mxu0 0.0
      %7235 = vmatpush1.msra.mxu0 0.0
      %7236 = vmatprep.subr.mxu0 0.0
      %7237 = vmatpush1.msra.mxu0 0.0
      %7238 = vmatprep.subr.mxu0 0.0
      %7239 = vmatpush1.msra.mxu0 0.0
      %7240 = vmatprep.subr.mxu0 0.0
      %7241 = vmatpush1.msra.mxu0 0.0
      %7242 = vmatprep.subr.mxu0 0.0
      %7243 = vmatpush1.msra.mxu0 0.0
      %7244 = vmatprep.subr.mxu0 0.0
      %7245 = vmatpush1.msra.mxu0 0.0
      %7246 = vmatprep.subr.mxu0 0.0
      %7247 = vmatpush1.msra.mxu0 0.0
      %7248 = vmatprep.subr.mxu0 0.0
      %7249 = vmatpush1.msra.mxu0 0.0
      %7250 = vmatprep.subr.mxu0 0.0
      %7251 = vmatpush1.msra.mxu0 0.0
      %7252 = vmatprep.subr.mxu0 0.0
      %7253 = vmatpush1.msra.mxu0 0.0
      %7254 = vmatprep.subr.mxu0 0.0
      %7255 = vmatpush1.msra.mxu0 0.0
      %7256 = vmatprep.subr.mxu0 0.0
      %7257 = vmatpush1.msra.mxu0 0.0
      %7258 = vmatprep.subr.mxu0 0.0
      %7259 = vmatpush1.msra.mxu0 0.0
      %7260 = vmatprep.subr.mxu0 0.0
      %7261 = vmatpush1.msra.mxu0 0.0
      %7262 = vmatprep.subr.mxu0 0.0
      %7263 = vmatpush1.msra.mxu0 0.0
      %7264 = vmatprep.subr.mxu0 0.0
      %7265 = vmatpush1.msra.mxu0 0.0
      %7266 = vmatprep.subr.mxu0 0.0
      %7267 = vmatpush1.msra.mxu0 0.0
      %7268 = vmatprep.subr.mxu0 0.0
      %7269 = vmatpush1.msra.mxu0 0.0
      %7270 = vmatprep.subr.mxu0 0.0
      %7271 = vmatpush1.msra.mxu0 0.0
      %7272 = vmatprep.subr.mxu0 0.0
      %7273 = vmatpush1.msra.mxu0 0.0
      %7274 = vmatprep.subr.mxu0 0.0
      %7275 = vmatpush1.msra.mxu0 0.0
      %7276 = vmatprep.subr.mxu0 0.0
      %7277 = vmatpush1.msra.mxu0 0.0
      %7278 = vmatprep.subr.mxu0 0.0
      %7279 = vmatpush1.msra.mxu0 0.0
      %7280 = vmatprep.subr.mxu0 0.0
      %7281 = vmatpush1.msra.mxu0 0.0
      %7282 = vmatprep.subr.mxu0 0.0
      %7283 = vmatpush1.msra.mxu0 0.0
      %7284 = vmatprep.subr.mxu0 0.0
      %7285 = vmatpush1.msra.mxu0 0.0
      %7286 = vmatprep.subr.mxu0 0.0
      %7287 = vmatpush1.msra.mxu0 0.0
      %7288 = vmatprep.subr.mxu0 0.0
      %7289 = vmatpush1.msra.mxu0 0.0
      %7290 = vmatprep.subr.mxu0 0.0
      %7291 = vmatpush1.msra.mxu0 0.0
      %7292 = vmatprep.subr.mxu0 0.0
      %7293 = vmatpush1.msra.mxu0 0.0
      %7294 = vmatprep.mubr.f32.mxu0 0.0
      %7295 = vmatmul.mubr.f32.gmra.mrb[0].mxu0 %v7158
      %v7296 = vpop.f32.mrb[0].mxu0
      %v7297 = vadd.f32 0.0, %v7296
      %v7298 = vpop.f32.mrb[0].mxu0
      %7299 = vmatprep.mubr.f32.mxu0 0.0
      %7300 = vmatmul.mubr.f32.gmra.mrb[0].mxu0 %v7160
      %v7301 = vpop.f32.mrb[0].mxu0
      %v7302 = vadd.f32 0.0, %v7301
      %v7303 = vpop.f32.mrb[0].mxu0
      %7304 = vmatprep.mubr.f32.mxu0 0.0
      %7305 = vmatmul.mubr.f32.gmra.mrb[0].mxu0 %v7162
      %v7306 = vpop.f32.mrb[0].mxu0
      %v7307 = vadd.f32 0.0, %v7306
      %v7308 = vpop.f32.mrb[0].mxu0
      %7309 = vmatprep.mubr.f32.mxu0 0.0
      %7310 = vmatmul.mubr.f32.gmra.mrb[0].mxu0 %v7164
      %v7311 = vpop.f32.mrb[0].mxu0
      %v7312 = vadd.f32 0.0, %v7311
      %v7313 = vpop.f32.mrb[0].mxu0
      %7314 = vmatprep.mubr.f32.mxu0 0.0
      %7315 = vmatmul.mubr.f32.gmra.mrb[0].mxu0 %v7166
      %v7316 = vpop.f32.mrb[0].mxu0
      %v7317 = vadd.f32 0.0, %v7316
      %v7318 = vpop.f32.mrb[0].mxu0
      %7319 = vmatprep.mubr.f32.mxu0 0.0
      %7320 = vmatmul.mubr.f32.gmra.mrb[0].mxu0 %v7168
      %v7321 = vpop.f32.mrb[0].mxu0
      %v7322 = vadd.f32 0.0, %v7321
      %v7323 = vpop.f32.mrb[0].mxu0
      %7324 = vmatprep.mubr.f32.mxu0 0.0
      %7325 = vmatmul.mubr.f32.gmra.mrb[0].mxu0 %v7170
      %v7326 = vpop.f32.mrb[0].mxu0
      %v7327 = vadd.f32 0.0, %v7326
      %v7328 = vpop.f32.mrb[0].mxu0
      %7329 = vmatprep.mubr.f32.mxu0 0.0
      %7330 = vmatmul.mubr.f32.gmra.mrb[0].mxu0 %v7172
      %v7331 = vpop.f32.mrb[0].mxu0
      %v7332 = vadd.f32 0.0, %v7331
      %v7333 = vpop.f32.mrb[0].mxu0
      %7334 = vmatprep.mubr.f32.mxu0 0.0
      %7335 = vmatmul.mubr.f32.gmra.mrb[0].mxu0 %v7174
      %v7336 = vpop.f32.mrb[0].mxu0
      %v7337 = vadd.f32 0.0, %v7336
      %v7338 = vpop.f32.mrb[0].mxu0
      %7339 = vmatprep.mubr.f32.mxu0 0.0
      %7340 = vmatmul.mubr.f32.gmra.mrb[0].mxu0 %v7176
      %v7341 = vpop.f32.mrb[0].mxu0
      %v7342 = vadd.f32 0.0, %v7341
      %v7343 = vpop.f32.mrb[0].mxu0
      %7344 = vmatprep.mubr.f32.mxu0 0.0
      %7345 = vmatmul.mubr.f32.gmra.mrb[0].mxu0 %v7178
      %v7346 = vpop.f32.mrb[0].mxu0
      %v7347 = vadd.f32 0.0, %v7346
      %v7348 = vpop.f32.mrb[0].mxu0
      %7349 = vmatprep.mubr.f32.mxu0 0.0
      %7350 = vmatmul.mubr.f32.gmra.mrb[0].mxu0 %v7180
      %v7351 = vpop.f32.mrb[0].mxu0
      %v7352 = vadd.f32 0.0, %v7351
      %v7353 = vpop.f32.mrb[0].mxu0
      %7354 = vmatprep.mubr.f32.mxu0 0.0
      %7355 = vmatmul.mubr.f32.gmra.mrb[0].mxu0 %v7182
      %v7356 = vpop.f32.mrb[0].mxu0
      %v7357 = vadd.f32 0.0, %v7356
      %v7358 = vpop.f32.mrb[0].mxu0
      %7359 = vmatprep.mubr.f32.mxu0 0.0
      %7360 = vmatmul.mubr.f32.gmra.mrb[0].mxu0 %v7184
      %v7361 = vpop.f32.mrb[0].mxu0
      %v7362 = vadd.f32 0.0, %v7361
      %v7363 = vpop.f32.mrb[0].mxu0
      %7364 = vmatprep.mubr.f32.mxu0 0.0
      %7365 = vmatmul.mubr.f32.gmra.mrb[0].mxu0 %v7186
      %v7366 = vpop.f32.mrb[0].mxu0
      %v7367 = vadd.f32 0.0, %v7366
      %v7368 = vpop.f32.mrb[0].mxu0
      %7369 = vmatprep.mubr.f32.mxu0 0.0
      %7370 = vmatmul.mubr.f32.gmra.mrb[0].mxu0 %v7188
      %v7371 = vpop.f32.mrb[0].mxu0
      %v7372 = vadd.f32 0.0, %v7371
      %v7373 = vpop.f32.mrb[0].mxu0
      %7374 = vmatprep.mubr.f32.mxu0 0.0
      %7375 = vmatmul.mubr.f32.gmra.mrb[0].mxu0 %v7190
      %v7376 = vpop.f32.mrb[0].mxu0
      %v7377 = vadd.f32 0.0, %v7376
      %v7378 = vpop.f32.mrb[0].mxu0
      %7379 = vmatprep.mubr.f32.mxu0 0.0
      %7380 = vmatmul.mubr.f32.gmra.mrb[0].mxu0 %v7192
      %v7381 = vpop.f32.mrb[0].mxu0
      %v7382 = vadd.f32 0.0, %v7381
      %v7383 = vpop.f32.mrb[0].mxu0
      %7384 = vmatprep.mubr.f32.mxu0 0.0
      %7385 = vmatmul.mubr.f32.gmra.mrb[0].mxu0 %v7194
      %v7386 = vpop.f32.mrb[0].mxu0
      %v7387 = vadd.f32 0.0, %v7386
      %v7388 = vpop.f32.mrb[0].mxu0
      %7389 = vmatprep.mubr.f32.mxu0 0.0
      %7390 = vmatmul.mubr.f32.gmra.mrb[0].mxu0 %v7196
      %v7391 = vpop.f32.mrb[0].mxu0
      %v7392 = vadd.f32 0.0, %v7391
      %v7393 = vpop.f32.mrb[0].mxu0
      %7394 = vmatprep.mubr.f32.mxu0 0.0
      %7395 = vmatmul.mubr.f32.gmra.mrb[0].mxu0 %v7198
      %v7396 = vpop.f32.mrb[0].mxu0
      %v7397 = vadd.f32 0.0, %v7396
      %v7398 = vpop.f32.mrb[0].mxu0
      %7399 = vmatprep.mubr.f32.mxu0 0.0
      %7400 = vmatmul.mubr.f32.gmra.mrb[0].mxu0 %v7200
      %v7401 = vpop.f32.mrb[0].mxu0
      %v7402 = vadd.f32 0.0, %v7401
      %v7403 = vpop.f32.mrb[0].mxu0
      %7404 = vmatprep.mubr.f32.mxu0 0.0
      %7405 = vmatmul.mubr.f32.gmra.mrb[0].mxu0 %v7202
      %v7406 = vpop.f32.mrb[0].mxu0
      %v7407 = vadd.f32 0.0, %v7406
      %v7408 = vpop.f32.mrb[0].mxu0
      %7409 = vmatprep.mubr.f32.mxu0 0.0
      %7410 = vmatmul.mubr.f32.gmra.mrb[0].mxu0 %v7204
      %v7411 = vpop.f32.mrb[0].mxu0
      %v7412 = vadd.f32 0.0, %v7411
      %v7413 = vpop.f32.mrb[0].mxu0
      %7414 = vmatprep.mubr.f32.mxu0 0.0
      %7415 = vmatmul.mubr.f32.gmra.mrb[0].mxu0 %v7206
      %v7416 = vpop.f32.mrb[0].mxu0
      %v7417 = vadd.f32 0.0, %v7416
      %v7418 = vpop.f32.mrb[0].mxu0
      %7419 = vmatprep.mubr.f32.mxu0 0.0
      %7420 = vmatmul.mubr.f32.gmra.mrb[0].mxu0 %v7208
      %v7421 = vpop.f32.mrb[0].mxu0
      %v7422 = vadd.f32 0.0, %v7421
      %v7423 = vpop.f32.mrb[0].mxu0
      %7424 = vmatprep.mubr.f32.mxu0 0.0
      %7425 = vmatmul.mubr.f32.gmra.mrb[0].mxu0 %v7210
      %v7426 = vpop.f32.mrb[0].mxu0
      %v7427 = vadd.f32 0.0, %v7426
      %v7428 = vpop.f32.mrb[0].mxu0
      %7429 = vmatprep.mubr.f32.mxu0 0.0
      %7430 = vmatmul.mubr.f32.gmra.mrb[0].mxu0 %v7212
      %v7431 = vpop.f32.mrb[0].mxu0
      %v7432 = vadd.f32 0.0, %v7431
      %v7433 = vpop.f32.mrb[0].mxu0
      %7434 = vmatprep.mubr.f32.mxu0 0.0
      %7435 = vmatmul.mubr.f32.gmra.mrb[0].mxu0 %v7214
      %v7436 = vpop.f32.mrb[0].mxu0
      %v7437 = vadd.f32 0.0, %v7436
      %v7438 = vpop.f32.mrb[0].mxu0
      %7439 = vmatprep.mubr.f32.mxu0 0.0
      %7440 = vmatmul.mubr.f32.gmra.mrb[0].mxu0 %v7216
      %v7441 = vpop.f32.mrb[0].mxu0
      %v7442 = vadd.f32 0.0, %v7441
      %v7443 = vpop.f32.mrb[0].mxu0
      %7444 = vmatprep.mubr.f32.mxu0 0.0
      %7445 = vmatmul.mubr.f32.gmra.mrb[0].mxu0 %v7218
      %v7446 = vpop.f32.mrb[0].mxu0
      %v7447 = vadd.f32 0.0, %v7446
      %v7448 = vpop.f32.mrb[0].mxu0
      %7449 = vmatprep.mubr.f32.mxu0 0.0
      %7450 = vmatmul.mubr.f32.gmra.mrb[0].mxu0 %v7220
      %v7451 = vpop.f32.mrb[0].mxu0
      %v7452 = vadd.f32 0.0, %v7451
      %v7453 = vpop.f32.mrb[0].mxu0
      %7454 = vmatprep.mubr.f32.mxu0 0.0
      %7455 = vmatmul.mubr.f32.gmra.mrb[0].mxu0 %v7222
      %v7456 = vpop.f32.mrb[0].mxu0
      %v7457 = vadd.f32 0.0, %v7456
      %v7458 = vpop.f32.mrb[0].mxu0
      %7459 = vmatprep.mubr.f32.mxu0 0.0
      %7460 = vmatmul.mubr.f32.gmra.mrb[0].mxu0 %v7224
      %v7461 = vpop.f32.mrb[0].mxu0
      %v7462 = vadd.f32 0.0, %v7461
      %v7463 = vpop.f32.mrb[0].mxu0
      %7464 = vmatprep.mubr.f32.mxu0 0.0
      %7465 = vmatmul.mubr.f32.gmra.mrb[0].mxu0 %v7226
      %v7466 = vpop.f32.mrb[0].mxu0
      %v7467 = vadd.f32 0.0, %v7466
      %v7468 = vpop.f32.mrb[0].mxu0
      %7469 = vmatprep.mubr.f32.mxu0 0.0
      %7470 = vmatmul.mubr.f32.gmra.mrb[0].mxu0 %v7228
      %v7471 = vpop.f32.mrb[0].mxu0
      %v7472 = vadd.f32 0.0, %v7471
      %v7473 = vpop.f32.mrb[0].mxu0
      %7474 = vdwg.mxu0
      %v7475 = vadd.f32 %v6975, %v7297
      %v7476 = vadd.f32 %v6976, %v7302
      %v7477 = vadd.f32 %v6977, %v7307
      %v7478 = vadd.f32 %v6978, %v7312
      %v7479 = vadd.f32 %v6979, %v7317
      %v7480 = vadd.f32 %v6980, %v7322
      %v7481 = vadd.f32 %v6981, %v7327
      %v7482 = vadd.f32 %v6982, %v7332
      %v7483 = vadd.f32 %v6983, %v7337
      %v7484 = vadd.f32 %v6984, %v7342
      %v7485 = vadd.f32 %v6985, %v7347
      %v7486 = vadd.f32 %v6986, %v7352
      %v7487 = vadd.f32 %v6987, %v7357
      %v7488 = vadd.f32 %v6988, %v7362
      %v7489 = vadd.f32 %v6989, %v7367
      %v7490 = vadd.f32 %v6990, %v7372
      %v7491 = vadd.f32 %v6991, %v7377
      %v7492 = vadd.f32 %v6992, %v7382
      %v7493 = vadd.f32 %v6993, %v7387
      %v7494 = vadd.f32 %v6994, %v7392
      %v7495 = vadd.f32 %v6995, %v7397
      %v7496 = vadd.f32 %v6996, %v7402
      %v7497 = vadd.f32 %v6997, %v7407
      %v7498 = vadd.f32 %v6998, %v7412
      %v7499 = vadd.f32 %v6999, %v7417
      %v7500 = vadd.f32 %v7000, %v7422
      %v7501 = vadd.f32 %v7001, %v7427
      %v7502 = vadd.f32 %v7002, %v7432
      %v7503 = vadd.f32 %v7003, %v7437
      %v7504 = vadd.f32 %v7004, %v7442
      %v7505 = vadd.f32 %v7005, %v7447
      %v7506 = vadd.f32 %v7006, %v7452
      %v7507 = vadd.f32 %v7007, %v7457
      %v7508 = vadd.f32 %v7008, %v7462
      %v7509 = vadd.f32 %v7009, %v7467
      %v7510 = vadd.f32 %v7010, %v7472
      %v7511 = vld [vmem:[%s219 + $0x25] sm:$0xff]
      %v7512 = vld [vmem:[%s219 + $0x2d] sm:$0xff]
      %v7513 = vld [vmem:[%s219 + $0x35] sm:$0xff]
      %v7514 = vld [vmem:[%s219 + $0x3d] sm:$0xff]
      %v7515 = vld [vmem:[%s219 + $0x45] sm:$0xff]
      %v7516 = vld [vmem:[%s219 + $0x4d] sm:$0xff]
      %v7517 = vld [vmem:[%s219 + $0x55] sm:$0xff]
      %v7518 = vld [vmem:[%s219 + $0x5d] sm:$0xff]
      %v7519 = vld [vmem:[%s219 + $0x65] sm:$0xff]
      %v7520 = vld [vmem:[%s219 + $0x6d] sm:$0xff]
      %v7521 = vld [vmem:[%s219 + $0x75] sm:$0xff]
      %v7522 = vld [vmem:[%s219 + $0x7d] sm:$0xff]
      %v7523 = vld [vmem:[%s219 + $0x85] sm:$0xff]
      %v7524 = vld [vmem:[%s219 + $0x8d] sm:$0xff]
      %v7525 = vld [vmem:[%s219 + $0x95] sm:$0xff]
      %v7526 = vld [vmem:[%s219 + $0x9d] sm:$0xff]
      %v7527 = vld [vmem:[%s219 + $0xa5] sm:$0xff]
      %v7528 = vld [vmem:[%s219 + $0xad] sm:$0xff]
      %v7529 = vld [vmem:[%s219 + $0xb5] sm:$0xff]
      %v7530 = vld [vmem:[%s219 + $0xbd] sm:$0xff]
      %v7531 = vld [vmem:[%s219 + $0xc5] sm:$0xff]
      %v7532 = vld [vmem:[%s219 + $0xcd] sm:$0xff]
      %v7533 = vld [vmem:[%s219 + $0xd5] sm:$0xff]
      %v7534 = vld [vmem:[%s219 + $0xdd] sm:$0xff]
      %v7535 = vld [vmem:[%s219 + $0xe5] sm:$0xff]
      %v7536 = vld [vmem:[%s219 + $0xed] sm:$0xff]
      %v7537 = vld [vmem:[%s219 + $0xf5] sm:$0xff]
      %v7538 = vld [vmem:[%s219 + $0xfd] sm:$0xff]
      %v7539 = vld [vmem:[%s219 + $0x105] sm:$0xff]
      %v7540 = vld [vmem:[%s219 + $0x10d] sm:$0xff]
      %v7541 = vld [vmem:[%s219 + $0x115] sm:$0xff]
      %v7542 = vld [vmem:[%s219 + $0x11d] sm:$0xff]
      %v7543 = vld [vmem:[%s219 + $0x125] sm:$0xff]
      %v7544 = vld [vmem:[%s219 + $0x12d] sm:$0xff]
      %v7545 = vld [vmem:[%s219 + $0x135] sm:$0xff]
      %v7546 = vld [vmem:[%s219 + $0x13d] sm:$0xff]
      %s7547 = scalar_lea.vmem %s3, 112
      %v7548 = vld [vmem:[%s7547] sm:$0xff]
      %v7549 = vld [vmem:[%s7547 + $0x8] sm:$0xff]
      %7586 = vrot.lane.b32.xlu0 %v7511, 112
      %v7587 = vpop.permute.xlu0 %7586
      %7588 = vrot.lane.b32.xlu0 %v7512, 112
      %v7589 = vpop.permute.xlu0 %7588
      %7590 = vrot.lane.b32.xlu0 %v7513, 112
      %v7591 = vpop.permute.xlu0 %7590
      %7592 = vrot.lane.b32.xlu0 %v7514, 112
      %v7593 = vpop.permute.xlu0 %7592
      %7594 = vrot.lane.b32.xlu0 %v7515, 112
      %v7595 = vpop.permute.xlu0 %7594
      %7596 = vrot.lane.b32.xlu0 %v7516, 112
      %v7597 = vpop.permute.xlu0 %7596
      %7598 = vrot.lane.b32.xlu0 %v7517, 112
      %v7599 = vpop.permute.xlu0 %7598
      %7600 = vrot.lane.b32.xlu0 %v7518, 112
      %v7601 = vpop.permute.xlu0 %7600
      %7602 = vrot.lane.b32.xlu0 %v7519, 112
      %v7603 = vpop.permute.xlu0 %7602
      %7604 = vrot.lane.b32.xlu0 %v7520, 112
      %v7605 = vpop.permute.xlu0 %7604
      %7606 = vrot.lane.b32.xlu0 %v7521, 112
      %v7607 = vpop.permute.xlu0 %7606
      %7608 = vrot.lane.b32.xlu0 %v7522, 112
      %v7609 = vpop.permute.xlu0 %7608
      %7610 = vrot.lane.b32.xlu0 %v7523, 112
      %v7611 = vpop.permute.xlu0 %7610
      %7612 = vrot.lane.b32.xlu0 %v7524, 112
      %v7613 = vpop.permute.xlu0 %7612
      %7614 = vrot.lane.b32.xlu0 %v7525, 112
      %v7615 = vpop.permute.xlu0 %7614
      %7616 = vrot.lane.b32.xlu0 %v7526, 112
      %v7617 = vpop.permute.xlu0 %7616
      %7618 = vrot.lane.b32.xlu0 %v7527, 112
      %v7619 = vpop.permute.xlu0 %7618
      %7620 = vrot.lane.b32.xlu0 %v7528, 112
      %v7621 = vpop.permute.xlu0 %7620
      %7622 = vrot.lane.b32.xlu0 %v7529, 112
      %v7623 = vpop.permute.xlu0 %7622
      %7624 = vrot.lane.b32.xlu0 %v7530, 112
      %v7625 = vpop.permute.xlu0 %7624
      %7626 = vrot.lane.b32.xlu0 %v7531, 112
      %v7627 = vpop.permute.xlu0 %7626
      %7628 = vrot.lane.b32.xlu0 %v7532, 112
      %v7629 = vpop.permute.xlu0 %7628
      %7630 = vrot.lane.b32.xlu0 %v7533, 112
      %v7631 = vpop.permute.xlu0 %7630
      %7632 = vrot.lane.b32.xlu0 %v7534, 112
      %v7633 = vpop.permute.xlu0 %7632
      %7634 = vrot.lane.b32.xlu0 %v7535, 112
      %v7635 = vpop.permute.xlu0 %7634
      %7636 = vrot.lane.b32.xlu0 %v7536, 112
      %v7637 = vpop.permute.xlu0 %7636
      %7638 = vrot.lane.b32.xlu0 %v7537, 112
      %v7639 = vpop.permute.xlu0 %7638
      %7640 = vrot.lane.b32.xlu0 %v7538, 112
      %v7641 = vpop.permute.xlu0 %7640
      %7642 = vrot.lane.b32.xlu0 %v7539, 112
      %v7643 = vpop.permute.xlu0 %7642
      %7644 = vrot.lane.b32.xlu0 %v7540, 112
      %v7645 = vpop.permute.xlu0 %7644
      %7646 = vrot.lane.b32.xlu0 %v7541, 112
      %v7647 = vpop.permute.xlu0 %7646
      %7648 = vrot.lane.b32.xlu0 %v7542, 112
      %v7649 = vpop.permute.xlu0 %7648
      %7650 = vrot.lane.b32.xlu0 %v7543, 112
      %v7651 = vpop.permute.xlu0 %7650
      %7652 = vrot.lane.b32.xlu0 %v7544, 112
      %v7653 = vpop.permute.xlu0 %7652
      %7654 = vrot.lane.b32.xlu0 %v7545, 112
      %v7655 = vpop.permute.xlu0 %7654
      %7656 = vrot.lane.b32.xlu0 %v7546, 112
      %v7657 = vpop.permute.xlu0 %7656
      %v7658 = vsel %vm302, %v7587, 0
      %v7660 = vsel %vm302, %v7589, 0
      %v7662 = vsel %vm302, %v7591, 0
      %v7664 = vsel %vm302, %v7593, 0
      %v7666 = vsel %vm302, %v7595, 0
      %v7668 = vsel %vm302, %v7597, 0
      %v7670 = vsel %vm302, %v7599, 0
      %v7672 = vsel %vm302, %v7601, 0
      %v7674 = vsel %vm302, %v7603, 0
      %v7676 = vsel %vm302, %v7605, 0
      %v7678 = vsel %vm302, %v7607, 0
      %v7680 = vsel %vm302, %v7609, 0
      %v7682 = vsel %vm302, %v7611, 0
      %v7684 = vsel %vm302, %v7613, 0
      %v7686 = vsel %vm302, %v7615, 0
      %v7688 = vsel %vm302, %v7617, 0
      %v7690 = vsel %vm302, %v7619, 0
      %v7692 = vsel %vm302, %v7621, 0
      %v7694 = vsel %vm302, %v7623, 0
      %v7696 = vsel %vm302, %v7625, 0
      %v7698 = vsel %vm302, %v7627, 0
      %v7700 = vsel %vm302, %v7629, 0
      %v7702 = vsel %vm302, %v7631, 0
      %v7704 = vsel %vm302, %v7633, 0
      %v7706 = vsel %vm302, %v7635, 0
      %v7708 = vsel %vm302, %v7637, 0
      %v7710 = vsel %vm302, %v7639, 0
      %v7712 = vsel %vm302, %v7641, 0
      %v7714 = vsel %vm302, %v7643, 0
      %v7716 = vsel %vm302, %v7645, 0
      %v7718 = vsel %vm302, %v7647, 0
      %v7720 = vsel %vm302, %v7649, 0
      %v7722 = vsel %vm302, %v7651, 0
      %v7724 = vsel %vm302, %v7653, 0
      %v7726 = vsel %vm302, %v7655, 0
      %v7728 = vsel %vm302, %v7657, 0
      %7730 = vmatprep.subr.mxu0 0.0
      %7731 = vmatpush1.msra.mxu0 %v7548
      %7732 = vmatprep.subr.mxu0 0.0
      %7733 = vmatpush1.msra.mxu0 %v7549
      %7734 = vmatprep.subr.mxu0 0.0
      %7735 = vmatpush1.msra.mxu0 0.0
      %7736 = vmatprep.subr.mxu0 0.0
      %7737 = vmatpush1.msra.mxu0 0.0
      %7738 = vmatprep.subr.mxu0 0.0
      %7739 = vmatpush1.msra.mxu0 0.0
      %7740 = vmatprep.subr.mxu0 0.0
      %7741 = vmatpush1.msra.mxu0 0.0
      %7742 = vmatprep.subr.mxu0 0.0
      %7743 = vmatpush1.msra.mxu0 0.0
      %7744 = vmatprep.subr.mxu0 0.0
      %7745 = vmatpush1.msra.mxu0 0.0
      %7746 = vmatprep.subr.mxu0 0.0
      %7747 = vmatpush1.msra.mxu0 0.0
      %7748 = vmatprep.subr.mxu0 0.0
      %7749 = vmatpush1.msra.mxu0 0.0
      %7750 = vmatprep.subr.mxu0 0.0
      %7751 = vmatpush1.msra.mxu0 0.0
      %7752 = vmatprep.subr.mxu0 0.0
      %7753 = vmatpush1.msra.mxu0 0.0
      %7754 = vmatprep.subr.mxu0 0.0
      %7755 = vmatpush1.msra.mxu0 0.0
      %7756 = vmatprep.subr.mxu0 0.0
      %7757 = vmatpush1.msra.mxu0 0.0
      %7758 = vmatprep.subr.mxu0 0.0
      %7759 = vmatpush1.msra.mxu0 0.0
      %7760 = vmatprep.subr.mxu0 0.0
      %7761 = vmatpush1.msra.mxu0 0.0
      %7762 = vmatprep.subr.mxu0 0.0
      %7763 = vmatpush1.msra.mxu0 0.0
      %7764 = vmatprep.subr.mxu0 0.0
      %7765 = vmatpush1.msra.mxu0 0.0
      %7766 = vmatprep.subr.mxu0 0.0
      %7767 = vmatpush1.msra.mxu0 0.0
      %7768 = vmatprep.subr.mxu0 0.0
      %7769 = vmatpush1.msra.mxu0 0.0
      %7770 = vmatprep.subr.mxu0 0.0
      %7771 = vmatpush1.msra.mxu0 0.0
      %7772 = vmatprep.subr.mxu0 0.0
      %7773 = vmatpush1.msra.mxu0 0.0
      %7774 = vmatprep.subr.mxu0 0.0
      %7775 = vmatpush1.msra.mxu0 0.0
      %7776 = vmatprep.subr.mxu0 0.0
      %7777 = vmatpush1.msra.mxu0 0.0
      %7778 = vmatprep.subr.mxu0 0.0
      %7779 = vmatpush1.msra.mxu0 0.0
      %7780 = vmatprep.subr.mxu0 0.0
      %7781 = vmatpush1.msra.mxu0 0.0
      %7782 = vmatprep.subr.mxu0 0.0
      %7783 = vmatpush1.msra.mxu0 0.0
      %7784 = vmatprep.subr.mxu0 0.0
      %7785 = vmatpush1.msra.mxu0 0.0
      %7786 = vmatprep.subr.mxu0 0.0
      %7787 = vmatpush1.msra.mxu0 0.0
      %7788 = vmatprep.subr.mxu0 0.0
      %7789 = vmatpush1.msra.mxu0 0.0
      %7790 = vmatprep.subr.mxu0 0.0
      %7791 = vmatpush1.msra.mxu0 0.0
      %7792 = vmatprep.subr.mxu0 0.0
      %7793 = vmatpush1.msra.mxu0 0.0
      %7794 = vmatprep.mubr.f32.mxu0 0.0
      %7795 = vmatmul.mubr.f32.gmra.mrb[0].mxu0 %v7658
      %v7796 = vpop.f32.mrb[0].mxu0
      %v7797 = vadd.f32 0.0, %v7796
      %v7798 = vpop.f32.mrb[0].mxu0
      %7799 = vmatprep.mubr.f32.mxu0 0.0
      %7800 = vmatmul.mubr.f32.gmra.mrb[0].mxu0 %v7660
      %v7801 = vpop.f32.mrb[0].mxu0
      %v7802 = vadd.f32 0.0, %v7801
      %v7803 = vpop.f32.mrb[0].mxu0
      %7804 = vmatprep.mubr.f32.mxu0 0.0
      %7805 = vmatmul.mubr.f32.gmra.mrb[0].mxu0 %v7662
      %v7806 = vpop.f32.mrb[0].mxu0
      %v7807 = vadd.f32 0.0, %v7806
      %v7808 = vpop.f32.mrb[0].mxu0
      %7809 = vmatprep.mubr.f32.mxu0 0.0
      %7810 = vmatmul.mubr.f32.gmra.mrb[0].mxu0 %v7664
      %v7811 = vpop.f32.mrb[0].mxu0
      %v7812 = vadd.f32 0.0, %v7811
      %v7813 = vpop.f32.mrb[0].mxu0
      %7814 = vmatprep.mubr.f32.mxu0 0.0
      %7815 = vmatmul.mubr.f32.gmra.mrb[0].mxu0 %v7666
      %v7816 = vpop.f32.mrb[0].mxu0
      %v7817 = vadd.f32 0.0, %v7816
      %v7818 = vpop.f32.mrb[0].mxu0
      %7819 = vmatprep.mubr.f32.mxu0 0.0
      %7820 = vmatmul.mubr.f32.gmra.mrb[0].mxu0 %v7668
      %v7821 = vpop.f32.mrb[0].mxu0
      %v7822 = vadd.f32 0.0, %v7821
      %v7823 = vpop.f32.mrb[0].mxu0
      %7824 = vmatprep.mubr.f32.mxu0 0.0
      %7825 = vmatmul.mubr.f32.gmra.mrb[0].mxu0 %v7670
      %v7826 = vpop.f32.mrb[0].mxu0
      %v7827 = vadd.f32 0.0, %v7826
      %v7828 = vpop.f32.mrb[0].mxu0
      %7829 = vmatprep.mubr.f32.mxu0 0.0
      %7830 = vmatmul.mubr.f32.gmra.mrb[0].mxu0 %v7672
      %v7831 = vpop.f32.mrb[0].mxu0
      %v7832 = vadd.f32 0.0, %v7831
      %v7833 = vpop.f32.mrb[0].mxu0
      %7834 = vmatprep.mubr.f32.mxu0 0.0
      %7835 = vmatmul.mubr.f32.gmra.mrb[0].mxu0 %v7674
      %v7836 = vpop.f32.mrb[0].mxu0
      %v7837 = vadd.f32 0.0, %v7836
      %v7838 = vpop.f32.mrb[0].mxu0
      %7839 = vmatprep.mubr.f32.mxu0 0.0
      %7840 = vmatmul.mubr.f32.gmra.mrb[0].mxu0 %v7676
      %v7841 = vpop.f32.mrb[0].mxu0
      %v7842 = vadd.f32 0.0, %v7841
      %v7843 = vpop.f32.mrb[0].mxu0
      %7844 = vmatprep.mubr.f32.mxu0 0.0
      %7845 = vmatmul.mubr.f32.gmra.mrb[0].mxu0 %v7678
      %v7846 = vpop.f32.mrb[0].mxu0
      %v7847 = vadd.f32 0.0, %v7846
      %v7848 = vpop.f32.mrb[0].mxu0
      %7849 = vmatprep.mubr.f32.mxu0 0.0
      %7850 = vmatmul.mubr.f32.gmra.mrb[0].mxu0 %v7680
      %v7851 = vpop.f32.mrb[0].mxu0
      %v7852 = vadd.f32 0.0, %v7851
      %v7853 = vpop.f32.mrb[0].mxu0
      %7854 = vmatprep.mubr.f32.mxu0 0.0
      %7855 = vmatmul.mubr.f32.gmra.mrb[0].mxu0 %v7682
      %v7856 = vpop.f32.mrb[0].mxu0
      %v7857 = vadd.f32 0.0, %v7856
      %v7858 = vpop.f32.mrb[0].mxu0
      %7859 = vmatprep.mubr.f32.mxu0 0.0
      %7860 = vmatmul.mubr.f32.gmra.mrb[0].mxu0 %v7684
      %v7861 = vpop.f32.mrb[0].mxu0
      %v7862 = vadd.f32 0.0, %v7861
      %v7863 = vpop.f32.mrb[0].mxu0
      %7864 = vmatprep.mubr.f32.mxu0 0.0
      %7865 = vmatmul.mubr.f32.gmra.mrb[0].mxu0 %v7686
      %v7866 = vpop.f32.mrb[0].mxu0
      %v7867 = vadd.f32 0.0, %v7866
      %v7868 = vpop.f32.mrb[0].mxu0
      %7869 = vmatprep.mubr.f32.mxu0 0.0
      %7870 = vmatmul.mubr.f32.gmra.mrb[0].mxu0 %v7688
      %v7871 = vpop.f32.mrb[0].mxu0
      %v7872 = vadd.f32 0.0, %v7871
      %v7873 = vpop.f32.mrb[0].mxu0
      %7874 = vmatprep.mubr.f32.mxu0 0.0
      %7875 = vmatmul.mubr.f32.gmra.mrb[0].mxu0 %v7690
      %v7876 = vpop.f32.mrb[0].mxu0
      %v7877 = vadd.f32 0.0, %v7876
      %v7878 = vpop.f32.mrb[0].mxu0
      %7879 = vmatprep.mubr.f32.mxu0 0.0
      %7880 = vmatmul.mubr.f32.gmra.mrb[0].mxu0 %v7692
      %v7881 = vpop.f32.mrb[0].mxu0
      %v7882 = vadd.f32 0.0, %v7881
      %v7883 = vpop.f32.mrb[0].mxu0
      %7884 = vmatprep.mubr.f32.mxu0 0.0
      %7885 = vmatmul.mubr.f32.gmra.mrb[0].mxu0 %v7694
      %v7886 = vpop.f32.mrb[0].mxu0
      %v7887 = vadd.f32 0.0, %v7886
      %v7888 = vpop.f32.mrb[0].mxu0
      %7889 = vmatprep.mubr.f32.mxu0 0.0
      %7890 = vmatmul.mubr.f32.gmra.mrb[0].mxu0 %v7696
      %v7891 = vpop.f32.mrb[0].mxu0
      %v7892 = vadd.f32 0.0, %v7891
      %v7893 = vpop.f32.mrb[0].mxu0
      %7894 = vmatprep.mubr.f32.mxu0 0.0
      %7895 = vmatmul.mubr.f32.gmra.mrb[0].mxu0 %v7698
      %v7896 = vpop.f32.mrb[0].mxu0
      %v7897 = vadd.f32 0.0, %v7896
      %v7898 = vpop.f32.mrb[0].mxu0
      %7899 = vmatprep.mubr.f32.mxu0 0.0
      %7900 = vmatmul.mubr.f32.gmra.mrb[0].mxu0 %v7700
      %v7901 = vpop.f32.mrb[0].mxu0
      %v7902 = vadd.f32 0.0, %v7901
      %v7903 = vpop.f32.mrb[0].mxu0
      %7904 = vmatprep.mubr.f32.mxu0 0.0
      %7905 = vmatmul.mubr.f32.gmra.mrb[0].mxu0 %v7702
      %v7906 = vpop.f32.mrb[0].mxu0
      %v7907 = vadd.f32 0.0, %v7906
      %v7908 = vpop.f32.mrb[0].mxu0
      %7909 = vmatprep.mubr.f32.mxu0 0.0
      %7910 = vmatmul.mubr.f32.gmra.mrb[0].mxu0 %v7704
      %v7911 = vpop.f32.mrb[0].mxu0
      %v7912 = vadd.f32 0.0, %v7911
      %v7913 = vpop.f32.mrb[0].mxu0
      %7914 = vmatprep.mubr.f32.mxu0 0.0
      %7915 = vmatmul.mubr.f32.gmra.mrb[0].mxu0 %v7706
      %v7916 = vpop.f32.mrb[0].mxu0
      %v7917 = vadd.f32 0.0, %v7916
      %v7918 = vpop.f32.mrb[0].mxu0
      %7919 = vmatprep.mubr.f32.mxu0 0.0
      %7920 = vmatmul.mubr.f32.gmra.mrb[0].mxu0 %v7708
      %v7921 = vpop.f32.mrb[0].mxu0
      %v7922 = vadd.f32 0.0, %v7921
      %v7923 = vpop.f32.mrb[0].mxu0
      %7924 = vmatprep.mubr.f32.mxu0 0.0
      %7925 = vmatmul.mubr.f32.gmra.mrb[0].mxu0 %v7710
      %v7926 = vpop.f32.mrb[0].mxu0
      %v7927 = vadd.f32 0.0, %v7926
      %v7928 = vpop.f32.mrb[0].mxu0
      %7929 = vmatprep.mubr.f32.mxu0 0.0
      %7930 = vmatmul.mubr.f32.gmra.mrb[0].mxu0 %v7712
      %v7931 = vpop.f32.mrb[0].mxu0
      %v7932 = vadd.f32 0.0, %v7931
      %v7933 = vpop.f32.mrb[0].mxu0
      %7934 = vmatprep.mubr.f32.mxu0 0.0
      %7935 = vmatmul.mubr.f32.gmra.mrb[0].mxu0 %v7714
      %v7936 = vpop.f32.mrb[0].mxu0
      %v7937 = vadd.f32 0.0, %v7936
      %v7938 = vpop.f32.mrb[0].mxu0
      %7939 = vmatprep.mubr.f32.mxu0 0.0
      %7940 = vmatmul.mubr.f32.gmra.mrb[0].mxu0 %v7716
      %v7941 = vpop.f32.mrb[0].mxu0
      %v7942 = vadd.f32 0.0, %v7941
      %v7943 = vpop.f32.mrb[0].mxu0
      %7944 = vmatprep.mubr.f32.mxu0 0.0
      %7945 = vmatmul.mubr.f32.gmra.mrb[0].mxu0 %v7718
      %v7946 = vpop.f32.mrb[0].mxu0
      %v7947 = vadd.f32 0.0, %v7946
      %v7948 = vpop.f32.mrb[0].mxu0
      %7949 = vmatprep.mubr.f32.mxu0 0.0
      %7950 = vmatmul.mubr.f32.gmra.mrb[0].mxu0 %v7720
      %v7951 = vpop.f32.mrb[0].mxu0
      %v7952 = vadd.f32 0.0, %v7951
      %v7953 = vpop.f32.mrb[0].mxu0
      %7954 = vmatprep.mubr.f32.mxu0 0.0
      %7955 = vmatmul.mubr.f32.gmra.mrb[0].mxu0 %v7722
      %v7956 = vpop.f32.mrb[0].mxu0
      %v7957 = vadd.f32 0.0, %v7956
      %v7958 = vpop.f32.mrb[0].mxu0
      %7959 = vmatprep.mubr.f32.mxu0 0.0
      %7960 = vmatmul.mubr.f32.gmra.mrb[0].mxu0 %v7724
      %v7961 = vpop.f32.mrb[0].mxu0
      %v7962 = vadd.f32 0.0, %v7961
      %v7963 = vpop.f32.mrb[0].mxu0
      %7964 = vmatprep.mubr.f32.mxu0 0.0
      %7965 = vmatmul.mubr.f32.gmra.mrb[0].mxu0 %v7726
      %v7966 = vpop.f32.mrb[0].mxu0
      %v7967 = vadd.f32 0.0, %v7966
      %v7968 = vpop.f32.mrb[0].mxu0
      %7969 = vmatprep.mubr.f32.mxu0 0.0
      %7970 = vmatmul.mubr.f32.gmra.mrb[0].mxu0 %v7728
      %v7971 = vpop.f32.mrb[0].mxu0
      %v7972 = vadd.f32 0.0, %v7971
      %v7973 = vpop.f32.mrb[0].mxu0
      %7974 = vdwg.mxu0
      %v7975 = vadd.f32 %v7475, %v7797
      %v7976 = vadd.f32 %v7476, %v7802
      %v7977 = vadd.f32 %v7477, %v7807
      %v7978 = vadd.f32 %v7478, %v7812
      %v7979 = vadd.f32 %v7479, %v7817
      %v7980 = vadd.f32 %v7480, %v7822
      %v7981 = vadd.f32 %v7481, %v7827
      %v7982 = vadd.f32 %v7482, %v7832
      %v7983 = vadd.f32 %v7483, %v7837
      %v7984 = vadd.f32 %v7484, %v7842
      %v7985 = vadd.f32 %v7485, %v7847
      %v7986 = vadd.f32 %v7486, %v7852
      %v7987 = vadd.f32 %v7487, %v7857
      %v7988 = vadd.f32 %v7488, %v7862
      %v7989 = vadd.f32 %v7489, %v7867
      %v7990 = vadd.f32 %v7490, %v7872
      %v7991 = vadd.f32 %v7491, %v7877
      %v7992 = vadd.f32 %v7492, %v7882
      %v7993 = vadd.f32 %v7493, %v7887
      %v7994 = vadd.f32 %v7494, %v7892
      %v7995 = vadd.f32 %v7495, %v7897
      %v7996 = vadd.f32 %v7496, %v7902
      %v7997 = vadd.f32 %v7497, %v7907
      %v7998 = vadd.f32 %v7498, %v7912
      %v7999 = vadd.f32 %v7499, %v7917
      %v8000 = vadd.f32 %v7500, %v7922
      %v8001 = vadd.f32 %v7501, %v7927
      %v8002 = vadd.f32 %v7502, %v7932
      %v8003 = vadd.f32 %v7503, %v7937
      %v8004 = vadd.f32 %v7504, %v7942
      %v8005 = vadd.f32 %v7505, %v7947
      %v8006 = vadd.f32 %v7506, %v7952
      %v8007 = vadd.f32 %v7507, %v7957
      %v8008 = vadd.f32 %v7508, %v7962
      %v8009 = vadd.f32 %v7509, %v7967
      %v8010 = vadd.f32 %v7510, %v7972
      %v8011 = vld [vmem:[%s219 + $0x26] sm:$0xff]
      %v8012 = vld [vmem:[%s219 + $0x2e] sm:$0xff]
      %v8013 = vld [vmem:[%s219 + $0x36] sm:$0xff]
      %v8014 = vld [vmem:[%s219 + $0x3e] sm:$0xff]
      %v8015 = vld [vmem:[%s219 + $0x46] sm:$0xff]
      %v8016 = vld [vmem:[%s219 + $0x4e] sm:$0xff]
      %v8017 = vld [vmem:[%s219 + $0x56] sm:$0xff]
      %v8018 = vld [vmem:[%s219 + $0x5e] sm:$0xff]
      %v8019 = vld [vmem:[%s219 + $0x66] sm:$0xff]
      %v8020 = vld [vmem:[%s219 + $0x6e] sm:$0xff]
      %v8021 = vld [vmem:[%s219 + $0x76] sm:$0xff]
      %v8022 = vld [vmem:[%s219 + $0x7e] sm:$0xff]
      %v8023 = vld [vmem:[%s219 + $0x86] sm:$0xff]
      %v8024 = vld [vmem:[%s219 + $0x8e] sm:$0xff]
      %v8025 = vld [vmem:[%s219 + $0x96] sm:$0xff]
      %v8026 = vld [vmem:[%s219 + $0x9e] sm:$0xff]
      %v8027 = vld [vmem:[%s219 + $0xa6] sm:$0xff]
      %v8028 = vld [vmem:[%s219 + $0xae] sm:$0xff]
      %v8029 = vld [vmem:[%s219 + $0xb6] sm:$0xff]
      %v8030 = vld [vmem:[%s219 + $0xbe] sm:$0xff]
      %v8031 = vld [vmem:[%s219 + $0xc6] sm:$0xff]
      %v8032 = vld [vmem:[%s219 + $0xce] sm:$0xff]
      %v8033 = vld [vmem:[%s219 + $0xd6] sm:$0xff]
      %v8034 = vld [vmem:[%s219 + $0xde] sm:$0xff]
      %v8035 = vld [vmem:[%s219 + $0xe6] sm:$0xff]
      %v8036 = vld [vmem:[%s219 + $0xee] sm:$0xff]
      %v8037 = vld [vmem:[%s219 + $0xf6] sm:$0xff]
      %v8038 = vld [vmem:[%s219 + $0xfe] sm:$0xff]
      %v8039 = vld [vmem:[%s219 + $0x106] sm:$0xff]
      %v8040 = vld [vmem:[%s219 + $0x10e] sm:$0xff]
      %v8041 = vld [vmem:[%s219 + $0x116] sm:$0xff]
      %v8042 = vld [vmem:[%s219 + $0x11e] sm:$0xff]
      %v8043 = vld [vmem:[%s219 + $0x126] sm:$0xff]
      %v8044 = vld [vmem:[%s219 + $0x12e] sm:$0xff]
      %v8045 = vld [vmem:[%s219 + $0x136] sm:$0xff]
      %v8046 = vld [vmem:[%s219 + $0x13e] sm:$0xff]
      %s8047 = scalar_lea.vmem %s3, 128
      %v8048 = vld [vmem:[%s8047] sm:$0xff]
      %v8049 = vld [vmem:[%s8047 + $0x8] sm:$0xff]
      %8086 = vrot.lane.b32.xlu0 %v8011, 112
      %v8087 = vpop.permute.xlu0 %8086
      %8088 = vrot.lane.b32.xlu0 %v8012, 112
      %v8089 = vpop.permute.xlu0 %8088
      %8090 = vrot.lane.b32.xlu0 %v8013, 112
      %v8091 = vpop.permute.xlu0 %8090
      %8092 = vrot.lane.b32.xlu0 %v8014, 112
      %v8093 = vpop.permute.xlu0 %8092
      %8094 = vrot.lane.b32.xlu0 %v8015, 112
      %v8095 = vpop.permute.xlu0 %8094
      %8096 = vrot.lane.b32.xlu0 %v8016, 112
      %v8097 = vpop.permute.xlu0 %8096
      %8098 = vrot.lane.b32.xlu0 %v8017, 112
      %v8099 = vpop.permute.xlu0 %8098
      %8100 = vrot.lane.b32.xlu0 %v8018, 112
      %v8101 = vpop.permute.xlu0 %8100
      %8102 = vrot.lane.b32.xlu0 %v8019, 112
      %v8103 = vpop.permute.xlu0 %8102
      %8104 = vrot.lane.b32.xlu0 %v8020, 112
      %v8105 = vpop.permute.xlu0 %8104
      %8106 = vrot.lane.b32.xlu0 %v8021, 112
      %v8107 = vpop.permute.xlu0 %8106
      %8108 = vrot.lane.b32.xlu0 %v8022, 112
      %v8109 = vpop.permute.xlu0 %8108
      %8110 = vrot.lane.b32.xlu0 %v8023, 112
      %v8111 = vpop.permute.xlu0 %8110
      %8112 = vrot.lane.b32.xlu0 %v8024, 112
      %v8113 = vpop.permute.xlu0 %8112
      %8114 = vrot.lane.b32.xlu0 %v8025, 112
      %v8115 = vpop.permute.xlu0 %8114
      %8116 = vrot.lane.b32.xlu0 %v8026, 112
      %v8117 = vpop.permute.xlu0 %8116
      %8118 = vrot.lane.b32.xlu0 %v8027, 112
      %v8119 = vpop.permute.xlu0 %8118
      %8120 = vrot.lane.b32.xlu0 %v8028, 112
      %v8121 = vpop.permute.xlu0 %8120
      %8122 = vrot.lane.b32.xlu0 %v8029, 112
      %v8123 = vpop.permute.xlu0 %8122
      %8124 = vrot.lane.b32.xlu0 %v8030, 112
      %v8125 = vpop.permute.xlu0 %8124
      %8126 = vrot.lane.b32.xlu0 %v8031, 112
      %v8127 = vpop.permute.xlu0 %8126
      %8128 = vrot.lane.b32.xlu0 %v8032, 112
      %v8129 = vpop.permute.xlu0 %8128
      %8130 = vrot.lane.b32.xlu0 %v8033, 112
      %v8131 = vpop.permute.xlu0 %8130
      %8132 = vrot.lane.b32.xlu0 %v8034, 112
      %v8133 = vpop.permute.xlu0 %8132
      %8134 = vrot.lane.b32.xlu0 %v8035, 112
      %v8135 = vpop.permute.xlu0 %8134
      %8136 = vrot.lane.b32.xlu0 %v8036, 112
      %v8137 = vpop.permute.xlu0 %8136
      %8138 = vrot.lane.b32.xlu0 %v8037, 112
      %v8139 = vpop.permute.xlu0 %8138
      %8140 = vrot.lane.b32.xlu0 %v8038, 112
      %v8141 = vpop.permute.xlu0 %8140
      %8142 = vrot.lane.b32.xlu0 %v8039, 112
      %v8143 = vpop.permute.xlu0 %8142
      %8144 = vrot.lane.b32.xlu0 %v8040, 112
      %v8145 = vpop.permute.xlu0 %8144
      %8146 = vrot.lane.b32.xlu0 %v8041, 112
      %v8147 = vpop.permute.xlu0 %8146
      %8148 = vrot.lane.b32.xlu0 %v8042, 112
      %v8149 = vpop.permute.xlu0 %8148
      %8150 = vrot.lane.b32.xlu0 %v8043, 112
      %v8151 = vpop.permute.xlu0 %8150
      %8152 = vrot.lane.b32.xlu0 %v8044, 112
      %v8153 = vpop.permute.xlu0 %8152
      %8154 = vrot.lane.b32.xlu0 %v8045, 112
      %v8155 = vpop.permute.xlu0 %8154
      %8156 = vrot.lane.b32.xlu0 %v8046, 112
      %v8157 = vpop.permute.xlu0 %8156
      %v8158 = vsel %vm302, %v8087, 0
      %v8160 = vsel %vm302, %v8089, 0
      %v8162 = vsel %vm302, %v8091, 0
      %v8164 = vsel %vm302, %v8093, 0
      %v8166 = vsel %vm302, %v8095, 0
      %v8168 = vsel %vm302, %v8097, 0
      %v8170 = vsel %vm302, %v8099, 0
      %v8172 = vsel %vm302, %v8101, 0
      %v8174 = vsel %vm302, %v8103, 0
      %v8176 = vsel %vm302, %v8105, 0
      %v8178 = vsel %vm302, %v8107, 0
      %v8180 = vsel %vm302, %v8109, 0
      %v8182 = vsel %vm302, %v8111, 0
      %v8184 = vsel %vm302, %v8113, 0
      %v8186 = vsel %vm302, %v8115, 0
      %v8188 = vsel %vm302, %v8117, 0
      %v8190 = vsel %vm302, %v8119, 0
      %v8192 = vsel %vm302, %v8121, 0
      %v8194 = vsel %vm302, %v8123, 0
      %v8196 = vsel %vm302, %v8125, 0
      %v8198 = vsel %vm302, %v8127, 0
      %v8200 = vsel %vm302, %v8129, 0
      %v8202 = vsel %vm302, %v8131, 0
      %v8204 = vsel %vm302, %v8133, 0
      %v8206 = vsel %vm302, %v8135, 0
      %v8208 = vsel %vm302, %v8137, 0
      %v8210 = vsel %vm302, %v8139, 0
      %v8212 = vsel %vm302, %v8141, 0
      %v8214 = vsel %vm302, %v8143, 0
      %v8216 = vsel %vm302, %v8145, 0
      %v8218 = vsel %vm302, %v8147, 0
      %v8220 = vsel %vm302, %v8149, 0
      %v8222 = vsel %vm302, %v8151, 0
      %v8224 = vsel %vm302, %v8153, 0
      %v8226 = vsel %vm302, %v8155, 0
      %v8228 = vsel %vm302, %v8157, 0
      %8230 = vmatprep.subr.mxu0 0.0
      %8231 = vmatpush1.msra.mxu0 %v8048
      %8232 = vmatprep.subr.mxu0 0.0
      %8233 = vmatpush1.msra.mxu0 %v8049
      %8234 = vmatprep.subr.mxu0 0.0
      %8235 = vmatpush1.msra.mxu0 0.0
      %8236 = vmatprep.subr.mxu0 0.0
      %8237 = vmatpush1.msra.mxu0 0.0
      %8238 = vmatprep.subr.mxu0 0.0
      %8239 = vmatpush1.msra.mxu0 0.0
      %8240 = vmatprep.subr.mxu0 0.0
      %8241 = vmatpush1.msra.mxu0 0.0
      %8242 = vmatprep.subr.mxu0 0.0
      %8243 = vmatpush1.msra.mxu0 0.0
      %8244 = vmatprep.subr.mxu0 0.0
      %8245 = vmatpush1.msra.mxu0 0.0
      %8246 = vmatprep.subr.mxu0 0.0
      %8247 = vmatpush1.msra.mxu0 0.0
      %8248 = vmatprep.subr.mxu0 0.0
      %8249 = vmatpush1.msra.mxu0 0.0
      %8250 = vmatprep.subr.mxu0 0.0
      %8251 = vmatpush1.msra.mxu0 0.0
      %8252 = vmatprep.subr.mxu0 0.0
      %8253 = vmatpush1.msra.mxu0 0.0
      %8254 = vmatprep.subr.mxu0 0.0
      %8255 = vmatpush1.msra.mxu0 0.0
      %8256 = vmatprep.subr.mxu0 0.0
      %8257 = vmatpush1.msra.mxu0 0.0
      %8258 = vmatprep.subr.mxu0 0.0
      %8259 = vmatpush1.msra.mxu0 0.0
      %8260 = vmatprep.subr.mxu0 0.0
      %8261 = vmatpush1.msra.mxu0 0.0
      %8262 = vmatprep.subr.mxu0 0.0
      %8263 = vmatpush1.msra.mxu0 0.0
      %8264 = vmatprep.subr.mxu0 0.0
      %8265 = vmatpush1.msra.mxu0 0.0
      %8266 = vmatprep.subr.mxu0 0.0
      %8267 = vmatpush1.msra.mxu0 0.0
      %8268 = vmatprep.subr.mxu0 0.0
      %8269 = vmatpush1.msra.mxu0 0.0
      %8270 = vmatprep.subr.mxu0 0.0
      %8271 = vmatpush1.msra.mxu0 0.0
      %8272 = vmatprep.subr.mxu0 0.0
      %8273 = vmatpush1.msra.mxu0 0.0
      %8274 = vmatprep.subr.mxu0 0.0
      %8275 = vmatpush1.msra.mxu0 0.0
      %8276 = vmatprep.subr.mxu0 0.0
      %8277 = vmatpush1.msra.mxu0 0.0
      %8278 = vmatprep.subr.mxu0 0.0
      %8279 = vmatpush1.msra.mxu0 0.0
      %8280 = vmatprep.subr.mxu0 0.0
      %8281 = vmatpush1.msra.mxu0 0.0
      %8282 = vmatprep.subr.mxu0 0.0
      %8283 = vmatpush1.msra.mxu0 0.0
      %8284 = vmatprep.subr.mxu0 0.0
      %8285 = vmatpush1.msra.mxu0 0.0
      %8286 = vmatprep.subr.mxu0 0.0
      %8287 = vmatpush1.msra.mxu0 0.0
      %8288 = vmatprep.subr.mxu0 0.0
      %8289 = vmatpush1.msra.mxu0 0.0
      %8290 = vmatprep.subr.mxu0 0.0
      %8291 = vmatpush1.msra.mxu0 0.0
      %8292 = vmatprep.subr.mxu0 0.0
      %8293 = vmatpush1.msra.mxu0 0.0
      %8294 = vmatprep.mubr.f32.mxu0 0.0
      %8295 = vmatmul.mubr.f32.gmra.mrb[0].mxu0 %v8158
      %v8296 = vpop.f32.mrb[0].mxu0
      %v8297 = vadd.f32 0.0, %v8296
      %v8298 = vpop.f32.mrb[0].mxu0
      %8299 = vmatprep.mubr.f32.mxu0 0.0
      %8300 = vmatmul.mubr.f32.gmra.mrb[0].mxu0 %v8160
      %v8301 = vpop.f32.mrb[0].mxu0
      %v8302 = vadd.f32 0.0, %v8301
      %v8303 = vpop.f32.mrb[0].mxu0
      %8304 = vmatprep.mubr.f32.mxu0 0.0
      %8305 = vmatmul.mubr.f32.gmra.mrb[0].mxu0 %v8162
      %v8306 = vpop.f32.mrb[0].mxu0
      %v8307 = vadd.f32 0.0, %v8306
      %v8308 = vpop.f32.mrb[0].mxu0
      %8309 = vmatprep.mubr.f32.mxu0 0.0
      %8310 = vmatmul.mubr.f32.gmra.mrb[0].mxu0 %v8164
      %v8311 = vpop.f32.mrb[0].mxu0
      %v8312 = vadd.f32 0.0, %v8311
      %v8313 = vpop.f32.mrb[0].mxu0
      %8314 = vmatprep.mubr.f32.mxu0 0.0
      %8315 = vmatmul.mubr.f32.gmra.mrb[0].mxu0 %v8166
      %v8316 = vpop.f32.mrb[0].mxu0
      %v8317 = vadd.f32 0.0, %v8316
      %v8318 = vpop.f32.mrb[0].mxu0
      %8319 = vmatprep.mubr.f32.mxu0 0.0
      %8320 = vmatmul.mubr.f32.gmra.mrb[0].mxu0 %v8168
      %v8321 = vpop.f32.mrb[0].mxu0
      %v8322 = vadd.f32 0.0, %v8321
      %v8323 = vpop.f32.mrb[0].mxu0
      %8324 = vmatprep.mubr.f32.mxu0 0.0
      %8325 = vmatmul.mubr.f32.gmra.mrb[0].mxu0 %v8170
      %v8326 = vpop.f32.mrb[0].mxu0
      %v8327 = vadd.f32 0.0, %v8326
      %v8328 = vpop.f32.mrb[0].mxu0
      %8329 = vmatprep.mubr.f32.mxu0 0.0
      %8330 = vmatmul.mubr.f32.gmra.mrb[0].mxu0 %v8172
      %v8331 = vpop.f32.mrb[0].mxu0
      %v8332 = vadd.f32 0.0, %v8331
      %v8333 = vpop.f32.mrb[0].mxu0
      %8334 = vmatprep.mubr.f32.mxu0 0.0
      %8335 = vmatmul.mubr.f32.gmra.mrb[0].mxu0 %v8174
      %v8336 = vpop.f32.mrb[0].mxu0
      %v8337 = vadd.f32 0.0, %v8336
      %v8338 = vpop.f32.mrb[0].mxu0
      %8339 = vmatprep.mubr.f32.mxu0 0.0
      %8340 = vmatmul.mubr.f32.gmra.mrb[0].mxu0 %v8176
      %v8341 = vpop.f32.mrb[0].mxu0
      %v8342 = vadd.f32 0.0, %v8341
      %v8343 = vpop.f32.mrb[0].mxu0
      %8344 = vmatprep.mubr.f32.mxu0 0.0
      %8345 = vmatmul.mubr.f32.gmra.mrb[0].mxu0 %v8178
      %v8346 = vpop.f32.mrb[0].mxu0
      %v8347 = vadd.f32 0.0, %v8346
      %v8348 = vpop.f32.mrb[0].mxu0
      %8349 = vmatprep.mubr.f32.mxu0 0.0
      %8350 = vmatmul.mubr.f32.gmra.mrb[0].mxu0 %v8180
      %v8351 = vpop.f32.mrb[0].mxu0
      %v8352 = vadd.f32 0.0, %v8351
      %v8353 = vpop.f32.mrb[0].mxu0
      %8354 = vmatprep.mubr.f32.mxu0 0.0
      %8355 = vmatmul.mubr.f32.gmra.mrb[0].mxu0 %v8182
      %v8356 = vpop.f32.mrb[0].mxu0
      %v8357 = vadd.f32 0.0, %v8356
      %v8358 = vpop.f32.mrb[0].mxu0
      %8359 = vmatprep.mubr.f32.mxu0 0.0
      %8360 = vmatmul.mubr.f32.gmra.mrb[0].mxu0 %v8184
      %v8361 = vpop.f32.mrb[0].mxu0
      %v8362 = vadd.f32 0.0, %v8361
      %v8363 = vpop.f32.mrb[0].mxu0
      %8364 = vmatprep.mubr.f32.mxu0 0.0
      %8365 = vmatmul.mubr.f32.gmra.mrb[0].mxu0 %v8186
      %v8366 = vpop.f32.mrb[0].mxu0
      %v8367 = vadd.f32 0.0, %v8366
      %v8368 = vpop.f32.mrb[0].mxu0
      %8369 = vmatprep.mubr.f32.mxu0 0.0
      %8370 = vmatmul.mubr.f32.gmra.mrb[0].mxu0 %v8188
      %v8371 = vpop.f32.mrb[0].mxu0
      %v8372 = vadd.f32 0.0, %v8371
      %v8373 = vpop.f32.mrb[0].mxu0
      %8374 = vmatprep.mubr.f32.mxu0 0.0
      %8375 = vmatmul.mubr.f32.gmra.mrb[0].mxu0 %v8190
      %v8376 = vpop.f32.mrb[0].mxu0
      %v8377 = vadd.f32 0.0, %v8376
      %v8378 = vpop.f32.mrb[0].mxu0
      %8379 = vmatprep.mubr.f32.mxu0 0.0
      %8380 = vmatmul.mubr.f32.gmra.mrb[0].mxu0 %v8192
      %v8381 = vpop.f32.mrb[0].mxu0
      %v8382 = vadd.f32 0.0, %v8381
      %v8383 = vpop.f32.mrb[0].mxu0
      %8384 = vmatprep.mubr.f32.mxu0 0.0
      %8385 = vmatmul.mubr.f32.gmra.mrb[0].mxu0 %v8194
      %v8386 = vpop.f32.mrb[0].mxu0
      %v8387 = vadd.f32 0.0, %v8386
      %v8388 = vpop.f32.mrb[0].mxu0
      %8389 = vmatprep.mubr.f32.mxu0 0.0
      %8390 = vmatmul.mubr.f32.gmra.mrb[0].mxu0 %v8196
      %v8391 = vpop.f32.mrb[0].mxu0
      %v8392 = vadd.f32 0.0, %v8391
      %v8393 = vpop.f32.mrb[0].mxu0
      %8394 = vmatprep.mubr.f32.mxu0 0.0
      %8395 = vmatmul.mubr.f32.gmra.mrb[0].mxu0 %v8198
      %v8396 = vpop.f32.mrb[0].mxu0
      %v8397 = vadd.f32 0.0, %v8396
      %v8398 = vpop.f32.mrb[0].mxu0
      %8399 = vmatprep.mubr.f32.mxu0 0.0
      %8400 = vmatmul.mubr.f32.gmra.mrb[0].mxu0 %v8200
      %v8401 = vpop.f32.mrb[0].mxu0
      %v8402 = vadd.f32 0.0, %v8401
      %v8403 = vpop.f32.mrb[0].mxu0
      %8404 = vmatprep.mubr.f32.mxu0 0.0
      %8405 = vmatmul.mubr.f32.gmra.mrb[0].mxu0 %v8202
      %v8406 = vpop.f32.mrb[0].mxu0
      %v8407 = vadd.f32 0.0, %v8406
      %v8408 = vpop.f32.mrb[0].mxu0
      %8409 = vmatprep.mubr.f32.mxu0 0.0
      %8410 = vmatmul.mubr.f32.gmra.mrb[0].mxu0 %v8204
      %v8411 = vpop.f32.mrb[0].mxu0
      %v8412 = vadd.f32 0.0, %v8411
      %v8413 = vpop.f32.mrb[0].mxu0
      %8414 = vmatprep.mubr.f32.mxu0 0.0
      %8415 = vmatmul.mubr.f32.gmra.mrb[0].mxu0 %v8206
      %v8416 = vpop.f32.mrb[0].mxu0
      %v8417 = vadd.f32 0.0, %v8416
      %v8418 = vpop.f32.mrb[0].mxu0
      %8419 = vmatprep.mubr.f32.mxu0 0.0
      %8420 = vmatmul.mubr.f32.gmra.mrb[0].mxu0 %v8208
      %v8421 = vpop.f32.mrb[0].mxu0
      %v8422 = vadd.f32 0.0, %v8421
      %v8423 = vpop.f32.mrb[0].mxu0
      %8424 = vmatprep.mubr.f32.mxu0 0.0
      %8425 = vmatmul.mubr.f32.gmra.mrb[0].mxu0 %v8210
      %v8426 = vpop.f32.mrb[0].mxu0
      %v8427 = vadd.f32 0.0, %v8426
      %v8428 = vpop.f32.mrb[0].mxu0
      %8429 = vmatprep.mubr.f32.mxu0 0.0
      %8430 = vmatmul.mubr.f32.gmra.mrb[0].mxu0 %v8212
      %v8431 = vpop.f32.mrb[0].mxu0
      %v8432 = vadd.f32 0.0, %v8431
      %v8433 = vpop.f32.mrb[0].mxu0
      %8434 = vmatprep.mubr.f32.mxu0 0.0
      %8435 = vmatmul.mubr.f32.gmra.mrb[0].mxu0 %v8214
      %v8436 = vpop.f32.mrb[0].mxu0
      %v8437 = vadd.f32 0.0, %v8436
      %v8438 = vpop.f32.mrb[0].mxu0
      %8439 = vmatprep.mubr.f32.mxu0 0.0
      %8440 = vmatmul.mubr.f32.gmra.mrb[0].mxu0 %v8216
      %v8441 = vpop.f32.mrb[0].mxu0
      %v8442 = vadd.f32 0.0, %v8441
      %v8443 = vpop.f32.mrb[0].mxu0
      %8444 = vmatprep.mubr.f32.mxu0 0.0
      %8445 = vmatmul.mubr.f32.gmra.mrb[0].mxu0 %v8218
      %v8446 = vpop.f32.mrb[0].mxu0
      %v8447 = vadd.f32 0.0, %v8446
      %v8448 = vpop.f32.mrb[0].mxu0
      %8449 = vmatprep.mubr.f32.mxu0 0.0
      %8450 = vmatmul.mubr.f32.gmra.mrb[0].mxu0 %v8220
      %v8451 = vpop.f32.mrb[0].mxu0
      %v8452 = vadd.f32 0.0, %v8451
      %v8453 = vpop.f32.mrb[0].mxu0
      %8454 = vmatprep.mubr.f32.mxu0 0.0
      %8455 = vmatmul.mubr.f32.gmra.mrb[0].mxu0 %v8222
      %v8456 = vpop.f32.mrb[0].mxu0
      %v8457 = vadd.f32 0.0, %v8456
      %v8458 = vpop.f32.mrb[0].mxu0
      %8459 = vmatprep.mubr.f32.mxu0 0.0
      %8460 = vmatmul.mubr.f32.gmra.mrb[0].mxu0 %v8224
      %v8461 = vpop.f32.mrb[0].mxu0
      %v8462 = vadd.f32 0.0, %v8461
      %v8463 = vpop.f32.mrb[0].mxu0
      %8464 = vmatprep.mubr.f32.mxu0 0.0
      %8465 = vmatmul.mubr.f32.gmra.mrb[0].mxu0 %v8226
      %v8466 = vpop.f32.mrb[0].mxu0
      %v8467 = vadd.f32 0.0, %v8466
      %v8468 = vpop.f32.mrb[0].mxu0
      %8469 = vmatprep.mubr.f32.mxu0 0.0
      %8470 = vmatmul.mubr.f32.gmra.mrb[0].mxu0 %v8228
      %v8471 = vpop.f32.mrb[0].mxu0
      %v8472 = vadd.f32 0.0, %v8471
      %v8473 = vpop.f32.mrb[0].mxu0
      %8474 = vdwg.mxu0
      %v8475 = vadd.f32 %v7975, %v8297
      %v8476 = vadd.f32 %v7976, %v8302
      %v8477 = vadd.f32 %v7977, %v8307
      %v8478 = vadd.f32 %v7978, %v8312
      %v8479 = vadd.f32 %v7979, %v8317
      %v8480 = vadd.f32 %v7980, %v8322
      %v8481 = vadd.f32 %v7981, %v8327
      %v8482 = vadd.f32 %v7982, %v8332
      %v8483 = vadd.f32 %v7983, %v8337
      %v8484 = vadd.f32 %v7984, %v8342
      %v8485 = vadd.f32 %v7985, %v8347
      %v8486 = vadd.f32 %v7986, %v8352
      %v8487 = vadd.f32 %v7987, %v8357
      %v8488 = vadd.f32 %v7988, %v8362
      %v8489 = vadd.f32 %v7989, %v8367
      %v8490 = vadd.f32 %v7990, %v8372
      %v8491 = vadd.f32 %v7991, %v8377
      %v8492 = vadd.f32 %v7992, %v8382
      %v8493 = vadd.f32 %v7993, %v8387
      %v8494 = vadd.f32 %v7994, %v8392
      %v8495 = vadd.f32 %v7995, %v8397
      %v8496 = vadd.f32 %v7996, %v8402
      %v8497 = vadd.f32 %v7997, %v8407
      %v8498 = vadd.f32 %v7998, %v8412
      %v8499 = vadd.f32 %v7999, %v8417
      %v8500 = vadd.f32 %v8000, %v8422
      %v8501 = vadd.f32 %v8001, %v8427
      %v8502 = vadd.f32 %v8002, %v8432
      %v8503 = vadd.f32 %v8003, %v8437
      %v8504 = vadd.f32 %v8004, %v8442
      %v8505 = vadd.f32 %v8005, %v8447
      %v8506 = vadd.f32 %v8006, %v8452
      %v8507 = vadd.f32 %v8007, %v8457
      %v8508 = vadd.f32 %v8008, %v8462
      %v8509 = vadd.f32 %v8009, %v8467
      %v8510 = vadd.f32 %v8010, %v8472
      %v8511 = vld [vmem:[%s4] sm:$0x1]
      %v8513 = vlaneseq
      %v8514 = vshrl.u32 %v8513, 7
      %v8515 = vsub.s32 0, %v8514
      %v8516 = vrot.slane %v8511, %v8515
      %v8518 = vadd.f32 %v8475, %v8516
      %v8519 = vadd.f32 %v8476, %v8516
      %v8520 = vadd.f32 %v8477, %v8516
      %v8521 = vadd.f32 %v8478, %v8516
      %v8522 = vadd.f32 %v8479, %v8516
      %v8523 = vadd.f32 %v8480, %v8516
      %v8524 = vadd.f32 %v8481, %v8516
      %v8525 = vadd.f32 %v8482, %v8516
      %v8526 = vadd.f32 %v8483, %v8516
      %v8527 = vadd.f32 %v8484, %v8516
      %v8528 = vadd.f32 %v8485, %v8516
      %v8529 = vadd.f32 %v8486, %v8516
      %v8530 = vadd.f32 %v8487, %v8516
      %v8531 = vadd.f32 %v8488, %v8516
      %v8532 = vadd.f32 %v8489, %v8516
      %v8533 = vadd.f32 %v8490, %v8516
      %v8534 = vadd.f32 %v8491, %v8516
      %v8535 = vadd.f32 %v8492, %v8516
      %v8536 = vadd.f32 %v8493, %v8516
      %v8537 = vadd.f32 %v8494, %v8516
      %v8538 = vadd.f32 %v8495, %v8516
      %v8539 = vadd.f32 %v8496, %v8516
      %v8540 = vadd.f32 %v8497, %v8516
      %v8541 = vadd.f32 %v8498, %v8516
      %v8542 = vadd.f32 %v8499, %v8516
      %v8543 = vadd.f32 %v8500, %v8516
      %v8544 = vadd.f32 %v8501, %v8516
      %v8545 = vadd.f32 %v8502, %v8516
      %v8546 = vadd.f32 %v8503, %v8516
      %v8547 = vadd.f32 %v8504, %v8516
      %v8548 = vadd.f32 %v8505, %v8516
      %v8549 = vadd.f32 %v8506, %v8516
      %v8550 = vadd.f32 %v8507, %v8516
      %v8551 = vadd.f32 %v8508, %v8516
      %v8552 = vadd.f32 %v8509, %v8516
      %v8553 = vadd.f32 %v8510, %v8516
      %8590 = vrot.lane.b32.xlu0 %v8518, 16
      %v8591 = vpop.permute.xlu0 %8590
      %8592 = vrot.lane.b32.xlu0 %v8519, 16
      %v8593 = vpop.permute.xlu0 %8592
      %8594 = vrot.lane.b32.xlu0 %v8520, 16
      %v8595 = vpop.permute.xlu0 %8594
      %8596 = vrot.lane.b32.xlu0 %v8521, 16
      %v8597 = vpop.permute.xlu0 %8596
      %8598 = vrot.lane.b32.xlu0 %v8522, 16
      %v8599 = vpop.permute.xlu0 %8598
      %8600 = vrot.lane.b32.xlu0 %v8523, 16
      %v8601 = vpop.permute.xlu0 %8600
      %8602 = vrot.lane.b32.xlu0 %v8524, 16
      %v8603 = vpop.permute.xlu0 %8602
      %8604 = vrot.lane.b32.xlu0 %v8525, 16
      %v8605 = vpop.permute.xlu0 %8604
      %8606 = vrot.lane.b32.xlu0 %v8526, 16
      %v8607 = vpop.permute.xlu0 %8606
      %8608 = vrot.lane.b32.xlu0 %v8527, 16
      %v8609 = vpop.permute.xlu0 %8608
      %8610 = vrot.lane.b32.xlu0 %v8528, 16
      %v8611 = vpop.permute.xlu0 %8610
      %8612 = vrot.lane.b32.xlu0 %v8529, 16
      %v8613 = vpop.permute.xlu0 %8612
      %8614 = vrot.lane.b32.xlu0 %v8530, 16
      %v8615 = vpop.permute.xlu0 %8614
      %8616 = vrot.lane.b32.xlu0 %v8531, 16
      %v8617 = vpop.permute.xlu0 %8616
      %8618 = vrot.lane.b32.xlu0 %v8532, 16
      %v8619 = vpop.permute.xlu0 %8618
      %8620 = vrot.lane.b32.xlu0 %v8533, 16
      %v8621 = vpop.permute.xlu0 %8620
      %8622 = vrot.lane.b32.xlu0 %v8534, 16
      %v8623 = vpop.permute.xlu0 %8622
      %8624 = vrot.lane.b32.xlu0 %v8535, 16
      %v8625 = vpop.permute.xlu0 %8624
      %8626 = vrot.lane.b32.xlu0 %v8536, 16
      %v8627 = vpop.permute.xlu0 %8626
      %8628 = vrot.lane.b32.xlu0 %v8537, 16
      %v8629 = vpop.permute.xlu0 %8628
      %8630 = vrot.lane.b32.xlu0 %v8538, 16
      %v8631 = vpop.permute.xlu0 %8630
      %8632 = vrot.lane.b32.xlu0 %v8539, 16
      %v8633 = vpop.permute.xlu0 %8632
      %8634 = vrot.lane.b32.xlu0 %v8540, 16
      %v8635 = vpop.permute.xlu0 %8634
      %8636 = vrot.lane.b32.xlu0 %v8541, 16
      %v8637 = vpop.permute.xlu0 %8636
      %8638 = vrot.lane.b32.xlu0 %v8542, 16
      %v8639 = vpop.permute.xlu0 %8638
      %8640 = vrot.lane.b32.xlu0 %v8543, 16
      %v8641 = vpop.permute.xlu0 %8640
      %8642 = vrot.lane.b32.xlu0 %v8544, 16
      %v8643 = vpop.permute.xlu0 %8642
      %8644 = vrot.lane.b32.xlu0 %v8545, 16
      %v8645 = vpop.permute.xlu0 %8644
      %8646 = vrot.lane.b32.xlu0 %v8546, 16
      %v8647 = vpop.permute.xlu0 %8646
      %8648 = vrot.lane.b32.xlu0 %v8547, 16
      %v8649 = vpop.permute.xlu0 %8648
      %8650 = vrot.lane.b32.xlu0 %v8548, 16
      %v8651 = vpop.permute.xlu0 %8650
      %8652 = vrot.lane.b32.xlu0 %v8549, 16
      %v8653 = vpop.permute.xlu0 %8652
      %8654 = vrot.lane.b32.xlu0 %v8550, 16
      %v8655 = vpop.permute.xlu0 %8654
      %8656 = vrot.lane.b32.xlu0 %v8551, 16
      %v8657 = vpop.permute.xlu0 %8656
      %8658 = vrot.lane.b32.xlu0 %v8552, 16
      %v8659 = vpop.permute.xlu0 %8658
      %8660 = vrot.lane.b32.xlu0 %v8553, 16
      %v8661 = vpop.permute.xlu0 %8660
      %vm8698 = vcmask 261248
      %8699 = vst.msk [vmem:[%s224] sm:$0xff] %vm8698, %v8591
      %8700 = vst.msk [vmem:[%s224 + $0x8] sm:$0xff] %vm8698, %v8593
      %8701 = vst.msk [vmem:[%s224 + $0x10] sm:$0xff] %vm8698, %v8595
      %8702 = vst.msk [vmem:[%s224 + $0x18] sm:$0xff] %vm8698, %v8597
      %8703 = vst.msk [vmem:[%s224 + $0x20] sm:$0xff] %vm8698, %v8599
      %8704 = vst.msk [vmem:[%s224 + $0x28] sm:$0xff] %vm8698, %v8601
      %8705 = vst.msk [vmem:[%s224 + $0x30] sm:$0xff] %vm8698, %v8603
      %8706 = vst.msk [vmem:[%s224 + $0x38] sm:$0xff] %vm8698, %v8605
      %8707 = vst.msk [vmem:[%s224 + $0x40] sm:$0xff] %vm8698, %v8607
      %8708 = vst.msk [vmem:[%s224 + $0x48] sm:$0xff] %vm8698, %v8609
      %8709 = vst.msk [vmem:[%s224 + $0x50] sm:$0xff] %vm8698, %v8611
      %8710 = vst.msk [vmem:[%s224 + $0x58] sm:$0xff] %vm8698, %v8613
      %8711 = vst.msk [vmem:[%s224 + $0x60] sm:$0xff] %vm8698, %v8615
      %8712 = vst.msk [vmem:[%s224 + $0x68] sm:$0xff] %vm8698, %v8617
      %8713 = vst.msk [vmem:[%s224 + $0x70] sm:$0xff] %vm8698, %v8619
      %8714 = vst.msk [vmem:[%s224 + $0x78] sm:$0xff] %vm8698, %v8621
      %8715 = vst.msk [vmem:[%s224 + $0x80] sm:$0xff] %vm8698, %v8623
      %8716 = vst.msk [vmem:[%s224 + $0x88] sm:$0xff] %vm8698, %v8625
      %8717 = vst.msk [vmem:[%s224 + $0x90] sm:$0xff] %vm8698, %v8627
      %8718 = vst.msk [vmem:[%s224 + $0x98] sm:$0xff] %vm8698, %v8629
      %8719 = vst.msk [vmem:[%s224 + $0xa0] sm:$0xff] %vm8698, %v8631
      %8720 = vst.msk [vmem:[%s224 + $0xa8] sm:$0xff] %vm8698, %v8633
      %8721 = vst.msk [vmem:[%s224 + $0xb0] sm:$0xff] %vm8698, %v8635
      %8722 = vst.msk [vmem:[%s224 + $0xb8] sm:$0xff] %vm8698, %v8637
      %8723 = vst.msk [vmem:[%s224 + $0xc0] sm:$0xff] %vm8698, %v8639
      %8724 = vst.msk [vmem:[%s224 + $0xc8] sm:$0xff] %vm8698, %v8641
      %8725 = vst.msk [vmem:[%s224 + $0xd0] sm:$0xff] %vm8698, %v8643
      %8726 = vst.msk [vmem:[%s224 + $0xd8] sm:$0xff] %vm8698, %v8645
      %8727 = vst.msk [vmem:[%s224 + $0xe0] sm:$0xff] %vm8698, %v8647
      %8728 = vst.msk [vmem:[%s224 + $0xe8] sm:$0xff] %vm8698, %v8649
      %8729 = vst.msk [vmem:[%s224 + $0xf0] sm:$0xff] %vm8698, %v8651
      %8730 = vst.msk [vmem:[%s224 + $0xf8] sm:$0xff] %vm8698, %v8653
      %8731 = vst.msk [vmem:[%s224 + $0x100] sm:$0xff] %vm8698, %v8655
      %8732 = vst.msk [vmem:[%s224 + $0x108] sm:$0xff] %vm8698, %v8657
      %8733 = vst.msk [vmem:[%s224 + $0x110] sm:$0xff] %vm8698, %v8659
      %8734 = vst.msk [vmem:[%s224 + $0x118] sm:$0xff] %vm8698, %v8661
      %p8735 = scmp.lt.s32.totalorder %s16, 1
      %s8736 = scalar_select %p8735, %s16, 1
      %s8737 = smul.addr %s8736, 36
      %s8738 = smul.addr %s8737, 8
      %s8739 = scalar_lea.vmem %s5, %s8738
      // Predicated region
      $region41: #{maconv_forward.3} parent=39 // pred_check
        %p8740 = pneg %p144
      $region42: #{maconv_forward.3} parent=39 // pred_check_branch
        %8742 = sbr.rel (%p8740) target = $region44
      $region43: #{maconv_forward.3} parent=39 // pred_region
        _
      $region44: #{maconv_forward.3} parent=39 // pred_fallthru
        _
    $region40: #{maconv_forward.3} parent=5 // pred_fallthru
      _
    %p8743 = scmp.le.s32.totalorder 2, %s11
    // Predicated region
    $region45: #{maconv_forward.3} parent=5 // pred_check
      %p8744 = pneg %p8743
    $region46: #{maconv_forward.3} parent=5 // pred_check_branch
      %8746 = sbr.rel (%p8744) target = $region48
    $region47: #{maconv_forward.3} parent=5 // pred_region
      %s8747 = ssub.s32 %s11, 2
      // Predicated region
      $region49: #{maconv_forward.3} parent=47 // pred_check
        %p8748 = pneg %p150
      $region50: #{maconv_forward.3} parent=47 // pred_check_branch
        %8750 = sbr.rel (%p8748) target = $region52
      $region51: #{maconv_forward.3} parent=47 // pred_region
        %p8751 = scmp.lt.s32.totalorder %s17, 1
        %s8752 = scalar_select %p8751, %s17, 1
        %s8753 = smul.addr %s8752, 36
        %s8754 = smul.addr %s8753, 8
        %s8755 = scalar_lea.vmem %s5, %s8754
      $region52: #{maconv_forward.3} parent=47 // pred_fallthru
        _
    $region48: #{maconv_forward.3} parent=5 // pred_fallthru
      _
  $region6: #{maconv_forward.3} parent=0 // loop_footer
    %s15 = sadd.s32 1, %s11
  $region7: #{maconv_forward.3} parent=0 // loop_footer_branch
    %10 = sbr.rel target = $region3
  $region8: #{maconv_forward.3} parent=0 // loop_exit
    _

</llo_original>
